<compile_context>
chip_gen: v6e
topology: v6e:2x2x1
jax: 0.10.0
libtpu: 0.0.40
codegen_flags: <defaults>
</compile_context>

<pallas_src>
import functools
import math

import jax
import jax.numpy as jnp
from jax import lax
from jax.experimental import pallas as pl
from jax.experimental.pallas import tpu as pltpu

EPS = 1e-5
K = 3            # ConvTranspose kernel; stride=1, padding=1 -> output spatial == input spatial
CH_ALIGN = 16    # real/imag channel halves padded to this so splits land on sublane tiles
LANE = 128
WSLACK = 128     # halo slack columns on each side of the flattened slab (lane aligned)


def _round_up(x, m):
    return (x + m - 1) // m * m


def _interp_matrix(n_in, n_out):
    """1-D operator of torch Upsample(mode='bilinear', align_corners=True)."""
    if n_in == 1:
        return jnp.ones((n_out, 1), jnp.float32)
    scale = (n_in - 1) / (n_out - 1)
    rows = []
    for o in range(n_out):
        s = o * scale
        i0 = min(int(math.floor(s)), n_in - 2)
        w = s - i0
        row = [0.0] * n_in
        row[i0] += 1.0 - w
        row[i0 + 1] += w
        rows.append(row)
    return jnp.array(rows, jnp.float32)


# ----------------------- fused double (ConvT -> BN -> ReLU) ---------------------- #

def _tconv9(w_ref, src_ref, b_ref, offs, wpad, fp):
    """3x3 'same' complex-block conv as 9 accumulated MXU matmuls over shifted slices."""
    d0 = offs[0]
    acc = b_ref[...] + jnp.dot(w_ref[0], src_ref[:, wpad + d0:wpad + d0 + fp],
                               preferred_element_type=jnp.float32)
    for t in range(1, len(offs)):
        d = offs[t]
        acc = acc + jnp.dot(w_ref[t], src_ref[:, wpad + d:wpad + d + fp],
                            preferred_element_type=jnp.float32)
    return acc


def _bn_relu(yr, yi, mask_rhs, bn_w, bn_b, inv_cnt):
    """ComplexBatchNorm2d (training batch stats, 2x2 whitening) + affine + ComplexReLU.

    yr/yi: (C, F) f32.  mask_rhs: (F, 128) interior mask broadcast over lanes, so the five
    moment reductions run on the (otherwise idle) MXU instead of the XLU/VPU.
    """
    def msum(a):
        return jnp.dot(a, mask_rhs, preferred_element_type=jnp.float32)[:, :1]   # (C, 1)

    mean_r = msum(yr) * inv_cnt
    mean_i = msum(yi) * inv_cnt
    vrr = msum(yr * yr) * inv_cnt - mean_r * mean_r + EPS
    vii = msum(yi * yi) * inv_cnt - mean_i * mean_i + EPS
    vri = msum(yr * yi) * inv_cnt - mean_r * mean_i
    det = jnp.maximum(vrr * vii - vri * vri, 1e-12)       # guard raw-moment rounding
    s = jnp.sqrt(det)
    inv_st = lax.rsqrt(det * (vrr + vii + 2.0 * s))       # 1/(sqrt(det)*sqrt(trace+2s)) on the EUP
    rrr = (vii + s) * inv_st
    rii = (vrr + s) * inv_st
    rri = -vri * inv_st
    cr = yr - mean_r
    ci = yi - mean_i
    wrr, wii, wri = bn_w[:, 0:1], bn_w[:, 1:2], bn_w[:, 2:3]
    br, bi = bn_b[:, 0:1], bn_b[:, 1:2]
    zr = rrr * cr + rri * ci
    zi = rri * cr + rii * ci
    ar = wrr * zr + wri * zi + br
    ai = wri * zr + wii * zi + bi
    return jnp.maximum(ar, 0.0), jnp.maximum(ai, 0.0)      # ComplexReLU: relu(re), relu(im)


def _double_tconv_kernel(xbuf_ref, mask_row_ref, mask_rhs_ref,
                         w1_ref, b1_ref, bn1w_ref, bn1b_ref,
                         w2_ref, b2_ref, bn2w_ref, bn2b_ref,
                         out_ref, buf2_ref,
                         *, inv_cnt, wp, wpad):
    fp = mask_row_ref.shape[1]                  # lane-padded N*Hp*Wp
    cmid_p = w1_ref.shape[1] // 2
    cout_p = w2_ref.shape[1] // 2
    offs = [(dy - 1) * wp + (dx - 1) for dy in range(K) for dx in range(K)]
    mask = mask_row_ref[...]                    # (1, fp) interior mask
    mask_rhs = mask_rhs_ref[...]                # (fp, 128) mask broadcast over lanes

    # ----- layer 1: ComplexConvTranspose2d(+bias) -> ComplexBN -> ComplexReLU -----
    y1 = _tconv9(w1_ref, xbuf_ref, b1_ref, offs, wpad, fp)           # (2*cmid_p, fp) f32
    a1r, a1i = _bn_relu(y1[:cmid_p], y1[cmid_p:], mask_rhs,
                        bn1w_ref[...], bn1b_ref[...], inv_cnt)

    # ----- stage a1 into a halo-padded bf16 slab (only the slack columns are memset) -----
    buf2_ref[:, :wpad] = jnp.zeros((2 * cmid_p, wpad), buf2_ref.dtype)
    buf2_ref[:, wpad + fp:] = jnp.zeros(
        (2 * cmid_p, buf2_ref.shape[1] - wpad - fp), buf2_ref.dtype)
    buf2_ref[:cmid_p, wpad:wpad + fp] = (a1r * mask).astype(buf2_ref.dtype)
    buf2_ref[cmid_p:, wpad:wpad + fp] = (a1i * mask).astype(buf2_ref.dtype)

    # ----- layer 2: same structure -----
    y2 = _tconv9(w2_ref, buf2_ref, b2_ref, offs, wpad, fp)           # (2*cout_p, fp) f32
    a2r, a2i = _bn_relu(y2[:cout_p], y2[cout_p:], mask_rhs,
                        bn2w_ref[...], bn2b_ref[...], inv_cnt)
    out_ref[:cout_p, :] = a2r
    out_ref[cout_p:, :] = a2i


# --------------------------------- wrapper ------------------------------------ #

def complex_up_forward(x1, x2, params):
    """Complex_Up (bilinear=True): x1,x2 complex64 (N,C,H,W) -> complex64 (N, out_ch, H2, W2)."""
    N, C1, Hin, Win = x1.shape
    _, C2, H, W = x2.shape
    Hup, Wup = 2 * Hin, 2 * Win
    cin = C1 + C2
    cmid_p = params["bn1w"].shape[0]
    cout_p = params["bn2w"].shape[0]
    cout = params["out_ch"]

    # ---- ComplexUpsample(scale=2, bilinear, align_corners=True) + F.pad + cat([x2, x1]) ----
    # The upsample is a fixed separable linear map -> one einsum fused into the layout prep
    # (all planes batched together: no per-plane grid, no masked 16-lane stores).
    x1ri = jnp.stack([jnp.real(x1), jnp.imag(x1)]).astype(jnp.float32)   # (2,N,C1,Hin,Win)
    x2ri = jnp.stack([jnp.real(x2), jnp.imag(x2)]).astype(jnp.float32)   # (2,N,C2,H,W)
    ah = _interp_matrix(Hin, Hup)                                        # (Hup, Hin)
    aw = _interp_matrix(Win, Wup)                                        # (Wup, Win)
    up = jnp.einsum('yh,xw,rnchw->rncyx', ah, aw, x1ri)                  # (2,N,C1,Hup,Wup)
    dY, dX = H - Hup, W - Wup
    up = jnp.pad(up, ((0, 0), (0, 0), (0, 0),
                      (dY // 2, dY - dY // 2), (dX // 2, dX - dX // 2)))
    x = jnp.concatenate([x2ri, up], axis=2)                              # (2,N,Cin,H,W)

    # ---- channel-major, conv halo, flatten, lane-pad, bf16: one fused prep chain ----
    Hp, Wp = H + 2, W + 2
    Fn = N * Hp * Wp
    Fp = _round_up(Fn, LANE)
    width = WSLACK + Fp + WSLACK
    x = jnp.transpose(x, (0, 2, 1, 3, 4))                                # (2,Cin,N,H,W)
    x = jnp.pad(x, ((0, 0), (0, 0), (0, 0), (1, 1), (1, 1)))             # zero conv halo
    xbuf = jnp.pad(x.reshape(2 * cin, Fn),
                   ((0, 0), (WSLACK, width - WSLACK - Fn))).astype(jnp.bfloat16)

    mask = jnp.pad(jnp.ones((N, H, W), jnp.float32),
                   ((0, 0), (1, 1), (1, 1))).reshape(Fn)
    mask = jnp.pad(mask, (0, Fp - Fn))
    mask_row = mask[None, :]                                             # (1, Fp)
    mask_rhs = jnp.broadcast_to(mask[:, None], (Fp, LANE))               # (Fp, 128) for MXU sums

    kernel = functools.partial(_double_tconv_kernel,
                               inv_cnt=1.0 / float(N * H * W), wp=Wp, wpad=WSLACK)
    vmem = pl.BlockSpec(memory_space=pltpu.MemorySpace.VMEM)
    out = pl.pallas_call(
        kernel,
        out_shape=jax.ShapeDtypeStruct((2 * cout_p, Fp), jnp.float32),
        in_specs=[vmem] * 11,
        out_specs=vmem,
        scratch_shapes=[pltpu.VMEM((2 * cmid_p, width), jnp.bfloat16)],   # layer-2 halo slab
        compiler_params=pltpu.CompilerParams(vmem_limit_bytes=64 * 1024 * 1024),
    )(xbuf, mask_row, mask_rhs,
      params["w1"], params["b1"], params["bn1w"], params["bn1b"],
      params["w2"], params["b2"], params["bn2w"], params["bn2b"])

    # ---- unpack (2*cout_p, Fp) slab -> complex64 (N, cout, H, W) ----
    out = out[:, :Fn]
    yr = out[:cout].reshape(cout, N, Hp, Wp)[:, :, 1:H + 1, 1:W + 1]
    yi = out[cout_p:cout_p + cout].reshape(cout, N, Hp, Wp)[:, :, 1:H + 1, 1:W + 1]
    yr = jnp.transpose(yr, (1, 0, 2, 3))
    yi = jnp.transpose(yi, (1, 0, 2, 3))
    return (yr + 1j * yi).astype(jnp.complex64)


# ----------------------------- parameter setup -------------------------------- #

def _pack_tconv_weight(wr, wi, ci_pad, co_pad):
    """torch ConvTranspose2d weights (Cin, Cout, K, K) -> per-tap complex block weights
    (K*K, 2*co_pad, 2*ci_pad) bf16.  ConvT(stride=1, pad=1) == 'same' correlation with the
    channel-transposed, spatially flipped kernel; complex block = [[Wr, -Wi], [Wi, Wr]]."""
    ci, co = wr.shape[0], wr.shape[1]
    wr_c = jnp.transpose(wr[:, :, ::-1, ::-1], (2, 3, 1, 0))   # (K, K, Cout, Cin)
    wi_c = jnp.transpose(wi[:, :, ::-1, ::-1], (2, 3, 1, 0))
    blocks = []
    for dy in range(K):
        for dx in range(K):
            r = jnp.pad(wr_c[dy, dx], ((0, co_pad - co), (0, ci_pad - ci)))
            i = jnp.pad(wi_c[dy, dx], ((0, co_pad - co), (0, ci_pad - ci)))
            top = jnp.concatenate([r, -i], axis=1)     # real-output rows
            bot = jnp.concatenate([i, r], axis=1)      # imag-output rows
            blocks.append(jnp.concatenate([top, bot], axis=0))
    return jnp.stack(blocks, axis=0).astype(jnp.bfloat16)


def _pack_conv_bias(br, bi, co_pad):
    # apply_complex with bias=True on both sub-convs: real gets (br - bi), imag gets (br + bi).
    co = br.shape[0]
    real = jnp.pad(br - bi, (0, co_pad - co))
    imag = jnp.pad(br + bi, (0, co_pad - co))
    return jnp.concatenate([real, imag]).reshape(-1, 1).astype(jnp.float32)


def init_params(key, in_ch, out_ch):
    mid_ch = in_ch // 2            # Complex_Up bilinear branch: mid_channels = in_channels // 2
    mid_p = _round_up(mid_ch, CH_ALIGN)
    out_p = _round_up(out_ch, CH_ALIGN)
    ks = jax.random.split(key, 8)

    def tconv(kw, kb, c_in, c_out):
        bound = 1.0 / (c_in * K * K) ** 0.5
        w = jax.random.uniform(kw, (c_in, c_out, K, K), jnp.float32, -bound, bound)
        b = jax.random.uniform(kb, (c_out,), jnp.float32, -bound, bound)
        return w, b

    w1r, b1r = tconv(ks[0], ks[1], in_ch, mid_ch)
    w1i, b1i = tconv(ks[2], ks[3], in_ch, mid_ch)
    w2r, b2r = tconv(ks[4], ks[5], mid_ch, out_ch)
    w2i, b2i = tconv(ks[6], ks[7], mid_ch, out_ch)

    def bn_params(c, c_pad):
        # complexPyTorch init: weight[:, :2] = sqrt(2), weight[:, 2] = 0, bias = 0
        w = jnp.concatenate([jnp.full((c, 2), 1.4142135623730951, jnp.float32),
                             jnp.zeros((c, 1), jnp.float32)], axis=1)   # [Wrr, Wii, Wri]
        return jnp.pad(w, ((0, c_pad - c), (0, 0))), jnp.zeros((c_pad, 2), jnp.float32)

    bn1w, bn1b = bn_params(mid_ch, mid_p)
    bn2w, bn2b = bn_params(out_ch, out_p)

    # TODO(synk): running_mean / running_covar momentum updates (training-time side effect) are
    #             not reproduced; the forward uses batch statistics and never reads them.
    return dict(
        w1=_pack_tconv_weight(w1r, w1i, in_ch, mid_p),    # layer-1 input channels unpadded
        b1=_pack_conv_bias(b1r, b1i, mid_p),
        bn1w=bn1w, bn1b=bn1b,
        w2=_pack_tconv_weight(w2r, w2i, mid_p, out_p),    # layer-2 input = padded mid channels
        b2=_pack_conv_bias(b2r, b2i, out_p),
        bn2w=bn2w, bn2b=bn2b,
        out_ch=out_ch,
    )


# ----------------------------------- main -------------------------------------- #

if __name__ == "__main__":
    N = 2
    IN_CH, OUT_CH = 8, 8
    C1 = IN_CH // 2          # channels of x1 (deep feature, pre-upsample)
    C2 = IN_CH - C1          # channels of x2 (skip connection)
    H, W = 16, 16
    Hin, Win = H // 2, W // 2

    key = jax.random.PRNGKey(0)
    k1, k2, k3, k4, kp = jax.random.split(key, 5)
    x1 = (jax.random.normal(k1, (N, C1, Hin, Win), jnp.float32)
          + 1j * jax.random.normal(k2, (N, C1, Hin, Win), jnp.float32)).astype(jnp.complex64)
    x2 = (jax.random.normal(k3, (N, C2, H, W), jnp.float32)
          + 1j * jax.random.normal(k4, (N, C2, H, W), jnp.float32)).astype(jnp.complex64)

    params = init_params(kp, IN_CH, OUT_CH)

    y = complex_up_forward(x1, x2, params)
    y = jax.block_until_ready(y)
    assert y.shape == (N, OUT_CH, H, W) and y.dtype == jnp.complex64
    assert bool(jnp.all(jnp.isfinite(jnp.real(y)) & jnp.isfinite(jnp.imag(y))))
    print("KERNEL_OK")
</pallas_src>

<mosaic_0001>
module attributes {stable_mosaic.version = 11 : i64} {
  func.func @_double_tconv_kernel(%arg0: memref<16x1024xbf16, #tpu.memory_space<vmem>>, %arg1: memref<1x768xf32, #tpu.memory_space<vmem>>, %arg2: memref<768x128xf32, #tpu.memory_space<vmem>>, %arg3: memref<9x32x16xbf16, #tpu.memory_space<vmem>>, %arg4: memref<32x1xf32, #tpu.memory_space<vmem>>, %arg5: memref<16x3xf32, #tpu.memory_space<vmem>>, %arg6: memref<16x2xf32, #tpu.memory_space<vmem>>, %arg7: memref<9x32x32xbf16, #tpu.memory_space<vmem>>, %arg8: memref<32x1xf32, #tpu.memory_space<vmem>>, %arg9: memref<16x3xf32, #tpu.memory_space<vmem>>, %arg10: memref<16x2xf32, #tpu.memory_space<vmem>>, %arg11: memref<32x768xf32, #tpu.memory_space<vmem>>, %arg12: memref<32x1024xbf16, #tpu.memory_space<vmem>>) attributes {dimension_semantics = [], scalar_prefetch = 0 : i64, scratch_operands = 1 : i64, tpu.core_type = #tpu.core_type<tc>} {
    %c0 = arith.constant 0 : index
    %c0_0 = arith.constant 0 : index
    %0 = vector.load %arg1[%c0, %c0_0] : memref<1x768xf32, #tpu.memory_space<vmem>>, vector<1x768xf32>
    %c0_1 = arith.constant 0 : index
    %c0_2 = arith.constant 0 : index
    %1 = vector.load %arg2[%c0_1, %c0_2] : memref<768x128xf32, #tpu.memory_space<vmem>>, vector<768x128xf32>
    %c0_3 = arith.constant 0 : index
    %c0_4 = arith.constant 0 : index
    %2 = vector.load %arg4[%c0_3, %c0_4] : memref<32x1xf32, #tpu.memory_space<vmem>>, vector<32x1xf32>
    %c0_5 = arith.constant 0 : index
    %c0_6 = arith.constant 0 : index
    %c0_7 = arith.constant 0 : index
    %3 = vector.load %arg3[%c0_5, %c0_6, %c0_7] : memref<9x32x16xbf16, #tpu.memory_space<vmem>>, vector<1x32x16xbf16>
    %4 = vector.shape_cast %3 : vector<1x32x16xbf16> to vector<32x16xbf16>
    %c0_8 = arith.constant 0 : index
    %c109 = arith.constant 109 : index
    %5 = vector.load %arg0[%c0_8, %c109] : memref<16x1024xbf16, #tpu.memory_space<vmem>>, vector<16x768xbf16>
    %cst = arith.constant dense<0.000000e+00> : vector<32x768xf32>
    %6 = tpu.matmul %4, %5, %cst {dimension_numbers = #tpu.dot_dimension_numbers<[1], [0], [0], [1], [0, 0, 1, 1], [], []>} : vector<32x16xbf16>, vector<16x768xbf16>, vector<32x768xf32> -> vector<32x768xf32>
    %7 = vector.broadcast %2 : vector<32x1xf32> to vector<32x768xf32>
    %8 = arith.addf %7, %6 : vector<32x768xf32>
    %c1 = arith.constant 1 : index
    %c0_9 = arith.constant 0 : index
    %c0_10 = arith.constant 0 : index
    %9 = vector.load %arg3[%c1, %c0_9, %c0_10] : memref<9x32x16xbf16, #tpu.memory_space<vmem>>, vector<1x32x16xbf16>
    %10 = vector.shape_cast %9 : vector<1x32x16xbf16> to vector<32x16xbf16>
    %c0_11 = arith.constant 0 : index
    %c110 = arith.constant 110 : index
    %11 = vector.load %arg0[%c0_11, %c110] : memref<16x1024xbf16, #tpu.memory_space<vmem>>, vector<16x768xbf16>
    %cst_12 = arith.constant dense<0.000000e+00> : vector<32x768xf32>
    %12 = tpu.matmul %10, %11, %cst_12 {dimension_numbers = #tpu.dot_dimension_numbers<[1], [0], [0], [1], [0, 0, 1, 1], [], []>} : vector<32x16xbf16>, vector<16x768xbf16>, vector<32x768xf32> -> vector<32x768xf32>
    %13 = arith.addf %8, %12 : vector<32x768xf32>
    %c2 = arith.constant 2 : index
    %c0_13 = arith.constant 0 : index
    %c0_14 = arith.constant 0 : index
    %14 = vector.load %arg3[%c2, %c0_13, %c0_14] : memref<9x32x16xbf16, #tpu.memory_space<vmem>>, vector<1x32x16xbf16>
    %15 = vector.shape_cast %14 : vector<1x32x16xbf16> to vector<32x16xbf16>
    %c0_15 = arith.constant 0 : index
    %c111 = arith.constant 111 : index
    %16 = vector.load %arg0[%c0_15, %c111] : memref<16x1024xbf16, #tpu.memory_space<vmem>>, vector<16x768xbf16>
    %cst_16 = arith.constant dense<0.000000e+00> : vector<32x768xf32>
    %17 = tpu.matmul %15, %16, %cst_16 {dimension_numbers = #tpu.dot_dimension_numbers<[1], [0], [0], [1], [0, 0, 1, 1], [], []>} : vector<32x16xbf16>, vector<16x768xbf16>, vector<32x768xf32> -> vector<32x768xf32>
    %18 = arith.addf %13, %17 : vector<32x768xf32>
    %c3 = arith.constant 3 : index
    %c0_17 = arith.constant 0 : index
    %c0_18 = arith.constant 0 : index
    %19 = vector.load %arg3[%c3, %c0_17, %c0_18] : memref<9x32x16xbf16, #tpu.memory_space<vmem>>, vector<1x32x16xbf16>
    %20 = vector.shape_cast %19 : vector<1x32x16xbf16> to vector<32x16xbf16>
    %c0_19 = arith.constant 0 : index
    %c127 = arith.constant 127 : index
    %21 = vector.load %arg0[%c0_19, %c127] : memref<16x1024xbf16, #tpu.memory_space<vmem>>, vector<16x768xbf16>
    %cst_20 = arith.constant dense<0.000000e+00> : vector<32x768xf32>
    %22 = tpu.matmul %20, %21, %cst_20 {dimension_numbers = #tpu.dot_dimension_numbers<[1], [0], [0], [1], [0, 0, 1, 1], [], []>} : vector<32x16xbf16>, vector<16x768xbf16>, vector<32x768xf32> -> vector<32x768xf32>
    %23 = arith.addf %18, %22 : vector<32x768xf32>
    %c4 = arith.constant 4 : index
    %c0_21 = arith.constant 0 : index
    %c0_22 = arith.constant 0 : index
    %24 = vector.load %arg3[%c4, %c0_21, %c0_22] : memref<9x32x16xbf16, #tpu.memory_space<vmem>>, vector<1x32x16xbf16>
    %25 = vector.shape_cast %24 : vector<1x32x16xbf16> to vector<32x16xbf16>
    %c0_23 = arith.constant 0 : index
    %c128 = arith.constant 128 : index
    %26 = vector.load %arg0[%c0_23, %c128] : memref<16x1024xbf16, #tpu.memory_space<vmem>>, vector<16x768xbf16>
    %cst_24 = arith.constant dense<0.000000e+00> : vector<32x768xf32>
    %27 = tpu.matmul %25, %26, %cst_24 {dimension_numbers = #tpu.dot_dimension_numbers<[1], [0], [0], [1], [0, 0, 1, 1], [], []>} : vector<32x16xbf16>, vector<16x768xbf16>, vector<32x768xf32> -> vector<32x768xf32>
    %28 = arith.addf %23, %27 : vector<32x768xf32>
    %c5 = arith.constant 5 : index
    %c0_25 = arith.constant 0 : index
    %c0_26 = arith.constant 0 : index
    %29 = vector.load %arg3[%c5, %c0_25, %c0_26] : memref<9x32x16xbf16, #tpu.memory_space<vmem>>, vector<1x32x16xbf16>
    %30 = vector.shape_cast %29 : vector<1x32x16xbf16> to vector<32x16xbf16>
    %c0_27 = arith.constant 0 : index
    %c129 = arith.constant 129 : index
    %31 = vector.load %arg0[%c0_27, %c129] : memref<16x1024xbf16, #tpu.memory_space<vmem>>, vector<16x768xbf16>
    %cst_28 = arith.constant dense<0.000000e+00> : vector<32x768xf32>
    %32 = tpu.matmul %30, %31, %cst_28 {dimension_numbers = #tpu.dot_dimension_numbers<[1], [0], [0], [1], [0, 0, 1, 1], [], []>} : vector<32x16xbf16>, vector<16x768xbf16>, vector<32x768xf32> -> vector<32x768xf32>
    %33 = arith.addf %28, %32 : vector<32x768xf32>
    %c6 = arith.constant 6 : index
    %c0_29 = arith.constant 0 : index
    %c0_30 = arith.constant 0 : index
    %34 = vector.load %arg3[%c6, %c0_29, %c0_30] : memref<9x32x16xbf16, #tpu.memory_space<vmem>>, vector<1x32x16xbf16>
    %35 = vector.shape_cast %34 : vector<1x32x16xbf16> to vector<32x16xbf16>
    %c0_31 = arith.constant 0 : index
    %c145 = arith.constant 145 : index
    %36 = vector.load %arg0[%c0_31, %c145] : memref<16x1024xbf16, #tpu.memory_space<vmem>>, vector<16x768xbf16>
    %cst_32 = arith.constant dense<0.000000e+00> : vector<32x768xf32>
    %37 = tpu.matmul %35, %36, %cst_32 {dimension_numbers = #tpu.dot_dimension_numbers<[1], [0], [0], [1], [0, 0, 1, 1], [], []>} : vector<32x16xbf16>, vector<16x768xbf16>, vector<32x768xf32> -> vector<32x768xf32>
    %38 = arith.addf %33, %37 : vector<32x768xf32>
    %c7 = arith.constant 7 : index
    %c0_33 = arith.constant 0 : index
    %c0_34 = arith.constant 0 : index
    %39 = vector.load %arg3[%c7, %c0_33, %c0_34] : memref<9x32x16xbf16, #tpu.memory_space<vmem>>, vector<1x32x16xbf16>
    %40 = vector.shape_cast %39 : vector<1x32x16xbf16> to vector<32x16xbf16>
    %c0_35 = arith.constant 0 : index
    %c146 = arith.constant 146 : index
    %41 = vector.load %arg0[%c0_35, %c146] : memref<16x1024xbf16, #tpu.memory_space<vmem>>, vector<16x768xbf16>
    %cst_36 = arith.constant dense<0.000000e+00> : vector<32x768xf32>
    %42 = tpu.matmul %40, %41, %cst_36 {dimension_numbers = #tpu.dot_dimension_numbers<[1], [0], [0], [1], [0, 0, 1, 1], [], []>} : vector<32x16xbf16>, vector<16x768xbf16>, vector<32x768xf32> -> vector<32x768xf32>
    %43 = arith.addf %38, %42 : vector<32x768xf32>
    %c8 = arith.constant 8 : index
    %c0_37 = arith.constant 0 : index
    %c0_38 = arith.constant 0 : index
    %44 = vector.load %arg3[%c8, %c0_37, %c0_38] : memref<9x32x16xbf16, #tpu.memory_space<vmem>>, vector<1x32x16xbf16>
    %45 = vector.shape_cast %44 : vector<1x32x16xbf16> to vector<32x16xbf16>
    %c0_39 = arith.constant 0 : index
    %c147 = arith.constant 147 : index
    %46 = vector.load %arg0[%c0_39, %c147] : memref<16x1024xbf16, #tpu.memory_space<vmem>>, vector<16x768xbf16>
    %cst_40 = arith.constant dense<0.000000e+00> : vector<32x768xf32>
    %47 = tpu.matmul %45, %46, %cst_40 {dimension_numbers = #tpu.dot_dimension_numbers<[1], [0], [0], [1], [0, 0, 1, 1], [], []>} : vector<32x16xbf16>, vector<16x768xbf16>, vector<32x768xf32> -> vector<32x768xf32>
    %48 = arith.addf %43, %47 : vector<32x768xf32>
    %49 = vector.extract_strided_slice %48 {offsets = [0, 0], sizes = [16, 768], strides = [1, 1]} : vector<32x768xf32> to vector<16x768xf32>
    %50 = vector.extract_strided_slice %48 {offsets = [16, 0], sizes = [16, 768], strides = [1, 1]} : vector<32x768xf32> to vector<16x768xf32>
    %c0_41 = arith.constant 0 : index
    %c0_42 = arith.constant 0 : index
    %51 = vector.load %arg5[%c0_41, %c0_42] : memref<16x3xf32, #tpu.memory_space<vmem>>, vector<16x3xf32>
    %c0_43 = arith.constant 0 : index
    %c0_44 = arith.constant 0 : index
    %52 = vector.load %arg6[%c0_43, %c0_44] : memref<16x2xf32, #tpu.memory_space<vmem>>, vector<16x2xf32>
    %cst_45 = arith.constant dense<0.000000e+00> : vector<16x128xf32>
    %53 = tpu.matmul %49, %1, %cst_45 {dimension_numbers = #tpu.dot_dimension_numbers<[1], [0], [0], [1], [0, 0, 1, 1], [], []>} : vector<16x768xf32>, vector<768x128xf32>, vector<16x128xf32> -> vector<16x128xf32>
    %54 = vector.extract_strided_slice %53 {offsets = [0, 0], sizes = [16, 1], strides = [1, 1]} : vector<16x128xf32> to vector<16x1xf32>
    %cst_46 = arith.constant 0.001953125 : f32
    %55 = vector.broadcast %cst_46 : f32 to vector<16x1xf32>
    %56 = arith.mulf %54, %55 : vector<16x1xf32>
    %cst_47 = arith.constant dense<0.000000e+00> : vector<16x128xf32>
    %57 = tpu.matmul %50, %1, %cst_47 {dimension_numbers = #tpu.dot_dimension_numbers<[1], [0], [0], [1], [0, 0, 1, 1], [], []>} : vector<16x768xf32>, vector<768x128xf32>, vector<16x128xf32> -> vector<16x128xf32>
    %58 = vector.extract_strided_slice %57 {offsets = [0, 0], sizes = [16, 1], strides = [1, 1]} : vector<16x128xf32> to vector<16x1xf32>
    %cst_48 = arith.constant 0.001953125 : f32
    %59 = vector.broadcast %cst_48 : f32 to vector<16x1xf32>
    %60 = arith.mulf %58, %59 : vector<16x1xf32>
    %61 = arith.mulf %49, %49 : vector<16x768xf32>
    %cst_49 = arith.constant dense<0.000000e+00> : vector<16x128xf32>
    %62 = tpu.matmul %61, %1, %cst_49 {dimension_numbers = #tpu.dot_dimension_numbers<[1], [0], [0], [1], [0, 0, 1, 1], [], []>} : vector<16x768xf32>, vector<768x128xf32>, vector<16x128xf32> -> vector<16x128xf32>
    %63 = vector.extract_strided_slice %62 {offsets = [0, 0], sizes = [16, 1], strides = [1, 1]} : vector<16x128xf32> to vector<16x1xf32>
    %cst_50 = arith.constant 0.001953125 : f32
    %64 = vector.broadcast %cst_50 : f32 to vector<16x1xf32>
    %65 = arith.mulf %63, %64 : vector<16x1xf32>
    %66 = arith.mulf %56, %56 : vector<16x1xf32>
    %67 = arith.subf %65, %66 : vector<16x1xf32>
    %cst_51 = arith.constant 9.99999974E-6 : f32
    %68 = vector.broadcast %cst_51 : f32 to vector<16x1xf32>
    %69 = arith.addf %67, %68 : vector<16x1xf32>
    %70 = arith.mulf %50, %50 : vector<16x768xf32>
    %cst_52 = arith.constant dense<0.000000e+00> : vector<16x128xf32>
    %71 = tpu.matmul %70, %1, %cst_52 {dimension_numbers = #tpu.dot_dimension_numbers<[1], [0], [0], [1], [0, 0, 1, 1], [], []>} : vector<16x768xf32>, vector<768x128xf32>, vector<16x128xf32> -> vector<16x128xf32>
    %72 = vector.extract_strided_slice %71 {offsets = [0, 0], sizes = [16, 1], strides = [1, 1]} : vector<16x128xf32> to vector<16x1xf32>
    %cst_53 = arith.constant 0.001953125 : f32
    %73 = vector.broadcast %cst_53 : f32 to vector<16x1xf32>
    %74 = arith.mulf %72, %73 : vector<16x1xf32>
    %75 = arith.mulf %60, %60 : vector<16x1xf32>
    %76 = arith.subf %74, %75 : vector<16x1xf32>
    %cst_54 = arith.constant 9.99999974E-6 : f32
    %77 = vector.broadcast %cst_54 : f32 to vector<16x1xf32>
    %78 = arith.addf %76, %77 : vector<16x1xf32>
    %79 = arith.mulf %49, %50 : vector<16x768xf32>
    %cst_55 = arith.constant dense<0.000000e+00> : vector<16x128xf32>
    %80 = tpu.matmul %79, %1, %cst_55 {dimension_numbers = #tpu.dot_dimension_numbers<[1], [0], [0], [1], [0, 0, 1, 1], [], []>} : vector<16x768xf32>, vector<768x128xf32>, vector<16x128xf32> -> vector<16x128xf32>
    %81 = vector.extract_strided_slice %80 {offsets = [0, 0], sizes = [16, 1], strides = [1, 1]} : vector<16x128xf32> to vector<16x1xf32>
    %cst_56 = arith.constant 0.001953125 : f32
    %82 = vector.broadcast %cst_56 : f32 to vector<16x1xf32>
    %83 = arith.mulf %81, %82 : vector<16x1xf32>
    %84 = arith.mulf %56, %60 : vector<16x1xf32>
    %85 = arith.subf %83, %84 : vector<16x1xf32>
    %86 = arith.mulf %69, %78 : vector<16x1xf32>
    %87 = arith.mulf %85, %85 : vector<16x1xf32>
    %88 = arith.subf %86, %87 : vector<16x1xf32>
    %cst_57 = arith.constant 9.99999996E-13 : f32
    %89 = vector.broadcast %cst_57 : f32 to vector<16x1xf32>
    %90 = arith.maximumf %88, %89 : vector<16x1xf32>
    %91 = math.sqrt %90 : vector<16x1xf32>
    %92 = arith.addf %69, %78 : vector<16x1xf32>
    %cst_58 = arith.constant 2.000000e+00 : f32
    %93 = vector.broadcast %cst_58 : f32 to vector<16x1xf32>
    %94 = arith.mulf %93, %91 : vector<16x1xf32>
    %95 = arith.addf %92, %94 : vector<16x1xf32>
    %96 = arith.mulf %90, %95 : vector<16x1xf32>
    %97 = math.rsqrt %96 : vector<16x1xf32>
    %98 = arith.addf %78, %91 : vector<16x1xf32>
    %99 = arith.mulf %98, %97 : vector<16x1xf32>
    %100 = arith.addf %69, %91 : vector<16x1xf32>
    %101 = arith.mulf %100, %97 : vector<16x1xf32>
    %cst_59 = arith.constant 0.000000e+00 : f32
    %102 = vector.broadcast %cst_59 : f32 to vector<16x1xf32>
    %103 = arith.subf %102, %85 : vector<16x1xf32>
    %104 = arith.mulf %103, %97 : vector<16x1xf32>
    %105 = vector.broadcast %56 : vector<16x1xf32> to vector<16x768xf32>
    %106 = arith.subf %49, %105 : vector<16x768xf32>
    %107 = vector.broadcast %60 : vector<16x1xf32> to vector<16x768xf32>
    %108 = arith.subf %50, %107 : vector<16x768xf32>
    %109 = vector.extract_strided_slice %51 {offsets = [0, 0], sizes = [16, 1], strides = [1, 1]} : vector<16x3xf32> to vector<16x1xf32>
    %110 = vector.extract_strided_slice %51 {offsets = [0, 1], sizes = [16, 1], strides = [1, 1]} : vector<16x3xf32> to vector<16x1xf32>
    %111 = vector.extract_strided_slice %51 {offsets = [0, 2], sizes = [16, 1], strides = [1, 1]} : vector<16x3xf32> to vector<16x1xf32>
    %112 = vector.extract_strided_slice %52 {offsets = [0, 0], sizes = [16, 1], strides = [1, 1]} : vector<16x2xf32> to vector<16x1xf32>
    %113 = vector.extract_strided_slice %52 {offsets = [0, 1], sizes = [16, 1], strides = [1, 1]} : vector<16x2xf32> to vector<16x1xf32>
    %114 = vector.broadcast %99 : vector<16x1xf32> to vector<16x768xf32>
    %115 = arith.mulf %114, %106 : vector<16x768xf32>
    %116 = vector.broadcast %104 : vector<16x1xf32> to vector<16x768xf32>
    %117 = arith.mulf %116, %108 : vector<16x768xf32>
    %118 = arith.addf %115, %117 : vector<16x768xf32>
    %119 = vector.broadcast %104 : vector<16x1xf32> to vector<16x768xf32>
    %120 = arith.mulf %119, %106 : vector<16x768xf32>
    %121 = vector.broadcast %101 : vector<16x1xf32> to vector<16x768xf32>
    %122 = arith.mulf %121, %108 : vector<16x768xf32>
    %123 = arith.addf %120, %122 : vector<16x768xf32>
    %124 = vector.broadcast %109 : vector<16x1xf32> to vector<16x768xf32>
    %125 = arith.mulf %124, %118 : vector<16x768xf32>
    %126 = vector.broadcast %111 : vector<16x1xf32> to vector<16x768xf32>
    %127 = arith.mulf %126, %123 : vector<16x768xf32>
    %128 = arith.addf %125, %127 : vector<16x768xf32>
    %129 = vector.broadcast %112 : vector<16x1xf32> to vector<16x768xf32>
    %130 = arith.addf %128, %129 : vector<16x768xf32>
    %131 = vector.broadcast %111 : vector<16x1xf32> to vector<16x768xf32>
    %132 = arith.mulf %131, %118 : vector<16x768xf32>
    %133 = vector.broadcast %110 : vector<16x1xf32> to vector<16x768xf32>
    %134 = arith.mulf %133, %123 : vector<16x768xf32>
    %135 = arith.addf %132, %134 : vector<16x768xf32>
    %136 = vector.broadcast %113 : vector<16x1xf32> to vector<16x768xf32>
    %137 = arith.addf %135, %136 : vector<16x768xf32>
    %cst_60 = arith.constant 0.000000e+00 : f32
    %138 = vector.broadcast %cst_60 : f32 to vector<16x768xf32>
    %139 = arith.maximumf %130, %138 : vector<16x768xf32>
    %cst_61 = arith.constant 0.000000e+00 : f32
    %140 = vector.broadcast %cst_61 : f32 to vector<16x768xf32>
    %141 = arith.maximumf %137, %140 : vector<16x768xf32>
    %cst_62 = arith.constant 0.000000e+00 : bf16
    %142 = vector.broadcast %cst_62 : bf16 to vector<32x128xbf16>
    %c0_63 = arith.constant 0 : index
    %c0_64 = arith.constant 0 : index
    %143 = vector.load %arg12[%c0_63, %c0_64] : memref<32x1024xbf16, #tpu.memory_space<vmem>>, vector<32x128xbf16>
    tpu.vector_store %arg12[%c0_63, %c0_64], %142 {strides = array<i32>} : memref<32x1024xbf16, #tpu.memory_space<vmem>>, vector<32x128xbf16>,
    %cst_65 = arith.constant 0.000000e+00 : bf16
    %144 = vector.broadcast %cst_65 : bf16 to vector<32x128xbf16>
    %c0_66 = arith.constant 0 : index
    %c896 = arith.constant 896 : index
    %145 = vector.load %arg12[%c0_66, %c896] : memref<32x1024xbf16, #tpu.memory_space<vmem>>, vector<32x128xbf16>
    tpu.vector_store %arg12[%c0_66, %c896], %144 {strides = array<i32>} : memref<32x1024xbf16, #tpu.memory_space<vmem>>, vector<32x128xbf16>,
    %146 = vector.broadcast %0 : vector<1x768xf32> to vector<16x768xf32>
    %147 = arith.mulf %139, %146 : vector<16x768xf32>
    %148 = arith.truncf %147 : vector<16x768xf32> to vector<16x768xbf16>
    %c0_67 = arith.constant 0 : index
    %c128_68 = arith.constant 128 : index
    %149 = vector.load %arg12[%c0_67, %c128_68] : memref<32x1024xbf16, #tpu.memory_space<vmem>>, vector<16x768xbf16>
    tpu.vector_store %arg12[%c0_67, %c128_68], %148 {strides = array<i32>} : memref<32x1024xbf16, #tpu.memory_space<vmem>>, vector<16x768xbf16>,
    %150 = vector.broadcast %0 : vector<1x768xf32> to vector<16x768xf32>
    %151 = arith.mulf %141, %150 : vector<16x768xf32>
    %152 = arith.truncf %151 : vector<16x768xf32> to vector<16x768xbf16>
    %c16 = arith.constant 16 : index
    %c128_69 = arith.constant 128 : index
    %153 = vector.load %arg12[%c16, %c128_69] : memref<32x1024xbf16, #tpu.memory_space<vmem>>, vector<16x768xbf16>
    tpu.vector_store %arg12[%c16, %c128_69], %152 {strides = array<i32>} : memref<32x1024xbf16, #tpu.memory_space<vmem>>, vector<16x768xbf16>,
    %c0_70 = arith.constant 0 : index
    %c0_71 = arith.constant 0 : index
    %154 = vector.load %arg8[%c0_70, %c0_71] : memref<32x1xf32, #tpu.memory_space<vmem>>, vector<32x1xf32>
    %c0_72 = arith.constant 0 : index
    %c0_73 = arith.constant 0 : index
    %c0_74 = arith.constant 0 : index
    %155 = vector.load %arg7[%c0_72, %c0_73, %c0_74] : memref<9x32x32xbf16, #tpu.memory_space<vmem>>, vector<1x32x32xbf16>
    %156 = vector.shape_cast %155 : vector<1x32x32xbf16> to vector<32x32xbf16>
    %c0_75 = arith.constant 0 : index
    %c109_76 = arith.constant 109 : index
    %157 = vector.load %arg12[%c0_75, %c109_76] : memref<32x1024xbf16, #tpu.memory_space<vmem>>, vector<32x768xbf16>
    %cst_77 = arith.constant dense<0.000000e+00> : vector<32x768xf32>
    %158 = tpu.matmul %156, %157, %cst_77 {dimension_numbers = #tpu.dot_dimension_numbers<[1], [0], [0], [1], [0, 0, 1, 1], [], []>} : vector<32x32xbf16>, vector<32x768xbf16>, vector<32x768xf32> -> vector<32x768xf32>
    %159 = vector.broadcast %154 : vector<32x1xf32> to vector<32x768xf32>
    %160 = arith.addf %159, %158 : vector<32x768xf32>
    %c1_78 = arith.constant 1 : index
    %c0_79 = arith.constant 0 : index
    %c0_80 = arith.constant 0 : index
    %161 = vector.load %arg7[%c1_78, %c0_79, %c0_80] : memref<9x32x32xbf16, #tpu.memory_space<vmem>>, vector<1x32x32xbf16>
    %162 = vector.shape_cast %161 : vector<1x32x32xbf16> to vector<32x32xbf16>
    %c0_81 = arith.constant 0 : index
    %c110_82 = arith.constant 110 : index
    %163 = vector.load %arg12[%c0_81, %c110_82] : memref<32x1024xbf16, #tpu.memory_space<vmem>>, vector<32x768xbf16>
    %cst_83 = arith.constant dense<0.000000e+00> : vector<32x768xf32>
    %164 = tpu.matmul %162, %163, %cst_83 {dimension_numbers = #tpu.dot_dimension_numbers<[1], [0], [0], [1], [0, 0, 1, 1], [], []>} : vector<32x32xbf16>, vector<32x768xbf16>, vector<32x768xf32> -> vector<32x768xf32>
    %165 = arith.addf %160, %164 : vector<32x768xf32>
    %c2_84 = arith.constant 2 : index
    %c0_85 = arith.constant 0 : index
    %c0_86 = arith.constant 0 : index
    %166 = vector.load %arg7[%c2_84, %c0_85, %c0_86] : memref<9x32x32xbf16, #tpu.memory_space<vmem>>, vector<1x32x32xbf16>
    %167 = vector.shape_cast %166 : vector<1x32x32xbf16> to vector<32x32xbf16>
    %c0_87 = arith.constant 0 : index
    %c111_88 = arith.constant 111 : index
    %168 = vector.load %arg12[%c0_87, %c111_88] : memref<32x1024xbf16, #tpu.memory_space<vmem>>, vector<32x768xbf16>
    %cst_89 = arith.constant dense<0.000000e+00> : vector<32x768xf32>
    %169 = tpu.matmul %167, %168, %cst_89 {dimension_numbers = #tpu.dot_dimension_numbers<[1], [0], [0], [1], [0, 0, 1, 1], [], []>} : vector<32x32xbf16>, vector<32x768xbf16>, vector<32x768xf32> -> vector<32x768xf32>
    %170 = arith.addf %165, %169 : vector<32x768xf32>
    %c3_90 = arith.constant 3 : index
    %c0_91 = arith.constant 0 : index
    %c0_92 = arith.constant 0 : index
    %171 = vector.load %arg7[%c3_90, %c0_91, %c0_92] : memref<9x32x32xbf16, #tpu.memory_space<vmem>>, vector<1x32x32xbf16>
    %172 = vector.shape_cast %171 : vector<1x32x32xbf16> to vector<32x32xbf16>
    %c0_93 = arith.constant 0 : index
    %c127_94 = arith.constant 127 : index
    %173 = vector.load %arg12[%c0_93, %c127_94] : memref<32x1024xbf16, #tpu.memory_space<vmem>>, vector<32x768xbf16>
    %cst_95 = arith.constant dense<0.000000e+00> : vector<32x768xf32>
    %174 = tpu.matmul %172, %173, %cst_95 {dimension_numbers = #tpu.dot_dimension_numbers<[1], [0], [0], [1], [0, 0, 1, 1], [], []>} : vector<32x32xbf16>, vector<32x768xbf16>, vector<32x768xf32> -> vector<32x768xf32>
    %175 = arith.addf %170, %174 : vector<32x768xf32>
    %c4_96 = arith.constant 4 : index
    %c0_97 = arith.constant 0 : index
    %c0_98 = arith.constant 0 : index
    %176 = vector.load %arg7[%c4_96, %c0_97, %c0_98] : memref<9x32x32xbf16, #tpu.memory_space<vmem>>, vector<1x32x32xbf16>
    %177 = vector.shape_cast %176 : vector<1x32x32xbf16> to vector<32x32xbf16>
    %c0_99 = arith.constant 0 : index
    %c128_100 = arith.constant 128 : index
    %178 = vector.load %arg12[%c0_99, %c128_100] : memref<32x1024xbf16, #tpu.memory_space<vmem>>, vector<32x768xbf16>
    %cst_101 = arith.constant dense<0.000000e+00> : vector<32x768xf32>
    %179 = tpu.matmul %177, %178, %cst_101 {dimension_numbers = #tpu.dot_dimension_numbers<[1], [0], [0], [1], [0, 0, 1, 1], [], []>} : vector<32x32xbf16>, vector<32x768xbf16>, vector<32x768xf32> -> vector<32x768xf32>
    %180 = arith.addf %175, %179 : vector<32x768xf32>
    %c5_102 = arith.constant 5 : index
    %c0_103 = arith.constant 0 : index
    %c0_104 = arith.constant 0 : index
    %181 = vector.load %arg7[%c5_102, %c0_103, %c0_104] : memref<9x32x32xbf16, #tpu.memory_space<vmem>>, vector<1x32x32xbf16>
    %182 = vector.shape_cast %181 : vector<1x32x32xbf16> to vector<32x32xbf16>
    %c0_105 = arith.constant 0 : index
    %c129_106 = arith.constant 129 : index
    %183 = vector.load %arg12[%c0_105, %c129_106] : memref<32x1024xbf16, #tpu.memory_space<vmem>>, vector<32x768xbf16>
    %cst_107 = arith.constant dense<0.000000e+00> : vector<32x768xf32>
    %184 = tpu.matmul %182, %183, %cst_107 {dimension_numbers = #tpu.dot_dimension_numbers<[1], [0], [0], [1], [0, 0, 1, 1], [], []>} : vector<32x32xbf16>, vector<32x768xbf16>, vector<32x768xf32> -> vector<32x768xf32>
    %185 = arith.addf %180, %184 : vector<32x768xf32>
    %c6_108 = arith.constant 6 : index
    %c0_109 = arith.constant 0 : index
    %c0_110 = arith.constant 0 : index
    %186 = vector.load %arg7[%c6_108, %c0_109, %c0_110] : memref<9x32x32xbf16, #tpu.memory_space<vmem>>, vector<1x32x32xbf16>
    %187 = vector.shape_cast %186 : vector<1x32x32xbf16> to vector<32x32xbf16>
    %c0_111 = arith.constant 0 : index
    %c145_112 = arith.constant 145 : index
    %188 = vector.load %arg12[%c0_111, %c145_112] : memref<32x1024xbf16, #tpu.memory_space<vmem>>, vector<32x768xbf16>
    %cst_113 = arith.constant dense<0.000000e+00> : vector<32x768xf32>
    %189 = tpu.matmul %187, %188, %cst_113 {dimension_numbers = #tpu.dot_dimension_numbers<[1], [0], [0], [1], [0, 0, 1, 1], [], []>} : vector<32x32xbf16>, vector<32x768xbf16>, vector<32x768xf32> -> vector<32x768xf32>
    %190 = arith.addf %185, %189 : vector<32x768xf32>
    %c7_114 = arith.constant 7 : index
    %c0_115 = arith.constant 0 : index
    %c0_116 = arith.constant 0 : index
    %191 = vector.load %arg7[%c7_114, %c0_115, %c0_116] : memref<9x32x32xbf16, #tpu.memory_space<vmem>>, vector<1x32x32xbf16>
    %192 = vector.shape_cast %191 : vector<1x32x32xbf16> to vector<32x32xbf16>
    %c0_117 = arith.constant 0 : index
    %c146_118 = arith.constant 146 : index
    %193 = vector.load %arg12[%c0_117, %c146_118] : memref<32x1024xbf16, #tpu.memory_space<vmem>>, vector<32x768xbf16>
    %cst_119 = arith.constant dense<0.000000e+00> : vector<32x768xf32>
    %194 = tpu.matmul %192, %193, %cst_119 {dimension_numbers = #tpu.dot_dimension_numbers<[1], [0], [0], [1], [0, 0, 1, 1], [], []>} : vector<32x32xbf16>, vector<32x768xbf16>, vector<32x768xf32> -> vector<32x768xf32>
    %195 = arith.addf %190, %194 : vector<32x768xf32>
    %c8_120 = arith.constant 8 : index
    %c0_121 = arith.constant 0 : index
    %c0_122 = arith.constant 0 : index
    %196 = vector.load %arg7[%c8_120, %c0_121, %c0_122] : memref<9x32x32xbf16, #tpu.memory_space<vmem>>, vector<1x32x32xbf16>
    %197 = vector.shape_cast %196 : vector<1x32x32xbf16> to vector<32x32xbf16>
    %c0_123 = arith.constant 0 : index
    %c147_124 = arith.constant 147 : index
    %198 = vector.load %arg12[%c0_123, %c147_124] : memref<32x1024xbf16, #tpu.memory_space<vmem>>, vector<32x768xbf16>
    %cst_125 = arith.constant dense<0.000000e+00> : vector<32x768xf32>
    %199 = tpu.matmul %197, %198, %cst_125 {dimension_numbers = #tpu.dot_dimension_numbers<[1], [0], [0], [1], [0, 0, 1, 1], [], []>} : vector<32x32xbf16>, vector<32x768xbf16>, vector<32x768xf32> -> vector<32x768xf32>
    %200 = arith.addf %195, %199 : vector<32x768xf32>
    %201 = vector.extract_strided_slice %200 {offsets = [0, 0], sizes = [16, 768], strides = [1, 1]} : vector<32x768xf32> to vector<16x768xf32>
    %202 = vector.extract_strided_slice %200 {offsets = [16, 0], sizes = [16, 768], strides = [1, 1]} : vector<32x768xf32> to vector<16x768xf32>
    %c0_126 = arith.constant 0 : index
    %c0_127 = arith.constant 0 : index
    %203 = vector.load %arg9[%c0_126, %c0_127] : memref<16x3xf32, #tpu.memory_space<vmem>>, vector<16x3xf32>
    %c0_128 = arith.constant 0 : index
    %c0_129 = arith.constant 0 : index
    %204 = vector.load %arg10[%c0_128, %c0_129] : memref<16x2xf32, #tpu.memory_space<vmem>>, vector<16x2xf32>
    %cst_130 = arith.constant dense<0.000000e+00> : vector<16x128xf32>
    %205 = tpu.matmul %201, %1, %cst_130 {dimension_numbers = #tpu.dot_dimension_numbers<[1], [0], [0], [1], [0, 0, 1, 1], [], []>} : vector<16x768xf32>, vector<768x128xf32>, vector<16x128xf32> -> vector<16x128xf32>
    %206 = vector.extract_strided_slice %205 {offsets = [0, 0], sizes = [16, 1], strides = [1, 1]} : vector<16x128xf32> to vector<16x1xf32>
    %cst_131 = arith.constant 0.001953125 : f32
    %207 = vector.broadcast %cst_131 : f32 to vector<16x1xf32>
    %208 = arith.mulf %206, %207 : vector<16x1xf32>
    %cst_132 = arith.constant dense<0.000000e+00> : vector<16x128xf32>
    %209 = tpu.matmul %202, %1, %cst_132 {dimension_numbers = #tpu.dot_dimension_numbers<[1], [0], [0], [1], [0, 0, 1, 1], [], []>} : vector<16x768xf32>, vector<768x128xf32>, vector<16x128xf32> -> vector<16x128xf32>
    %210 = vector.extract_strided_slice %209 {offsets = [0, 0], sizes = [16, 1], strides = [1, 1]} : vector<16x128xf32> to vector<16x1xf32>
    %cst_133 = arith.constant 0.001953125 : f32
    %211 = vector.broadcast %cst_133 : f32 to vector<16x1xf32>
    %212 = arith.mulf %210, %211 : vector<16x1xf32>
    %213 = arith.mulf %201, %201 : vector<16x768xf32>
    %cst_134 = arith.constant dense<0.000000e+00> : vector<16x128xf32>
    %214 = tpu.matmul %213, %1, %cst_134 {dimension_numbers = #tpu.dot_dimension_numbers<[1], [0], [0], [1], [0, 0, 1, 1], [], []>} : vector<16x768xf32>, vector<768x128xf32>, vector<16x128xf32> -> vector<16x128xf32>
    %215 = vector.extract_strided_slice %214 {offsets = [0, 0], sizes = [16, 1], strides = [1, 1]} : vector<16x128xf32> to vector<16x1xf32>
    %cst_135 = arith.constant 0.001953125 : f32
    %216 = vector.broadcast %cst_135 : f32 to vector<16x1xf32>
    %217 = arith.mulf %215, %216 : vector<16x1xf32>
    %218 = arith.mulf %208, %208 : vector<16x1xf32>
    %219 = arith.subf %217, %218 : vector<16x1xf32>
    %cst_136 = arith.constant 9.99999974E-6 : f32
    %220 = vector.broadcast %cst_136 : f32 to vector<16x1xf32>
    %221 = arith.addf %219, %220 : vector<16x1xf32>
    %222 = arith.mulf %202, %202 : vector<16x768xf32>
    %cst_137 = arith.constant dense<0.000000e+00> : vector<16x128xf32>
    %223 = tpu.matmul %222, %1, %cst_137 {dimension_numbers = #tpu.dot_dimension_numbers<[1], [0], [0], [1], [0, 0, 1, 1], [], []>} : vector<16x768xf32>, vector<768x128xf32>, vector<16x128xf32> -> vector<16x128xf32>
    %224 = vector.extract_strided_slice %223 {offsets = [0, 0], sizes = [16, 1], strides = [1, 1]} : vector<16x128xf32> to vector<16x1xf32>
    %cst_138 = arith.constant 0.001953125 : f32
    %225 = vector.broadcast %cst_138 : f32 to vector<16x1xf32>
    %226 = arith.mulf %224, %225 : vector<16x1xf32>
    %227 = arith.mulf %212, %212 : vector<16x1xf32>
    %228 = arith.subf %226, %227 : vector<16x1xf32>
    %cst_139 = arith.constant 9.99999974E-6 : f32
    %229 = vector.broadcast %cst_139 : f32 to vector<16x1xf32>
    %230 = arith.addf %228, %229 : vector<16x1xf32>
    %231 = arith.mulf %201, %202 : vector<16x768xf32>
    %cst_140 = arith.constant dense<0.000000e+00> : vector<16x128xf32>
    %232 = tpu.matmul %231, %1, %cst_140 {dimension_numbers = #tpu.dot_dimension_numbers<[1], [0], [0], [1], [0, 0, 1, 1], [], []>} : vector<16x768xf32>, vector<768x128xf32>, vector<16x128xf32> -> vector<16x128xf32>
    %233 = vector.extract_strided_slice %232 {offsets = [0, 0], sizes = [16, 1], strides = [1, 1]} : vector<16x128xf32> to vector<16x1xf32>
    %cst_141 = arith.constant 0.001953125 : f32
    %234 = vector.broadcast %cst_141 : f32 to vector<16x1xf32>
    %235 = arith.mulf %233, %234 : vector<16x1xf32>
    %236 = arith.mulf %208, %212 : vector<16x1xf32>
    %237 = arith.subf %235, %236 : vector<16x1xf32>
    %238 = arith.mulf %221, %230 : vector<16x1xf32>
    %239 = arith.mulf %237, %237 : vector<16x1xf32>
    %240 = arith.subf %238, %239 : vector<16x1xf32>
    %cst_142 = arith.constant 9.99999996E-13 : f32
    %241 = vector.broadcast %cst_142 : f32 to vector<16x1xf32>
    %242 = arith.maximumf %240, %241 : vector<16x1xf32>
    %243 = math.sqrt %242 : vector<16x1xf32>
    %244 = arith.addf %221, %230 : vector<16x1xf32>
    %cst_143 = arith.constant 2.000000e+00 : f32
    %245 = vector.broadcast %cst_143 : f32 to vector<16x1xf32>
    %246 = arith.mulf %245, %243 : vector<16x1xf32>
    %247 = arith.addf %244, %246 : vector<16x1xf32>
    %248 = arith.mulf %242, %247 : vector<16x1xf32>
    %249 = math.rsqrt %248 : vector<16x1xf32>
    %250 = arith.addf %230, %243 : vector<16x1xf32>
    %251 = arith.mulf %250, %249 : vector<16x1xf32>
    %252 = arith.addf %221, %243 : vector<16x1xf32>
    %253 = arith.mulf %252, %249 : vector<16x1xf32>
    %cst_144 = arith.constant 0.000000e+00 : f32
    %254 = vector.broadcast %cst_144 : f32 to vector<16x1xf32>
    %255 = arith.subf %254, %237 : vector<16x1xf32>
    %256 = arith.mulf %255, %249 : vector<16x1xf32>
    %257 = vector.broadcast %208 : vector<16x1xf32> to vector<16x768xf32>
    %258 = arith.subf %201, %257 : vector<16x768xf32>
    %259 = vector.broadcast %212 : vector<16x1xf32> to vector<16x768xf32>
    %260 = arith.subf %202, %259 : vector<16x768xf32>
    %261 = vector.extract_strided_slice %203 {offsets = [0, 0], sizes = [16, 1], strides = [1, 1]} : vector<16x3xf32> to vector<16x1xf32>
    %262 = vector.extract_strided_slice %203 {offsets = [0, 1], sizes = [16, 1], strides = [1, 1]} : vector<16x3xf32> to vector<16x1xf32>
    %263 = vector.extract_strided_slice %203 {offsets = [0, 2], sizes = [16, 1], strides = [1, 1]} : vector<16x3xf32> to vector<16x1xf32>
    %264 = vector.extract_strided_slice %204 {offsets = [0, 0], sizes = [16, 1], strides = [1, 1]} : vector<16x2xf32> to vector<16x1xf32>
    %265 = vector.extract_strided_slice %204 {offsets = [0, 1], sizes = [16, 1], strides = [1, 1]} : vector<16x2xf32> to vector<16x1xf32>
    %266 = vector.broadcast %251 : vector<16x1xf32> to vector<16x768xf32>
    %267 = arith.mulf %266, %258 : vector<16x768xf32>
    %268 = vector.broadcast %256 : vector<16x1xf32> to vector<16x768xf32>
    %269 = arith.mulf %268, %260 : vector<16x768xf32>
    %270 = arith.addf %267, %269 : vector<16x768xf32>
    %271 = vector.broadcast %256 : vector<16x1xf32> to vector<16x768xf32>
    %272 = arith.mulf %271, %258 : vector<16x768xf32>
    %273 = vector.broadcast %253 : vector<16x1xf32> to vector<16x768xf32>
    %274 = arith.mulf %273, %260 : vector<16x768xf32>
    %275 = arith.addf %272, %274 : vector<16x768xf32>
    %276 = vector.broadcast %261 : vector<16x1xf32> to vector<16x768xf32>
    %277 = arith.mulf %276, %270 : vector<16x768xf32>
    %278 = vector.broadcast %263 : vector<16x1xf32> to vector<16x768xf32>
    %279 = arith.mulf %278, %275 : vector<16x768xf32>
    %280 = arith.addf %277, %279 : vector<16x768xf32>
    %281 = vector.broadcast %264 : vector<16x1xf32> to vector<16x768xf32>
    %282 = arith.addf %280, %281 : vector<16x768xf32>
    %283 = vector.broadcast %263 : vector<16x1xf32> to vector<16x768xf32>
    %284 = arith.mulf %283, %270 : vector<16x768xf32>
    %285 = vector.broadcast %262 : vector<16x1xf32> to vector<16x768xf32>
    %286 = arith.mulf %285, %275 : vector<16x768xf32>
    %287 = arith.addf %284, %286 : vector<16x768xf32>
    %288 = vector.broadcast %265 : vector<16x1xf32> to vector<16x768xf32>
    %289 = arith.addf %287, %288 : vector<16x768xf32>
    %cst_145 = arith.constant 0.000000e+00 : f32
    %290 = vector.broadcast %cst_145 : f32 to vector<16x768xf32>
    %291 = arith.maximumf %282, %290 : vector<16x768xf32>
    %cst_146 = arith.constant 0.000000e+00 : f32
    %292 = vector.broadcast %cst_146 : f32 to vector<16x768xf32>
    %293 = arith.maximumf %289, %292 : vector<16x768xf32>
    %c0_147 = arith.constant 0 : index
    %c0_148 = arith.constant 0 : index
    %294 = vector.load %arg11[%c0_147, %c0_148] : memref<32x768xf32, #tpu.memory_space<vmem>>, vector<16x768xf32>
    tpu.vector_store %arg11[%c0_147, %c0_148], %291 {strides = array<i32>} : memref<32x768xf32, #tpu.memory_space<vmem>>, vector<16x768xf32>,
    %c16_149 = arith.constant 16 : index
    %c0_150 = arith.constant 0 : index
    %295 = vector.load %arg11[%c16_149, %c0_150] : memref<32x768xf32, #tpu.memory_space<vmem>>, vector<16x768xf32>
    tpu.vector_store %arg11[%c16_149, %c0_150], %293 {strides = array<i32>} : memref<32x768xf32, #tpu.memory_space<vmem>>, vector<16x768xf32>,
    return
  }
}

</mosaic_0001>

<llo_original>
// kernel: tpu_custom_call.1
$region0: #{tpu_custom_call.1}
  #allocation0 [shape = 'u32[]', space=smem, size = 0x4, offset = 0x4, fixed_abs, tag = 'smem constant byte address 0x4 - core index']
  #allocation1 [shape = 'u32[144,128]{1,0:T(1,128)}', space=vmem, size = 0x12000, scoped, tag = 'internal scratch']
  #allocation2 [shape = 'bf16[32,1024]{1,0:T(8,128)(2,1)}', space=vmem, size = 0x10000, scoped, tag = 'scratch operand']
  %s0 = inlined_call_operand.vmem [shape: bf16[16,1024], index: 0, kind: input, shape index: {}]
  %s1 = inlined_call_operand.vmem [shape: f32[1,768], index: 1, kind: input, shape index: {}]
  %s2 = inlined_call_operand.hbm [shape: f32[768,128], index: 2, kind: input, shape index: {}]
  %s3 = inlined_call_operand.vmem [shape: bf16[9,32,16], index: 3, kind: input, shape index: {}]
  %s4 = inlined_call_operand.vmem [shape: f32[32,1], index: 4, kind: input, shape index: {}]
  %s5 = inlined_call_operand.vmem [shape: f32[16,3], index: 5, kind: input, shape index: {}]
  %s6 = inlined_call_operand.vmem [shape: f32[16,2], index: 6, kind: input, shape index: {}]
  %s7 = inlined_call_operand.vmem [shape: bf16[9,32,32], index: 7, kind: input, shape index: {}]
  %s8 = inlined_call_operand.vmem [shape: f32[32,1], index: 8, kind: input, shape index: {}]
  %s9 = inlined_call_operand.vmem [shape: f32[16,3], index: 9, kind: input, shape index: {}]
  %s10 = inlined_call_operand.vmem [shape: f32[16,2], index: 10, kind: input, shape index: {}]
  %s11 = inlined_call_operand.hbm [shape: f32[32,768], index: 11, kind: output, shape index: {}]
  %s12 = sld [smem:[#allocation0]]
  $region58: #{tpu_custom_call.1} parent=0
    _
  %s14 = ssub.s32 1, %s12
  %s15 = scalar_select 0, %s14, %s12
  $region1: #{tpu_custom_call.1} parent=0
    #allocation3 [shape = 'u8[393216]{0}', space=vmem, size = 0x60000, scoped, tag = 'input window, operand 2, single buffered']
    #allocation4 [shape = 's32[1]{0}', space=sflag, size = 0x4, scoped, tag = 'scoped memory for tpu_custom_call.1']
    #allocation5 [shape = 's32[1]{0}', space=sflag, size = 0x4, scoped, tag = 'scoped memory for tpu_custom_call.1']
    #allocation6 [shape = 'u8[98304]{0}', space=vmem, size = 0x18000, scoped, tag = 'output window, operand 0, single buffered']
    %16 = vsyncpa [#allocation4], 0
    %17 = vsyncpa [#allocation5], 0
    // Predicated region
    $region2: #{tpu_custom_call.1} parent=1 // pred_check
      _
    $region3: #{tpu_custom_call.1} parent=1 // pred_check_branch
      %19 = sbr.rel (0) target = $region5
    $region4: #{tpu_custom_call.1} parent=1 // pred_region
      _
    $region5: #{tpu_custom_call.1} parent=1 // pred_fallthru
      _
    // Predicated region
    $region6: #{tpu_custom_call.1} parent=1 // pred_check
      _
    $region7: #{tpu_custom_call.1} parent=1 // pred_check_branch
      %21 = sbr.rel (0) target = $region9
    $region8: #{tpu_custom_call.1} parent=1 // pred_region
      _
    $region9: #{tpu_custom_call.1} parent=1 // pred_fallthru
      _
    // Predicated region
    $region10: #{tpu_custom_call.1} parent=1 // pred_check
      _
    $region11: #{tpu_custom_call.1} parent=1 // pred_check_branch
      %23 = sbr.rel (0) target = $region13
    $region12: #{tpu_custom_call.1} parent=1 // pred_region
      %s25 = ssub.s32 12288, 12288
      %26 = vsyncadd [#allocation4], %s25
      %s27 = sshll.u32 [#allocation3], 4
      %s28 = int_to_ptr.vmem [resolvable:$true] %s27
      %33 = dma.hbm_to_vmem [thread:$0]  %s2, 12288, %s28, [#allocation4], 128, 128, 8
    $region13: #{tpu_custom_call.1} parent=1 // pred_fallthru
      _
    // Predicated region
    $region14: #{tpu_custom_call.1} parent=1 // pred_check
      _
    $region15: #{tpu_custom_call.1} parent=1 // pred_check_branch
      %35 = sbr.rel (0) target = $region17
    $region16: #{tpu_custom_call.1} parent=1 // pred_region
      _
    $region17: #{tpu_custom_call.1} parent=1 // pred_fallthru
      _
    // Predicated region
    $region18: #{tpu_custom_call.1} parent=1 // pred_check
      _
    $region19: #{tpu_custom_call.1} parent=1 // pred_check_branch
      %37 = sbr.rel (0) target = $region21
    $region20: #{tpu_custom_call.1} parent=1 // pred_region
      _
    $region21: #{tpu_custom_call.1} parent=1 // pred_fallthru
      _
    // Predicated region
    $region22: #{tpu_custom_call.1} parent=1 // pred_check
      _
    $region23: #{tpu_custom_call.1} parent=1 // pred_check_branch
      %39 = sbr.rel (0) target = $region25
    $region24: #{tpu_custom_call.1} parent=1 // pred_region
      _
    $region25: #{tpu_custom_call.1} parent=1 // pred_fallthru
      _
    // Predicated region
    $region26: #{tpu_custom_call.1} parent=1 // pred_check
      _
    $region27: #{tpu_custom_call.1} parent=1 // pred_check_branch
      %41 = sbr.rel (0) target = $region29
    $region28: #{tpu_custom_call.1} parent=1 // pred_region
      _
    $region29: #{tpu_custom_call.1} parent=1 // pred_fallthru
      _
    // Predicated region
    $region30: #{tpu_custom_call.1} parent=1 // pred_check
      _
    $region31: #{tpu_custom_call.1} parent=1 // pred_check_branch
      %43 = sbr.rel (0) target = $region33
    $region32: #{tpu_custom_call.1} parent=1 // pred_region
      _
    $region33: #{tpu_custom_call.1} parent=1 // pred_fallthru
      _
    // Predicated region
    $region34: #{tpu_custom_call.1} parent=1 // pred_check
      _
    $region35: #{tpu_custom_call.1} parent=1 // pred_check_branch
      %45 = sbr.rel (0) target = $region37
    $region36: #{tpu_custom_call.1} parent=1 // pred_region
      _
    $region37: #{tpu_custom_call.1} parent=1 // pred_fallthru
      _
    // Predicated region
    $region38: #{tpu_custom_call.1} parent=1 // pred_check
      _
    $region39: #{tpu_custom_call.1} parent=1 // pred_check_branch
      %47 = sbr.rel (0) target = $region41
    $region40: #{tpu_custom_call.1} parent=1 // pred_region
      _
    $region41: #{tpu_custom_call.1} parent=1 // pred_fallthru
      _
    // Predicated region
    $region42: #{tpu_custom_call.1} parent=1 // pred_check
      _
    $region43: #{tpu_custom_call.1} parent=1 // pred_check_branch
      %49 = sbr.rel (0) target = $region45
    $region44: #{tpu_custom_call.1} parent=1 // pred_region
      _
    $region45: #{tpu_custom_call.1} parent=1 // pred_fallthru
      _
    // Predicated region
    $region46: #{tpu_custom_call.1} parent=1 // pred_check
      _
    $region47: #{tpu_custom_call.1} parent=1 // pred_check_branch
      %51 = sbr.rel (0) target = $region49
    $region48: #{tpu_custom_call.1} parent=1 // pred_region
      %52 = dma.done [#allocation4], 12288
    $region49: #{tpu_custom_call.1} parent=1 // pred_fallthru
      _
    %v54 = vld [vmem:[%s1] sm:$0x3f]
    %v55 = vld [vmem:[#allocation3] sm:$0xff]
    %v56 = vld [vmem:[#allocation3 + $0x8] sm:$0xff]
    %v57 = vld [vmem:[#allocation3 + $0x10] sm:$0xff]
    %v58 = vld [vmem:[#allocation3 + $0x18] sm:$0xff]
    %v59 = vld [vmem:[#allocation3 + $0x20] sm:$0xff]
    %v60 = vld [vmem:[#allocation3 + $0x28] sm:$0xff]
    %v61 = vld [vmem:[#allocation3 + $0x30] sm:$0xff]
    %v62 = vld [vmem:[#allocation3 + $0x38] sm:$0xff]
    %v63 = vld [vmem:[#allocation3 + $0x40] sm:$0xff]
    %v64 = vld [vmem:[#allocation3 + $0x48] sm:$0xff]
    %v65 = vld [vmem:[#allocation3 + $0x50] sm:$0xff]
    %v66 = vld [vmem:[#allocation3 + $0x58] sm:$0xff]
    %v67 = vld [vmem:[#allocation3 + $0x60] sm:$0xff]
    %v68 = vld [vmem:[#allocation3 + $0x68] sm:$0xff]
    %v69 = vld [vmem:[#allocation3 + $0x70] sm:$0xff]
    %v70 = vld [vmem:[#allocation3 + $0x78] sm:$0xff]
    %v71 = vld [vmem:[#allocation3 + $0x80] sm:$0xff]
    %v72 = vld [vmem:[#allocation3 + $0x88] sm:$0xff]
    %v73 = vld [vmem:[#allocation3 + $0x90] sm:$0xff]
    %v74 = vld [vmem:[#allocation3 + $0x98] sm:$0xff]
    %v75 = vld [vmem:[#allocation3 + $0xa0] sm:$0xff]
    %v76 = vld [vmem:[#allocation3 + $0xa8] sm:$0xff]
    %v77 = vld [vmem:[#allocation3 + $0xb0] sm:$0xff]
    %v78 = vld [vmem:[#allocation3 + $0xb8] sm:$0xff]
    %v79 = vld [vmem:[#allocation3 + $0xc0] sm:$0xff]
    %v80 = vld [vmem:[#allocation3 + $0xc8] sm:$0xff]
    %v81 = vld [vmem:[#allocation3 + $0xd0] sm:$0xff]
    %v82 = vld [vmem:[#allocation3 + $0xd8] sm:$0xff]
    %v83 = vld [vmem:[#allocation3 + $0xe0] sm:$0xff]
    %v84 = vld [vmem:[#allocation3 + $0xe8] sm:$0xff]
    %v85 = vld [vmem:[#allocation3 + $0xf0] sm:$0xff]
    %v86 = vld [vmem:[#allocation3 + $0xf8] sm:$0xff]
    %v87 = vld [vmem:[#allocation3 + $0x100] sm:$0xff]
    %v88 = vld [vmem:[#allocation3 + $0x108] sm:$0xff]
    %v89 = vld [vmem:[#allocation3 + $0x110] sm:$0xff]
    %v90 = vld [vmem:[#allocation3 + $0x118] sm:$0xff]
    %v91 = vld [vmem:[#allocation3 + $0x120] sm:$0xff]
    %v92 = vld [vmem:[#allocation3 + $0x128] sm:$0xff]
    %v93 = vld [vmem:[#allocation3 + $0x130] sm:$0xff]
    %v94 = vld [vmem:[#allocation3 + $0x138] sm:$0xff]
    %v95 = vld [vmem:[#allocation3 + $0x140] sm:$0xff]
    %v96 = vld [vmem:[#allocation3 + $0x148] sm:$0xff]
    %v97 = vld [vmem:[#allocation3 + $0x150] sm:$0xff]
    %v98 = vld [vmem:[#allocation3 + $0x158] sm:$0xff]
    %v99 = vld [vmem:[#allocation3 + $0x160] sm:$0xff]
    %v100 = vld [vmem:[#allocation3 + $0x168] sm:$0xff]
    %v101 = vld [vmem:[#allocation3 + $0x170] sm:$0xff]
    %v102 = vld [vmem:[#allocation3 + $0x178] sm:$0xff]
    %v103 = vld [vmem:[#allocation3 + $0x180] sm:$0xff]
    %v104 = vld [vmem:[#allocation3 + $0x188] sm:$0xff]
    %v105 = vld [vmem:[#allocation3 + $0x190] sm:$0xff]
    %v106 = vld [vmem:[#allocation3 + $0x198] sm:$0xff]
    %v107 = vld [vmem:[#allocation3 + $0x1a0] sm:$0xff]
    %v108 = vld [vmem:[#allocation3 + $0x1a8] sm:$0xff]
    %v109 = vld [vmem:[#allocation3 + $0x1b0] sm:$0xff]
    %v110 = vld [vmem:[#allocation3 + $0x1b8] sm:$0xff]
    %v111 = vld [vmem:[#allocation3 + $0x1c0] sm:$0xff]
    %v112 = vld [vmem:[#allocation3 + $0x1c8] sm:$0xff]
    %v113 = vld [vmem:[#allocation3 + $0x1d0] sm:$0xff]
    %v114 = vld [vmem:[#allocation3 + $0x1d8] sm:$0xff]
    %v115 = vld [vmem:[#allocation3 + $0x1e0] sm:$0xff]
    %v116 = vld [vmem:[#allocation3 + $0x1e8] sm:$0xff]
    %v117 = vld [vmem:[#allocation3 + $0x1f0] sm:$0xff]
    %v118 = vld [vmem:[#allocation3 + $0x1f8] sm:$0xff]
    %v119 = vld [vmem:[#allocation3 + $0x200] sm:$0xff]
    %v120 = vld [vmem:[#allocation3 + $0x208] sm:$0xff]
    %v121 = vld [vmem:[#allocation3 + $0x210] sm:$0xff]
    %v122 = vld [vmem:[#allocation3 + $0x218] sm:$0xff]
    %v123 = vld [vmem:[#allocation3 + $0x220] sm:$0xff]
    %v124 = vld [vmem:[#allocation3 + $0x228] sm:$0xff]
    %v125 = vld [vmem:[#allocation3 + $0x230] sm:$0xff]
    %v126 = vld [vmem:[#allocation3 + $0x238] sm:$0xff]
    %v127 = vld [vmem:[#allocation3 + $0x240] sm:$0xff]
    %v128 = vld [vmem:[#allocation3 + $0x248] sm:$0xff]
    %v129 = vld [vmem:[#allocation3 + $0x250] sm:$0xff]
    %v130 = vld [vmem:[#allocation3 + $0x258] sm:$0xff]
    %v131 = vld [vmem:[#allocation3 + $0x260] sm:$0xff]
    %v132 = vld [vmem:[#allocation3 + $0x268] sm:$0xff]
    %v133 = vld [vmem:[#allocation3 + $0x270] sm:$0xff]
    %v134 = vld [vmem:[#allocation3 + $0x278] sm:$0xff]
    %v135 = vld [vmem:[#allocation3 + $0x280] sm:$0xff]
    %v136 = vld [vmem:[#allocation3 + $0x288] sm:$0xff]
    %v137 = vld [vmem:[#allocation3 + $0x290] sm:$0xff]
    %v138 = vld [vmem:[#allocation3 + $0x298] sm:$0xff]
    %v139 = vld [vmem:[#allocation3 + $0x2a0] sm:$0xff]
    %v140 = vld [vmem:[#allocation3 + $0x2a8] sm:$0xff]
    %v141 = vld [vmem:[#allocation3 + $0x2b0] sm:$0xff]
    %v142 = vld [vmem:[#allocation3 + $0x2b8] sm:$0xff]
    %v143 = vld [vmem:[#allocation3 + $0x2c0] sm:$0xff]
    %v144 = vld [vmem:[#allocation3 + $0x2c8] sm:$0xff]
    %v145 = vld [vmem:[#allocation3 + $0x2d0] sm:$0xff]
    %v146 = vld [vmem:[#allocation3 + $0x2d8] sm:$0xff]
    %v147 = vld [vmem:[#allocation3 + $0x2e0] sm:$0xff]
    %v148 = vld [vmem:[#allocation3 + $0x2e8] sm:$0xff]
    %v149 = vld [vmem:[#allocation3 + $0x2f0] sm:$0xff]
    %v150 = vld [vmem:[#allocation3 + $0x2f8] sm:$0xff]
    %v151 = vld [vmem:[%s4] sm:$0xff]
    %v152 = vld [vmem:[%s4 + $0x8] sm:$0xff]
    %v153 = vld [vmem:[%s4 + $0x10] sm:$0xff]
    %v154 = vld [vmem:[%s4 + $0x18] sm:$0xff]
    %v155 = vld [vmem:[%s3] sm:$0xf]
    %v156 = vld [vmem:[%s3 + $0x4] sm:$0xf]
    %v157 = vld [vmem:[%s3 + $0x8] sm:$0xf]
    %v158 = vld [vmem:[%s3 + $0xc] sm:$0xf]
    %v159 = vld [vmem:[%s0] sm:$0xff]
    %v160 = vld [vmem:[%s0 + $0x8] sm:$0xff]
    %v161 = vld [vmem:[%s0 + $0x10] sm:$0xff]
    %v162 = vld [vmem:[%s0 + $0x18] sm:$0xf]
    %v163 = vld [vmem:[%s0 + $0x20] sm:$0xff]
    %v164 = vld [vmem:[%s0 + $0x28] sm:$0xff]
    %v165 = vld [vmem:[%s0 + $0x30] sm:$0xff]
    %v166 = vld [vmem:[%s0 + $0x38] sm:$0xf]
    %v171 = vunpack.c.l.b16 %v155
    %v172 = vunpack.c.l.b16 %v156
    %v173 = vunpack.c.l.b16 %v157
    %v174 = vunpack.c.l.b16 %v158
    %v175 = vpack.c.b16 %v172, %v171
    %v176 = vpack.c.b16 %v174, %v173
    %v185 = vunpack.c.l.b16 %v159
    %v186 = vunpack.c.h.b16 %v159
    %v187 = vunpack.c.l.b16 %v160
    %v188 = vunpack.c.h.b16 %v160
    %v189 = vunpack.c.l.b16 %v161
    %v190 = vunpack.c.h.b16 %v161
    %v191 = vunpack.c.l.b16 %v162
    %v192 = vunpack.c.l.b16 %v163
    %v193 = vunpack.c.h.b16 %v163
    %v194 = vunpack.c.l.b16 %v164
    %v195 = vunpack.c.h.b16 %v164
    %v196 = vunpack.c.l.b16 %v165
    %v197 = vunpack.c.h.b16 %v165
    %v198 = vunpack.c.l.b16 %v166
    %v199 = vpack.c.b16 %v192, %v185
    %v200 = vpack.c.b16 %v193, %v186
    %v201 = vpack.c.b16 %v194, %v187
    %v202 = vpack.c.b16 %v195, %v188
    %v203 = vpack.c.b16 %v196, %v189
    %v204 = vpack.c.b16 %v197, %v190
    %v205 = vpack.c.b16 %v198, %v191
    %206 = vrot.lane.b32.xlu0 %v199, 19
    %v207 = vpop.permute.xlu0 %206
    %208 = vrot.lane.b32.xlu0 %v200, 19
    %v209 = vpop.permute.xlu0 %208
    %210 = vrot.lane.b32.xlu0 %v201, 19
    %v211 = vpop.permute.xlu0 %210
    %212 = vrot.lane.b32.xlu0 %v202, 19
    %v213 = vpop.permute.xlu0 %212
    %214 = vrot.lane.b32.xlu0 %v203, 19
    %v215 = vpop.permute.xlu0 %214
    %216 = vrot.lane.b32.xlu0 %v204, 19
    %v217 = vpop.permute.xlu0 %216
    %218 = vrot.lane.b32.xlu0 %v205, 19
    %v219 = vpop.permute.xlu0 %218
    %vm220 = vcmask 154624
    %v221 = vsel %vm220, %v207, %v209
    %v222 = vsel %vm220, %v209, %v211
    %v223 = vsel %vm220, %v211, %v213
    %v224 = vsel %vm220, %v213, %v215
    %v225 = vsel %vm220, %v215, %v217
    %v226 = vsel %vm220, %v217, %v219
    %vm233 = vcmask 130048
    %v235 = vsel %vm233, %v175, 0
    %v238 = vsel %vm233, %v176, 0
    %240 = vmatprep.subr.bf16.mxu0 0
    %241 = vmatpush1.bf16.msra.mxu0 0
    %242 = vmatprep.subr.bf16.mxu0 0
    %243 = vmatpush1.bf16.msra.mxu0 0
    %244 = vmatprep.subr.bf16.mxu0 0
    %245 = vmatpush1.bf16.msra.mxu0 0
    %246 = vmatprep.subr.bf16.mxu0 0
    %247 = vmatpush1.bf16.msra.mxu0 0
    %248 = vmatprep.subr.bf16.mxu0 0
    %249 = vmatpush1.bf16.msra.mxu0 0
    %250 = vmatprep.subr.bf16.mxu0 0
    %251 = vmatpush1.bf16.msra.mxu0 0
    %252 = vmatprep.subr.bf16.mxu0 0
    %253 = vmatpush1.bf16.msra.mxu0 0
    %254 = vmatprep.subr.bf16.mxu0 %v222
    %255 = vmatpush1.bf16.msra.mxu0 %v221
    %256 = vmatprep.subr.bf16.mxu0 0
    %257 = vmatpush2.bf16.msra.mxu0 0
    %258 = vmatprep.subr.bf16.mxu0 0
    %259 = vmatpush2.bf16.msra.mxu0 0
    %260 = vmatprep.subr.bf16.mxu0 0
    %261 = vmatpush2.bf16.msra.mxu0 0
    %262 = vmatprep.subr.bf16.mxu0 0
    %263 = vmatpush2.bf16.msra.mxu0 0
    %264 = vmatprep.subr.bf16.mxu0 0
    %265 = vmatpush2.bf16.msra.mxu0 0
    %266 = vmatprep.subr.bf16.mxu0 0
    %267 = vmatpush2.bf16.msra.mxu0 0
    %268 = vmatprep.subr.bf16.mxu0 0
    %269 = vmatpush2.bf16.msra.mxu0 0
    %270 = vmatprep.subr.bf16.mxu0 0
    %271 = vmatpush2.bf16.msra.mxu0 0
    %272 = vmatprep.mubr.bf16.mxu0 0
    %273 = vmatmul.mubr.bf16.gmra.mxu0 %v235
    %v274 = vpop.f32.mrf.mxu0
    %v275 = vadd.f32 0.0, %v274
    %v276 = vpop.f32.mrf.mxu0
    %v277 = vadd.f32 0.0, %v276
    %v278 = vpop.f32.mrf.mxu0
    %v279 = vadd.f32 0.0, %v278
    %v280 = vpop.f32.mrf.mxu0
    %v281 = vadd.f32 0.0, %v280
    %282 = vmatprep.mubr.bf16.mxu0 0
    %283 = vmatmul.mubr.bf16.gmra.mxu0 %v238
    %v284 = vpop.f32.mrf.mxu0
    %v285 = vadd.f32 0.0, %v284
    %v286 = vpop.f32.mrf.mxu0
    %v287 = vadd.f32 0.0, %v286
    %v288 = vpop.f32.mrf.mxu0
    %v289 = vadd.f32 0.0, %v288
    %v290 = vpop.f32.mrf.mxu0
    %v291 = vadd.f32 0.0, %v290
    %292 = vdwg.mxu0
    %293 = vmatprep.subr.bf16.mxu0 0
    %294 = vmatpush1.bf16.msra.mxu0 0
    %295 = vmatprep.subr.bf16.mxu0 0
    %296 = vmatpush1.bf16.msra.mxu0 0
    %297 = vmatprep.subr.bf16.mxu0 0
    %298 = vmatpush1.bf16.msra.mxu0 0
    %299 = vmatprep.subr.bf16.mxu0 0
    %300 = vmatpush1.bf16.msra.mxu0 0
    %301 = vmatprep.subr.bf16.mxu0 0
    %302 = vmatpush1.bf16.msra.mxu0 0
    %303 = vmatprep.subr.bf16.mxu0 0
    %304 = vmatpush1.bf16.msra.mxu0 0
    %305 = vmatprep.subr.bf16.mxu0 0
    %306 = vmatpush1.bf16.msra.mxu0 0
    %307 = vmatprep.subr.bf16.mxu0 %v224
    %308 = vmatpush1.bf16.msra.mxu0 %v223
    %309 = vmatprep.subr.bf16.mxu0 0
    %310 = vmatpush2.bf16.msra.mxu0 0
    %311 = vmatprep.subr.bf16.mxu0 0
    %312 = vmatpush2.bf16.msra.mxu0 0
    %313 = vmatprep.subr.bf16.mxu0 0
    %314 = vmatpush2.bf16.msra.mxu0 0
    %315 = vmatprep.subr.bf16.mxu0 0
    %316 = vmatpush2.bf16.msra.mxu0 0
    %317 = vmatprep.subr.bf16.mxu0 0
    %318 = vmatpush2.bf16.msra.mxu0 0
    %319 = vmatprep.subr.bf16.mxu0 0
    %320 = vmatpush2.bf16.msra.mxu0 0
    %321 = vmatprep.subr.bf16.mxu0 0
    %322 = vmatpush2.bf16.msra.mxu0 0
    %323 = vmatprep.subr.bf16.mxu0 0
    %324 = vmatpush2.bf16.msra.mxu0 0
    %325 = vmatprep.mubr.bf16.mxu0 0
    %326 = vmatmul.mubr.bf16.gmra.mxu0 %v235
    %v327 = vpop.f32.mrf.mxu0
    %v328 = vadd.f32 0.0, %v327
    %v329 = vpop.f32.mrf.mxu0
    %v330 = vadd.f32 0.0, %v329
    %v331 = vpop.f32.mrf.mxu0
    %v332 = vadd.f32 0.0, %v331
    %v333 = vpop.f32.mrf.mxu0
    %v334 = vadd.f32 0.0, %v333
    %335 = vmatprep.mubr.bf16.mxu0 0
    %336 = vmatmul.mubr.bf16.gmra.mxu0 %v238
    %v337 = vpop.f32.mrf.mxu0
    %v338 = vadd.f32 0.0, %v337
    %v339 = vpop.f32.mrf.mxu0
    %v340 = vadd.f32 0.0, %v339
    %v341 = vpop.f32.mrf.mxu0
    %v342 = vadd.f32 0.0, %v341
    %v343 = vpop.f32.mrf.mxu0
    %v344 = vadd.f32 0.0, %v343
    %345 = vdwg.mxu0
    %346 = vmatprep.subr.bf16.mxu0 0
    %347 = vmatpush1.bf16.msra.mxu0 0
    %348 = vmatprep.subr.bf16.mxu0 0
    %349 = vmatpush1.bf16.msra.mxu0 0
    %350 = vmatprep.subr.bf16.mxu0 0
    %351 = vmatpush1.bf16.msra.mxu0 0
    %352 = vmatprep.subr.bf16.mxu0 0
    %353 = vmatpush1.bf16.msra.mxu0 0
    %354 = vmatprep.subr.bf16.mxu0 0
    %355 = vmatpush1.bf16.msra.mxu0 0
    %356 = vmatprep.subr.bf16.mxu0 0
    %357 = vmatpush1.bf16.msra.mxu0 0
    %358 = vmatprep.subr.bf16.mxu0 0
    %359 = vmatpush1.bf16.msra.mxu0 0
    %360 = vmatprep.subr.bf16.mxu0 %v226
    %361 = vmatpush1.bf16.msra.mxu0 %v225
    %362 = vmatprep.subr.bf16.mxu0 0
    %363 = vmatpush2.bf16.msra.mxu0 0
    %364 = vmatprep.subr.bf16.mxu0 0
    %365 = vmatpush2.bf16.msra.mxu0 0
    %366 = vmatprep.subr.bf16.mxu0 0
    %367 = vmatpush2.bf16.msra.mxu0 0
    %368 = vmatprep.subr.bf16.mxu0 0
    %369 = vmatpush2.bf16.msra.mxu0 0
    %370 = vmatprep.subr.bf16.mxu0 0
    %371 = vmatpush2.bf16.msra.mxu0 0
    %372 = vmatprep.subr.bf16.mxu0 0
    %373 = vmatpush2.bf16.msra.mxu0 0
    %374 = vmatprep.subr.bf16.mxu0 0
    %375 = vmatpush2.bf16.msra.mxu0 0
    %376 = vmatprep.subr.bf16.mxu0 0
    %377 = vmatpush2.bf16.msra.mxu0 0
    %378 = vmatprep.mubr.bf16.mxu0 0
    %379 = vmatmul.mubr.bf16.gmra.mxu0 %v235
    %v380 = vpop.f32.mrf.mxu0
    %v381 = vadd.f32 0.0, %v380
    %v382 = vpop.f32.mrf.mxu0
    %v383 = vadd.f32 0.0, %v382
    %v384 = vpop.f32.mrf.mxu0
    %v385 = vadd.f32 0.0, %v384
    %v386 = vpop.f32.mrf.mxu0
    %v387 = vadd.f32 0.0, %v386
    %388 = vmatprep.mubr.bf16.mxu0 0
    %389 = vmatmul.mubr.bf16.gmra.mxu0 %v238
    %v390 = vpop.f32.mrf.mxu0
    %v391 = vadd.f32 0.0, %v390
    %v392 = vpop.f32.mrf.mxu0
    %v393 = vadd.f32 0.0, %v392
    %v394 = vpop.f32.mrf.mxu0
    %v395 = vadd.f32 0.0, %v394
    %v396 = vpop.f32.mrf.mxu0
    %v397 = vadd.f32 0.0, %v396
    %398 = vdwg.mxu0
    %400 = vset.pattern.permute.xlu0 0
    %401 = vperm.xlu0 %400, %v151
    %v402 = vpop.permute.xlu0 %401
    %405 = vset.pattern.permute.xlu0 0
    %406 = vperm.xlu0 %405, %v152
    %v407 = vpop.permute.xlu0 %406
    %410 = vset.pattern.permute.xlu0 0
    %411 = vperm.xlu0 %410, %v153
    %v412 = vpop.permute.xlu0 %411
    %415 = vset.pattern.permute.xlu0 0
    %416 = vperm.xlu0 %415, %v154
    %v417 = vpop.permute.xlu0 %416
    %v419 = vadd.f32 %v402, %v275
    %v420 = vadd.f32 %v402, %v277
    %v421 = vadd.f32 %v402, %v328
    %v422 = vadd.f32 %v402, %v330
    %v423 = vadd.f32 %v402, %v381
    %v424 = vadd.f32 %v402, %v383
    %v425 = vadd.f32 %v407, %v279
    %v426 = vadd.f32 %v407, %v281
    %v427 = vadd.f32 %v407, %v332
    %v428 = vadd.f32 %v407, %v334
    %v429 = vadd.f32 %v407, %v385
    %v430 = vadd.f32 %v407, %v387
    %v431 = vadd.f32 %v412, %v285
    %v432 = vadd.f32 %v412, %v287
    %v433 = vadd.f32 %v412, %v338
    %v434 = vadd.f32 %v412, %v340
    %v435 = vadd.f32 %v412, %v391
    %v436 = vadd.f32 %v412, %v393
    %v437 = vadd.f32 %v417, %v289
    %v438 = vadd.f32 %v417, %v291
    %v439 = vadd.f32 %v417, %v342
    %v440 = vadd.f32 %v417, %v344
    %v441 = vadd.f32 %v417, %v395
    %v442 = vadd.f32 %v417, %v397
    %s443 = scalar_lea.vmem %s3, 16
    %v444 = vld [vmem:[%s443] sm:$0xf]
    %v445 = vld [vmem:[%s443 + $0x4] sm:$0xf]
    %v446 = vld [vmem:[%s443 + $0x8] sm:$0xf]
    %v447 = vld [vmem:[%s443 + $0xc] sm:$0xf]
    %v452 = vunpack.c.l.b16 %v444
    %v453 = vunpack.c.l.b16 %v445
    %v454 = vunpack.c.l.b16 %v446
    %v455 = vunpack.c.l.b16 %v447
    %v456 = vpack.c.b16 %v453, %v452
    %v457 = vpack.c.b16 %v455, %v454
    %458 = vrot.lane.b32.xlu0 %v199, 18
    %v459 = vpop.permute.xlu0 %458
    %460 = vrot.lane.b32.xlu0 %v200, 18
    %v461 = vpop.permute.xlu0 %460
    %462 = vrot.lane.b32.xlu0 %v201, 18
    %v463 = vpop.permute.xlu0 %462
    %464 = vrot.lane.b32.xlu0 %v202, 18
    %v465 = vpop.permute.xlu0 %464
    %466 = vrot.lane.b32.xlu0 %v203, 18
    %v467 = vpop.permute.xlu0 %466
    %468 = vrot.lane.b32.xlu0 %v204, 18
    %v469 = vpop.permute.xlu0 %468
    %470 = vrot.lane.b32.xlu0 %v205, 18
    %v471 = vpop.permute.xlu0 %470
    %vm472 = vcmask 146432
    %v473 = vsel %vm472, %v459, %v461
    %v474 = vsel %vm472, %v461, %v463
    %v475 = vsel %vm472, %v463, %v465
    %v476 = vsel %vm472, %v465, %v467
    %v477 = vsel %vm472, %v467, %v469
    %v478 = vsel %vm472, %v469, %v471
    %v486 = vsel %vm233, %v456, 0
    %v489 = vsel %vm233, %v457, 0
    %491 = vmatprep.subr.bf16.mxu0 0
    %492 = vmatpush1.bf16.msra.mxu0 0
    %493 = vmatprep.subr.bf16.mxu0 0
    %494 = vmatpush1.bf16.msra.mxu0 0
    %495 = vmatprep.subr.bf16.mxu0 0
    %496 = vmatpush1.bf16.msra.mxu0 0
    %497 = vmatprep.subr.bf16.mxu0 0
    %498 = vmatpush1.bf16.msra.mxu0 0
    %499 = vmatprep.subr.bf16.mxu0 0
    %500 = vmatpush1.bf16.msra.mxu0 0
    %501 = vmatprep.subr.bf16.mxu0 0
    %502 = vmatpush1.bf16.msra.mxu0 0
    %503 = vmatprep.subr.bf16.mxu0 0
    %504 = vmatpush1.bf16.msra.mxu0 0
    %505 = vmatprep.subr.bf16.mxu0 %v474
    %506 = vmatpush1.bf16.msra.mxu0 %v473
    %507 = vmatprep.subr.bf16.mxu0 0
    %508 = vmatpush2.bf16.msra.mxu0 0
    %509 = vmatprep.subr.bf16.mxu0 0
    %510 = vmatpush2.bf16.msra.mxu0 0
    %511 = vmatprep.subr.bf16.mxu0 0
    %512 = vmatpush2.bf16.msra.mxu0 0
    %513 = vmatprep.subr.bf16.mxu0 0
    %514 = vmatpush2.bf16.msra.mxu0 0
    %515 = vmatprep.subr.bf16.mxu0 0
    %516 = vmatpush2.bf16.msra.mxu0 0
    %517 = vmatprep.subr.bf16.mxu0 0
    %518 = vmatpush2.bf16.msra.mxu0 0
    %519 = vmatprep.subr.bf16.mxu0 0
    %520 = vmatpush2.bf16.msra.mxu0 0
    %521 = vmatprep.subr.bf16.mxu0 0
    %522 = vmatpush2.bf16.msra.mxu0 0
    %523 = vmatprep.mubr.bf16.mxu0 0
    %524 = vmatmul.mubr.bf16.gmra.mxu0 %v486
    %v525 = vpop.f32.mrf.mxu0
    %v526 = vadd.f32 0.0, %v525
    %v527 = vpop.f32.mrf.mxu0
    %v528 = vadd.f32 0.0, %v527
    %v529 = vpop.f32.mrf.mxu0
    %v530 = vadd.f32 0.0, %v529
    %v531 = vpop.f32.mrf.mxu0
    %v532 = vadd.f32 0.0, %v531
    %533 = vmatprep.mubr.bf16.mxu0 0
    %534 = vmatmul.mubr.bf16.gmra.mxu0 %v489
    %v535 = vpop.f32.mrf.mxu0
    %v536 = vadd.f32 0.0, %v535
    %v537 = vpop.f32.mrf.mxu0
    %v538 = vadd.f32 0.0, %v537
    %v539 = vpop.f32.mrf.mxu0
    %v540 = vadd.f32 0.0, %v539
    %v541 = vpop.f32.mrf.mxu0
    %v542 = vadd.f32 0.0, %v541
    %543 = vdwg.mxu0
    %544 = vmatprep.subr.bf16.mxu0 0
    %545 = vmatpush1.bf16.msra.mxu0 0
    %546 = vmatprep.subr.bf16.mxu0 0
    %547 = vmatpush1.bf16.msra.mxu0 0
    %548 = vmatprep.subr.bf16.mxu0 0
    %549 = vmatpush1.bf16.msra.mxu0 0
    %550 = vmatprep.subr.bf16.mxu0 0
    %551 = vmatpush1.bf16.msra.mxu0 0
    %552 = vmatprep.subr.bf16.mxu0 0
    %553 = vmatpush1.bf16.msra.mxu0 0
    %554 = vmatprep.subr.bf16.mxu0 0
    %555 = vmatpush1.bf16.msra.mxu0 0
    %556 = vmatprep.subr.bf16.mxu0 0
    %557 = vmatpush1.bf16.msra.mxu0 0
    %558 = vmatprep.subr.bf16.mxu0 %v476
    %559 = vmatpush1.bf16.msra.mxu0 %v475
    %560 = vmatprep.subr.bf16.mxu0 0
    %561 = vmatpush2.bf16.msra.mxu0 0
    %562 = vmatprep.subr.bf16.mxu0 0
    %563 = vmatpush2.bf16.msra.mxu0 0
    %564 = vmatprep.subr.bf16.mxu0 0
    %565 = vmatpush2.bf16.msra.mxu0 0
    %566 = vmatprep.subr.bf16.mxu0 0
    %567 = vmatpush2.bf16.msra.mxu0 0
    %568 = vmatprep.subr.bf16.mxu0 0
    %569 = vmatpush2.bf16.msra.mxu0 0
    %570 = vmatprep.subr.bf16.mxu0 0
    %571 = vmatpush2.bf16.msra.mxu0 0
    %572 = vmatprep.subr.bf16.mxu0 0
    %573 = vmatpush2.bf16.msra.mxu0 0
    %574 = vmatprep.subr.bf16.mxu0 0
    %575 = vmatpush2.bf16.msra.mxu0 0
    %576 = vmatprep.mubr.bf16.mxu0 0
    %577 = vmatmul.mubr.bf16.gmra.mxu0 %v486
    %v578 = vpop.f32.mrf.mxu0
    %v579 = vadd.f32 0.0, %v578
    %v580 = vpop.f32.mrf.mxu0
    %v581 = vadd.f32 0.0, %v580
    %v582 = vpop.f32.mrf.mxu0
    %v583 = vadd.f32 0.0, %v582
    %v584 = vpop.f32.mrf.mxu0
    %v585 = vadd.f32 0.0, %v584
    %586 = vmatprep.mubr.bf16.mxu0 0
    %587 = vmatmul.mubr.bf16.gmra.mxu0 %v489
    %v588 = vpop.f32.mrf.mxu0
    %v589 = vadd.f32 0.0, %v588
    %v590 = vpop.f32.mrf.mxu0
    %v591 = vadd.f32 0.0, %v590
    %v592 = vpop.f32.mrf.mxu0
    %v593 = vadd.f32 0.0, %v592
    %v594 = vpop.f32.mrf.mxu0
    %v595 = vadd.f32 0.0, %v594
    %596 = vdwg.mxu0
    %597 = vmatprep.subr.bf16.mxu0 0
    %598 = vmatpush1.bf16.msra.mxu0 0
    %599 = vmatprep.subr.bf16.mxu0 0
    %600 = vmatpush1.bf16.msra.mxu0 0
    %601 = vmatprep.subr.bf16.mxu0 0
    %602 = vmatpush1.bf16.msra.mxu0 0
    %603 = vmatprep.subr.bf16.mxu0 0
    %604 = vmatpush1.bf16.msra.mxu0 0
    %605 = vmatprep.subr.bf16.mxu0 0
    %606 = vmatpush1.bf16.msra.mxu0 0
    %607 = vmatprep.subr.bf16.mxu0 0
    %608 = vmatpush1.bf16.msra.mxu0 0
    %609 = vmatprep.subr.bf16.mxu0 0
    %610 = vmatpush1.bf16.msra.mxu0 0
    %611 = vmatprep.subr.bf16.mxu0 %v478
    %612 = vmatpush1.bf16.msra.mxu0 %v477
    %613 = vmatprep.subr.bf16.mxu0 0
    %614 = vmatpush2.bf16.msra.mxu0 0
    %615 = vmatprep.subr.bf16.mxu0 0
    %616 = vmatpush2.bf16.msra.mxu0 0
    %617 = vmatprep.subr.bf16.mxu0 0
    %618 = vmatpush2.bf16.msra.mxu0 0
    %619 = vmatprep.subr.bf16.mxu0 0
    %620 = vmatpush2.bf16.msra.mxu0 0
    %621 = vmatprep.subr.bf16.mxu0 0
    %622 = vmatpush2.bf16.msra.mxu0 0
    %623 = vmatprep.subr.bf16.mxu0 0
    %624 = vmatpush2.bf16.msra.mxu0 0
    %625 = vmatprep.subr.bf16.mxu0 0
    %626 = vmatpush2.bf16.msra.mxu0 0
    %627 = vmatprep.subr.bf16.mxu0 0
    %628 = vmatpush2.bf16.msra.mxu0 0
    %629 = vmatprep.mubr.bf16.mxu0 0
    %630 = vmatmul.mubr.bf16.gmra.mxu0 %v486
    %v631 = vpop.f32.mrf.mxu0
    %v632 = vadd.f32 0.0, %v631
    %v633 = vpop.f32.mrf.mxu0
    %v634 = vadd.f32 0.0, %v633
    %v635 = vpop.f32.mrf.mxu0
    %v636 = vadd.f32 0.0, %v635
    %v637 = vpop.f32.mrf.mxu0
    %v638 = vadd.f32 0.0, %v637
    %639 = vmatprep.mubr.bf16.mxu0 0
    %640 = vmatmul.mubr.bf16.gmra.mxu0 %v489
    %v641 = vpop.f32.mrf.mxu0
    %v642 = vadd.f32 0.0, %v641
    %v643 = vpop.f32.mrf.mxu0
    %v644 = vadd.f32 0.0, %v643
    %v645 = vpop.f32.mrf.mxu0
    %v646 = vadd.f32 0.0, %v645
    %v647 = vpop.f32.mrf.mxu0
    %v648 = vadd.f32 0.0, %v647
    %649 = vdwg.mxu0
    %v650 = vadd.f32 %v419, %v526
    %v651 = vadd.f32 %v420, %v528
    %v652 = vadd.f32 %v421, %v579
    %v653 = vadd.f32 %v422, %v581
    %v654 = vadd.f32 %v423, %v632
    %v655 = vadd.f32 %v424, %v634
    %v656 = vadd.f32 %v425, %v530
    %v657 = vadd.f32 %v426, %v532
    %v658 = vadd.f32 %v427, %v583
    %v659 = vadd.f32 %v428, %v585
    %v660 = vadd.f32 %v429, %v636
    %v661 = vadd.f32 %v430, %v638
    %v662 = vadd.f32 %v431, %v536
    %v663 = vadd.f32 %v432, %v538
    %v664 = vadd.f32 %v433, %v589
    %v665 = vadd.f32 %v434, %v591
    %v666 = vadd.f32 %v435, %v642
    %v667 = vadd.f32 %v436, %v644
    %v668 = vadd.f32 %v437, %v540
    %v669 = vadd.f32 %v438, %v542
    %v670 = vadd.f32 %v439, %v593
    %v671 = vadd.f32 %v440, %v595
    %v672 = vadd.f32 %v441, %v646
    %v673 = vadd.f32 %v442, %v648
    %s674 = scalar_lea.vmem %s3, 32
    %v675 = vld [vmem:[%s674] sm:$0xf]
    %v676 = vld [vmem:[%s674 + $0x4] sm:$0xf]
    %v677 = vld [vmem:[%s674 + $0x8] sm:$0xf]
    %v678 = vld [vmem:[%s674 + $0xc] sm:$0xf]
    %v683 = vunpack.c.l.b16 %v675
    %v684 = vunpack.c.l.b16 %v676
    %v685 = vunpack.c.l.b16 %v677
    %v686 = vunpack.c.l.b16 %v678
    %v687 = vpack.c.b16 %v684, %v683
    %v688 = vpack.c.b16 %v686, %v685
    %689 = vrot.lane.b32.xlu0 %v199, 17
    %v690 = vpop.permute.xlu0 %689
    %691 = vrot.lane.b32.xlu0 %v200, 17
    %v692 = vpop.permute.xlu0 %691
    %693 = vrot.lane.b32.xlu0 %v201, 17
    %v694 = vpop.permute.xlu0 %693
    %695 = vrot.lane.b32.xlu0 %v202, 17
    %v696 = vpop.permute.xlu0 %695
    %697 = vrot.lane.b32.xlu0 %v203, 17
    %v698 = vpop.permute.xlu0 %697
    %699 = vrot.lane.b32.xlu0 %v204, 17
    %v700 = vpop.permute.xlu0 %699
    %701 = vrot.lane.b32.xlu0 %v205, 17
    %v702 = vpop.permute.xlu0 %701
    %vm703 = vcmask 138240
    %v704 = vsel %vm703, %v690, %v692
    %v705 = vsel %vm703, %v692, %v694
    %v706 = vsel %vm703, %v694, %v696
    %v707 = vsel %vm703, %v696, %v698
    %v708 = vsel %vm703, %v698, %v700
    %v709 = vsel %vm703, %v700, %v702
    %v717 = vsel %vm233, %v687, 0
    %v720 = vsel %vm233, %v688, 0
    %722 = vmatprep.subr.bf16.mxu0 0
    %723 = vmatpush1.bf16.msra.mxu0 0
    %724 = vmatprep.subr.bf16.mxu0 0
    %725 = vmatpush1.bf16.msra.mxu0 0
    %726 = vmatprep.subr.bf16.mxu0 0
    %727 = vmatpush1.bf16.msra.mxu0 0
    %728 = vmatprep.subr.bf16.mxu0 0
    %729 = vmatpush1.bf16.msra.mxu0 0
    %730 = vmatprep.subr.bf16.mxu0 0
    %731 = vmatpush1.bf16.msra.mxu0 0
    %732 = vmatprep.subr.bf16.mxu0 0
    %733 = vmatpush1.bf16.msra.mxu0 0
    %734 = vmatprep.subr.bf16.mxu0 0
    %735 = vmatpush1.bf16.msra.mxu0 0
    %736 = vmatprep.subr.bf16.mxu0 %v705
    %737 = vmatpush1.bf16.msra.mxu0 %v704
    %738 = vmatprep.subr.bf16.mxu0 0
    %739 = vmatpush2.bf16.msra.mxu0 0
    %740 = vmatprep.subr.bf16.mxu0 0
    %741 = vmatpush2.bf16.msra.mxu0 0
    %742 = vmatprep.subr.bf16.mxu0 0
    %743 = vmatpush2.bf16.msra.mxu0 0
    %744 = vmatprep.subr.bf16.mxu0 0
    %745 = vmatpush2.bf16.msra.mxu0 0
    %746 = vmatprep.subr.bf16.mxu0 0
    %747 = vmatpush2.bf16.msra.mxu0 0
    %748 = vmatprep.subr.bf16.mxu0 0
    %749 = vmatpush2.bf16.msra.mxu0 0
    %750 = vmatprep.subr.bf16.mxu0 0
    %751 = vmatpush2.bf16.msra.mxu0 0
    %752 = vmatprep.subr.bf16.mxu0 0
    %753 = vmatpush2.bf16.msra.mxu0 0
    %754 = vmatprep.mubr.bf16.mxu0 0
    %755 = vmatmul.mubr.bf16.gmra.mxu0 %v717
    %v756 = vpop.f32.mrf.mxu0
    %v757 = vadd.f32 0.0, %v756
    %v758 = vpop.f32.mrf.mxu0
    %v759 = vadd.f32 0.0, %v758
    %v760 = vpop.f32.mrf.mxu0
    %v761 = vadd.f32 0.0, %v760
    %v762 = vpop.f32.mrf.mxu0
    %v763 = vadd.f32 0.0, %v762
    %764 = vmatprep.mubr.bf16.mxu0 0
    %765 = vmatmul.mubr.bf16.gmra.mxu0 %v720
    %v766 = vpop.f32.mrf.mxu0
    %v767 = vadd.f32 0.0, %v766
    %v768 = vpop.f32.mrf.mxu0
    %v769 = vadd.f32 0.0, %v768
    %v770 = vpop.f32.mrf.mxu0
    %v771 = vadd.f32 0.0, %v770
    %v772 = vpop.f32.mrf.mxu0
    %v773 = vadd.f32 0.0, %v772
    %774 = vdwg.mxu0
    %775 = vmatprep.subr.bf16.mxu0 0
    %776 = vmatpush1.bf16.msra.mxu0 0
    %777 = vmatprep.subr.bf16.mxu0 0
    %778 = vmatpush1.bf16.msra.mxu0 0
    %779 = vmatprep.subr.bf16.mxu0 0
    %780 = vmatpush1.bf16.msra.mxu0 0
    %781 = vmatprep.subr.bf16.mxu0 0
    %782 = vmatpush1.bf16.msra.mxu0 0
    %783 = vmatprep.subr.bf16.mxu0 0
    %784 = vmatpush1.bf16.msra.mxu0 0
    %785 = vmatprep.subr.bf16.mxu0 0
    %786 = vmatpush1.bf16.msra.mxu0 0
    %787 = vmatprep.subr.bf16.mxu0 0
    %788 = vmatpush1.bf16.msra.mxu0 0
    %789 = vmatprep.subr.bf16.mxu0 %v707
    %790 = vmatpush1.bf16.msra.mxu0 %v706
    %791 = vmatprep.subr.bf16.mxu0 0
    %792 = vmatpush2.bf16.msra.mxu0 0
    %793 = vmatprep.subr.bf16.mxu0 0
    %794 = vmatpush2.bf16.msra.mxu0 0
    %795 = vmatprep.subr.bf16.mxu0 0
    %796 = vmatpush2.bf16.msra.mxu0 0
    %797 = vmatprep.subr.bf16.mxu0 0
    %798 = vmatpush2.bf16.msra.mxu0 0
    %799 = vmatprep.subr.bf16.mxu0 0
    %800 = vmatpush2.bf16.msra.mxu0 0
    %801 = vmatprep.subr.bf16.mxu0 0
    %802 = vmatpush2.bf16.msra.mxu0 0
    %803 = vmatprep.subr.bf16.mxu0 0
    %804 = vmatpush2.bf16.msra.mxu0 0
    %805 = vmatprep.subr.bf16.mxu0 0
    %806 = vmatpush2.bf16.msra.mxu0 0
    %807 = vmatprep.mubr.bf16.mxu0 0
    %808 = vmatmul.mubr.bf16.gmra.mxu0 %v717
    %v809 = vpop.f32.mrf.mxu0
    %v810 = vadd.f32 0.0, %v809
    %v811 = vpop.f32.mrf.mxu0
    %v812 = vadd.f32 0.0, %v811
    %v813 = vpop.f32.mrf.mxu0
    %v814 = vadd.f32 0.0, %v813
    %v815 = vpop.f32.mrf.mxu0
    %v816 = vadd.f32 0.0, %v815
    %817 = vmatprep.mubr.bf16.mxu0 0
    %818 = vmatmul.mubr.bf16.gmra.mxu0 %v720
    %v819 = vpop.f32.mrf.mxu0
    %v820 = vadd.f32 0.0, %v819
    %v821 = vpop.f32.mrf.mxu0
    %v822 = vadd.f32 0.0, %v821
    %v823 = vpop.f32.mrf.mxu0
    %v824 = vadd.f32 0.0, %v823
    %v825 = vpop.f32.mrf.mxu0
    %v826 = vadd.f32 0.0, %v825
    %827 = vdwg.mxu0
    %828 = vmatprep.subr.bf16.mxu0 0
    %829 = vmatpush1.bf16.msra.mxu0 0
    %830 = vmatprep.subr.bf16.mxu0 0
    %831 = vmatpush1.bf16.msra.mxu0 0
    %832 = vmatprep.subr.bf16.mxu0 0
    %833 = vmatpush1.bf16.msra.mxu0 0
    %834 = vmatprep.subr.bf16.mxu0 0
    %835 = vmatpush1.bf16.msra.mxu0 0
    %836 = vmatprep.subr.bf16.mxu0 0
    %837 = vmatpush1.bf16.msra.mxu0 0
    %838 = vmatprep.subr.bf16.mxu0 0
    %839 = vmatpush1.bf16.msra.mxu0 0
    %840 = vmatprep.subr.bf16.mxu0 0
    %841 = vmatpush1.bf16.msra.mxu0 0
    %842 = vmatprep.subr.bf16.mxu0 %v709
    %843 = vmatpush1.bf16.msra.mxu0 %v708
    %844 = vmatprep.subr.bf16.mxu0 0
    %845 = vmatpush2.bf16.msra.mxu0 0
    %846 = vmatprep.subr.bf16.mxu0 0
    %847 = vmatpush2.bf16.msra.mxu0 0
    %848 = vmatprep.subr.bf16.mxu0 0
    %849 = vmatpush2.bf16.msra.mxu0 0
    %850 = vmatprep.subr.bf16.mxu0 0
    %851 = vmatpush2.bf16.msra.mxu0 0
    %852 = vmatprep.subr.bf16.mxu0 0
    %853 = vmatpush2.bf16.msra.mxu0 0
    %854 = vmatprep.subr.bf16.mxu0 0
    %855 = vmatpush2.bf16.msra.mxu0 0
    %856 = vmatprep.subr.bf16.mxu0 0
    %857 = vmatpush2.bf16.msra.mxu0 0
    %858 = vmatprep.subr.bf16.mxu0 0
    %859 = vmatpush2.bf16.msra.mxu0 0
    %860 = vmatprep.mubr.bf16.mxu0 0
    %861 = vmatmul.mubr.bf16.gmra.mxu0 %v717
    %v862 = vpop.f32.mrf.mxu0
    %v863 = vadd.f32 0.0, %v862
    %v864 = vpop.f32.mrf.mxu0
    %v865 = vadd.f32 0.0, %v864
    %v866 = vpop.f32.mrf.mxu0
    %v867 = vadd.f32 0.0, %v866
    %v868 = vpop.f32.mrf.mxu0
    %v869 = vadd.f32 0.0, %v868
    %870 = vmatprep.mubr.bf16.mxu0 0
    %871 = vmatmul.mubr.bf16.gmra.mxu0 %v720
    %v872 = vpop.f32.mrf.mxu0
    %v873 = vadd.f32 0.0, %v872
    %v874 = vpop.f32.mrf.mxu0
    %v875 = vadd.f32 0.0, %v874
    %v876 = vpop.f32.mrf.mxu0
    %v877 = vadd.f32 0.0, %v876
    %v878 = vpop.f32.mrf.mxu0
    %v879 = vadd.f32 0.0, %v878
    %880 = vdwg.mxu0
    %v881 = vadd.f32 %v650, %v757
    %v882 = vadd.f32 %v651, %v759
    %v883 = vadd.f32 %v652, %v810
    %v884 = vadd.f32 %v653, %v812
    %v885 = vadd.f32 %v654, %v863
    %v886 = vadd.f32 %v655, %v865
    %v887 = vadd.f32 %v656, %v761
    %v888 = vadd.f32 %v657, %v763
    %v889 = vadd.f32 %v658, %v814
    %v890 = vadd.f32 %v659, %v816
    %v891 = vadd.f32 %v660, %v867
    %v892 = vadd.f32 %v661, %v869
    %v893 = vadd.f32 %v662, %v767
    %v894 = vadd.f32 %v663, %v769
    %v895 = vadd.f32 %v664, %v820
    %v896 = vadd.f32 %v665, %v822
    %v897 = vadd.f32 %v666, %v873
    %v898 = vadd.f32 %v667, %v875
    %v899 = vadd.f32 %v668, %v771
    %v900 = vadd.f32 %v669, %v773
    %v901 = vadd.f32 %v670, %v824
    %v902 = vadd.f32 %v671, %v826
    %v903 = vadd.f32 %v672, %v877
    %v904 = vadd.f32 %v673, %v879
    %s905 = scalar_lea.vmem %s3, 48
    %v906 = vld [vmem:[%s905] sm:$0xf]
    %v907 = vld [vmem:[%s905 + $0x4] sm:$0xf]
    %v908 = vld [vmem:[%s905 + $0x8] sm:$0xf]
    %v909 = vld [vmem:[%s905 + $0xc] sm:$0xf]
    %v914 = vunpack.c.l.b16 %v906
    %v915 = vunpack.c.l.b16 %v907
    %v916 = vunpack.c.l.b16 %v908
    %v917 = vunpack.c.l.b16 %v909
    %v918 = vpack.c.b16 %v915, %v914
    %v919 = vpack.c.b16 %v917, %v916
    %920 = vrot.lane.b32.xlu0 %v199, 1
    %v921 = vpop.permute.xlu0 %920
    %922 = vrot.lane.b32.xlu0 %v200, 1
    %v923 = vpop.permute.xlu0 %922
    %924 = vrot.lane.b32.xlu0 %v201, 1
    %v925 = vpop.permute.xlu0 %924
    %926 = vrot.lane.b32.xlu0 %v202, 1
    %v927 = vpop.permute.xlu0 %926
    %928 = vrot.lane.b32.xlu0 %v203, 1
    %v929 = vpop.permute.xlu0 %928
    %930 = vrot.lane.b32.xlu0 %v204, 1
    %v931 = vpop.permute.xlu0 %930
    %932 = vrot.lane.b32.xlu0 %v205, 1
    %v933 = vpop.permute.xlu0 %932
    %vm934 = vcmask 7168
    %v935 = vsel %vm934, %v921, %v923
    %v936 = vsel %vm934, %v923, %v925
    %v937 = vsel %vm934, %v925, %v927
    %v938 = vsel %vm934, %v927, %v929
    %v939 = vsel %vm934, %v929, %v931
    %v940 = vsel %vm934, %v931, %v933
    %v948 = vsel %vm233, %v918, 0
    %v951 = vsel %vm233, %v919, 0
    %953 = vmatprep.subr.bf16.mxu0 0
    %954 = vmatpush1.bf16.msra.mxu0 0
    %955 = vmatprep.subr.bf16.mxu0 0
    %956 = vmatpush1.bf16.msra.mxu0 0
    %957 = vmatprep.subr.bf16.mxu0 0
    %958 = vmatpush1.bf16.msra.mxu0 0
    %959 = vmatprep.subr.bf16.mxu0 0
    %960 = vmatpush1.bf16.msra.mxu0 0
    %961 = vmatprep.subr.bf16.mxu0 0
    %962 = vmatpush1.bf16.msra.mxu0 0
    %963 = vmatprep.subr.bf16.mxu0 0
    %964 = vmatpush1.bf16.msra.mxu0 0
    %965 = vmatprep.subr.bf16.mxu0 0
    %966 = vmatpush1.bf16.msra.mxu0 0
    %967 = vmatprep.subr.bf16.mxu0 %v936
    %968 = vmatpush1.bf16.msra.mxu0 %v935
    %969 = vmatprep.subr.bf16.mxu0 0
    %970 = vmatpush2.bf16.msra.mxu0 0
    %971 = vmatprep.subr.bf16.mxu0 0
    %972 = vmatpush2.bf16.msra.mxu0 0
    %973 = vmatprep.subr.bf16.mxu0 0
    %974 = vmatpush2.bf16.msra.mxu0 0
    %975 = vmatprep.subr.bf16.mxu0 0
    %976 = vmatpush2.bf16.msra.mxu0 0
    %977 = vmatprep.subr.bf16.mxu0 0
    %978 = vmatpush2.bf16.msra.mxu0 0
    %979 = vmatprep.subr.bf16.mxu0 0
    %980 = vmatpush2.bf16.msra.mxu0 0
    %981 = vmatprep.subr.bf16.mxu0 0
    %982 = vmatpush2.bf16.msra.mxu0 0
    %983 = vmatprep.subr.bf16.mxu0 0
    %984 = vmatpush2.bf16.msra.mxu0 0
    %985 = vmatprep.mubr.bf16.mxu0 0
    %986 = vmatmul.mubr.bf16.gmra.mxu0 %v948
    %v987 = vpop.f32.mrf.mxu0
    %v988 = vadd.f32 0.0, %v987
    %v989 = vpop.f32.mrf.mxu0
    %v990 = vadd.f32 0.0, %v989
    %v991 = vpop.f32.mrf.mxu0
    %v992 = vadd.f32 0.0, %v991
    %v993 = vpop.f32.mrf.mxu0
    %v994 = vadd.f32 0.0, %v993
    %995 = vmatprep.mubr.bf16.mxu0 0
    %996 = vmatmul.mubr.bf16.gmra.mxu0 %v951
    %v997 = vpop.f32.mrf.mxu0
    %v998 = vadd.f32 0.0, %v997
    %v999 = vpop.f32.mrf.mxu0
    %v1000 = vadd.f32 0.0, %v999
    %v1001 = vpop.f32.mrf.mxu0
    %v1002 = vadd.f32 0.0, %v1001
    %v1003 = vpop.f32.mrf.mxu0
    %v1004 = vadd.f32 0.0, %v1003
    %1005 = vdwg.mxu0
    %1006 = vmatprep.subr.bf16.mxu0 0
    %1007 = vmatpush1.bf16.msra.mxu0 0
    %1008 = vmatprep.subr.bf16.mxu0 0
    %1009 = vmatpush1.bf16.msra.mxu0 0
    %1010 = vmatprep.subr.bf16.mxu0 0
    %1011 = vmatpush1.bf16.msra.mxu0 0
    %1012 = vmatprep.subr.bf16.mxu0 0
    %1013 = vmatpush1.bf16.msra.mxu0 0
    %1014 = vmatprep.subr.bf16.mxu0 0
    %1015 = vmatpush1.bf16.msra.mxu0 0
    %1016 = vmatprep.subr.bf16.mxu0 0
    %1017 = vmatpush1.bf16.msra.mxu0 0
    %1018 = vmatprep.subr.bf16.mxu0 0
    %1019 = vmatpush1.bf16.msra.mxu0 0
    %1020 = vmatprep.subr.bf16.mxu0 %v938
    %1021 = vmatpush1.bf16.msra.mxu0 %v937
    %1022 = vmatprep.subr.bf16.mxu0 0
    %1023 = vmatpush2.bf16.msra.mxu0 0
    %1024 = vmatprep.subr.bf16.mxu0 0
    %1025 = vmatpush2.bf16.msra.mxu0 0
    %1026 = vmatprep.subr.bf16.mxu0 0
    %1027 = vmatpush2.bf16.msra.mxu0 0
    %1028 = vmatprep.subr.bf16.mxu0 0
    %1029 = vmatpush2.bf16.msra.mxu0 0
    %1030 = vmatprep.subr.bf16.mxu0 0
    %1031 = vmatpush2.bf16.msra.mxu0 0
    %1032 = vmatprep.subr.bf16.mxu0 0
    %1033 = vmatpush2.bf16.msra.mxu0 0
    %1034 = vmatprep.subr.bf16.mxu0 0
    %1035 = vmatpush2.bf16.msra.mxu0 0
    %1036 = vmatprep.subr.bf16.mxu0 0
    %1037 = vmatpush2.bf16.msra.mxu0 0
    %1038 = vmatprep.mubr.bf16.mxu0 0
    %1039 = vmatmul.mubr.bf16.gmra.mxu0 %v948
    %v1040 = vpop.f32.mrf.mxu0
    %v1041 = vadd.f32 0.0, %v1040
    %v1042 = vpop.f32.mrf.mxu0
    %v1043 = vadd.f32 0.0, %v1042
    %v1044 = vpop.f32.mrf.mxu0
    %v1045 = vadd.f32 0.0, %v1044
    %v1046 = vpop.f32.mrf.mxu0
    %v1047 = vadd.f32 0.0, %v1046
    %1048 = vmatprep.mubr.bf16.mxu0 0
    %1049 = vmatmul.mubr.bf16.gmra.mxu0 %v951
    %v1050 = vpop.f32.mrf.mxu0
    %v1051 = vadd.f32 0.0, %v1050
    %v1052 = vpop.f32.mrf.mxu0
    %v1053 = vadd.f32 0.0, %v1052
    %v1054 = vpop.f32.mrf.mxu0
    %v1055 = vadd.f32 0.0, %v1054
    %v1056 = vpop.f32.mrf.mxu0
    %v1057 = vadd.f32 0.0, %v1056
    %1058 = vdwg.mxu0
    %1059 = vmatprep.subr.bf16.mxu0 0
    %1060 = vmatpush1.bf16.msra.mxu0 0
    %1061 = vmatprep.subr.bf16.mxu0 0
    %1062 = vmatpush1.bf16.msra.mxu0 0
    %1063 = vmatprep.subr.bf16.mxu0 0
    %1064 = vmatpush1.bf16.msra.mxu0 0
    %1065 = vmatprep.subr.bf16.mxu0 0
    %1066 = vmatpush1.bf16.msra.mxu0 0
    %1067 = vmatprep.subr.bf16.mxu0 0
    %1068 = vmatpush1.bf16.msra.mxu0 0
    %1069 = vmatprep.subr.bf16.mxu0 0
    %1070 = vmatpush1.bf16.msra.mxu0 0
    %1071 = vmatprep.subr.bf16.mxu0 0
    %1072 = vmatpush1.bf16.msra.mxu0 0
    %1073 = vmatprep.subr.bf16.mxu0 %v940
    %1074 = vmatpush1.bf16.msra.mxu0 %v939
    %1075 = vmatprep.subr.bf16.mxu0 0
    %1076 = vmatpush2.bf16.msra.mxu0 0
    %1077 = vmatprep.subr.bf16.mxu0 0
    %1078 = vmatpush2.bf16.msra.mxu0 0
    %1079 = vmatprep.subr.bf16.mxu0 0
    %1080 = vmatpush2.bf16.msra.mxu0 0
    %1081 = vmatprep.subr.bf16.mxu0 0
    %1082 = vmatpush2.bf16.msra.mxu0 0
    %1083 = vmatprep.subr.bf16.mxu0 0
    %1084 = vmatpush2.bf16.msra.mxu0 0
    %1085 = vmatprep.subr.bf16.mxu0 0
    %1086 = vmatpush2.bf16.msra.mxu0 0
    %1087 = vmatprep.subr.bf16.mxu0 0
    %1088 = vmatpush2.bf16.msra.mxu0 0
    %1089 = vmatprep.subr.bf16.mxu0 0
    %1090 = vmatpush2.bf16.msra.mxu0 0
    %1091 = vmatprep.mubr.bf16.mxu0 0
    %1092 = vmatmul.mubr.bf16.gmra.mxu0 %v948
    %v1093 = vpop.f32.mrf.mxu0
    %v1094 = vadd.f32 0.0, %v1093
    %v1095 = vpop.f32.mrf.mxu0
    %v1096 = vadd.f32 0.0, %v1095
    %v1097 = vpop.f32.mrf.mxu0
    %v1098 = vadd.f32 0.0, %v1097
    %v1099 = vpop.f32.mrf.mxu0
    %v1100 = vadd.f32 0.0, %v1099
    %1101 = vmatprep.mubr.bf16.mxu0 0
    %1102 = vmatmul.mubr.bf16.gmra.mxu0 %v951
    %v1103 = vpop.f32.mrf.mxu0
    %v1104 = vadd.f32 0.0, %v1103
    %v1105 = vpop.f32.mrf.mxu0
    %v1106 = vadd.f32 0.0, %v1105
    %v1107 = vpop.f32.mrf.mxu0
    %v1108 = vadd.f32 0.0, %v1107
    %v1109 = vpop.f32.mrf.mxu0
    %v1110 = vadd.f32 0.0, %v1109
    %1111 = vdwg.mxu0
    %v1112 = vadd.f32 %v881, %v988
    %v1113 = vadd.f32 %v882, %v990
    %v1114 = vadd.f32 %v883, %v1041
    %v1115 = vadd.f32 %v884, %v1043
    %v1116 = vadd.f32 %v885, %v1094
    %v1117 = vadd.f32 %v886, %v1096
    %v1118 = vadd.f32 %v887, %v992
    %v1119 = vadd.f32 %v888, %v994
    %v1120 = vadd.f32 %v889, %v1045
    %v1121 = vadd.f32 %v890, %v1047
    %v1122 = vadd.f32 %v891, %v1098
    %v1123 = vadd.f32 %v892, %v1100
    %v1124 = vadd.f32 %v893, %v998
    %v1125 = vadd.f32 %v894, %v1000
    %v1126 = vadd.f32 %v895, %v1051
    %v1127 = vadd.f32 %v896, %v1053
    %v1128 = vadd.f32 %v897, %v1104
    %v1129 = vadd.f32 %v898, %v1106
    %v1130 = vadd.f32 %v899, %v1002
    %v1131 = vadd.f32 %v900, %v1004
    %v1132 = vadd.f32 %v901, %v1055
    %v1133 = vadd.f32 %v902, %v1057
    %v1134 = vadd.f32 %v903, %v1108
    %v1135 = vadd.f32 %v904, %v1110
    %s1136 = scalar_lea.vmem %s3, 64
    %v1137 = vld [vmem:[%s1136] sm:$0xf]
    %v1138 = vld [vmem:[%s1136 + $0x4] sm:$0xf]
    %v1139 = vld [vmem:[%s1136 + $0x8] sm:$0xf]
    %v1140 = vld [vmem:[%s1136 + $0xc] sm:$0xf]
    %v1141 = vld [vmem:[%s0 + $0x4] sm:$0xff]
    %v1142 = vld [vmem:[%s0 + $0xc] sm:$0xff]
    %v1143 = vld [vmem:[%s0 + $0x14] sm:$0xff]
    %v1144 = vld [vmem:[%s0 + $0x24] sm:$0xff]
    %v1145 = vld [vmem:[%s0 + $0x2c] sm:$0xff]
    %v1146 = vld [vmem:[%s0 + $0x34] sm:$0xff]
    %v1151 = vunpack.c.l.b16 %v1137
    %v1152 = vunpack.c.l.b16 %v1138
    %v1153 = vunpack.c.l.b16 %v1139
    %v1154 = vunpack.c.l.b16 %v1140
    %v1155 = vpack.c.b16 %v1152, %v1151
    %v1156 = vpack.c.b16 %v1154, %v1153
    %v1163 = vunpack.c.l.b16 %v1141
    %v1164 = vunpack.c.h.b16 %v1141
    %v1165 = vunpack.c.l.b16 %v1142
    %v1166 = vunpack.c.h.b16 %v1142
    %v1167 = vunpack.c.l.b16 %v1143
    %v1168 = vunpack.c.h.b16 %v1143
    %v1169 = vunpack.c.l.b16 %v1144
    %v1170 = vunpack.c.h.b16 %v1144
    %v1171 = vunpack.c.l.b16 %v1145
    %v1172 = vunpack.c.h.b16 %v1145
    %v1173 = vunpack.c.l.b16 %v1146
    %v1174 = vunpack.c.h.b16 %v1146
    %v1175 = vpack.c.b16 %v1169, %v1163
    %v1176 = vpack.c.b16 %v1170, %v1164
    %v1177 = vpack.c.b16 %v1171, %v1165
    %v1178 = vpack.c.b16 %v1172, %v1166
    %v1179 = vpack.c.b16 %v1173, %v1167
    %v1180 = vpack.c.b16 %v1174, %v1168
    %v1188 = vsel %vm233, %v1155, 0
    %v1191 = vsel %vm233, %v1156, 0
    %1193 = vmatprep.subr.bf16.mxu0 0
    %1194 = vmatpush1.bf16.msra.mxu0 0
    %1195 = vmatprep.subr.bf16.mxu0 0
    %1196 = vmatpush1.bf16.msra.mxu0 0
    %1197 = vmatprep.subr.bf16.mxu0 0
    %1198 = vmatpush1.bf16.msra.mxu0 0
    %1199 = vmatprep.subr.bf16.mxu0 0
    %1200 = vmatpush1.bf16.msra.mxu0 0
    %1201 = vmatprep.subr.bf16.mxu0 0
    %1202 = vmatpush1.bf16.msra.mxu0 0
    %1203 = vmatprep.subr.bf16.mxu0 0
    %1204 = vmatpush1.bf16.msra.mxu0 0
    %1205 = vmatprep.subr.bf16.mxu0 0
    %1206 = vmatpush1.bf16.msra.mxu0 0
    %1207 = vmatprep.subr.bf16.mxu0 %v1176
    %1208 = vmatpush1.bf16.msra.mxu0 %v1175
    %1209 = vmatprep.subr.bf16.mxu0 0
    %1210 = vmatpush2.bf16.msra.mxu0 0
    %1211 = vmatprep.subr.bf16.mxu0 0
    %1212 = vmatpush2.bf16.msra.mxu0 0
    %1213 = vmatprep.subr.bf16.mxu0 0
    %1214 = vmatpush2.bf16.msra.mxu0 0
    %1215 = vmatprep.subr.bf16.mxu0 0
    %1216 = vmatpush2.bf16.msra.mxu0 0
    %1217 = vmatprep.subr.bf16.mxu0 0
    %1218 = vmatpush2.bf16.msra.mxu0 0
    %1219 = vmatprep.subr.bf16.mxu0 0
    %1220 = vmatpush2.bf16.msra.mxu0 0
    %1221 = vmatprep.subr.bf16.mxu0 0
    %1222 = vmatpush2.bf16.msra.mxu0 0
    %1223 = vmatprep.subr.bf16.mxu0 0
    %1224 = vmatpush2.bf16.msra.mxu0 0
    %1225 = vmatprep.mubr.bf16.mxu0 0
    %1226 = vmatmul.mubr.bf16.gmra.mxu0 %v1188
    %v1227 = vpop.f32.mrf.mxu0
    %v1228 = vadd.f32 0.0, %v1227
    %v1229 = vpop.f32.mrf.mxu0
    %v1230 = vadd.f32 0.0, %v1229
    %v1231 = vpop.f32.mrf.mxu0
    %v1232 = vadd.f32 0.0, %v1231
    %v1233 = vpop.f32.mrf.mxu0
    %v1234 = vadd.f32 0.0, %v1233
    %1235 = vmatprep.mubr.bf16.mxu0 0
    %1236 = vmatmul.mubr.bf16.gmra.mxu0 %v1191
    %v1237 = vpop.f32.mrf.mxu0
    %v1238 = vadd.f32 0.0, %v1237
    %v1239 = vpop.f32.mrf.mxu0
    %v1240 = vadd.f32 0.0, %v1239
    %v1241 = vpop.f32.mrf.mxu0
    %v1242 = vadd.f32 0.0, %v1241
    %v1243 = vpop.f32.mrf.mxu0
    %v1244 = vadd.f32 0.0, %v1243
    %1245 = vdwg.mxu0
    %1246 = vmatprep.subr.bf16.mxu0 0
    %1247 = vmatpush1.bf16.msra.mxu0 0
    %1248 = vmatprep.subr.bf16.mxu0 0
    %1249 = vmatpush1.bf16.msra.mxu0 0
    %1250 = vmatprep.subr.bf16.mxu0 0
    %1251 = vmatpush1.bf16.msra.mxu0 0
    %1252 = vmatprep.subr.bf16.mxu0 0
    %1253 = vmatpush1.bf16.msra.mxu0 0
    %1254 = vmatprep.subr.bf16.mxu0 0
    %1255 = vmatpush1.bf16.msra.mxu0 0
    %1256 = vmatprep.subr.bf16.mxu0 0
    %1257 = vmatpush1.bf16.msra.mxu0 0
    %1258 = vmatprep.subr.bf16.mxu0 0
    %1259 = vmatpush1.bf16.msra.mxu0 0
    %1260 = vmatprep.subr.bf16.mxu0 %v1178
    %1261 = vmatpush1.bf16.msra.mxu0 %v1177
    %1262 = vmatprep.subr.bf16.mxu0 0
    %1263 = vmatpush2.bf16.msra.mxu0 0
    %1264 = vmatprep.subr.bf16.mxu0 0
    %1265 = vmatpush2.bf16.msra.mxu0 0
    %1266 = vmatprep.subr.bf16.mxu0 0
    %1267 = vmatpush2.bf16.msra.mxu0 0
    %1268 = vmatprep.subr.bf16.mxu0 0
    %1269 = vmatpush2.bf16.msra.mxu0 0
    %1270 = vmatprep.subr.bf16.mxu0 0
    %1271 = vmatpush2.bf16.msra.mxu0 0
    %1272 = vmatprep.subr.bf16.mxu0 0
    %1273 = vmatpush2.bf16.msra.mxu0 0
    %1274 = vmatprep.subr.bf16.mxu0 0
    %1275 = vmatpush2.bf16.msra.mxu0 0
    %1276 = vmatprep.subr.bf16.mxu0 0
    %1277 = vmatpush2.bf16.msra.mxu0 0
    %1278 = vmatprep.mubr.bf16.mxu0 0
    %1279 = vmatmul.mubr.bf16.gmra.mxu0 %v1188
    %v1280 = vpop.f32.mrf.mxu0
    %v1281 = vadd.f32 0.0, %v1280
    %v1282 = vpop.f32.mrf.mxu0
    %v1283 = vadd.f32 0.0, %v1282
    %v1284 = vpop.f32.mrf.mxu0
    %v1285 = vadd.f32 0.0, %v1284
    %v1286 = vpop.f32.mrf.mxu0
    %v1287 = vadd.f32 0.0, %v1286
    %1288 = vmatprep.mubr.bf16.mxu0 0
    %1289 = vmatmul.mubr.bf16.gmra.mxu0 %v1191
    %v1290 = vpop.f32.mrf.mxu0
    %v1291 = vadd.f32 0.0, %v1290
    %v1292 = vpop.f32.mrf.mxu0
    %v1293 = vadd.f32 0.0, %v1292
    %v1294 = vpop.f32.mrf.mxu0
    %v1295 = vadd.f32 0.0, %v1294
    %v1296 = vpop.f32.mrf.mxu0
    %v1297 = vadd.f32 0.0, %v1296
    %1298 = vdwg.mxu0
    %1299 = vmatprep.subr.bf16.mxu0 0
    %1300 = vmatpush1.bf16.msra.mxu0 0
    %1301 = vmatprep.subr.bf16.mxu0 0
    %1302 = vmatpush1.bf16.msra.mxu0 0
    %1303 = vmatprep.subr.bf16.mxu0 0
    %1304 = vmatpush1.bf16.msra.mxu0 0
    %1305 = vmatprep.subr.bf16.mxu0 0
    %1306 = vmatpush1.bf16.msra.mxu0 0
    %1307 = vmatprep.subr.bf16.mxu0 0
    %1308 = vmatpush1.bf16.msra.mxu0 0
    %1309 = vmatprep.subr.bf16.mxu0 0
    %1310 = vmatpush1.bf16.msra.mxu0 0
    %1311 = vmatprep.subr.bf16.mxu0 0
    %1312 = vmatpush1.bf16.msra.mxu0 0
    %1313 = vmatprep.subr.bf16.mxu0 %v1180
    %1314 = vmatpush1.bf16.msra.mxu0 %v1179
    %1315 = vmatprep.subr.bf16.mxu0 0
    %1316 = vmatpush2.bf16.msra.mxu0 0
    %1317 = vmatprep.subr.bf16.mxu0 0
    %1318 = vmatpush2.bf16.msra.mxu0 0
    %1319 = vmatprep.subr.bf16.mxu0 0
    %1320 = vmatpush2.bf16.msra.mxu0 0
    %1321 = vmatprep.subr.bf16.mxu0 0
    %1322 = vmatpush2.bf16.msra.mxu0 0
    %1323 = vmatprep.subr.bf16.mxu0 0
    %1324 = vmatpush2.bf16.msra.mxu0 0
    %1325 = vmatprep.subr.bf16.mxu0 0
    %1326 = vmatpush2.bf16.msra.mxu0 0
    %1327 = vmatprep.subr.bf16.mxu0 0
    %1328 = vmatpush2.bf16.msra.mxu0 0
    %1329 = vmatprep.subr.bf16.mxu0 0
    %1330 = vmatpush2.bf16.msra.mxu0 0
    %1331 = vmatprep.mubr.bf16.mxu0 0
    %1332 = vmatmul.mubr.bf16.gmra.mxu0 %v1188
    %v1333 = vpop.f32.mrf.mxu0
    %v1334 = vadd.f32 0.0, %v1333
    %v1335 = vpop.f32.mrf.mxu0
    %v1336 = vadd.f32 0.0, %v1335
    %v1337 = vpop.f32.mrf.mxu0
    %v1338 = vadd.f32 0.0, %v1337
    %v1339 = vpop.f32.mrf.mxu0
    %v1340 = vadd.f32 0.0, %v1339
    %1341 = vmatprep.mubr.bf16.mxu0 0
    %1342 = vmatmul.mubr.bf16.gmra.mxu0 %v1191
    %v1343 = vpop.f32.mrf.mxu0
    %v1344 = vadd.f32 0.0, %v1343
    %v1345 = vpop.f32.mrf.mxu0
    %v1346 = vadd.f32 0.0, %v1345
    %v1347 = vpop.f32.mrf.mxu0
    %v1348 = vadd.f32 0.0, %v1347
    %v1349 = vpop.f32.mrf.mxu0
    %v1350 = vadd.f32 0.0, %v1349
    %1351 = vdwg.mxu0
    %v1352 = vadd.f32 %v1112, %v1228
    %v1353 = vadd.f32 %v1113, %v1230
    %v1354 = vadd.f32 %v1114, %v1281
    %v1355 = vadd.f32 %v1115, %v1283
    %v1356 = vadd.f32 %v1116, %v1334
    %v1357 = vadd.f32 %v1117, %v1336
    %v1358 = vadd.f32 %v1118, %v1232
    %v1359 = vadd.f32 %v1119, %v1234
    %v1360 = vadd.f32 %v1120, %v1285
    %v1361 = vadd.f32 %v1121, %v1287
    %v1362 = vadd.f32 %v1122, %v1338
    %v1363 = vadd.f32 %v1123, %v1340
    %v1364 = vadd.f32 %v1124, %v1238
    %v1365 = vadd.f32 %v1125, %v1240
    %v1366 = vadd.f32 %v1126, %v1291
    %v1367 = vadd.f32 %v1127, %v1293
    %v1368 = vadd.f32 %v1128, %v1344
    %v1369 = vadd.f32 %v1129, %v1346
    %v1370 = vadd.f32 %v1130, %v1242
    %v1371 = vadd.f32 %v1131, %v1244
    %v1372 = vadd.f32 %v1132, %v1295
    %v1373 = vadd.f32 %v1133, %v1297
    %v1374 = vadd.f32 %v1134, %v1348
    %v1375 = vadd.f32 %v1135, %v1350
    %s1376 = scalar_lea.vmem %s3, 80
    %v1377 = vld [vmem:[%s1376] sm:$0xf]
    %v1378 = vld [vmem:[%s1376 + $0x4] sm:$0xf]
    %v1379 = vld [vmem:[%s1376 + $0x8] sm:$0xf]
    %v1380 = vld [vmem:[%s1376 + $0xc] sm:$0xf]
    %v1381 = vld [vmem:[%s0 + $0x4] sm:$0xff]
    %v1382 = vld [vmem:[%s0 + $0xc] sm:$0xff]
    %v1383 = vld [vmem:[%s0 + $0x14] sm:$0xff]
    %v1384 = vld [vmem:[%s0 + $0x1c] sm:$0xf]
    %v1385 = vld [vmem:[%s0 + $0x24] sm:$0xff]
    %v1386 = vld [vmem:[%s0 + $0x2c] sm:$0xff]
    %v1387 = vld [vmem:[%s0 + $0x34] sm:$0xff]
    %v1388 = vld [vmem:[%s0 + $0x3c] sm:$0xf]
    %v1393 = vunpack.c.l.b16 %v1377
    %v1394 = vunpack.c.l.b16 %v1378
    %v1395 = vunpack.c.l.b16 %v1379
    %v1396 = vunpack.c.l.b16 %v1380
    %v1397 = vpack.c.b16 %v1394, %v1393
    %v1398 = vpack.c.b16 %v1396, %v1395
    %v1407 = vunpack.c.l.b16 %v1381
    %v1408 = vunpack.c.h.b16 %v1381
    %v1409 = vunpack.c.l.b16 %v1382
    %v1410 = vunpack.c.h.b16 %v1382
    %v1411 = vunpack.c.l.b16 %v1383
    %v1412 = vunpack.c.h.b16 %v1383
    %v1413 = vunpack.c.l.b16 %v1384
    %v1414 = vunpack.c.l.b16 %v1385
    %v1415 = vunpack.c.h.b16 %v1385
    %v1416 = vunpack.c.l.b16 %v1386
    %v1417 = vunpack.c.h.b16 %v1386
    %v1418 = vunpack.c.l.b16 %v1387
    %v1419 = vunpack.c.h.b16 %v1387
    %v1420 = vunpack.c.l.b16 %v1388
    %v1421 = vpack.c.b16 %v1414, %v1407
    %v1422 = vpack.c.b16 %v1415, %v1408
    %v1423 = vpack.c.b16 %v1416, %v1409
    %v1424 = vpack.c.b16 %v1417, %v1410
    %v1425 = vpack.c.b16 %v1418, %v1411
    %v1426 = vpack.c.b16 %v1419, %v1412
    %v1427 = vpack.c.b16 %v1420, %v1413
    %1428 = vrot.lane.b32.xlu0 %v1421, 127
    %v1429 = vpop.permute.xlu0 %1428
    %1430 = vrot.lane.b32.xlu0 %v1422, 127
    %v1431 = vpop.permute.xlu0 %1430
    %1432 = vrot.lane.b32.xlu0 %v1423, 127
    %v1433 = vpop.permute.xlu0 %1432
    %1434 = vrot.lane.b32.xlu0 %v1424, 127
    %v1435 = vpop.permute.xlu0 %1434
    %1436 = vrot.lane.b32.xlu0 %v1425, 127
    %v1437 = vpop.permute.xlu0 %1436
    %1438 = vrot.lane.b32.xlu0 %v1426, 127
    %v1439 = vpop.permute.xlu0 %1438
    %1440 = vrot.lane.b32.xlu0 %v1427, 127
    %v1441 = vpop.permute.xlu0 %1440
    %vm1442 = vcmask 1039360
    %v1443 = vsel %vm1442, %v1429, %v1431
    %v1444 = vsel %vm1442, %v1431, %v1433
    %v1445 = vsel %vm1442, %v1433, %v1435
    %v1446 = vsel %vm1442, %v1435, %v1437
    %v1447 = vsel %vm1442, %v1437, %v1439
    %v1448 = vsel %vm1442, %v1439, %v1441
    %v1456 = vsel %vm233, %v1397, 0
    %v1459 = vsel %vm233, %v1398, 0
    %1461 = vmatprep.subr.bf16.mxu0 0
    %1462 = vmatpush1.bf16.msra.mxu0 0
    %1463 = vmatprep.subr.bf16.mxu0 0
    %1464 = vmatpush1.bf16.msra.mxu0 0
    %1465 = vmatprep.subr.bf16.mxu0 0
    %1466 = vmatpush1.bf16.msra.mxu0 0
    %1467 = vmatprep.subr.bf16.mxu0 0
    %1468 = vmatpush1.bf16.msra.mxu0 0
    %1469 = vmatprep.subr.bf16.mxu0 0
    %1470 = vmatpush1.bf16.msra.mxu0 0
    %1471 = vmatprep.subr.bf16.mxu0 0
    %1472 = vmatpush1.bf16.msra.mxu0 0
    %1473 = vmatprep.subr.bf16.mxu0 0
    %1474 = vmatpush1.bf16.msra.mxu0 0
    %1475 = vmatprep.subr.bf16.mxu0 %v1444
    %1476 = vmatpush1.bf16.msra.mxu0 %v1443
    %1477 = vmatprep.subr.bf16.mxu0 0
    %1478 = vmatpush2.bf16.msra.mxu0 0
    %1479 = vmatprep.subr.bf16.mxu0 0
    %1480 = vmatpush2.bf16.msra.mxu0 0
    %1481 = vmatprep.subr.bf16.mxu0 0
    %1482 = vmatpush2.bf16.msra.mxu0 0
    %1483 = vmatprep.subr.bf16.mxu0 0
    %1484 = vmatpush2.bf16.msra.mxu0 0
    %1485 = vmatprep.subr.bf16.mxu0 0
    %1486 = vmatpush2.bf16.msra.mxu0 0
    %1487 = vmatprep.subr.bf16.mxu0 0
    %1488 = vmatpush2.bf16.msra.mxu0 0
    %1489 = vmatprep.subr.bf16.mxu0 0
    %1490 = vmatpush2.bf16.msra.mxu0 0
    %1491 = vmatprep.subr.bf16.mxu0 0
    %1492 = vmatpush2.bf16.msra.mxu0 0
    %1493 = vmatprep.mubr.bf16.mxu0 0
    %1494 = vmatmul.mubr.bf16.gmra.mxu0 %v1456
    %v1495 = vpop.f32.mrf.mxu0
    %v1496 = vadd.f32 0.0, %v1495
    %v1497 = vpop.f32.mrf.mxu0
    %v1498 = vadd.f32 0.0, %v1497
    %v1499 = vpop.f32.mrf.mxu0
    %v1500 = vadd.f32 0.0, %v1499
    %v1501 = vpop.f32.mrf.mxu0
    %v1502 = vadd.f32 0.0, %v1501
    %1503 = vmatprep.mubr.bf16.mxu0 0
    %1504 = vmatmul.mubr.bf16.gmra.mxu0 %v1459
    %v1505 = vpop.f32.mrf.mxu0
    %v1506 = vadd.f32 0.0, %v1505
    %v1507 = vpop.f32.mrf.mxu0
    %v1508 = vadd.f32 0.0, %v1507
    %v1509 = vpop.f32.mrf.mxu0
    %v1510 = vadd.f32 0.0, %v1509
    %v1511 = vpop.f32.mrf.mxu0
    %v1512 = vadd.f32 0.0, %v1511
    %1513 = vdwg.mxu0
    %1514 = vmatprep.subr.bf16.mxu0 0
    %1515 = vmatpush1.bf16.msra.mxu0 0
    %1516 = vmatprep.subr.bf16.mxu0 0
    %1517 = vmatpush1.bf16.msra.mxu0 0
    %1518 = vmatprep.subr.bf16.mxu0 0
    %1519 = vmatpush1.bf16.msra.mxu0 0
    %1520 = vmatprep.subr.bf16.mxu0 0
    %1521 = vmatpush1.bf16.msra.mxu0 0
    %1522 = vmatprep.subr.bf16.mxu0 0
    %1523 = vmatpush1.bf16.msra.mxu0 0
    %1524 = vmatprep.subr.bf16.mxu0 0
    %1525 = vmatpush1.bf16.msra.mxu0 0
    %1526 = vmatprep.subr.bf16.mxu0 0
    %1527 = vmatpush1.bf16.msra.mxu0 0
    %1528 = vmatprep.subr.bf16.mxu0 %v1446
    %1529 = vmatpush1.bf16.msra.mxu0 %v1445
    %1530 = vmatprep.subr.bf16.mxu0 0
    %1531 = vmatpush2.bf16.msra.mxu0 0
    %1532 = vmatprep.subr.bf16.mxu0 0
    %1533 = vmatpush2.bf16.msra.mxu0 0
    %1534 = vmatprep.subr.bf16.mxu0 0
    %1535 = vmatpush2.bf16.msra.mxu0 0
    %1536 = vmatprep.subr.bf16.mxu0 0
    %1537 = vmatpush2.bf16.msra.mxu0 0
    %1538 = vmatprep.subr.bf16.mxu0 0
    %1539 = vmatpush2.bf16.msra.mxu0 0
    %1540 = vmatprep.subr.bf16.mxu0 0
    %1541 = vmatpush2.bf16.msra.mxu0 0
    %1542 = vmatprep.subr.bf16.mxu0 0
    %1543 = vmatpush2.bf16.msra.mxu0 0
    %1544 = vmatprep.subr.bf16.mxu0 0
    %1545 = vmatpush2.bf16.msra.mxu0 0
    %1546 = vmatprep.mubr.bf16.mxu0 0
    %1547 = vmatmul.mubr.bf16.gmra.mxu0 %v1456
    %v1548 = vpop.f32.mrf.mxu0
    %v1549 = vadd.f32 0.0, %v1548
    %v1550 = vpop.f32.mrf.mxu0
    %v1551 = vadd.f32 0.0, %v1550
    %v1552 = vpop.f32.mrf.mxu0
    %v1553 = vadd.f32 0.0, %v1552
    %v1554 = vpop.f32.mrf.mxu0
    %v1555 = vadd.f32 0.0, %v1554
    %1556 = vmatprep.mubr.bf16.mxu0 0
    %1557 = vmatmul.mubr.bf16.gmra.mxu0 %v1459
    %v1558 = vpop.f32.mrf.mxu0
    %v1559 = vadd.f32 0.0, %v1558
    %v1560 = vpop.f32.mrf.mxu0
    %v1561 = vadd.f32 0.0, %v1560
    %v1562 = vpop.f32.mrf.mxu0
    %v1563 = vadd.f32 0.0, %v1562
    %v1564 = vpop.f32.mrf.mxu0
    %v1565 = vadd.f32 0.0, %v1564
    %1566 = vdwg.mxu0
    %1567 = vmatprep.subr.bf16.mxu0 0
    %1568 = vmatpush1.bf16.msra.mxu0 0
    %1569 = vmatprep.subr.bf16.mxu0 0
    %1570 = vmatpush1.bf16.msra.mxu0 0
    %1571 = vmatprep.subr.bf16.mxu0 0
    %1572 = vmatpush1.bf16.msra.mxu0 0
    %1573 = vmatprep.subr.bf16.mxu0 0
    %1574 = vmatpush1.bf16.msra.mxu0 0
    %1575 = vmatprep.subr.bf16.mxu0 0
    %1576 = vmatpush1.bf16.msra.mxu0 0
    %1577 = vmatprep.subr.bf16.mxu0 0
    %1578 = vmatpush1.bf16.msra.mxu0 0
    %1579 = vmatprep.subr.bf16.mxu0 0
    %1580 = vmatpush1.bf16.msra.mxu0 0
    %1581 = vmatprep.subr.bf16.mxu0 %v1448
    %1582 = vmatpush1.bf16.msra.mxu0 %v1447
    %1583 = vmatprep.subr.bf16.mxu0 0
    %1584 = vmatpush2.bf16.msra.mxu0 0
    %1585 = vmatprep.subr.bf16.mxu0 0
    %1586 = vmatpush2.bf16.msra.mxu0 0
    %1587 = vmatprep.subr.bf16.mxu0 0
    %1588 = vmatpush2.bf16.msra.mxu0 0
    %1589 = vmatprep.subr.bf16.mxu0 0
    %1590 = vmatpush2.bf16.msra.mxu0 0
    %1591 = vmatprep.subr.bf16.mxu0 0
    %1592 = vmatpush2.bf16.msra.mxu0 0
    %1593 = vmatprep.subr.bf16.mxu0 0
    %1594 = vmatpush2.bf16.msra.mxu0 0
    %1595 = vmatprep.subr.bf16.mxu0 0
    %1596 = vmatpush2.bf16.msra.mxu0 0
    %1597 = vmatprep.subr.bf16.mxu0 0
    %1598 = vmatpush2.bf16.msra.mxu0 0
    %1599 = vmatprep.mubr.bf16.mxu0 0
    %1600 = vmatmul.mubr.bf16.gmra.mxu0 %v1456
    %v1601 = vpop.f32.mrf.mxu0
    %v1602 = vadd.f32 0.0, %v1601
    %v1603 = vpop.f32.mrf.mxu0
    %v1604 = vadd.f32 0.0, %v1603
    %v1605 = vpop.f32.mrf.mxu0
    %v1606 = vadd.f32 0.0, %v1605
    %v1607 = vpop.f32.mrf.mxu0
    %v1608 = vadd.f32 0.0, %v1607
    %1609 = vmatprep.mubr.bf16.mxu0 0
    %1610 = vmatmul.mubr.bf16.gmra.mxu0 %v1459
    %v1611 = vpop.f32.mrf.mxu0
    %v1612 = vadd.f32 0.0, %v1611
    %v1613 = vpop.f32.mrf.mxu0
    %v1614 = vadd.f32 0.0, %v1613
    %v1615 = vpop.f32.mrf.mxu0
    %v1616 = vadd.f32 0.0, %v1615
    %v1617 = vpop.f32.mrf.mxu0
    %v1618 = vadd.f32 0.0, %v1617
    %1619 = vdwg.mxu0
    %v1620 = vadd.f32 %v1352, %v1496
    %v1621 = vadd.f32 %v1353, %v1498
    %v1622 = vadd.f32 %v1354, %v1549
    %v1623 = vadd.f32 %v1355, %v1551
    %v1624 = vadd.f32 %v1356, %v1602
    %v1625 = vadd.f32 %v1357, %v1604
    %v1626 = vadd.f32 %v1358, %v1500
    %v1627 = vadd.f32 %v1359, %v1502
    %v1628 = vadd.f32 %v1360, %v1553
    %v1629 = vadd.f32 %v1361, %v1555
    %v1630 = vadd.f32 %v1362, %v1606
    %v1631 = vadd.f32 %v1363, %v1608
    %v1632 = vadd.f32 %v1364, %v1506
    %v1633 = vadd.f32 %v1365, %v1508
    %v1634 = vadd.f32 %v1366, %v1559
    %v1635 = vadd.f32 %v1367, %v1561
    %v1636 = vadd.f32 %v1368, %v1612
    %v1637 = vadd.f32 %v1369, %v1614
    %v1638 = vadd.f32 %v1370, %v1510
    %v1639 = vadd.f32 %v1371, %v1512
    %v1640 = vadd.f32 %v1372, %v1563
    %v1641 = vadd.f32 %v1373, %v1565
    %v1642 = vadd.f32 %v1374, %v1616
    %v1643 = vadd.f32 %v1375, %v1618
    %s1644 = scalar_lea.vmem %s3, 96
    %v1645 = vld [vmem:[%s1644] sm:$0xf]
    %v1646 = vld [vmem:[%s1644 + $0x4] sm:$0xf]
    %v1647 = vld [vmem:[%s1644 + $0x8] sm:$0xf]
    %v1648 = vld [vmem:[%s1644 + $0xc] sm:$0xf]
    %v1653 = vunpack.c.l.b16 %v1645
    %v1654 = vunpack.c.l.b16 %v1646
    %v1655 = vunpack.c.l.b16 %v1647
    %v1656 = vunpack.c.l.b16 %v1648
    %v1657 = vpack.c.b16 %v1654, %v1653
    %v1658 = vpack.c.b16 %v1656, %v1655
    %1659 = vrot.lane.b32.xlu0 %v1421, 111
    %v1660 = vpop.permute.xlu0 %1659
    %1661 = vrot.lane.b32.xlu0 %v1422, 111
    %v1662 = vpop.permute.xlu0 %1661
    %1663 = vrot.lane.b32.xlu0 %v1423, 111
    %v1664 = vpop.permute.xlu0 %1663
    %1665 = vrot.lane.b32.xlu0 %v1424, 111
    %v1666 = vpop.permute.xlu0 %1665
    %1667 = vrot.lane.b32.xlu0 %v1425, 111
    %v1668 = vpop.permute.xlu0 %1667
    %1669 = vrot.lane.b32.xlu0 %v1426, 111
    %v1670 = vpop.permute.xlu0 %1669
    %1671 = vrot.lane.b32.xlu0 %v1427, 111
    %v1672 = vpop.permute.xlu0 %1671
    %vm1673 = vcmask 908288
    %v1674 = vsel %vm1673, %v1660, %v1662
    %v1675 = vsel %vm1673, %v1662, %v1664
    %v1676 = vsel %vm1673, %v1664, %v1666
    %v1677 = vsel %vm1673, %v1666, %v1668
    %v1678 = vsel %vm1673, %v1668, %v1670
    %v1679 = vsel %vm1673, %v1670, %v1672
    %v1687 = vsel %vm233, %v1657, 0
    %v1690 = vsel %vm233, %v1658, 0
    %1692 = vmatprep.subr.bf16.mxu0 0
    %1693 = vmatpush1.bf16.msra.mxu0 0
    %1694 = vmatprep.subr.bf16.mxu0 0
    %1695 = vmatpush1.bf16.msra.mxu0 0
    %1696 = vmatprep.subr.bf16.mxu0 0
    %1697 = vmatpush1.bf16.msra.mxu0 0
    %1698 = vmatprep.subr.bf16.mxu0 0
    %1699 = vmatpush1.bf16.msra.mxu0 0
    %1700 = vmatprep.subr.bf16.mxu0 0
    %1701 = vmatpush1.bf16.msra.mxu0 0
    %1702 = vmatprep.subr.bf16.mxu0 0
    %1703 = vmatpush1.bf16.msra.mxu0 0
    %1704 = vmatprep.subr.bf16.mxu0 0
    %1705 = vmatpush1.bf16.msra.mxu0 0
    %1706 = vmatprep.subr.bf16.mxu0 %v1675
    %1707 = vmatpush1.bf16.msra.mxu0 %v1674
    %1708 = vmatprep.subr.bf16.mxu0 0
    %1709 = vmatpush2.bf16.msra.mxu0 0
    %1710 = vmatprep.subr.bf16.mxu0 0
    %1711 = vmatpush2.bf16.msra.mxu0 0
    %1712 = vmatprep.subr.bf16.mxu0 0
    %1713 = vmatpush2.bf16.msra.mxu0 0
    %1714 = vmatprep.subr.bf16.mxu0 0
    %1715 = vmatpush2.bf16.msra.mxu0 0
    %1716 = vmatprep.subr.bf16.mxu0 0
    %1717 = vmatpush2.bf16.msra.mxu0 0
    %1718 = vmatprep.subr.bf16.mxu0 0
    %1719 = vmatpush2.bf16.msra.mxu0 0
    %1720 = vmatprep.subr.bf16.mxu0 0
    %1721 = vmatpush2.bf16.msra.mxu0 0
    %1722 = vmatprep.subr.bf16.mxu0 0
    %1723 = vmatpush2.bf16.msra.mxu0 0
    %1724 = vmatprep.mubr.bf16.mxu0 0
    %1725 = vmatmul.mubr.bf16.gmra.mxu0 %v1687
    %v1726 = vpop.f32.mrf.mxu0
    %v1727 = vadd.f32 0.0, %v1726
    %v1728 = vpop.f32.mrf.mxu0
    %v1729 = vadd.f32 0.0, %v1728
    %v1730 = vpop.f32.mrf.mxu0
    %v1731 = vadd.f32 0.0, %v1730
    %v1732 = vpop.f32.mrf.mxu0
    %v1733 = vadd.f32 0.0, %v1732
    %1734 = vmatprep.mubr.bf16.mxu0 0
    %1735 = vmatmul.mubr.bf16.gmra.mxu0 %v1690
    %v1736 = vpop.f32.mrf.mxu0
    %v1737 = vadd.f32 0.0, %v1736
    %v1738 = vpop.f32.mrf.mxu0
    %v1739 = vadd.f32 0.0, %v1738
    %v1740 = vpop.f32.mrf.mxu0
    %v1741 = vadd.f32 0.0, %v1740
    %v1742 = vpop.f32.mrf.mxu0
    %v1743 = vadd.f32 0.0, %v1742
    %1744 = vdwg.mxu0
    %1745 = vmatprep.subr.bf16.mxu0 0
    %1746 = vmatpush1.bf16.msra.mxu0 0
    %1747 = vmatprep.subr.bf16.mxu0 0
    %1748 = vmatpush1.bf16.msra.mxu0 0
    %1749 = vmatprep.subr.bf16.mxu0 0
    %1750 = vmatpush1.bf16.msra.mxu0 0
    %1751 = vmatprep.subr.bf16.mxu0 0
    %1752 = vmatpush1.bf16.msra.mxu0 0
    %1753 = vmatprep.subr.bf16.mxu0 0
    %1754 = vmatpush1.bf16.msra.mxu0 0
    %1755 = vmatprep.subr.bf16.mxu0 0
    %1756 = vmatpush1.bf16.msra.mxu0 0
    %1757 = vmatprep.subr.bf16.mxu0 0
    %1758 = vmatpush1.bf16.msra.mxu0 0
    %1759 = vmatprep.subr.bf16.mxu0 %v1677
    %1760 = vmatpush1.bf16.msra.mxu0 %v1676
    %1761 = vmatprep.subr.bf16.mxu0 0
    %1762 = vmatpush2.bf16.msra.mxu0 0
    %1763 = vmatprep.subr.bf16.mxu0 0
    %1764 = vmatpush2.bf16.msra.mxu0 0
    %1765 = vmatprep.subr.bf16.mxu0 0
    %1766 = vmatpush2.bf16.msra.mxu0 0
    %1767 = vmatprep.subr.bf16.mxu0 0
    %1768 = vmatpush2.bf16.msra.mxu0 0
    %1769 = vmatprep.subr.bf16.mxu0 0
    %1770 = vmatpush2.bf16.msra.mxu0 0
    %1771 = vmatprep.subr.bf16.mxu0 0
    %1772 = vmatpush2.bf16.msra.mxu0 0
    %1773 = vmatprep.subr.bf16.mxu0 0
    %1774 = vmatpush2.bf16.msra.mxu0 0
    %1775 = vmatprep.subr.bf16.mxu0 0
    %1776 = vmatpush2.bf16.msra.mxu0 0
    %1777 = vmatprep.mubr.bf16.mxu0 0
    %1778 = vmatmul.mubr.bf16.gmra.mxu0 %v1687
    %v1779 = vpop.f32.mrf.mxu0
    %v1780 = vadd.f32 0.0, %v1779
    %v1781 = vpop.f32.mrf.mxu0
    %v1782 = vadd.f32 0.0, %v1781
    %v1783 = vpop.f32.mrf.mxu0
    %v1784 = vadd.f32 0.0, %v1783
    %v1785 = vpop.f32.mrf.mxu0
    %v1786 = vadd.f32 0.0, %v1785
    %1787 = vmatprep.mubr.bf16.mxu0 0
    %1788 = vmatmul.mubr.bf16.gmra.mxu0 %v1690
    %v1789 = vpop.f32.mrf.mxu0
    %v1790 = vadd.f32 0.0, %v1789
    %v1791 = vpop.f32.mrf.mxu0
    %v1792 = vadd.f32 0.0, %v1791
    %v1793 = vpop.f32.mrf.mxu0
    %v1794 = vadd.f32 0.0, %v1793
    %v1795 = vpop.f32.mrf.mxu0
    %v1796 = vadd.f32 0.0, %v1795
    %1797 = vdwg.mxu0
    %1798 = vmatprep.subr.bf16.mxu0 0
    %1799 = vmatpush1.bf16.msra.mxu0 0
    %1800 = vmatprep.subr.bf16.mxu0 0
    %1801 = vmatpush1.bf16.msra.mxu0 0
    %1802 = vmatprep.subr.bf16.mxu0 0
    %1803 = vmatpush1.bf16.msra.mxu0 0
    %1804 = vmatprep.subr.bf16.mxu0 0
    %1805 = vmatpush1.bf16.msra.mxu0 0
    %1806 = vmatprep.subr.bf16.mxu0 0
    %1807 = vmatpush1.bf16.msra.mxu0 0
    %1808 = vmatprep.subr.bf16.mxu0 0
    %1809 = vmatpush1.bf16.msra.mxu0 0
    %1810 = vmatprep.subr.bf16.mxu0 0
    %1811 = vmatpush1.bf16.msra.mxu0 0
    %1812 = vmatprep.subr.bf16.mxu0 %v1679
    %1813 = vmatpush1.bf16.msra.mxu0 %v1678
    %1814 = vmatprep.subr.bf16.mxu0 0
    %1815 = vmatpush2.bf16.msra.mxu0 0
    %1816 = vmatprep.subr.bf16.mxu0 0
    %1817 = vmatpush2.bf16.msra.mxu0 0
    %1818 = vmatprep.subr.bf16.mxu0 0
    %1819 = vmatpush2.bf16.msra.mxu0 0
    %1820 = vmatprep.subr.bf16.mxu0 0
    %1821 = vmatpush2.bf16.msra.mxu0 0
    %1822 = vmatprep.subr.bf16.mxu0 0
    %1823 = vmatpush2.bf16.msra.mxu0 0
    %1824 = vmatprep.subr.bf16.mxu0 0
    %1825 = vmatpush2.bf16.msra.mxu0 0
    %1826 = vmatprep.subr.bf16.mxu0 0
    %1827 = vmatpush2.bf16.msra.mxu0 0
    %1828 = vmatprep.subr.bf16.mxu0 0
    %1829 = vmatpush2.bf16.msra.mxu0 0
    %1830 = vmatprep.mubr.bf16.mxu0 0
    %1831 = vmatmul.mubr.bf16.gmra.mxu0 %v1687
    %v1832 = vpop.f32.mrf.mxu0
    %v1833 = vadd.f32 0.0, %v1832
    %v1834 = vpop.f32.mrf.mxu0
    %v1835 = vadd.f32 0.0, %v1834
    %v1836 = vpop.f32.mrf.mxu0
    %v1837 = vadd.f32 0.0, %v1836
    %v1838 = vpop.f32.mrf.mxu0
    %v1839 = vadd.f32 0.0, %v1838
    %1840 = vmatprep.mubr.bf16.mxu0 0
    %1841 = vmatmul.mubr.bf16.gmra.mxu0 %v1690
    %v1842 = vpop.f32.mrf.mxu0
    %v1843 = vadd.f32 0.0, %v1842
    %v1844 = vpop.f32.mrf.mxu0
    %v1845 = vadd.f32 0.0, %v1844
    %v1846 = vpop.f32.mrf.mxu0
    %v1847 = vadd.f32 0.0, %v1846
    %v1848 = vpop.f32.mrf.mxu0
    %v1849 = vadd.f32 0.0, %v1848
    %1850 = vdwg.mxu0
    %v1851 = vadd.f32 %v1620, %v1727
    %v1852 = vadd.f32 %v1621, %v1729
    %v1853 = vadd.f32 %v1622, %v1780
    %v1854 = vadd.f32 %v1623, %v1782
    %v1855 = vadd.f32 %v1624, %v1833
    %v1856 = vadd.f32 %v1625, %v1835
    %v1857 = vadd.f32 %v1626, %v1731
    %v1858 = vadd.f32 %v1627, %v1733
    %v1859 = vadd.f32 %v1628, %v1784
    %v1860 = vadd.f32 %v1629, %v1786
    %v1861 = vadd.f32 %v1630, %v1837
    %v1862 = vadd.f32 %v1631, %v1839
    %v1863 = vadd.f32 %v1632, %v1737
    %v1864 = vadd.f32 %v1633, %v1739
    %v1865 = vadd.f32 %v1634, %v1790
    %v1866 = vadd.f32 %v1635, %v1792
    %v1867 = vadd.f32 %v1636, %v1843
    %v1868 = vadd.f32 %v1637, %v1845
    %v1869 = vadd.f32 %v1638, %v1741
    %v1870 = vadd.f32 %v1639, %v1743
    %v1871 = vadd.f32 %v1640, %v1794
    %v1872 = vadd.f32 %v1641, %v1796
    %v1873 = vadd.f32 %v1642, %v1847
    %v1874 = vadd.f32 %v1643, %v1849
    %s1875 = scalar_lea.vmem %s3, 112
    %v1876 = vld [vmem:[%s1875] sm:$0xf]
    %v1877 = vld [vmem:[%s1875 + $0x4] sm:$0xf]
    %v1878 = vld [vmem:[%s1875 + $0x8] sm:$0xf]
    %v1879 = vld [vmem:[%s1875 + $0xc] sm:$0xf]
    %v1884 = vunpack.c.l.b16 %v1876
    %v1885 = vunpack.c.l.b16 %v1877
    %v1886 = vunpack.c.l.b16 %v1878
    %v1887 = vunpack.c.l.b16 %v1879
    %v1888 = vpack.c.b16 %v1885, %v1884
    %v1889 = vpack.c.b16 %v1887, %v1886
    %1890 = vrot.lane.b32.xlu0 %v1421, 110
    %v1891 = vpop.permute.xlu0 %1890
    %1892 = vrot.lane.b32.xlu0 %v1422, 110
    %v1893 = vpop.permute.xlu0 %1892
    %1894 = vrot.lane.b32.xlu0 %v1423, 110
    %v1895 = vpop.permute.xlu0 %1894
    %1896 = vrot.lane.b32.xlu0 %v1424, 110
    %v1897 = vpop.permute.xlu0 %1896
    %1898 = vrot.lane.b32.xlu0 %v1425, 110
    %v1899 = vpop.permute.xlu0 %1898
    %1900 = vrot.lane.b32.xlu0 %v1426, 110
    %v1901 = vpop.permute.xlu0 %1900
    %1902 = vrot.lane.b32.xlu0 %v1427, 110
    %v1903 = vpop.permute.xlu0 %1902
    %vm1904 = vcmask 900096
    %v1905 = vsel %vm1904, %v1891, %v1893
    %v1906 = vsel %vm1904, %v1893, %v1895
    %v1907 = vsel %vm1904, %v1895, %v1897
    %v1908 = vsel %vm1904, %v1897, %v1899
    %v1909 = vsel %vm1904, %v1899, %v1901
    %v1910 = vsel %vm1904, %v1901, %v1903
    %v1918 = vsel %vm233, %v1888, 0
    %v1921 = vsel %vm233, %v1889, 0
    %1923 = vmatprep.subr.bf16.mxu0 0
    %1924 = vmatpush1.bf16.msra.mxu0 0
    %1925 = vmatprep.subr.bf16.mxu0 0
    %1926 = vmatpush1.bf16.msra.mxu0 0
    %1927 = vmatprep.subr.bf16.mxu0 0
    %1928 = vmatpush1.bf16.msra.mxu0 0
    %1929 = vmatprep.subr.bf16.mxu0 0
    %1930 = vmatpush1.bf16.msra.mxu0 0
    %1931 = vmatprep.subr.bf16.mxu0 0
    %1932 = vmatpush1.bf16.msra.mxu0 0
    %1933 = vmatprep.subr.bf16.mxu0 0
    %1934 = vmatpush1.bf16.msra.mxu0 0
    %1935 = vmatprep.subr.bf16.mxu0 0
    %1936 = vmatpush1.bf16.msra.mxu0 0
    %1937 = vmatprep.subr.bf16.mxu0 %v1906
    %1938 = vmatpush1.bf16.msra.mxu0 %v1905
    %1939 = vmatprep.subr.bf16.mxu0 0
    %1940 = vmatpush2.bf16.msra.mxu0 0
    %1941 = vmatprep.subr.bf16.mxu0 0
    %1942 = vmatpush2.bf16.msra.mxu0 0
    %1943 = vmatprep.subr.bf16.mxu0 0
    %1944 = vmatpush2.bf16.msra.mxu0 0
    %1945 = vmatprep.subr.bf16.mxu0 0
    %1946 = vmatpush2.bf16.msra.mxu0 0
    %1947 = vmatprep.subr.bf16.mxu0 0
    %1948 = vmatpush2.bf16.msra.mxu0 0
    %1949 = vmatprep.subr.bf16.mxu0 0
    %1950 = vmatpush2.bf16.msra.mxu0 0
    %1951 = vmatprep.subr.bf16.mxu0 0
    %1952 = vmatpush2.bf16.msra.mxu0 0
    %1953 = vmatprep.subr.bf16.mxu0 0
    %1954 = vmatpush2.bf16.msra.mxu0 0
    %1955 = vmatprep.mubr.bf16.mxu0 0
    %1956 = vmatmul.mubr.bf16.gmra.mxu0 %v1918
    %v1957 = vpop.f32.mrf.mxu0
    %v1958 = vadd.f32 0.0, %v1957
    %v1959 = vpop.f32.mrf.mxu0
    %v1960 = vadd.f32 0.0, %v1959
    %v1961 = vpop.f32.mrf.mxu0
    %v1962 = vadd.f32 0.0, %v1961
    %v1963 = vpop.f32.mrf.mxu0
    %v1964 = vadd.f32 0.0, %v1963
    %1965 = vmatprep.mubr.bf16.mxu0 0
    %1966 = vmatmul.mubr.bf16.gmra.mxu0 %v1921
    %v1967 = vpop.f32.mrf.mxu0
    %v1968 = vadd.f32 0.0, %v1967
    %v1969 = vpop.f32.mrf.mxu0
    %v1970 = vadd.f32 0.0, %v1969
    %v1971 = vpop.f32.mrf.mxu0
    %v1972 = vadd.f32 0.0, %v1971
    %v1973 = vpop.f32.mrf.mxu0
    %v1974 = vadd.f32 0.0, %v1973
    %1975 = vdwg.mxu0
    %1976 = vmatprep.subr.bf16.mxu0 0
    %1977 = vmatpush1.bf16.msra.mxu0 0
    %1978 = vmatprep.subr.bf16.mxu0 0
    %1979 = vmatpush1.bf16.msra.mxu0 0
    %1980 = vmatprep.subr.bf16.mxu0 0
    %1981 = vmatpush1.bf16.msra.mxu0 0
    %1982 = vmatprep.subr.bf16.mxu0 0
    %1983 = vmatpush1.bf16.msra.mxu0 0
    %1984 = vmatprep.subr.bf16.mxu0 0
    %1985 = vmatpush1.bf16.msra.mxu0 0
    %1986 = vmatprep.subr.bf16.mxu0 0
    %1987 = vmatpush1.bf16.msra.mxu0 0
    %1988 = vmatprep.subr.bf16.mxu0 0
    %1989 = vmatpush1.bf16.msra.mxu0 0
    %1990 = vmatprep.subr.bf16.mxu0 %v1908
    %1991 = vmatpush1.bf16.msra.mxu0 %v1907
    %1992 = vmatprep.subr.bf16.mxu0 0
    %1993 = vmatpush2.bf16.msra.mxu0 0
    %1994 = vmatprep.subr.bf16.mxu0 0
    %1995 = vmatpush2.bf16.msra.mxu0 0
    %1996 = vmatprep.subr.bf16.mxu0 0
    %1997 = vmatpush2.bf16.msra.mxu0 0
    %1998 = vmatprep.subr.bf16.mxu0 0
    %1999 = vmatpush2.bf16.msra.mxu0 0
    %2000 = vmatprep.subr.bf16.mxu0 0
    %2001 = vmatpush2.bf16.msra.mxu0 0
    %2002 = vmatprep.subr.bf16.mxu0 0
    %2003 = vmatpush2.bf16.msra.mxu0 0
    %2004 = vmatprep.subr.bf16.mxu0 0
    %2005 = vmatpush2.bf16.msra.mxu0 0
    %2006 = vmatprep.subr.bf16.mxu0 0
    %2007 = vmatpush2.bf16.msra.mxu0 0
    %2008 = vmatprep.mubr.bf16.mxu0 0
    %2009 = vmatmul.mubr.bf16.gmra.mxu0 %v1918
    %v2010 = vpop.f32.mrf.mxu0
    %v2011 = vadd.f32 0.0, %v2010
    %v2012 = vpop.f32.mrf.mxu0
    %v2013 = vadd.f32 0.0, %v2012
    %v2014 = vpop.f32.mrf.mxu0
    %v2015 = vadd.f32 0.0, %v2014
    %v2016 = vpop.f32.mrf.mxu0
    %v2017 = vadd.f32 0.0, %v2016
    %2018 = vmatprep.mubr.bf16.mxu0 0
    %2019 = vmatmul.mubr.bf16.gmra.mxu0 %v1921
    %v2020 = vpop.f32.mrf.mxu0
    %v2021 = vadd.f32 0.0, %v2020
    %v2022 = vpop.f32.mrf.mxu0
    %v2023 = vadd.f32 0.0, %v2022
    %v2024 = vpop.f32.mrf.mxu0
    %v2025 = vadd.f32 0.0, %v2024
    %v2026 = vpop.f32.mrf.mxu0
    %v2027 = vadd.f32 0.0, %v2026
    %2028 = vdwg.mxu0
    %2029 = vmatprep.subr.bf16.mxu0 0
    %2030 = vmatpush1.bf16.msra.mxu0 0
    %2031 = vmatprep.subr.bf16.mxu0 0
    %2032 = vmatpush1.bf16.msra.mxu0 0
    %2033 = vmatprep.subr.bf16.mxu0 0
    %2034 = vmatpush1.bf16.msra.mxu0 0
    %2035 = vmatprep.subr.bf16.mxu0 0
    %2036 = vmatpush1.bf16.msra.mxu0 0
    %2037 = vmatprep.subr.bf16.mxu0 0
    %2038 = vmatpush1.bf16.msra.mxu0 0
    %2039 = vmatprep.subr.bf16.mxu0 0
    %2040 = vmatpush1.bf16.msra.mxu0 0
    %2041 = vmatprep.subr.bf16.mxu0 0
    %2042 = vmatpush1.bf16.msra.mxu0 0
    %2043 = vmatprep.subr.bf16.mxu0 %v1910
    %2044 = vmatpush1.bf16.msra.mxu0 %v1909
    %2045 = vmatprep.subr.bf16.mxu0 0
    %2046 = vmatpush2.bf16.msra.mxu0 0
    %2047 = vmatprep.subr.bf16.mxu0 0
    %2048 = vmatpush2.bf16.msra.mxu0 0
    %2049 = vmatprep.subr.bf16.mxu0 0
    %2050 = vmatpush2.bf16.msra.mxu0 0
    %2051 = vmatprep.subr.bf16.mxu0 0
    %2052 = vmatpush2.bf16.msra.mxu0 0
    %2053 = vmatprep.subr.bf16.mxu0 0
    %2054 = vmatpush2.bf16.msra.mxu0 0
    %2055 = vmatprep.subr.bf16.mxu0 0
    %2056 = vmatpush2.bf16.msra.mxu0 0
    %2057 = vmatprep.subr.bf16.mxu0 0
    %2058 = vmatpush2.bf16.msra.mxu0 0
    %2059 = vmatprep.subr.bf16.mxu0 0
    %2060 = vmatpush2.bf16.msra.mxu0 0
    %2061 = vmatprep.mubr.bf16.mxu0 0
    %2062 = vmatmul.mubr.bf16.gmra.mxu0 %v1918
    %v2063 = vpop.f32.mrf.mxu0
    %v2064 = vadd.f32 0.0, %v2063
    %v2065 = vpop.f32.mrf.mxu0
    %v2066 = vadd.f32 0.0, %v2065
    %v2067 = vpop.f32.mrf.mxu0
    %v2068 = vadd.f32 0.0, %v2067
    %v2069 = vpop.f32.mrf.mxu0
    %v2070 = vadd.f32 0.0, %v2069
    %2071 = vmatprep.mubr.bf16.mxu0 0
    %2072 = vmatmul.mubr.bf16.gmra.mxu0 %v1921
    %v2073 = vpop.f32.mrf.mxu0
    %v2074 = vadd.f32 0.0, %v2073
    %v2075 = vpop.f32.mrf.mxu0
    %v2076 = vadd.f32 0.0, %v2075
    %v2077 = vpop.f32.mrf.mxu0
    %v2078 = vadd.f32 0.0, %v2077
    %v2079 = vpop.f32.mrf.mxu0
    %v2080 = vadd.f32 0.0, %v2079
    %2081 = vdwg.mxu0
    %v2082 = vadd.f32 %v1851, %v1958
    %v2083 = vadd.f32 %v1852, %v1960
    %v2084 = vadd.f32 %v1853, %v2011
    %v2085 = vadd.f32 %v1854, %v2013
    %v2086 = vadd.f32 %v1855, %v2064
    %v2087 = vadd.f32 %v1856, %v2066
    %v2088 = vadd.f32 %v1857, %v1962
    %v2089 = vadd.f32 %v1858, %v1964
    %v2090 = vadd.f32 %v1859, %v2015
    %v2091 = vadd.f32 %v1860, %v2017
    %v2092 = vadd.f32 %v1861, %v2068
    %v2093 = vadd.f32 %v1862, %v2070
    %v2094 = vadd.f32 %v1863, %v1968
    %v2095 = vadd.f32 %v1864, %v1970
    %v2096 = vadd.f32 %v1865, %v2021
    %v2097 = vadd.f32 %v1866, %v2023
    %v2098 = vadd.f32 %v1867, %v2074
    %v2099 = vadd.f32 %v1868, %v2076
    %v2100 = vadd.f32 %v1869, %v1972
    %v2101 = vadd.f32 %v1870, %v1974
    %v2102 = vadd.f32 %v1871, %v2025
    %v2103 = vadd.f32 %v1872, %v2027
    %v2104 = vadd.f32 %v1873, %v2078
    %v2105 = vadd.f32 %v1874, %v2080
    %s2106 = scalar_lea.vmem %s3, 128
    %v2107 = vld [vmem:[%s2106] sm:$0xf]
    %v2108 = vld [vmem:[%s2106 + $0x4] sm:$0xf]
    %v2109 = vld [vmem:[%s2106 + $0x8] sm:$0xf]
    %v2110 = vld [vmem:[%s2106 + $0xc] sm:$0xf]
    %v2115 = vunpack.c.l.b16 %v2107
    %v2116 = vunpack.c.l.b16 %v2108
    %v2117 = vunpack.c.l.b16 %v2109
    %v2118 = vunpack.c.l.b16 %v2110
    %v2119 = vpack.c.b16 %v2116, %v2115
    %v2120 = vpack.c.b16 %v2118, %v2117
    %2121 = vrot.lane.b32.xlu0 %v1421, 109
    %v2122 = vpop.permute.xlu0 %2121
    %2123 = vrot.lane.b32.xlu0 %v1422, 109
    %v2124 = vpop.permute.xlu0 %2123
    %2125 = vrot.lane.b32.xlu0 %v1423, 109
    %v2126 = vpop.permute.xlu0 %2125
    %2127 = vrot.lane.b32.xlu0 %v1424, 109
    %v2128 = vpop.permute.xlu0 %2127
    %2129 = vrot.lane.b32.xlu0 %v1425, 109
    %v2130 = vpop.permute.xlu0 %2129
    %2131 = vrot.lane.b32.xlu0 %v1426, 109
    %v2132 = vpop.permute.xlu0 %2131
    %2133 = vrot.lane.b32.xlu0 %v1427, 109
    %v2134 = vpop.permute.xlu0 %2133
    %vm2135 = vcmask 891904
    %v2136 = vsel %vm2135, %v2122, %v2124
    %v2137 = vsel %vm2135, %v2124, %v2126
    %v2138 = vsel %vm2135, %v2126, %v2128
    %v2139 = vsel %vm2135, %v2128, %v2130
    %v2140 = vsel %vm2135, %v2130, %v2132
    %v2141 = vsel %vm2135, %v2132, %v2134
    %v2149 = vsel %vm233, %v2119, 0
    %v2152 = vsel %vm233, %v2120, 0
    %2154 = vmatprep.subr.bf16.mxu0 0
    %2155 = vmatpush1.bf16.msra.mxu0 0
    %2156 = vmatprep.subr.bf16.mxu0 0
    %2157 = vmatpush1.bf16.msra.mxu0 0
    %2158 = vmatprep.subr.bf16.mxu0 0
    %2159 = vmatpush1.bf16.msra.mxu0 0
    %2160 = vmatprep.subr.bf16.mxu0 0
    %2161 = vmatpush1.bf16.msra.mxu0 0
    %2162 = vmatprep.subr.bf16.mxu0 0
    %2163 = vmatpush1.bf16.msra.mxu0 0
    %2164 = vmatprep.subr.bf16.mxu0 0
    %2165 = vmatpush1.bf16.msra.mxu0 0
    %2166 = vmatprep.subr.bf16.mxu0 0
    %2167 = vmatpush1.bf16.msra.mxu0 0
    %2168 = vmatprep.subr.bf16.mxu0 %v2137
    %2169 = vmatpush1.bf16.msra.mxu0 %v2136
    %2170 = vmatprep.subr.bf16.mxu0 0
    %2171 = vmatpush2.bf16.msra.mxu0 0
    %2172 = vmatprep.subr.bf16.mxu0 0
    %2173 = vmatpush2.bf16.msra.mxu0 0
    %2174 = vmatprep.subr.bf16.mxu0 0
    %2175 = vmatpush2.bf16.msra.mxu0 0
    %2176 = vmatprep.subr.bf16.mxu0 0
    %2177 = vmatpush2.bf16.msra.mxu0 0
    %2178 = vmatprep.subr.bf16.mxu0 0
    %2179 = vmatpush2.bf16.msra.mxu0 0
    %2180 = vmatprep.subr.bf16.mxu0 0
    %2181 = vmatpush2.bf16.msra.mxu0 0
    %2182 = vmatprep.subr.bf16.mxu0 0
    %2183 = vmatpush2.bf16.msra.mxu0 0
    %2184 = vmatprep.subr.bf16.mxu0 0
    %2185 = vmatpush2.bf16.msra.mxu0 0
    %2186 = vmatprep.mubr.bf16.mxu0 0
    %2187 = vmatmul.mubr.bf16.gmra.mxu0 %v2149
    %v2188 = vpop.f32.mrf.mxu0
    %v2189 = vadd.f32 0.0, %v2188
    %v2190 = vpop.f32.mrf.mxu0
    %v2191 = vadd.f32 0.0, %v2190
    %v2192 = vpop.f32.mrf.mxu0
    %v2193 = vadd.f32 0.0, %v2192
    %v2194 = vpop.f32.mrf.mxu0
    %v2195 = vadd.f32 0.0, %v2194
    %2196 = vmatprep.mubr.bf16.mxu0 0
    %2197 = vmatmul.mubr.bf16.gmra.mxu0 %v2152
    %v2198 = vpop.f32.mrf.mxu0
    %v2199 = vadd.f32 0.0, %v2198
    %v2200 = vpop.f32.mrf.mxu0
    %v2201 = vadd.f32 0.0, %v2200
    %v2202 = vpop.f32.mrf.mxu0
    %v2203 = vadd.f32 0.0, %v2202
    %v2204 = vpop.f32.mrf.mxu0
    %v2205 = vadd.f32 0.0, %v2204
    %2206 = vdwg.mxu0
    %2207 = vmatprep.subr.bf16.mxu0 0
    %2208 = vmatpush1.bf16.msra.mxu0 0
    %2209 = vmatprep.subr.bf16.mxu0 0
    %2210 = vmatpush1.bf16.msra.mxu0 0
    %2211 = vmatprep.subr.bf16.mxu0 0
    %2212 = vmatpush1.bf16.msra.mxu0 0
    %2213 = vmatprep.subr.bf16.mxu0 0
    %2214 = vmatpush1.bf16.msra.mxu0 0
    %2215 = vmatprep.subr.bf16.mxu0 0
    %2216 = vmatpush1.bf16.msra.mxu0 0
    %2217 = vmatprep.subr.bf16.mxu0 0
    %2218 = vmatpush1.bf16.msra.mxu0 0
    %2219 = vmatprep.subr.bf16.mxu0 0
    %2220 = vmatpush1.bf16.msra.mxu0 0
    %2221 = vmatprep.subr.bf16.mxu0 %v2139
    %2222 = vmatpush1.bf16.msra.mxu0 %v2138
    %2223 = vmatprep.subr.bf16.mxu0 0
    %2224 = vmatpush2.bf16.msra.mxu0 0
    %2225 = vmatprep.subr.bf16.mxu0 0
    %2226 = vmatpush2.bf16.msra.mxu0 0
    %2227 = vmatprep.subr.bf16.mxu0 0
    %2228 = vmatpush2.bf16.msra.mxu0 0
    %2229 = vmatprep.subr.bf16.mxu0 0
    %2230 = vmatpush2.bf16.msra.mxu0 0
    %2231 = vmatprep.subr.bf16.mxu0 0
    %2232 = vmatpush2.bf16.msra.mxu0 0
    %2233 = vmatprep.subr.bf16.mxu0 0
    %2234 = vmatpush2.bf16.msra.mxu0 0
    %2235 = vmatprep.subr.bf16.mxu0 0
    %2236 = vmatpush2.bf16.msra.mxu0 0
    %2237 = vmatprep.subr.bf16.mxu0 0
    %2238 = vmatpush2.bf16.msra.mxu0 0
    %2239 = vmatprep.mubr.bf16.mxu0 0
    %2240 = vmatmul.mubr.bf16.gmra.mxu0 %v2149
    %v2241 = vpop.f32.mrf.mxu0
    %v2242 = vadd.f32 0.0, %v2241
    %v2243 = vpop.f32.mrf.mxu0
    %v2244 = vadd.f32 0.0, %v2243
    %v2245 = vpop.f32.mrf.mxu0
    %v2246 = vadd.f32 0.0, %v2245
    %v2247 = vpop.f32.mrf.mxu0
    %v2248 = vadd.f32 0.0, %v2247
    %2249 = vmatprep.mubr.bf16.mxu0 0
    %2250 = vmatmul.mubr.bf16.gmra.mxu0 %v2152
    %v2251 = vpop.f32.mrf.mxu0
    %v2252 = vadd.f32 0.0, %v2251
    %v2253 = vpop.f32.mrf.mxu0
    %v2254 = vadd.f32 0.0, %v2253
    %v2255 = vpop.f32.mrf.mxu0
    %v2256 = vadd.f32 0.0, %v2255
    %v2257 = vpop.f32.mrf.mxu0
    %v2258 = vadd.f32 0.0, %v2257
    %2259 = vdwg.mxu0
    %2260 = vmatprep.subr.bf16.mxu0 0
    %2261 = vmatpush1.bf16.msra.mxu0 0
    %2262 = vmatprep.subr.bf16.mxu0 0
    %2263 = vmatpush1.bf16.msra.mxu0 0
    %2264 = vmatprep.subr.bf16.mxu0 0
    %2265 = vmatpush1.bf16.msra.mxu0 0
    %2266 = vmatprep.subr.bf16.mxu0 0
    %2267 = vmatpush1.bf16.msra.mxu0 0
    %2268 = vmatprep.subr.bf16.mxu0 0
    %2269 = vmatpush1.bf16.msra.mxu0 0
    %2270 = vmatprep.subr.bf16.mxu0 0
    %2271 = vmatpush1.bf16.msra.mxu0 0
    %2272 = vmatprep.subr.bf16.mxu0 0
    %2273 = vmatpush1.bf16.msra.mxu0 0
    %2274 = vmatprep.subr.bf16.mxu0 %v2141
    %2275 = vmatpush1.bf16.msra.mxu0 %v2140
    %2276 = vmatprep.subr.bf16.mxu0 0
    %2277 = vmatpush2.bf16.msra.mxu0 0
    %2278 = vmatprep.subr.bf16.mxu0 0
    %2279 = vmatpush2.bf16.msra.mxu0 0
    %2280 = vmatprep.subr.bf16.mxu0 0
    %2281 = vmatpush2.bf16.msra.mxu0 0
    %2282 = vmatprep.subr.bf16.mxu0 0
    %2283 = vmatpush2.bf16.msra.mxu0 0
    %2284 = vmatprep.subr.bf16.mxu0 0
    %2285 = vmatpush2.bf16.msra.mxu0 0
    %2286 = vmatprep.subr.bf16.mxu0 0
    %2287 = vmatpush2.bf16.msra.mxu0 0
    %2288 = vmatprep.subr.bf16.mxu0 0
    %2289 = vmatpush2.bf16.msra.mxu0 0
    %2290 = vmatprep.subr.bf16.mxu0 0
    %2291 = vmatpush2.bf16.msra.mxu0 0
    %2292 = vmatprep.mubr.bf16.mxu0 0
    %2293 = vmatmul.mubr.bf16.gmra.mxu0 %v2149
    %v2294 = vpop.f32.mrf.mxu0
    %v2295 = vadd.f32 0.0, %v2294
    %v2296 = vpop.f32.mrf.mxu0
    %v2297 = vadd.f32 0.0, %v2296
    %v2298 = vpop.f32.mrf.mxu0
    %v2299 = vadd.f32 0.0, %v2298
    %v2300 = vpop.f32.mrf.mxu0
    %v2301 = vadd.f32 0.0, %v2300
    %2302 = vmatprep.mubr.bf16.mxu0 0
    %2303 = vmatmul.mubr.bf16.gmra.mxu0 %v2152
    %v2304 = vpop.f32.mrf.mxu0
    %v2305 = vadd.f32 0.0, %v2304
    %v2306 = vpop.f32.mrf.mxu0
    %v2307 = vadd.f32 0.0, %v2306
    %v2308 = vpop.f32.mrf.mxu0
    %v2309 = vadd.f32 0.0, %v2308
    %v2310 = vpop.f32.mrf.mxu0
    %v2311 = vadd.f32 0.0, %v2310
    %2312 = vdwg.mxu0
    %v2313 = vadd.f32 %v2082, %v2189
    %v2314 = vadd.f32 %v2083, %v2191
    %v2315 = vadd.f32 %v2084, %v2242
    %v2316 = vadd.f32 %v2085, %v2244
    %v2317 = vadd.f32 %v2086, %v2295
    %v2318 = vadd.f32 %v2087, %v2297
    %v2319 = vadd.f32 %v2088, %v2193
    %v2320 = vadd.f32 %v2089, %v2195
    %v2321 = vadd.f32 %v2090, %v2246
    %v2322 = vadd.f32 %v2091, %v2248
    %v2323 = vadd.f32 %v2092, %v2299
    %v2324 = vadd.f32 %v2093, %v2301
    %v2325 = vadd.f32 %v2094, %v2199
    %v2326 = vadd.f32 %v2095, %v2201
    %v2327 = vadd.f32 %v2096, %v2252
    %v2328 = vadd.f32 %v2097, %v2254
    %v2329 = vadd.f32 %v2098, %v2305
    %v2330 = vadd.f32 %v2099, %v2307
    %v2331 = vadd.f32 %v2100, %v2203
    %v2332 = vadd.f32 %v2101, %v2205
    %v2333 = vadd.f32 %v2102, %v2256
    %v2334 = vadd.f32 %v2103, %v2258
    %v2335 = vadd.f32 %v2104, %v2309
    %v2336 = vadd.f32 %v2105, %v2311
    %v2337 = vld [vmem:[%s5] sm:$0xff]
    %v2338 = vld [vmem:[%s5 + $0x8] sm:$0xff]
    %v2339 = vld [vmem:[%s6] sm:$0xff]
    %v2340 = vld [vmem:[%s6 + $0x8] sm:$0xff]
    %2341 = vmatprep.subr.mxu0 0.0
    %2342 = vmatpush1.msra.mxu0 %v70
    %2343 = vmatprep.subr.mxu0 0.0
    %2344 = vmatpush1.msra.mxu0 %v69
    %2345 = vmatprep.subr.mxu0 0.0
    %2346 = vmatpush1.msra.mxu0 %v68
    %2347 = vmatprep.subr.mxu0 0.0
    %2348 = vmatpush1.msra.mxu0 %v67
    %2349 = vmatprep.subr.mxu0 0.0
    %2350 = vmatpush1.msra.mxu0 %v66
    %2351 = vmatprep.subr.mxu0 0.0
    %2352 = vmatpush1.msra.mxu0 %v65
    %2353 = vmatprep.subr.mxu0 0.0
    %2354 = vmatpush1.msra.mxu0 %v64
    %2355 = vmatprep.subr.mxu0 0.0
    %2356 = vmatpush1.msra.mxu0 %v63
    %2357 = vmatprep.subr.mxu0 0.0
    %2358 = vmatpush1.msra.mxu0 %v62
    %2359 = vmatprep.subr.mxu0 0.0
    %2360 = vmatpush1.msra.mxu0 %v61
    %2361 = vmatprep.subr.mxu0 0.0
    %2362 = vmatpush1.msra.mxu0 %v60
    %2363 = vmatprep.subr.mxu0 0.0
    %2364 = vmatpush1.msra.mxu0 %v59
    %2365 = vmatprep.subr.mxu0 0.0
    %2366 = vmatpush1.msra.mxu0 %v58
    %2367 = vmatprep.subr.mxu0 0.0
    %2368 = vmatpush1.msra.mxu0 %v57
    %2369 = vmatprep.subr.mxu0 0.0
    %2370 = vmatpush1.msra.mxu0 %v56
    %2371 = vmatprep.subr.mxu0 0.0
    %2372 = vmatpush1.msra.mxu0 %v55
    %2373 = vmatprep.subr.mxu0 0.0
    %2374 = vmatpush2.msra.mxu0 %v86
    %2375 = vmatprep.subr.mxu0 0.0
    %2376 = vmatpush2.msra.mxu0 %v85
    %2377 = vmatprep.subr.mxu0 0.0
    %2378 = vmatpush2.msra.mxu0 %v84
    %2379 = vmatprep.subr.mxu0 0.0
    %2380 = vmatpush2.msra.mxu0 %v83
    %2381 = vmatprep.subr.mxu0 0.0
    %2382 = vmatpush2.msra.mxu0 %v82
    %2383 = vmatprep.subr.mxu0 0.0
    %2384 = vmatpush2.msra.mxu0 %v81
    %2385 = vmatprep.subr.mxu0 0.0
    %2386 = vmatpush2.msra.mxu0 %v80
    %2387 = vmatprep.subr.mxu0 0.0
    %2388 = vmatpush2.msra.mxu0 %v79
    %2389 = vmatprep.subr.mxu0 0.0
    %2390 = vmatpush2.msra.mxu0 %v78
    %2391 = vmatprep.subr.mxu0 0.0
    %2392 = vmatpush2.msra.mxu0 %v77
    %2393 = vmatprep.subr.mxu0 0.0
    %2394 = vmatpush2.msra.mxu0 %v76
    %2395 = vmatprep.subr.mxu0 0.0
    %2396 = vmatpush2.msra.mxu0 %v75
    %2397 = vmatprep.subr.mxu0 0.0
    %2398 = vmatpush2.msra.mxu0 %v74
    %2399 = vmatprep.subr.mxu0 0.0
    %2400 = vmatpush2.msra.mxu0 %v73
    %2401 = vmatprep.subr.mxu0 0.0
    %2402 = vmatpush2.msra.mxu0 %v72
    %2403 = vmatprep.subr.mxu0 0.0
    %2404 = vmatpush2.msra.mxu0 %v71
    %2405 = vmatprep.mubr.f32.mxu0 %v2314
    %2406 = vmatmul.mubr.f32.gmra.mxu0 %v2313
    %v2407 = vpop.f32.mrf.mxu0
    %v2408 = vadd.f32 0.0, %v2407
    %v2409 = vpop.f32.mrf.mxu0
    %2410 = vmatprep.mubr.f32.mxu0 %v2320
    %2411 = vmatmul.mubr.f32.gmra.mxu0 %v2319
    %v2412 = vpop.f32.mrf.mxu0
    %v2413 = vadd.f32 0.0, %v2412
    %v2414 = vpop.f32.mrf.mxu0
    %2415 = vdwg.mxu0
    %2416 = vmatprep.subr.mxu0 0.0
    %2417 = vmatpush1.msra.mxu0 %v102
    %2418 = vmatprep.subr.mxu0 0.0
    %2419 = vmatpush1.msra.mxu0 %v101
    %2420 = vmatprep.subr.mxu0 0.0
    %2421 = vmatpush1.msra.mxu0 %v100
    %2422 = vmatprep.subr.mxu0 0.0
    %2423 = vmatpush1.msra.mxu0 %v99
    %2424 = vmatprep.subr.mxu0 0.0
    %2425 = vmatpush1.msra.mxu0 %v98
    %2426 = vmatprep.subr.mxu0 0.0
    %2427 = vmatpush1.msra.mxu0 %v97
    %2428 = vmatprep.subr.mxu0 0.0
    %2429 = vmatpush1.msra.mxu0 %v96
    %2430 = vmatprep.subr.mxu0 0.0
    %2431 = vmatpush1.msra.mxu0 %v95
    %2432 = vmatprep.subr.mxu0 0.0
    %2433 = vmatpush1.msra.mxu0 %v94
    %2434 = vmatprep.subr.mxu0 0.0
    %2435 = vmatpush1.msra.mxu0 %v93
    %2436 = vmatprep.subr.mxu0 0.0
    %2437 = vmatpush1.msra.mxu0 %v92
    %2438 = vmatprep.subr.mxu0 0.0
    %2439 = vmatpush1.msra.mxu0 %v91
    %2440 = vmatprep.subr.mxu0 0.0
    %2441 = vmatpush1.msra.mxu0 %v90
    %2442 = vmatprep.subr.mxu0 0.0
    %2443 = vmatpush1.msra.mxu0 %v89
    %2444 = vmatprep.subr.mxu0 0.0
    %2445 = vmatpush1.msra.mxu0 %v88
    %2446 = vmatprep.subr.mxu0 0.0
    %2447 = vmatpush1.msra.mxu0 %v87
    %2448 = vmatprep.subr.mxu0 0.0
    %2449 = vmatpush2.msra.mxu0 %v118
    %2450 = vmatprep.subr.mxu0 0.0
    %2451 = vmatpush2.msra.mxu0 %v117
    %2452 = vmatprep.subr.mxu0 0.0
    %2453 = vmatpush2.msra.mxu0 %v116
    %2454 = vmatprep.subr.mxu0 0.0
    %2455 = vmatpush2.msra.mxu0 %v115
    %2456 = vmatprep.subr.mxu0 0.0
    %2457 = vmatpush2.msra.mxu0 %v114
    %2458 = vmatprep.subr.mxu0 0.0
    %2459 = vmatpush2.msra.mxu0 %v113
    %2460 = vmatprep.subr.mxu0 0.0
    %2461 = vmatpush2.msra.mxu0 %v112
    %2462 = vmatprep.subr.mxu0 0.0
    %2463 = vmatpush2.msra.mxu0 %v111
    %2464 = vmatprep.subr.mxu0 0.0
    %2465 = vmatpush2.msra.mxu0 %v110
    %2466 = vmatprep.subr.mxu0 0.0
    %2467 = vmatpush2.msra.mxu0 %v109
    %2468 = vmatprep.subr.mxu0 0.0
    %2469 = vmatpush2.msra.mxu0 %v108
    %2470 = vmatprep.subr.mxu0 0.0
    %2471 = vmatpush2.msra.mxu0 %v107
    %2472 = vmatprep.subr.mxu0 0.0
    %2473 = vmatpush2.msra.mxu0 %v106
    %2474 = vmatprep.subr.mxu0 0.0
    %2475 = vmatpush2.msra.mxu0 %v105
    %2476 = vmatprep.subr.mxu0 0.0
    %2477 = vmatpush2.msra.mxu0 %v104
    %2478 = vmatprep.subr.mxu0 0.0
    %2479 = vmatpush2.msra.mxu0 %v103
    %2480 = vmatprep.mubr.f32.mxu0 %v2316
    %2481 = vmatmul.mubr.f32.gmra.mxu0 %v2315
    %v2482 = vpop.f32.mrf.mxu0
    %v2483 = vadd.f32 %v2408, %v2482
    %v2484 = vpop.f32.mrf.mxu0
    %2485 = vmatprep.mubr.f32.mxu0 %v2322
    %2486 = vmatmul.mubr.f32.gmra.mxu0 %v2321
    %v2487 = vpop.f32.mrf.mxu0
    %v2488 = vadd.f32 %v2413, %v2487
    %v2489 = vpop.f32.mrf.mxu0
    %2490 = vdwg.mxu0
    %2491 = vmatprep.subr.mxu0 0.0
    %2492 = vmatpush1.msra.mxu0 %v134
    %2493 = vmatprep.subr.mxu0 0.0
    %2494 = vmatpush1.msra.mxu0 %v133
    %2495 = vmatprep.subr.mxu0 0.0
    %2496 = vmatpush1.msra.mxu0 %v132
    %2497 = vmatprep.subr.mxu0 0.0
    %2498 = vmatpush1.msra.mxu0 %v131
    %2499 = vmatprep.subr.mxu0 0.0
    %2500 = vmatpush1.msra.mxu0 %v130
    %2501 = vmatprep.subr.mxu0 0.0
    %2502 = vmatpush1.msra.mxu0 %v129
    %2503 = vmatprep.subr.mxu0 0.0
    %2504 = vmatpush1.msra.mxu0 %v128
    %2505 = vmatprep.subr.mxu0 0.0
    %2506 = vmatpush1.msra.mxu0 %v127
    %2507 = vmatprep.subr.mxu0 0.0
    %2508 = vmatpush1.msra.mxu0 %v126
    %2509 = vmatprep.subr.mxu0 0.0
    %2510 = vmatpush1.msra.mxu0 %v125
    %2511 = vmatprep.subr.mxu0 0.0
    %2512 = vmatpush1.msra.mxu0 %v124
    %2513 = vmatprep.subr.mxu0 0.0
    %2514 = vmatpush1.msra.mxu0 %v123
    %2515 = vmatprep.subr.mxu0 0.0
    %2516 = vmatpush1.msra.mxu0 %v122
    %2517 = vmatprep.subr.mxu0 0.0
    %2518 = vmatpush1.msra.mxu0 %v121
    %2519 = vmatprep.subr.mxu0 0.0
    %2520 = vmatpush1.msra.mxu0 %v120
    %2521 = vmatprep.subr.mxu0 0.0
    %2522 = vmatpush1.msra.mxu0 %v119
    %2523 = vmatprep.subr.mxu0 0.0
    %2524 = vmatpush2.msra.mxu0 %v150
    %2525 = vmatprep.subr.mxu0 0.0
    %2526 = vmatpush2.msra.mxu0 %v149
    %2527 = vmatprep.subr.mxu0 0.0
    %2528 = vmatpush2.msra.mxu0 %v148
    %2529 = vmatprep.subr.mxu0 0.0
    %2530 = vmatpush2.msra.mxu0 %v147
    %2531 = vmatprep.subr.mxu0 0.0
    %2532 = vmatpush2.msra.mxu0 %v146
    %2533 = vmatprep.subr.mxu0 0.0
    %2534 = vmatpush2.msra.mxu0 %v145
    %2535 = vmatprep.subr.mxu0 0.0
    %2536 = vmatpush2.msra.mxu0 %v144
    %2537 = vmatprep.subr.mxu0 0.0
    %2538 = vmatpush2.msra.mxu0 %v143
    %2539 = vmatprep.subr.mxu0 0.0
    %2540 = vmatpush2.msra.mxu0 %v142
    %2541 = vmatprep.subr.mxu0 0.0
    %2542 = vmatpush2.msra.mxu0 %v141
    %2543 = vmatprep.subr.mxu0 0.0
    %2544 = vmatpush2.msra.mxu0 %v140
    %2545 = vmatprep.subr.mxu0 0.0
    %2546 = vmatpush2.msra.mxu0 %v139
    %2547 = vmatprep.subr.mxu0 0.0
    %2548 = vmatpush2.msra.mxu0 %v138
    %2549 = vmatprep.subr.mxu0 0.0
    %2550 = vmatpush2.msra.mxu0 %v137
    %2551 = vmatprep.subr.mxu0 0.0
    %2552 = vmatpush2.msra.mxu0 %v136
    %2553 = vmatprep.subr.mxu0 0.0
    %2554 = vmatpush2.msra.mxu0 %v135
    %2555 = vmatprep.mubr.f32.mxu0 %v2318
    %2556 = vmatmul.mubr.f32.gmra.mxu0 %v2317
    %v2557 = vpop.f32.mrf.mxu0
    %v2558 = vadd.f32 %v2483, %v2557
    %v2559 = vpop.f32.mrf.mxu0
    %2560 = vmatprep.mubr.f32.mxu0 %v2324
    %2561 = vmatmul.mubr.f32.gmra.mxu0 %v2323
    %v2562 = vpop.f32.mrf.mxu0
    %v2563 = vadd.f32 %v2488, %v2562
    %v2564 = vpop.f32.mrf.mxu0
    %2565 = vdwg.mxu0
    %v2566 = vmul.f32 %v2558, 0.001953125
    %v2567 = vmul.f32 %v2563, 0.001953125
    %2568 = vmatprep.subr.mxu0 0.0
    %2569 = vmatpush1.msra.mxu0 %v70
    %2570 = vmatprep.subr.mxu0 0.0
    %2571 = vmatpush1.msra.mxu0 %v69
    %2572 = vmatprep.subr.mxu0 0.0
    %2573 = vmatpush1.msra.mxu0 %v68
    %2574 = vmatprep.subr.mxu0 0.0
    %2575 = vmatpush1.msra.mxu0 %v67
    %2576 = vmatprep.subr.mxu0 0.0
    %2577 = vmatpush1.msra.mxu0 %v66
    %2578 = vmatprep.subr.mxu0 0.0
    %2579 = vmatpush1.msra.mxu0 %v65
    %2580 = vmatprep.subr.mxu0 0.0
    %2581 = vmatpush1.msra.mxu0 %v64
    %2582 = vmatprep.subr.mxu0 0.0
    %2583 = vmatpush1.msra.mxu0 %v63
    %2584 = vmatprep.subr.mxu0 0.0
    %2585 = vmatpush1.msra.mxu0 %v62
    %2586 = vmatprep.subr.mxu0 0.0
    %2587 = vmatpush1.msra.mxu0 %v61
    %2588 = vmatprep.subr.mxu0 0.0
    %2589 = vmatpush1.msra.mxu0 %v60
    %2590 = vmatprep.subr.mxu0 0.0
    %2591 = vmatpush1.msra.mxu0 %v59
    %2592 = vmatprep.subr.mxu0 0.0
    %2593 = vmatpush1.msra.mxu0 %v58
    %2594 = vmatprep.subr.mxu0 0.0
    %2595 = vmatpush1.msra.mxu0 %v57
    %2596 = vmatprep.subr.mxu0 0.0
    %2597 = vmatpush1.msra.mxu0 %v56
    %2598 = vmatprep.subr.mxu0 0.0
    %2599 = vmatpush1.msra.mxu0 %v55
    %2600 = vmatprep.subr.mxu0 0.0
    %2601 = vmatpush2.msra.mxu0 %v86
    %2602 = vmatprep.subr.mxu0 0.0
    %2603 = vmatpush2.msra.mxu0 %v85
    %2604 = vmatprep.subr.mxu0 0.0
    %2605 = vmatpush2.msra.mxu0 %v84
    %2606 = vmatprep.subr.mxu0 0.0
    %2607 = vmatpush2.msra.mxu0 %v83
    %2608 = vmatprep.subr.mxu0 0.0
    %2609 = vmatpush2.msra.mxu0 %v82
    %2610 = vmatprep.subr.mxu0 0.0
    %2611 = vmatpush2.msra.mxu0 %v81
    %2612 = vmatprep.subr.mxu0 0.0
    %2613 = vmatpush2.msra.mxu0 %v80
    %2614 = vmatprep.subr.mxu0 0.0
    %2615 = vmatpush2.msra.mxu0 %v79
    %2616 = vmatprep.subr.mxu0 0.0
    %2617 = vmatpush2.msra.mxu0 %v78
    %2618 = vmatprep.subr.mxu0 0.0
    %2619 = vmatpush2.msra.mxu0 %v77
    %2620 = vmatprep.subr.mxu0 0.0
    %2621 = vmatpush2.msra.mxu0 %v76
    %2622 = vmatprep.subr.mxu0 0.0
    %2623 = vmatpush2.msra.mxu0 %v75
    %2624 = vmatprep.subr.mxu0 0.0
    %2625 = vmatpush2.msra.mxu0 %v74
    %2626 = vmatprep.subr.mxu0 0.0
    %2627 = vmatpush2.msra.mxu0 %v73
    %2628 = vmatprep.subr.mxu0 0.0
    %2629 = vmatpush2.msra.mxu0 %v72
    %2630 = vmatprep.subr.mxu0 0.0
    %2631 = vmatpush2.msra.mxu0 %v71
    %2632 = vmatprep.mubr.f32.mxu0 %v2326
    %2633 = vmatmul.mubr.f32.gmra.mxu0 %v2325
    %v2634 = vpop.f32.mrf.mxu0
    %v2635 = vadd.f32 0.0, %v2634
    %v2636 = vpop.f32.mrf.mxu0
    %2637 = vmatprep.mubr.f32.mxu0 %v2332
    %2638 = vmatmul.mubr.f32.gmra.mxu0 %v2331
    %v2639 = vpop.f32.mrf.mxu0
    %v2640 = vadd.f32 0.0, %v2639
    %v2641 = vpop.f32.mrf.mxu0
    %2642 = vdwg.mxu0
    %2643 = vmatprep.subr.mxu0 0.0
    %2644 = vmatpush1.msra.mxu0 %v102
    %2645 = vmatprep.subr.mxu0 0.0
    %2646 = vmatpush1.msra.mxu0 %v101
    %2647 = vmatprep.subr.mxu0 0.0
    %2648 = vmatpush1.msra.mxu0 %v100
    %2649 = vmatprep.subr.mxu0 0.0
    %2650 = vmatpush1.msra.mxu0 %v99
    %2651 = vmatprep.subr.mxu0 0.0
    %2652 = vmatpush1.msra.mxu0 %v98
    %2653 = vmatprep.subr.mxu0 0.0
    %2654 = vmatpush1.msra.mxu0 %v97
    %2655 = vmatprep.subr.mxu0 0.0
    %2656 = vmatpush1.msra.mxu0 %v96
    %2657 = vmatprep.subr.mxu0 0.0
    %2658 = vmatpush1.msra.mxu0 %v95
    %2659 = vmatprep.subr.mxu0 0.0
    %2660 = vmatpush1.msra.mxu0 %v94
    %2661 = vmatprep.subr.mxu0 0.0
    %2662 = vmatpush1.msra.mxu0 %v93
    %2663 = vmatprep.subr.mxu0 0.0
    %2664 = vmatpush1.msra.mxu0 %v92
    %2665 = vmatprep.subr.mxu0 0.0
    %2666 = vmatpush1.msra.mxu0 %v91
    %2667 = vmatprep.subr.mxu0 0.0
    %2668 = vmatpush1.msra.mxu0 %v90
    %2669 = vmatprep.subr.mxu0 0.0
    %2670 = vmatpush1.msra.mxu0 %v89
    %2671 = vmatprep.subr.mxu0 0.0
    %2672 = vmatpush1.msra.mxu0 %v88
    %2673 = vmatprep.subr.mxu0 0.0
    %2674 = vmatpush1.msra.mxu0 %v87
    %2675 = vmatprep.subr.mxu0 0.0
    %2676 = vmatpush2.msra.mxu0 %v118
    %2677 = vmatprep.subr.mxu0 0.0
    %2678 = vmatpush2.msra.mxu0 %v117
    %2679 = vmatprep.subr.mxu0 0.0
    %2680 = vmatpush2.msra.mxu0 %v116
    %2681 = vmatprep.subr.mxu0 0.0
    %2682 = vmatpush2.msra.mxu0 %v115
    %2683 = vmatprep.subr.mxu0 0.0
    %2684 = vmatpush2.msra.mxu0 %v114
    %2685 = vmatprep.subr.mxu0 0.0
    %2686 = vmatpush2.msra.mxu0 %v113
    %2687 = vmatprep.subr.mxu0 0.0
    %2688 = vmatpush2.msra.mxu0 %v112
    %2689 = vmatprep.subr.mxu0 0.0
    %2690 = vmatpush2.msra.mxu0 %v111
    %2691 = vmatprep.subr.mxu0 0.0
    %2692 = vmatpush2.msra.mxu0 %v110
    %2693 = vmatprep.subr.mxu0 0.0
    %2694 = vmatpush2.msra.mxu0 %v109
    %2695 = vmatprep.subr.mxu0 0.0
    %2696 = vmatpush2.msra.mxu0 %v108
    %2697 = vmatprep.subr.mxu0 0.0
    %2698 = vmatpush2.msra.mxu0 %v107
    %2699 = vmatprep.subr.mxu0 0.0
    %2700 = vmatpush2.msra.mxu0 %v106
    %2701 = vmatprep.subr.mxu0 0.0
    %2702 = vmatpush2.msra.mxu0 %v105
    %2703 = vmatprep.subr.mxu0 0.0
    %2704 = vmatpush2.msra.mxu0 %v104
    %2705 = vmatprep.subr.mxu0 0.0
    %2706 = vmatpush2.msra.mxu0 %v103
    %2707 = vmatprep.mubr.f32.mxu0 %v2328
    %2708 = vmatmul.mubr.f32.gmra.mxu0 %v2327
    %v2709 = vpop.f32.mrf.mxu0
    %v2710 = vadd.f32 %v2635, %v2709
    %v2711 = vpop.f32.mrf.mxu0
    %2712 = vmatprep.mubr.f32.mxu0 %v2334
    %2713 = vmatmul.mubr.f32.gmra.mxu0 %v2333
    %v2714 = vpop.f32.mrf.mxu0
    %v2715 = vadd.f32 %v2640, %v2714
    %v2716 = vpop.f32.mrf.mxu0
    %2717 = vdwg.mxu0
    %2718 = vmatprep.subr.mxu0 0.0
    %2719 = vmatpush1.msra.mxu0 %v134
    %2720 = vmatprep.subr.mxu0 0.0
    %2721 = vmatpush1.msra.mxu0 %v133
    %2722 = vmatprep.subr.mxu0 0.0
    %2723 = vmatpush1.msra.mxu0 %v132
    %2724 = vmatprep.subr.mxu0 0.0
    %2725 = vmatpush1.msra.mxu0 %v131
    %2726 = vmatprep.subr.mxu0 0.0
    %2727 = vmatpush1.msra.mxu0 %v130
    %2728 = vmatprep.subr.mxu0 0.0
    %2729 = vmatpush1.msra.mxu0 %v129
    %2730 = vmatprep.subr.mxu0 0.0
    %2731 = vmatpush1.msra.mxu0 %v128
    %2732 = vmatprep.subr.mxu0 0.0
    %2733 = vmatpush1.msra.mxu0 %v127
    %2734 = vmatprep.subr.mxu0 0.0
    %2735 = vmatpush1.msra.mxu0 %v126
    %2736 = vmatprep.subr.mxu0 0.0
    %2737 = vmatpush1.msra.mxu0 %v125
    %2738 = vmatprep.subr.mxu0 0.0
    %2739 = vmatpush1.msra.mxu0 %v124
    %2740 = vmatprep.subr.mxu0 0.0
    %2741 = vmatpush1.msra.mxu0 %v123
    %2742 = vmatprep.subr.mxu0 0.0
    %2743 = vmatpush1.msra.mxu0 %v122
    %2744 = vmatprep.subr.mxu0 0.0
    %2745 = vmatpush1.msra.mxu0 %v121
    %2746 = vmatprep.subr.mxu0 0.0
    %2747 = vmatpush1.msra.mxu0 %v120
    %2748 = vmatprep.subr.mxu0 0.0
    %2749 = vmatpush1.msra.mxu0 %v119
    %2750 = vmatprep.subr.mxu0 0.0
    %2751 = vmatpush2.msra.mxu0 %v150
    %2752 = vmatprep.subr.mxu0 0.0
    %2753 = vmatpush2.msra.mxu0 %v149
    %2754 = vmatprep.subr.mxu0 0.0
    %2755 = vmatpush2.msra.mxu0 %v148
    %2756 = vmatprep.subr.mxu0 0.0
    %2757 = vmatpush2.msra.mxu0 %v147
    %2758 = vmatprep.subr.mxu0 0.0
    %2759 = vmatpush2.msra.mxu0 %v146
    %2760 = vmatprep.subr.mxu0 0.0
    %2761 = vmatpush2.msra.mxu0 %v145
    %2762 = vmatprep.subr.mxu0 0.0
    %2763 = vmatpush2.msra.mxu0 %v144
    %2764 = vmatprep.subr.mxu0 0.0
    %2765 = vmatpush2.msra.mxu0 %v143
    %2766 = vmatprep.subr.mxu0 0.0
    %2767 = vmatpush2.msra.mxu0 %v142
    %2768 = vmatprep.subr.mxu0 0.0
    %2769 = vmatpush2.msra.mxu0 %v141
    %2770 = vmatprep.subr.mxu0 0.0
    %2771 = vmatpush2.msra.mxu0 %v140
    %2772 = vmatprep.subr.mxu0 0.0
    %2773 = vmatpush2.msra.mxu0 %v139
    %2774 = vmatprep.subr.mxu0 0.0
    %2775 = vmatpush2.msra.mxu0 %v138
    %2776 = vmatprep.subr.mxu0 0.0
    %2777 = vmatpush2.msra.mxu0 %v137
    %2778 = vmatprep.subr.mxu0 0.0
    %2779 = vmatpush2.msra.mxu0 %v136
    %2780 = vmatprep.subr.mxu0 0.0
    %2781 = vmatpush2.msra.mxu0 %v135
    %2782 = vmatprep.mubr.f32.mxu0 %v2330
    %2783 = vmatmul.mubr.f32.gmra.mxu0 %v2329
    %v2784 = vpop.f32.mrf.mxu0
    %v2785 = vadd.f32 %v2710, %v2784
    %v2786 = vpop.f32.mrf.mxu0
    %2787 = vmatprep.mubr.f32.mxu0 %v2336
    %2788 = vmatmul.mubr.f32.gmra.mxu0 %v2335
    %v2789 = vpop.f32.mrf.mxu0
    %v2790 = vadd.f32 %v2715, %v2789
    %v2791 = vpop.f32.mrf.mxu0
    %2792 = vdwg.mxu0
    %v2793 = vmul.f32 %v2785, 0.001953125
    %v2794 = vmul.f32 %v2790, 0.001953125
    %v2795 = vmul.f32 %v2313, %v2313
    %v2796 = vmul.f32 %v2314, %v2314
    %v2797 = vmul.f32 %v2315, %v2315
    %v2798 = vmul.f32 %v2316, %v2316
    %v2799 = vmul.f32 %v2317, %v2317
    %v2800 = vmul.f32 %v2318, %v2318
    %v2801 = vmul.f32 %v2319, %v2319
    %v2802 = vmul.f32 %v2320, %v2320
    %v2803 = vmul.f32 %v2321, %v2321
    %v2804 = vmul.f32 %v2322, %v2322
    %v2805 = vmul.f32 %v2323, %v2323
    %v2806 = vmul.f32 %v2324, %v2324
    %2807 = vmatprep.subr.mxu0 0.0
    %2808 = vmatpush1.msra.mxu0 %v70
    %2809 = vmatprep.subr.mxu0 0.0
    %2810 = vmatpush1.msra.mxu0 %v69
    %2811 = vmatprep.subr.mxu0 0.0
    %2812 = vmatpush1.msra.mxu0 %v68
    %2813 = vmatprep.subr.mxu0 0.0
    %2814 = vmatpush1.msra.mxu0 %v67
    %2815 = vmatprep.subr.mxu0 0.0
    %2816 = vmatpush1.msra.mxu0 %v66
    %2817 = vmatprep.subr.mxu0 0.0
    %2818 = vmatpush1.msra.mxu0 %v65
    %2819 = vmatprep.subr.mxu0 0.0
    %2820 = vmatpush1.msra.mxu0 %v64
    %2821 = vmatprep.subr.mxu0 0.0
    %2822 = vmatpush1.msra.mxu0 %v63
    %2823 = vmatprep.subr.mxu0 0.0
    %2824 = vmatpush1.msra.mxu0 %v62
    %2825 = vmatprep.subr.mxu0 0.0
    %2826 = vmatpush1.msra.mxu0 %v61
    %2827 = vmatprep.subr.mxu0 0.0
    %2828 = vmatpush1.msra.mxu0 %v60
    %2829 = vmatprep.subr.mxu0 0.0
    %2830 = vmatpush1.msra.mxu0 %v59
    %2831 = vmatprep.subr.mxu0 0.0
    %2832 = vmatpush1.msra.mxu0 %v58
    %2833 = vmatprep.subr.mxu0 0.0
    %2834 = vmatpush1.msra.mxu0 %v57
    %2835 = vmatprep.subr.mxu0 0.0
    %2836 = vmatpush1.msra.mxu0 %v56
    %2837 = vmatprep.subr.mxu0 0.0
    %2838 = vmatpush1.msra.mxu0 %v55
    %2839 = vmatprep.subr.mxu0 0.0
    %2840 = vmatpush2.msra.mxu0 %v86
    %2841 = vmatprep.subr.mxu0 0.0
    %2842 = vmatpush2.msra.mxu0 %v85
    %2843 = vmatprep.subr.mxu0 0.0
    %2844 = vmatpush2.msra.mxu0 %v84
    %2845 = vmatprep.subr.mxu0 0.0
    %2846 = vmatpush2.msra.mxu0 %v83
    %2847 = vmatprep.subr.mxu0 0.0
    %2848 = vmatpush2.msra.mxu0 %v82
    %2849 = vmatprep.subr.mxu0 0.0
    %2850 = vmatpush2.msra.mxu0 %v81
    %2851 = vmatprep.subr.mxu0 0.0
    %2852 = vmatpush2.msra.mxu0 %v80
    %2853 = vmatprep.subr.mxu0 0.0
    %2854 = vmatpush2.msra.mxu0 %v79
    %2855 = vmatprep.subr.mxu0 0.0
    %2856 = vmatpush2.msra.mxu0 %v78
    %2857 = vmatprep.subr.mxu0 0.0
    %2858 = vmatpush2.msra.mxu0 %v77
    %2859 = vmatprep.subr.mxu0 0.0
    %2860 = vmatpush2.msra.mxu0 %v76
    %2861 = vmatprep.subr.mxu0 0.0
    %2862 = vmatpush2.msra.mxu0 %v75
    %2863 = vmatprep.subr.mxu0 0.0
    %2864 = vmatpush2.msra.mxu0 %v74
    %2865 = vmatprep.subr.mxu0 0.0
    %2866 = vmatpush2.msra.mxu0 %v73
    %2867 = vmatprep.subr.mxu0 0.0
    %2868 = vmatpush2.msra.mxu0 %v72
    %2869 = vmatprep.subr.mxu0 0.0
    %2870 = vmatpush2.msra.mxu0 %v71
    %2871 = vmatprep.mubr.f32.mxu0 %v2796
    %2872 = vmatmul.mubr.f32.gmra.mxu0 %v2795
    %v2873 = vpop.f32.mrf.mxu0
    %v2874 = vadd.f32 0.0, %v2873
    %v2875 = vpop.f32.mrf.mxu0
    %2876 = vmatprep.mubr.f32.mxu0 %v2802
    %2877 = vmatmul.mubr.f32.gmra.mxu0 %v2801
    %v2878 = vpop.f32.mrf.mxu0
    %v2879 = vadd.f32 0.0, %v2878
    %v2880 = vpop.f32.mrf.mxu0
    %2881 = vdwg.mxu0
    %2882 = vmatprep.subr.mxu0 0.0
    %2883 = vmatpush1.msra.mxu0 %v102
    %2884 = vmatprep.subr.mxu0 0.0
    %2885 = vmatpush1.msra.mxu0 %v101
    %2886 = vmatprep.subr.mxu0 0.0
    %2887 = vmatpush1.msra.mxu0 %v100
    %2888 = vmatprep.subr.mxu0 0.0
    %2889 = vmatpush1.msra.mxu0 %v99
    %2890 = vmatprep.subr.mxu0 0.0
    %2891 = vmatpush1.msra.mxu0 %v98
    %2892 = vmatprep.subr.mxu0 0.0
    %2893 = vmatpush1.msra.mxu0 %v97
    %2894 = vmatprep.subr.mxu0 0.0
    %2895 = vmatpush1.msra.mxu0 %v96
    %2896 = vmatprep.subr.mxu0 0.0
    %2897 = vmatpush1.msra.mxu0 %v95
    %2898 = vmatprep.subr.mxu0 0.0
    %2899 = vmatpush1.msra.mxu0 %v94
    %2900 = vmatprep.subr.mxu0 0.0
    %2901 = vmatpush1.msra.mxu0 %v93
    %2902 = vmatprep.subr.mxu0 0.0
    %2903 = vmatpush1.msra.mxu0 %v92
    %2904 = vmatprep.subr.mxu0 0.0
    %2905 = vmatpush1.msra.mxu0 %v91
    %2906 = vmatprep.subr.mxu0 0.0
    %2907 = vmatpush1.msra.mxu0 %v90
    %2908 = vmatprep.subr.mxu0 0.0
    %2909 = vmatpush1.msra.mxu0 %v89
    %2910 = vmatprep.subr.mxu0 0.0
    %2911 = vmatpush1.msra.mxu0 %v88
    %2912 = vmatprep.subr.mxu0 0.0
    %2913 = vmatpush1.msra.mxu0 %v87
    %2914 = vmatprep.subr.mxu0 0.0
    %2915 = vmatpush2.msra.mxu0 %v118
    %2916 = vmatprep.subr.mxu0 0.0
    %2917 = vmatpush2.msra.mxu0 %v117
    %2918 = vmatprep.subr.mxu0 0.0
    %2919 = vmatpush2.msra.mxu0 %v116
    %2920 = vmatprep.subr.mxu0 0.0
    %2921 = vmatpush2.msra.mxu0 %v115
    %2922 = vmatprep.subr.mxu0 0.0
    %2923 = vmatpush2.msra.mxu0 %v114
    %2924 = vmatprep.subr.mxu0 0.0
    %2925 = vmatpush2.msra.mxu0 %v113
    %2926 = vmatprep.subr.mxu0 0.0
    %2927 = vmatpush2.msra.mxu0 %v112
    %2928 = vmatprep.subr.mxu0 0.0
    %2929 = vmatpush2.msra.mxu0 %v111
    %2930 = vmatprep.subr.mxu0 0.0
    %2931 = vmatpush2.msra.mxu0 %v110
    %2932 = vmatprep.subr.mxu0 0.0
    %2933 = vmatpush2.msra.mxu0 %v109
    %2934 = vmatprep.subr.mxu0 0.0
    %2935 = vmatpush2.msra.mxu0 %v108
    %2936 = vmatprep.subr.mxu0 0.0
    %2937 = vmatpush2.msra.mxu0 %v107
    %2938 = vmatprep.subr.mxu0 0.0
    %2939 = vmatpush2.msra.mxu0 %v106
    %2940 = vmatprep.subr.mxu0 0.0
    %2941 = vmatpush2.msra.mxu0 %v105
    %2942 = vmatprep.subr.mxu0 0.0
    %2943 = vmatpush2.msra.mxu0 %v104
    %2944 = vmatprep.subr.mxu0 0.0
    %2945 = vmatpush2.msra.mxu0 %v103
    %2946 = vmatprep.mubr.f32.mxu0 %v2798
    %2947 = vmatmul.mubr.f32.gmra.mxu0 %v2797
    %v2948 = vpop.f32.mrf.mxu0
    %v2949 = vadd.f32 %v2874, %v2948
    %v2950 = vpop.f32.mrf.mxu0
    %2951 = vmatprep.mubr.f32.mxu0 %v2804
    %2952 = vmatmul.mubr.f32.gmra.mxu0 %v2803
    %v2953 = vpop.f32.mrf.mxu0
    %v2954 = vadd.f32 %v2879, %v2953
    %v2955 = vpop.f32.mrf.mxu0
    %2956 = vdwg.mxu0
    %2957 = vmatprep.subr.mxu0 0.0
    %2958 = vmatpush1.msra.mxu0 %v134
    %2959 = vmatprep.subr.mxu0 0.0
    %2960 = vmatpush1.msra.mxu0 %v133
    %2961 = vmatprep.subr.mxu0 0.0
    %2962 = vmatpush1.msra.mxu0 %v132
    %2963 = vmatprep.subr.mxu0 0.0
    %2964 = vmatpush1.msra.mxu0 %v131
    %2965 = vmatprep.subr.mxu0 0.0
    %2966 = vmatpush1.msra.mxu0 %v130
    %2967 = vmatprep.subr.mxu0 0.0
    %2968 = vmatpush1.msra.mxu0 %v129
    %2969 = vmatprep.subr.mxu0 0.0
    %2970 = vmatpush1.msra.mxu0 %v128
    %2971 = vmatprep.subr.mxu0 0.0
    %2972 = vmatpush1.msra.mxu0 %v127
    %2973 = vmatprep.subr.mxu0 0.0
    %2974 = vmatpush1.msra.mxu0 %v126
    %2975 = vmatprep.subr.mxu0 0.0
    %2976 = vmatpush1.msra.mxu0 %v125
    %2977 = vmatprep.subr.mxu0 0.0
    %2978 = vmatpush1.msra.mxu0 %v124
    %2979 = vmatprep.subr.mxu0 0.0
    %2980 = vmatpush1.msra.mxu0 %v123
    %2981 = vmatprep.subr.mxu0 0.0
    %2982 = vmatpush1.msra.mxu0 %v122
    %2983 = vmatprep.subr.mxu0 0.0
    %2984 = vmatpush1.msra.mxu0 %v121
    %2985 = vmatprep.subr.mxu0 0.0
    %2986 = vmatpush1.msra.mxu0 %v120
    %2987 = vmatprep.subr.mxu0 0.0
    %2988 = vmatpush1.msra.mxu0 %v119
    %2989 = vmatprep.subr.mxu0 0.0
    %2990 = vmatpush2.msra.mxu0 %v150
    %2991 = vmatprep.subr.mxu0 0.0
    %2992 = vmatpush2.msra.mxu0 %v149
    %2993 = vmatprep.subr.mxu0 0.0
    %2994 = vmatpush2.msra.mxu0 %v148
    %2995 = vmatprep.subr.mxu0 0.0
    %2996 = vmatpush2.msra.mxu0 %v147
    %2997 = vmatprep.subr.mxu0 0.0
    %2998 = vmatpush2.msra.mxu0 %v146
    %2999 = vmatprep.subr.mxu0 0.0
    %3000 = vmatpush2.msra.mxu0 %v145
    %3001 = vmatprep.subr.mxu0 0.0
    %3002 = vmatpush2.msra.mxu0 %v144
    %3003 = vmatprep.subr.mxu0 0.0
    %3004 = vmatpush2.msra.mxu0 %v143
    %3005 = vmatprep.subr.mxu0 0.0
    %3006 = vmatpush2.msra.mxu0 %v142
    %3007 = vmatprep.subr.mxu0 0.0
    %3008 = vmatpush2.msra.mxu0 %v141
    %3009 = vmatprep.subr.mxu0 0.0
    %3010 = vmatpush2.msra.mxu0 %v140
    %3011 = vmatprep.subr.mxu0 0.0
    %3012 = vmatpush2.msra.mxu0 %v139
    %3013 = vmatprep.subr.mxu0 0.0
    %3014 = vmatpush2.msra.mxu0 %v138
    %3015 = vmatprep.subr.mxu0 0.0
    %3016 = vmatpush2.msra.mxu0 %v137
    %3017 = vmatprep.subr.mxu0 0.0
    %3018 = vmatpush2.msra.mxu0 %v136
    %3019 = vmatprep.subr.mxu0 0.0
    %3020 = vmatpush2.msra.mxu0 %v135
    %3021 = vmatprep.mubr.f32.mxu0 %v2800
    %3022 = vmatmul.mubr.f32.gmra.mxu0 %v2799
    %v3023 = vpop.f32.mrf.mxu0
    %v3024 = vadd.f32 %v2949, %v3023
    %v3025 = vpop.f32.mrf.mxu0
    %3026 = vmatprep.mubr.f32.mxu0 %v2806
    %3027 = vmatmul.mubr.f32.gmra.mxu0 %v2805
    %v3028 = vpop.f32.mrf.mxu0
    %v3029 = vadd.f32 %v2954, %v3028
    %v3030 = vpop.f32.mrf.mxu0
    %3031 = vdwg.mxu0
    %v3032 = vmul.f32 %v3024, 0.001953125
    %v3033 = vmul.f32 %v3029, 0.001953125
    %v3034 = vmul.f32 %v2566, %v2566
    %v3035 = vmul.f32 %v2567, %v2567
    %v3036 = vsub.f32 %v3032, %v3034
    %v3037 = vsub.f32 %v3033, %v3035
    %v3038 = vadd.f32 %v3036, 1e-05
    %v3039 = vadd.f32 %v3037, 1e-05
    %v3040 = vmul.f32 %v2325, %v2325
    %v3041 = vmul.f32 %v2326, %v2326
    %v3042 = vmul.f32 %v2327, %v2327
    %v3043 = vmul.f32 %v2328, %v2328
    %v3044 = vmul.f32 %v2329, %v2329
    %v3045 = vmul.f32 %v2330, %v2330
    %v3046 = vmul.f32 %v2331, %v2331
    %v3047 = vmul.f32 %v2332, %v2332
    %v3048 = vmul.f32 %v2333, %v2333
    %v3049 = vmul.f32 %v2334, %v2334
    %v3050 = vmul.f32 %v2335, %v2335
    %v3051 = vmul.f32 %v2336, %v2336
    %3052 = vmatprep.subr.mxu0 0.0
    %3053 = vmatpush1.msra.mxu0 %v70
    %3054 = vmatprep.subr.mxu0 0.0
    %3055 = vmatpush1.msra.mxu0 %v69
    %3056 = vmatprep.subr.mxu0 0.0
    %3057 = vmatpush1.msra.mxu0 %v68
    %3058 = vmatprep.subr.mxu0 0.0
    %3059 = vmatpush1.msra.mxu0 %v67
    %3060 = vmatprep.subr.mxu0 0.0
    %3061 = vmatpush1.msra.mxu0 %v66
    %3062 = vmatprep.subr.mxu0 0.0
    %3063 = vmatpush1.msra.mxu0 %v65
    %3064 = vmatprep.subr.mxu0 0.0
    %3065 = vmatpush1.msra.mxu0 %v64
    %3066 = vmatprep.subr.mxu0 0.0
    %3067 = vmatpush1.msra.mxu0 %v63
    %3068 = vmatprep.subr.mxu0 0.0
    %3069 = vmatpush1.msra.mxu0 %v62
    %3070 = vmatprep.subr.mxu0 0.0
    %3071 = vmatpush1.msra.mxu0 %v61
    %3072 = vmatprep.subr.mxu0 0.0
    %3073 = vmatpush1.msra.mxu0 %v60
    %3074 = vmatprep.subr.mxu0 0.0
    %3075 = vmatpush1.msra.mxu0 %v59
    %3076 = vmatprep.subr.mxu0 0.0
    %3077 = vmatpush1.msra.mxu0 %v58
    %3078 = vmatprep.subr.mxu0 0.0
    %3079 = vmatpush1.msra.mxu0 %v57
    %3080 = vmatprep.subr.mxu0 0.0
    %3081 = vmatpush1.msra.mxu0 %v56
    %3082 = vmatprep.subr.mxu0 0.0
    %3083 = vmatpush1.msra.mxu0 %v55
    %3084 = vmatprep.subr.mxu0 0.0
    %3085 = vmatpush2.msra.mxu0 %v86
    %3086 = vmatprep.subr.mxu0 0.0
    %3087 = vmatpush2.msra.mxu0 %v85
    %3088 = vmatprep.subr.mxu0 0.0
    %3089 = vmatpush2.msra.mxu0 %v84
    %3090 = vmatprep.subr.mxu0 0.0
    %3091 = vmatpush2.msra.mxu0 %v83
    %3092 = vmatprep.subr.mxu0 0.0
    %3093 = vmatpush2.msra.mxu0 %v82
    %3094 = vmatprep.subr.mxu0 0.0
    %3095 = vmatpush2.msra.mxu0 %v81
    %3096 = vmatprep.subr.mxu0 0.0
    %3097 = vmatpush2.msra.mxu0 %v80
    %3098 = vmatprep.subr.mxu0 0.0
    %3099 = vmatpush2.msra.mxu0 %v79
    %3100 = vmatprep.subr.mxu0 0.0
    %3101 = vmatpush2.msra.mxu0 %v78
    %3102 = vmatprep.subr.mxu0 0.0
    %3103 = vmatpush2.msra.mxu0 %v77
    %3104 = vmatprep.subr.mxu0 0.0
    %3105 = vmatpush2.msra.mxu0 %v76
    %3106 = vmatprep.subr.mxu0 0.0
    %3107 = vmatpush2.msra.mxu0 %v75
    %3108 = vmatprep.subr.mxu0 0.0
    %3109 = vmatpush2.msra.mxu0 %v74
    %3110 = vmatprep.subr.mxu0 0.0
    %3111 = vmatpush2.msra.mxu0 %v73
    %3112 = vmatprep.subr.mxu0 0.0
    %3113 = vmatpush2.msra.mxu0 %v72
    %3114 = vmatprep.subr.mxu0 0.0
    %3115 = vmatpush2.msra.mxu0 %v71
    %3116 = vmatprep.mubr.f32.mxu0 %v3041
    %3117 = vmatmul.mubr.f32.gmra.mxu0 %v3040
    %v3118 = vpop.f32.mrf.mxu0
    %v3119 = vadd.f32 0.0, %v3118
    %v3120 = vpop.f32.mrf.mxu0
    %3121 = vmatprep.mubr.f32.mxu0 %v3047
    %3122 = vmatmul.mubr.f32.gmra.mxu0 %v3046
    %v3123 = vpop.f32.mrf.mxu0
    %v3124 = vadd.f32 0.0, %v3123
    %v3125 = vpop.f32.mrf.mxu0
    %3126 = vdwg.mxu0
    %3127 = vmatprep.subr.mxu0 0.0
    %3128 = vmatpush1.msra.mxu0 %v102
    %3129 = vmatprep.subr.mxu0 0.0
    %3130 = vmatpush1.msra.mxu0 %v101
    %3131 = vmatprep.subr.mxu0 0.0
    %3132 = vmatpush1.msra.mxu0 %v100
    %3133 = vmatprep.subr.mxu0 0.0
    %3134 = vmatpush1.msra.mxu0 %v99
    %3135 = vmatprep.subr.mxu0 0.0
    %3136 = vmatpush1.msra.mxu0 %v98
    %3137 = vmatprep.subr.mxu0 0.0
    %3138 = vmatpush1.msra.mxu0 %v97
    %3139 = vmatprep.subr.mxu0 0.0
    %3140 = vmatpush1.msra.mxu0 %v96
    %3141 = vmatprep.subr.mxu0 0.0
    %3142 = vmatpush1.msra.mxu0 %v95
    %3143 = vmatprep.subr.mxu0 0.0
    %3144 = vmatpush1.msra.mxu0 %v94
    %3145 = vmatprep.subr.mxu0 0.0
    %3146 = vmatpush1.msra.mxu0 %v93
    %3147 = vmatprep.subr.mxu0 0.0
    %3148 = vmatpush1.msra.mxu0 %v92
    %3149 = vmatprep.subr.mxu0 0.0
    %3150 = vmatpush1.msra.mxu0 %v91
    %3151 = vmatprep.subr.mxu0 0.0
    %3152 = vmatpush1.msra.mxu0 %v90
    %3153 = vmatprep.subr.mxu0 0.0
    %3154 = vmatpush1.msra.mxu0 %v89
    %3155 = vmatprep.subr.mxu0 0.0
    %3156 = vmatpush1.msra.mxu0 %v88
    %3157 = vmatprep.subr.mxu0 0.0
    %3158 = vmatpush1.msra.mxu0 %v87
    %3159 = vmatprep.subr.mxu0 0.0
    %3160 = vmatpush2.msra.mxu0 %v118
    %3161 = vmatprep.subr.mxu0 0.0
    %3162 = vmatpush2.msra.mxu0 %v117
    %3163 = vmatprep.subr.mxu0 0.0
    %3164 = vmatpush2.msra.mxu0 %v116
    %3165 = vmatprep.subr.mxu0 0.0
    %3166 = vmatpush2.msra.mxu0 %v115
    %3167 = vmatprep.subr.mxu0 0.0
    %3168 = vmatpush2.msra.mxu0 %v114
    %3169 = vmatprep.subr.mxu0 0.0
    %3170 = vmatpush2.msra.mxu0 %v113
    %3171 = vmatprep.subr.mxu0 0.0
    %3172 = vmatpush2.msra.mxu0 %v112
    %3173 = vmatprep.subr.mxu0 0.0
    %3174 = vmatpush2.msra.mxu0 %v111
    %3175 = vmatprep.subr.mxu0 0.0
    %3176 = vmatpush2.msra.mxu0 %v110
    %3177 = vmatprep.subr.mxu0 0.0
    %3178 = vmatpush2.msra.mxu0 %v109
    %3179 = vmatprep.subr.mxu0 0.0
    %3180 = vmatpush2.msra.mxu0 %v108
    %3181 = vmatprep.subr.mxu0 0.0
    %3182 = vmatpush2.msra.mxu0 %v107
    %3183 = vmatprep.subr.mxu0 0.0
    %3184 = vmatpush2.msra.mxu0 %v106
    %3185 = vmatprep.subr.mxu0 0.0
    %3186 = vmatpush2.msra.mxu0 %v105
    %3187 = vmatprep.subr.mxu0 0.0
    %3188 = vmatpush2.msra.mxu0 %v104
    %3189 = vmatprep.subr.mxu0 0.0
    %3190 = vmatpush2.msra.mxu0 %v103
    %3191 = vmatprep.mubr.f32.mxu0 %v3043
    %3192 = vmatmul.mubr.f32.gmra.mxu0 %v3042
    %v3193 = vpop.f32.mrf.mxu0
    %v3194 = vadd.f32 %v3119, %v3193
    %v3195 = vpop.f32.mrf.mxu0
    %3196 = vmatprep.mubr.f32.mxu0 %v3049
    %3197 = vmatmul.mubr.f32.gmra.mxu0 %v3048
    %v3198 = vpop.f32.mrf.mxu0
    %v3199 = vadd.f32 %v3124, %v3198
    %v3200 = vpop.f32.mrf.mxu0
    %3201 = vdwg.mxu0
    %3202 = vmatprep.subr.mxu0 0.0
    %3203 = vmatpush1.msra.mxu0 %v134
    %3204 = vmatprep.subr.mxu0 0.0
    %3205 = vmatpush1.msra.mxu0 %v133
    %3206 = vmatprep.subr.mxu0 0.0
    %3207 = vmatpush1.msra.mxu0 %v132
    %3208 = vmatprep.subr.mxu0 0.0
    %3209 = vmatpush1.msra.mxu0 %v131
    %3210 = vmatprep.subr.mxu0 0.0
    %3211 = vmatpush1.msra.mxu0 %v130
    %3212 = vmatprep.subr.mxu0 0.0
    %3213 = vmatpush1.msra.mxu0 %v129
    %3214 = vmatprep.subr.mxu0 0.0
    %3215 = vmatpush1.msra.mxu0 %v128
    %3216 = vmatprep.subr.mxu0 0.0
    %3217 = vmatpush1.msra.mxu0 %v127
    %3218 = vmatprep.subr.mxu0 0.0
    %3219 = vmatpush1.msra.mxu0 %v126
    %3220 = vmatprep.subr.mxu0 0.0
    %3221 = vmatpush1.msra.mxu0 %v125
    %3222 = vmatprep.subr.mxu0 0.0
    %3223 = vmatpush1.msra.mxu0 %v124
    %3224 = vmatprep.subr.mxu0 0.0
    %3225 = vmatpush1.msra.mxu0 %v123
    %3226 = vmatprep.subr.mxu0 0.0
    %3227 = vmatpush1.msra.mxu0 %v122
    %3228 = vmatprep.subr.mxu0 0.0
    %3229 = vmatpush1.msra.mxu0 %v121
    %3230 = vmatprep.subr.mxu0 0.0
    %3231 = vmatpush1.msra.mxu0 %v120
    %3232 = vmatprep.subr.mxu0 0.0
    %3233 = vmatpush1.msra.mxu0 %v119
    %3234 = vmatprep.subr.mxu0 0.0
    %3235 = vmatpush2.msra.mxu0 %v150
    %3236 = vmatprep.subr.mxu0 0.0
    %3237 = vmatpush2.msra.mxu0 %v149
    %3238 = vmatprep.subr.mxu0 0.0
    %3239 = vmatpush2.msra.mxu0 %v148
    %3240 = vmatprep.subr.mxu0 0.0
    %3241 = vmatpush2.msra.mxu0 %v147
    %3242 = vmatprep.subr.mxu0 0.0
    %3243 = vmatpush2.msra.mxu0 %v146
    %3244 = vmatprep.subr.mxu0 0.0
    %3245 = vmatpush2.msra.mxu0 %v145
    %3246 = vmatprep.subr.mxu0 0.0
    %3247 = vmatpush2.msra.mxu0 %v144
    %3248 = vmatprep.subr.mxu0 0.0
    %3249 = vmatpush2.msra.mxu0 %v143
    %3250 = vmatprep.subr.mxu0 0.0
    %3251 = vmatpush2.msra.mxu0 %v142
    %3252 = vmatprep.subr.mxu0 0.0
    %3253 = vmatpush2.msra.mxu0 %v141
    %3254 = vmatprep.subr.mxu0 0.0
    %3255 = vmatpush2.msra.mxu0 %v140
    %3256 = vmatprep.subr.mxu0 0.0
    %3257 = vmatpush2.msra.mxu0 %v139
    %3258 = vmatprep.subr.mxu0 0.0
    %3259 = vmatpush2.msra.mxu0 %v138
    %3260 = vmatprep.subr.mxu0 0.0
    %3261 = vmatpush2.msra.mxu0 %v137
    %3262 = vmatprep.subr.mxu0 0.0
    %3263 = vmatpush2.msra.mxu0 %v136
    %3264 = vmatprep.subr.mxu0 0.0
    %3265 = vmatpush2.msra.mxu0 %v135
    %3266 = vmatprep.mubr.f32.mxu0 %v3045
    %3267 = vmatmul.mubr.f32.gmra.mxu0 %v3044
    %v3268 = vpop.f32.mrf.mxu0
    %v3269 = vadd.f32 %v3194, %v3268
    %v3270 = vpop.f32.mrf.mxu0
    %3271 = vmatprep.mubr.f32.mxu0 %v3051
    %3272 = vmatmul.mubr.f32.gmra.mxu0 %v3050
    %v3273 = vpop.f32.mrf.mxu0
    %v3274 = vadd.f32 %v3199, %v3273
    %v3275 = vpop.f32.mrf.mxu0
    %3276 = vdwg.mxu0
    %v3277 = vmul.f32 %v3269, 0.001953125
    %v3278 = vmul.f32 %v3274, 0.001953125
    %v3279 = vmul.f32 %v2793, %v2793
    %v3280 = vmul.f32 %v2794, %v2794
    %v3281 = vsub.f32 %v3277, %v3279
    %v3282 = vsub.f32 %v3278, %v3280
    %v3283 = vadd.f32 %v3281, 1e-05
    %v3284 = vadd.f32 %v3282, 1e-05
    %v3285 = vmul.f32 %v2313, %v2325
    %v3286 = vmul.f32 %v2314, %v2326
    %v3287 = vmul.f32 %v2315, %v2327
    %v3288 = vmul.f32 %v2316, %v2328
    %v3289 = vmul.f32 %v2317, %v2329
    %v3290 = vmul.f32 %v2318, %v2330
    %v3291 = vmul.f32 %v2319, %v2331
    %v3292 = vmul.f32 %v2320, %v2332
    %v3293 = vmul.f32 %v2321, %v2333
    %v3294 = vmul.f32 %v2322, %v2334
    %v3295 = vmul.f32 %v2323, %v2335
    %v3296 = vmul.f32 %v2324, %v2336
    %3297 = vmatprep.subr.mxu0 0.0
    %3298 = vmatpush1.msra.mxu0 %v70
    %3299 = vmatprep.subr.mxu0 0.0
    %3300 = vmatpush1.msra.mxu0 %v69
    %3301 = vmatprep.subr.mxu0 0.0
    %3302 = vmatpush1.msra.mxu0 %v68
    %3303 = vmatprep.subr.mxu0 0.0
    %3304 = vmatpush1.msra.mxu0 %v67
    %3305 = vmatprep.subr.mxu0 0.0
    %3306 = vmatpush1.msra.mxu0 %v66
    %3307 = vmatprep.subr.mxu0 0.0
    %3308 = vmatpush1.msra.mxu0 %v65
    %3309 = vmatprep.subr.mxu0 0.0
    %3310 = vmatpush1.msra.mxu0 %v64
    %3311 = vmatprep.subr.mxu0 0.0
    %3312 = vmatpush1.msra.mxu0 %v63
    %3313 = vmatprep.subr.mxu0 0.0
    %3314 = vmatpush1.msra.mxu0 %v62
    %3315 = vmatprep.subr.mxu0 0.0
    %3316 = vmatpush1.msra.mxu0 %v61
    %3317 = vmatprep.subr.mxu0 0.0
    %3318 = vmatpush1.msra.mxu0 %v60
    %3319 = vmatprep.subr.mxu0 0.0
    %3320 = vmatpush1.msra.mxu0 %v59
    %3321 = vmatprep.subr.mxu0 0.0
    %3322 = vmatpush1.msra.mxu0 %v58
    %3323 = vmatprep.subr.mxu0 0.0
    %3324 = vmatpush1.msra.mxu0 %v57
    %3325 = vmatprep.subr.mxu0 0.0
    %3326 = vmatpush1.msra.mxu0 %v56
    %3327 = vmatprep.subr.mxu0 0.0
    %3328 = vmatpush1.msra.mxu0 %v55
    %3329 = vmatprep.subr.mxu0 0.0
    %3330 = vmatpush2.msra.mxu0 %v86
    %3331 = vmatprep.subr.mxu0 0.0
    %3332 = vmatpush2.msra.mxu0 %v85
    %3333 = vmatprep.subr.mxu0 0.0
    %3334 = vmatpush2.msra.mxu0 %v84
    %3335 = vmatprep.subr.mxu0 0.0
    %3336 = vmatpush2.msra.mxu0 %v83
    %3337 = vmatprep.subr.mxu0 0.0
    %3338 = vmatpush2.msra.mxu0 %v82
    %3339 = vmatprep.subr.mxu0 0.0
    %3340 = vmatpush2.msra.mxu0 %v81
    %3341 = vmatprep.subr.mxu0 0.0
    %3342 = vmatpush2.msra.mxu0 %v80
    %3343 = vmatprep.subr.mxu0 0.0
    %3344 = vmatpush2.msra.mxu0 %v79
    %3345 = vmatprep.subr.mxu0 0.0
    %3346 = vmatpush2.msra.mxu0 %v78
    %3347 = vmatprep.subr.mxu0 0.0
    %3348 = vmatpush2.msra.mxu0 %v77
    %3349 = vmatprep.subr.mxu0 0.0
    %3350 = vmatpush2.msra.mxu0 %v76
    %3351 = vmatprep.subr.mxu0 0.0
    %3352 = vmatpush2.msra.mxu0 %v75
    %3353 = vmatprep.subr.mxu0 0.0
    %3354 = vmatpush2.msra.mxu0 %v74
    %3355 = vmatprep.subr.mxu0 0.0
    %3356 = vmatpush2.msra.mxu0 %v73
    %3357 = vmatprep.subr.mxu0 0.0
    %3358 = vmatpush2.msra.mxu0 %v72
    %3359 = vmatprep.subr.mxu0 0.0
    %3360 = vmatpush2.msra.mxu0 %v71
    %3361 = vmatprep.mubr.f32.mxu0 %v3286
    %3362 = vmatmul.mubr.f32.gmra.mxu0 %v3285
    %v3363 = vpop.f32.mrf.mxu0
    %v3364 = vadd.f32 0.0, %v3363
    %v3365 = vpop.f32.mrf.mxu0
    %3366 = vmatprep.mubr.f32.mxu0 %v3292
    %3367 = vmatmul.mubr.f32.gmra.mxu0 %v3291
    %v3368 = vpop.f32.mrf.mxu0
    %v3369 = vadd.f32 0.0, %v3368
    %v3370 = vpop.f32.mrf.mxu0
    %3371 = vdwg.mxu0
    %3372 = vmatprep.subr.mxu0 0.0
    %3373 = vmatpush1.msra.mxu0 %v102
    %3374 = vmatprep.subr.mxu0 0.0
    %3375 = vmatpush1.msra.mxu0 %v101
    %3376 = vmatprep.subr.mxu0 0.0
    %3377 = vmatpush1.msra.mxu0 %v100
    %3378 = vmatprep.subr.mxu0 0.0
    %3379 = vmatpush1.msra.mxu0 %v99
    %3380 = vmatprep.subr.mxu0 0.0
    %3381 = vmatpush1.msra.mxu0 %v98
    %3382 = vmatprep.subr.mxu0 0.0
    %3383 = vmatpush1.msra.mxu0 %v97
    %3384 = vmatprep.subr.mxu0 0.0
    %3385 = vmatpush1.msra.mxu0 %v96
    %3386 = vmatprep.subr.mxu0 0.0
    %3387 = vmatpush1.msra.mxu0 %v95
    %3388 = vmatprep.subr.mxu0 0.0
    %3389 = vmatpush1.msra.mxu0 %v94
    %3390 = vmatprep.subr.mxu0 0.0
    %3391 = vmatpush1.msra.mxu0 %v93
    %3392 = vmatprep.subr.mxu0 0.0
    %3393 = vmatpush1.msra.mxu0 %v92
    %3394 = vmatprep.subr.mxu0 0.0
    %3395 = vmatpush1.msra.mxu0 %v91
    %3396 = vmatprep.subr.mxu0 0.0
    %3397 = vmatpush1.msra.mxu0 %v90
    %3398 = vmatprep.subr.mxu0 0.0
    %3399 = vmatpush1.msra.mxu0 %v89
    %3400 = vmatprep.subr.mxu0 0.0
    %3401 = vmatpush1.msra.mxu0 %v88
    %3402 = vmatprep.subr.mxu0 0.0
    %3403 = vmatpush1.msra.mxu0 %v87
    %3404 = vmatprep.subr.mxu0 0.0
    %3405 = vmatpush2.msra.mxu0 %v118
    %3406 = vmatprep.subr.mxu0 0.0
    %3407 = vmatpush2.msra.mxu0 %v117
    %3408 = vmatprep.subr.mxu0 0.0
    %3409 = vmatpush2.msra.mxu0 %v116
    %3410 = vmatprep.subr.mxu0 0.0
    %3411 = vmatpush2.msra.mxu0 %v115
    %3412 = vmatprep.subr.mxu0 0.0
    %3413 = vmatpush2.msra.mxu0 %v114
    %3414 = vmatprep.subr.mxu0 0.0
    %3415 = vmatpush2.msra.mxu0 %v113
    %3416 = vmatprep.subr.mxu0 0.0
    %3417 = vmatpush2.msra.mxu0 %v112
    %3418 = vmatprep.subr.mxu0 0.0
    %3419 = vmatpush2.msra.mxu0 %v111
    %3420 = vmatprep.subr.mxu0 0.0
    %3421 = vmatpush2.msra.mxu0 %v110
    %3422 = vmatprep.subr.mxu0 0.0
    %3423 = vmatpush2.msra.mxu0 %v109
    %3424 = vmatprep.subr.mxu0 0.0
    %3425 = vmatpush2.msra.mxu0 %v108
    %3426 = vmatprep.subr.mxu0 0.0
    %3427 = vmatpush2.msra.mxu0 %v107
    %3428 = vmatprep.subr.mxu0 0.0
    %3429 = vmatpush2.msra.mxu0 %v106
    %3430 = vmatprep.subr.mxu0 0.0
    %3431 = vmatpush2.msra.mxu0 %v105
    %3432 = vmatprep.subr.mxu0 0.0
    %3433 = vmatpush2.msra.mxu0 %v104
    %3434 = vmatprep.subr.mxu0 0.0
    %3435 = vmatpush2.msra.mxu0 %v103
    %3436 = vmatprep.mubr.f32.mxu0 %v3288
    %3437 = vmatmul.mubr.f32.gmra.mxu0 %v3287
    %v3438 = vpop.f32.mrf.mxu0
    %v3439 = vadd.f32 %v3364, %v3438
    %v3440 = vpop.f32.mrf.mxu0
    %3441 = vmatprep.mubr.f32.mxu0 %v3294
    %3442 = vmatmul.mubr.f32.gmra.mxu0 %v3293
    %v3443 = vpop.f32.mrf.mxu0
    %v3444 = vadd.f32 %v3369, %v3443
    %v3445 = vpop.f32.mrf.mxu0
    %3446 = vdwg.mxu0
    %3447 = vmatprep.subr.mxu0 0.0
    %3448 = vmatpush1.msra.mxu0 %v134
    %3449 = vmatprep.subr.mxu0 0.0
    %3450 = vmatpush1.msra.mxu0 %v133
    %3451 = vmatprep.subr.mxu0 0.0
    %3452 = vmatpush1.msra.mxu0 %v132
    %3453 = vmatprep.subr.mxu0 0.0
    %3454 = vmatpush1.msra.mxu0 %v131
    %3455 = vmatprep.subr.mxu0 0.0
    %3456 = vmatpush1.msra.mxu0 %v130
    %3457 = vmatprep.subr.mxu0 0.0
    %3458 = vmatpush1.msra.mxu0 %v129
    %3459 = vmatprep.subr.mxu0 0.0
    %3460 = vmatpush1.msra.mxu0 %v128
    %3461 = vmatprep.subr.mxu0 0.0
    %3462 = vmatpush1.msra.mxu0 %v127
    %3463 = vmatprep.subr.mxu0 0.0
    %3464 = vmatpush1.msra.mxu0 %v126
    %3465 = vmatprep.subr.mxu0 0.0
    %3466 = vmatpush1.msra.mxu0 %v125
    %3467 = vmatprep.subr.mxu0 0.0
    %3468 = vmatpush1.msra.mxu0 %v124
    %3469 = vmatprep.subr.mxu0 0.0
    %3470 = vmatpush1.msra.mxu0 %v123
    %3471 = vmatprep.subr.mxu0 0.0
    %3472 = vmatpush1.msra.mxu0 %v122
    %3473 = vmatprep.subr.mxu0 0.0
    %3474 = vmatpush1.msra.mxu0 %v121
    %3475 = vmatprep.subr.mxu0 0.0
    %3476 = vmatpush1.msra.mxu0 %v120
    %3477 = vmatprep.subr.mxu0 0.0
    %3478 = vmatpush1.msra.mxu0 %v119
    %3479 = vmatprep.subr.mxu0 0.0
    %3480 = vmatpush2.msra.mxu0 %v150
    %3481 = vmatprep.subr.mxu0 0.0
    %3482 = vmatpush2.msra.mxu0 %v149
    %3483 = vmatprep.subr.mxu0 0.0
    %3484 = vmatpush2.msra.mxu0 %v148
    %3485 = vmatprep.subr.mxu0 0.0
    %3486 = vmatpush2.msra.mxu0 %v147
    %3487 = vmatprep.subr.mxu0 0.0
    %3488 = vmatpush2.msra.mxu0 %v146
    %3489 = vmatprep.subr.mxu0 0.0
    %3490 = vmatpush2.msra.mxu0 %v145
    %3491 = vmatprep.subr.mxu0 0.0
    %3492 = vmatpush2.msra.mxu0 %v144
    %3493 = vmatprep.subr.mxu0 0.0
    %3494 = vmatpush2.msra.mxu0 %v143
    %3495 = vmatprep.subr.mxu0 0.0
    %3496 = vmatpush2.msra.mxu0 %v142
    %3497 = vmatprep.subr.mxu0 0.0
    %3498 = vmatpush2.msra.mxu0 %v141
    %3499 = vmatprep.subr.mxu0 0.0
    %3500 = vmatpush2.msra.mxu0 %v140
    %3501 = vmatprep.subr.mxu0 0.0
    %3502 = vmatpush2.msra.mxu0 %v139
    %3503 = vmatprep.subr.mxu0 0.0
    %3504 = vmatpush2.msra.mxu0 %v138
    %3505 = vmatprep.subr.mxu0 0.0
    %3506 = vmatpush2.msra.mxu0 %v137
    %3507 = vmatprep.subr.mxu0 0.0
    %3508 = vmatpush2.msra.mxu0 %v136
    %3509 = vmatprep.subr.mxu0 0.0
    %3510 = vmatpush2.msra.mxu0 %v135
    %3511 = vmatprep.mubr.f32.mxu0 %v3290
    %3512 = vmatmul.mubr.f32.gmra.mxu0 %v3289
    %v3513 = vpop.f32.mrf.mxu0
    %v3514 = vadd.f32 %v3439, %v3513
    %v3515 = vpop.f32.mrf.mxu0
    %3516 = vmatprep.mubr.f32.mxu0 %v3296
    %3517 = vmatmul.mubr.f32.gmra.mxu0 %v3295
    %v3518 = vpop.f32.mrf.mxu0
    %v3519 = vadd.f32 %v3444, %v3518
    %v3520 = vpop.f32.mrf.mxu0
    %3521 = vdwg.mxu0
    %v3522 = vmul.f32 %v3514, 0.001953125
    %v3523 = vmul.f32 %v3519, 0.001953125
    %v3524 = vmul.f32 %v2566, %v2793
    %v3525 = vmul.f32 %v2567, %v2794
    %v3526 = vsub.f32 %v3522, %v3524
    %v3527 = vsub.f32 %v3523, %v3525
    %v3528 = vmul.f32 %v3038, %v3283
    %v3529 = vmul.f32 %v3039, %v3284
    %v3530 = vmul.f32 %v3526, %v3526
    %v3531 = vmul.f32 %v3527, %v3527
    %v3532 = vsub.f32 %v3528, %v3530
    %v3533 = vsub.f32 %v3529, %v3531
    %v3534 = vmax.f32 %v3532, 1e-12
    %v3535 = vmax.f32 %v3533, 1e-12
    %v3536 = vrsqrt.pop %v3534
    %v3537 = vmul.f32 %v3534, %v3536
    %vm3538 = vcmp.eq.f32.partialorder %v3534, inf
    %v3539 = vsel %vm3538, %v3534, %v3537
    %vm3540 = vcmp.eq.f32.partialorder %v3534, 0.0
    %v3541 = vand.u32 %v3534, 2147483648
    %v3542 = vsel %vm3540, %v3541, %v3539
    %v3543 = vrsqrt.pop %v3535
    %v3544 = vmul.f32 %v3535, %v3543
    %vm3545 = vcmp.eq.f32.partialorder %v3535, inf
    %v3546 = vsel %vm3545, %v3535, %v3544
    %vm3547 = vcmp.eq.f32.partialorder %v3535, 0.0
    %v3548 = vand.u32 %v3535, 2147483648
    %v3549 = vsel %vm3547, %v3548, %v3546
    %v3550 = vadd.f32 %v3038, %v3283
    %v3551 = vadd.f32 %v3039, %v3284
    %v3552 = vmul.f32 %v3542, 2.0
    %v3553 = vmul.f32 %v3549, 2.0
    %v3554 = vadd.f32 %v3550, %v3552
    %v3555 = vadd.f32 %v3551, %v3553
    %v3556 = vmul.f32 %v3534, %v3554
    %v3557 = vmul.f32 %v3535, %v3555
    %v3558 = vrsqrt.pop %v3556
    %v3559 = vrsqrt.pop %v3557
    %v3560 = vadd.f32 %v3283, %v3542
    %v3561 = vadd.f32 %v3284, %v3549
    %v3562 = vmul.f32 %v3560, %v3558
    %v3563 = vmul.f32 %v3561, %v3559
    %v3564 = vadd.f32 %v3038, %v3542
    %v3565 = vadd.f32 %v3039, %v3549
    %v3566 = vmul.f32 %v3564, %v3558
    %v3567 = vmul.f32 %v3565, %v3559
    %v3568 = vsub.f32 0.0, %v3526
    %v3569 = vsub.f32 0.0, %v3527
    %v3570 = vmul.f32 %v3568, %v3558
    %v3571 = vmul.f32 %v3569, %v3559
    %3573 = vset.pattern.permute.xlu0 0
    %3574 = vperm.xlu0 %3573, %v2566
    %v3575 = vpop.permute.xlu0 %3574
    %3578 = vset.pattern.permute.xlu0 0
    %3579 = vperm.xlu0 %3578, %v2567
    %v3580 = vpop.permute.xlu0 %3579
    %v3582 = vsub.f32 %v2313, %v3575
    %v3583 = vsub.f32 %v2314, %v3575
    %v3584 = vsub.f32 %v2315, %v3575
    %v3585 = vsub.f32 %v2316, %v3575
    %v3586 = vsub.f32 %v2317, %v3575
    %v3587 = vsub.f32 %v2318, %v3575
    %v3588 = vsub.f32 %v2319, %v3580
    %v3589 = vsub.f32 %v2320, %v3580
    %v3590 = vsub.f32 %v2321, %v3580
    %v3591 = vsub.f32 %v2322, %v3580
    %v3592 = vsub.f32 %v2323, %v3580
    %v3593 = vsub.f32 %v2324, %v3580
    %3595 = vset.pattern.permute.xlu0 0
    %3596 = vperm.xlu0 %3595, %v2793
    %v3597 = vpop.permute.xlu0 %3596
    %3600 = vset.pattern.permute.xlu0 0
    %3601 = vperm.xlu0 %3600, %v2794
    %v3602 = vpop.permute.xlu0 %3601
    %v3604 = vsub.f32 %v2325, %v3597
    %v3605 = vsub.f32 %v2326, %v3597
    %v3606 = vsub.f32 %v2327, %v3597
    %v3607 = vsub.f32 %v2328, %v3597
    %v3608 = vsub.f32 %v2329, %v3597
    %v3609 = vsub.f32 %v2330, %v3597
    %v3610 = vsub.f32 %v2331, %v3602
    %v3611 = vsub.f32 %v2332, %v3602
    %v3612 = vsub.f32 %v2333, %v3602
    %v3613 = vsub.f32 %v2334, %v3602
    %v3614 = vsub.f32 %v2335, %v3602
    %v3615 = vsub.f32 %v2336, %v3602
    %3617 = vset.pattern.permute.xlu0 0
    %3618 = vperm.xlu0 %3617, %v3562
    %v3619 = vpop.permute.xlu0 %3618
    %3622 = vset.pattern.permute.xlu0 0
    %3623 = vperm.xlu0 %3622, %v3563
    %v3624 = vpop.permute.xlu0 %3623
    %v3626 = vmul.f32 %v3619, %v3582
    %v3627 = vmul.f32 %v3619, %v3583
    %v3628 = vmul.f32 %v3619, %v3584
    %v3629 = vmul.f32 %v3619, %v3585
    %v3630 = vmul.f32 %v3619, %v3586
    %v3631 = vmul.f32 %v3619, %v3587
    %v3632 = vmul.f32 %v3624, %v3588
    %v3633 = vmul.f32 %v3624, %v3589
    %v3634 = vmul.f32 %v3624, %v3590
    %v3635 = vmul.f32 %v3624, %v3591
    %v3636 = vmul.f32 %v3624, %v3592
    %v3637 = vmul.f32 %v3624, %v3593
    %3639 = vset.pattern.permute.xlu0 0
    %3640 = vperm.xlu0 %3639, %v3570
    %v3641 = vpop.permute.xlu0 %3640
    %3644 = vset.pattern.permute.xlu0 0
    %3645 = vperm.xlu0 %3644, %v3571
    %v3646 = vpop.permute.xlu0 %3645
    %v3648 = vmul.f32 %v3641, %v3604
    %v3649 = vmul.f32 %v3641, %v3605
    %v3650 = vmul.f32 %v3641, %v3606
    %v3651 = vmul.f32 %v3641, %v3607
    %v3652 = vmul.f32 %v3641, %v3608
    %v3653 = vmul.f32 %v3641, %v3609
    %v3654 = vmul.f32 %v3646, %v3610
    %v3655 = vmul.f32 %v3646, %v3611
    %v3656 = vmul.f32 %v3646, %v3612
    %v3657 = vmul.f32 %v3646, %v3613
    %v3658 = vmul.f32 %v3646, %v3614
    %v3659 = vmul.f32 %v3646, %v3615
    %v3660 = vadd.f32 %v3626, %v3648
    %v3661 = vadd.f32 %v3627, %v3649
    %v3662 = vadd.f32 %v3628, %v3650
    %v3663 = vadd.f32 %v3629, %v3651
    %v3664 = vadd.f32 %v3630, %v3652
    %v3665 = vadd.f32 %v3631, %v3653
    %v3666 = vadd.f32 %v3632, %v3654
    %v3667 = vadd.f32 %v3633, %v3655
    %v3668 = vadd.f32 %v3634, %v3656
    %v3669 = vadd.f32 %v3635, %v3657
    %v3670 = vadd.f32 %v3636, %v3658
    %v3671 = vadd.f32 %v3637, %v3659
    %v3672 = vmul.f32 %v3641, %v3582
    %v3673 = vmul.f32 %v3641, %v3583
    %v3674 = vmul.f32 %v3641, %v3584
    %v3675 = vmul.f32 %v3641, %v3585
    %v3676 = vmul.f32 %v3641, %v3586
    %v3677 = vmul.f32 %v3641, %v3587
    %v3678 = vmul.f32 %v3646, %v3588
    %v3679 = vmul.f32 %v3646, %v3589
    %v3680 = vmul.f32 %v3646, %v3590
    %v3681 = vmul.f32 %v3646, %v3591
    %v3682 = vmul.f32 %v3646, %v3592
    %v3683 = vmul.f32 %v3646, %v3593
    %3685 = vset.pattern.permute.xlu0 0
    %3686 = vperm.xlu0 %3685, %v3566
    %v3687 = vpop.permute.xlu0 %3686
    %3690 = vset.pattern.permute.xlu0 0
    %3691 = vperm.xlu0 %3690, %v3567
    %v3692 = vpop.permute.xlu0 %3691
    %v3694 = vmul.f32 %v3687, %v3604
    %v3695 = vmul.f32 %v3687, %v3605
    %v3696 = vmul.f32 %v3687, %v3606
    %v3697 = vmul.f32 %v3687, %v3607
    %v3698 = vmul.f32 %v3687, %v3608
    %v3699 = vmul.f32 %v3687, %v3609
    %v3700 = vmul.f32 %v3692, %v3610
    %v3701 = vmul.f32 %v3692, %v3611
    %v3702 = vmul.f32 %v3692, %v3612
    %v3703 = vmul.f32 %v3692, %v3613
    %v3704 = vmul.f32 %v3692, %v3614
    %v3705 = vmul.f32 %v3692, %v3615
    %v3706 = vadd.f32 %v3672, %v3694
    %v3707 = vadd.f32 %v3673, %v3695
    %v3708 = vadd.f32 %v3674, %v3696
    %v3709 = vadd.f32 %v3675, %v3697
    %v3710 = vadd.f32 %v3676, %v3698
    %v3711 = vadd.f32 %v3677, %v3699
    %v3712 = vadd.f32 %v3678, %v3700
    %v3713 = vadd.f32 %v3679, %v3701
    %v3714 = vadd.f32 %v3680, %v3702
    %v3715 = vadd.f32 %v3681, %v3703
    %v3716 = vadd.f32 %v3682, %v3704
    %v3717 = vadd.f32 %v3683, %v3705
    %3719 = vset.pattern.permute.xlu0 0
    %3720 = vperm.xlu0 %3719, %v2337
    %v3721 = vpop.permute.xlu0 %3720
    %3724 = vset.pattern.permute.xlu0 0
    %3725 = vperm.xlu0 %3724, %v2338
    %v3726 = vpop.permute.xlu0 %3725
    %v3728 = vmul.f32 %v3721, %v3660
    %v3729 = vmul.f32 %v3721, %v3661
    %v3730 = vmul.f32 %v3721, %v3662
    %v3731 = vmul.f32 %v3721, %v3663
    %v3732 = vmul.f32 %v3721, %v3664
    %v3733 = vmul.f32 %v3721, %v3665
    %v3734 = vmul.f32 %v3726, %v3666
    %v3735 = vmul.f32 %v3726, %v3667
    %v3736 = vmul.f32 %v3726, %v3668
    %v3737 = vmul.f32 %v3726, %v3669
    %v3738 = vmul.f32 %v3726, %v3670
    %v3739 = vmul.f32 %v3726, %v3671
    %3740 = vset.pattern.permute.xlu0 2
    %3741 = vperm.xlu0 %3740, %v2337
    %v3742 = vpop.permute.xlu0 %3741
    %3744 = vset.pattern.permute.xlu0 2
    %3745 = vperm.xlu0 %3744, %v2338
    %v3746 = vpop.permute.xlu0 %3745
    %v3748 = vmul.f32 %v3742, %v3706
    %v3749 = vmul.f32 %v3742, %v3707
    %v3750 = vmul.f32 %v3742, %v3708
    %v3751 = vmul.f32 %v3742, %v3709
    %v3752 = vmul.f32 %v3742, %v3710
    %v3753 = vmul.f32 %v3742, %v3711
    %v3754 = vmul.f32 %v3746, %v3712
    %v3755 = vmul.f32 %v3746, %v3713
    %v3756 = vmul.f32 %v3746, %v3714
    %v3757 = vmul.f32 %v3746, %v3715
    %v3758 = vmul.f32 %v3746, %v3716
    %v3759 = vmul.f32 %v3746, %v3717
    %v3760 = vadd.f32 %v3728, %v3748
    %v3761 = vadd.f32 %v3729, %v3749
    %v3762 = vadd.f32 %v3730, %v3750
    %v3763 = vadd.f32 %v3731, %v3751
    %v3764 = vadd.f32 %v3732, %v3752
    %v3765 = vadd.f32 %v3733, %v3753
    %v3766 = vadd.f32 %v3734, %v3754
    %v3767 = vadd.f32 %v3735, %v3755
    %v3768 = vadd.f32 %v3736, %v3756
    %v3769 = vadd.f32 %v3737, %v3757
    %v3770 = vadd.f32 %v3738, %v3758
    %v3771 = vadd.f32 %v3739, %v3759
    %3773 = vset.pattern.permute.xlu0 0
    %3774 = vperm.xlu0 %3773, %v2339
    %v3775 = vpop.permute.xlu0 %3774
    %3778 = vset.pattern.permute.xlu0 0
    %3779 = vperm.xlu0 %3778, %v2340
    %v3780 = vpop.permute.xlu0 %3779
    %v3782 = vadd.f32 %v3760, %v3775
    %v3783 = vadd.f32 %v3761, %v3775
    %v3784 = vadd.f32 %v3762, %v3775
    %v3785 = vadd.f32 %v3763, %v3775
    %v3786 = vadd.f32 %v3764, %v3775
    %v3787 = vadd.f32 %v3765, %v3775
    %v3788 = vadd.f32 %v3766, %v3780
    %v3789 = vadd.f32 %v3767, %v3780
    %v3790 = vadd.f32 %v3768, %v3780
    %v3791 = vadd.f32 %v3769, %v3780
    %v3792 = vadd.f32 %v3770, %v3780
    %v3793 = vadd.f32 %v3771, %v3780
    %v3794 = vmul.f32 %v3742, %v3660
    %v3795 = vmul.f32 %v3742, %v3661
    %v3796 = vmul.f32 %v3742, %v3662
    %v3797 = vmul.f32 %v3742, %v3663
    %v3798 = vmul.f32 %v3742, %v3664
    %v3799 = vmul.f32 %v3742, %v3665
    %v3800 = vmul.f32 %v3746, %v3666
    %v3801 = vmul.f32 %v3746, %v3667
    %v3802 = vmul.f32 %v3746, %v3668
    %v3803 = vmul.f32 %v3746, %v3669
    %v3804 = vmul.f32 %v3746, %v3670
    %v3805 = vmul.f32 %v3746, %v3671
    %3806 = vset.pattern.permute.xlu0 1
    %3807 = vperm.xlu0 %3806, %v2337
    %v3808 = vpop.permute.xlu0 %3807
    %3810 = vset.pattern.permute.xlu0 1
    %3811 = vperm.xlu0 %3810, %v2338
    %v3812 = vpop.permute.xlu0 %3811
    %v3814 = vmul.f32 %v3808, %v3706
    %v3815 = vmul.f32 %v3808, %v3707
    %v3816 = vmul.f32 %v3808, %v3708
    %v3817 = vmul.f32 %v3808, %v3709
    %v3818 = vmul.f32 %v3808, %v3710
    %v3819 = vmul.f32 %v3808, %v3711
    %v3820 = vmul.f32 %v3812, %v3712
    %v3821 = vmul.f32 %v3812, %v3713
    %v3822 = vmul.f32 %v3812, %v3714
    %v3823 = vmul.f32 %v3812, %v3715
    %v3824 = vmul.f32 %v3812, %v3716
    %v3825 = vmul.f32 %v3812, %v3717
    %v3826 = vadd.f32 %v3794, %v3814
    %v3827 = vadd.f32 %v3795, %v3815
    %v3828 = vadd.f32 %v3796, %v3816
    %v3829 = vadd.f32 %v3797, %v3817
    %v3830 = vadd.f32 %v3798, %v3818
    %v3831 = vadd.f32 %v3799, %v3819
    %v3832 = vadd.f32 %v3800, %v3820
    %v3833 = vadd.f32 %v3801, %v3821
    %v3834 = vadd.f32 %v3802, %v3822
    %v3835 = vadd.f32 %v3803, %v3823
    %v3836 = vadd.f32 %v3804, %v3824
    %v3837 = vadd.f32 %v3805, %v3825
    %3838 = vset.pattern.permute.xlu0 1
    %3839 = vperm.xlu0 %3838, %v2339
    %v3840 = vpop.permute.xlu0 %3839
    %3842 = vset.pattern.permute.xlu0 1
    %3843 = vperm.xlu0 %3842, %v2340
    %v3844 = vpop.permute.xlu0 %3843
    %v3846 = vadd.f32 %v3826, %v3840
    %v3847 = vadd.f32 %v3827, %v3840
    %v3848 = vadd.f32 %v3828, %v3840
    %v3849 = vadd.f32 %v3829, %v3840
    %v3850 = vadd.f32 %v3830, %v3840
    %v3851 = vadd.f32 %v3831, %v3840
    %v3852 = vadd.f32 %v3832, %v3844
    %v3853 = vadd.f32 %v3833, %v3844
    %v3854 = vadd.f32 %v3834, %v3844
    %v3855 = vadd.f32 %v3835, %v3844
    %v3856 = vadd.f32 %v3836, %v3844
    %v3857 = vadd.f32 %v3837, %v3844
    %v3858 = vmax.f32 %v3782, 0.0
    %v3859 = vmax.f32 %v3783, 0.0
    %v3860 = vmax.f32 %v3784, 0.0
    %v3861 = vmax.f32 %v3785, 0.0
    %v3862 = vmax.f32 %v3786, 0.0
    %v3863 = vmax.f32 %v3787, 0.0
    %v3864 = vmax.f32 %v3788, 0.0
    %v3865 = vmax.f32 %v3789, 0.0
    %v3866 = vmax.f32 %v3790, 0.0
    %v3867 = vmax.f32 %v3791, 0.0
    %v3868 = vmax.f32 %v3792, 0.0
    %v3869 = vmax.f32 %v3793, 0.0
    %v3870 = vmax.f32 %v3846, 0.0
    %v3871 = vmax.f32 %v3847, 0.0
    %v3872 = vmax.f32 %v3848, 0.0
    %v3873 = vmax.f32 %v3849, 0.0
    %v3874 = vmax.f32 %v3850, 0.0
    %v3875 = vmax.f32 %v3851, 0.0
    %v3876 = vmax.f32 %v3852, 0.0
    %v3877 = vmax.f32 %v3853, 0.0
    %v3878 = vmax.f32 %v3854, 0.0
    %v3879 = vmax.f32 %v3855, 0.0
    %v3880 = vmax.f32 %v3856, 0.0
    %v3881 = vmax.f32 %v3857, 0.0
    %3882 = vst [vmem:[#allocation2] sm:$0xf] 0
    %3883 = vst [vmem:[#allocation2 + $0x20] sm:$0xf] 0
    %3884 = vst [vmem:[#allocation2 + $0x40] sm:$0xf] 0
    %3885 = vst [vmem:[#allocation2 + $0x60] sm:$0xf] 0
    %3886 = vst [vmem:[#allocation2 + $0x1c] sm:$0xf] 0
    %3887 = vst [vmem:[#allocation2 + $0x3c] sm:$0xf] 0
    %3888 = vst [vmem:[#allocation2 + $0x5c] sm:$0xf] 0
    %3889 = vst [vmem:[#allocation2 + $0x7c] sm:$0xf] 0
    %v3891 = vlaneseq
    %v3892 = vshrl.u32 %v3891, 7
    %v3893 = vsub.s32 0, %v3892
    %v3894 = vrot.slane %v54, %v3893
    %v3895 = vlaneseq
    %v3896 = vshrl.u32 %v3895, 7
    %v3897 = vsub.s32 1, %v3896
    %v3898 = vrot.slane %v54, %v3897
    %v3899 = vlaneseq
    %v3900 = vshrl.u32 %v3899, 7
    %v3901 = vsub.s32 2, %v3900
    %v3902 = vrot.slane %v54, %v3901
    %v3903 = vlaneseq
    %v3904 = vshrl.u32 %v3903, 7
    %v3905 = vsub.s32 3, %v3904
    %v3906 = vrot.slane %v54, %v3905
    %v3907 = vlaneseq
    %v3908 = vshrl.u32 %v3907, 7
    %v3909 = vsub.s32 4, %v3908
    %v3910 = vrot.slane %v54, %v3909
    %v3911 = vlaneseq
    %v3912 = vshrl.u32 %v3911, 7
    %v3913 = vsub.s32 5, %v3912
    %v3914 = vrot.slane %v54, %v3913
    %v3921 = vmul.f32 %v3858, %v3894
    %v3922 = vmul.f32 %v3859, %v3898
    %v3923 = vmul.f32 %v3860, %v3902
    %v3924 = vmul.f32 %v3861, %v3906
    %v3925 = vmul.f32 %v3862, %v3910
    %v3926 = vmul.f32 %v3863, %v3914
    %v3927 = vmul.f32 %v3864, %v3894
    %v3928 = vmul.f32 %v3865, %v3898
    %v3929 = vmul.f32 %v3866, %v3902
    %v3930 = vmul.f32 %v3867, %v3906
    %v3931 = vmul.f32 %v3868, %v3910
    %v3932 = vmul.f32 %v3869, %v3914
    %v3933 = vpack.c.bf16 %v3927, %v3921
    %v3934 = vpack.c.bf16 %v3928, %v3922
    %v3935 = vpack.c.bf16 %v3929, %v3923
    %v3936 = vpack.c.bf16 %v3930, %v3924
    %v3937 = vpack.c.bf16 %v3931, %v3925
    %v3938 = vpack.c.bf16 %v3932, %v3926
    %v3945 = vunpack.c.l.b16 %v3933
    %v3946 = vunpack.c.l.b16 %v3934
    %v3947 = vunpack.c.l.b16 %v3935
    %v3948 = vunpack.c.l.b16 %v3936
    %v3949 = vunpack.c.l.b16 %v3937
    %v3950 = vunpack.c.l.b16 %v3938
    %v3951 = vunpack.c.h.b16 %v3933
    %v3952 = vunpack.c.h.b16 %v3934
    %v3953 = vunpack.c.h.b16 %v3935
    %v3954 = vunpack.c.h.b16 %v3936
    %v3955 = vunpack.c.h.b16 %v3937
    %v3956 = vunpack.c.h.b16 %v3938
    %v3957 = vpack.c.b16 %v3946, %v3945
    %v3958 = vpack.c.b16 %v3948, %v3947
    %v3959 = vpack.c.b16 %v3950, %v3949
    %v3960 = vpack.c.b16 %v3952, %v3951
    %v3961 = vpack.c.b16 %v3954, %v3953
    %v3962 = vpack.c.b16 %v3956, %v3955
    %3969 = vst [vmem:[#allocation2 + $0x4] sm:$0xff] %v3957
    %3970 = vst [vmem:[#allocation2 + $0xc] sm:$0xff] %v3958
    %3971 = vst [vmem:[#allocation2 + $0x14] sm:$0xff] %v3959
    %3972 = vst [vmem:[#allocation2 + $0x24] sm:$0xff] %v3960
    %3973 = vst [vmem:[#allocation2 + $0x2c] sm:$0xff] %v3961
    %3974 = vst [vmem:[#allocation2 + $0x34] sm:$0xff] %v3962
    %v3975 = vmul.f32 %v3870, %v3894
    %v3976 = vmul.f32 %v3871, %v3898
    %v3977 = vmul.f32 %v3872, %v3902
    %v3978 = vmul.f32 %v3873, %v3906
    %v3979 = vmul.f32 %v3874, %v3910
    %v3980 = vmul.f32 %v3875, %v3914
    %v3981 = vmul.f32 %v3876, %v3894
    %v3982 = vmul.f32 %v3877, %v3898
    %v3983 = vmul.f32 %v3878, %v3902
    %v3984 = vmul.f32 %v3879, %v3906
    %v3985 = vmul.f32 %v3880, %v3910
    %v3986 = vmul.f32 %v3881, %v3914
    %v3987 = vpack.c.bf16 %v3981, %v3975
    %v3988 = vpack.c.bf16 %v3982, %v3976
    %v3989 = vpack.c.bf16 %v3983, %v3977
    %v3990 = vpack.c.bf16 %v3984, %v3978
    %v3991 = vpack.c.bf16 %v3985, %v3979
    %v3992 = vpack.c.bf16 %v3986, %v3980
    %v3999 = vunpack.c.l.b16 %v3987
    %v4000 = vunpack.c.l.b16 %v3988
    %v4001 = vunpack.c.l.b16 %v3989
    %v4002 = vunpack.c.l.b16 %v3990
    %v4003 = vunpack.c.l.b16 %v3991
    %v4004 = vunpack.c.l.b16 %v3992
    %v4005 = vunpack.c.h.b16 %v3987
    %v4006 = vunpack.c.h.b16 %v3988
    %v4007 = vunpack.c.h.b16 %v3989
    %v4008 = vunpack.c.h.b16 %v3990
    %v4009 = vunpack.c.h.b16 %v3991
    %v4010 = vunpack.c.h.b16 %v3992
    %v4011 = vpack.c.b16 %v4000, %v3999
    %v4012 = vpack.c.b16 %v4002, %v4001
    %v4013 = vpack.c.b16 %v4004, %v4003
    %v4014 = vpack.c.b16 %v4006, %v4005
    %v4015 = vpack.c.b16 %v4008, %v4007
    %v4016 = vpack.c.b16 %v4010, %v4009
    %4023 = vst [vmem:[#allocation2 + $0x44] sm:$0xff] %v4011
    %4024 = vst [vmem:[#allocation2 + $0x4c] sm:$0xff] %v4012
    %4025 = vst [vmem:[#allocation2 + $0x54] sm:$0xff] %v4013
    %4026 = vst [vmem:[#allocation2 + $0x64] sm:$0xff] %v4014
    %4027 = vst [vmem:[#allocation2 + $0x6c] sm:$0xff] %v4015
    %4028 = vst [vmem:[#allocation2 + $0x74] sm:$0xff] %v4016
    %v4029 = vld [vmem:[%s8] sm:$0xff]
    %v4030 = vld [vmem:[%s8 + $0x8] sm:$0xff]
    %v4031 = vld [vmem:[%s8 + $0x10] sm:$0xff]
    %v4032 = vld [vmem:[%s8 + $0x18] sm:$0xff]
    %v4033 = vld [vmem:[%s7] sm:$0xf]
    %v4034 = vld [vmem:[%s7 + $0x4] sm:$0xf]
    %v4035 = vld [vmem:[%s7 + $0x8] sm:$0xf]
    %v4036 = vld [vmem:[%s7 + $0xc] sm:$0xf]
    %v4037 = vld [vmem:[#allocation2] sm:$0xff]
    %v4038 = vld [vmem:[#allocation2 + $0x8] sm:$0xff]
    %v4039 = vld [vmem:[#allocation2 + $0x10] sm:$0xff]
    %v4040 = vld [vmem:[#allocation2 + $0x18] sm:$0xf]
    %v4041 = vld [vmem:[#allocation2 + $0x20] sm:$0xff]
    %v4042 = vld [vmem:[#allocation2 + $0x28] sm:$0xff]
    %v4043 = vld [vmem:[#allocation2 + $0x30] sm:$0xff]
    %v4044 = vld [vmem:[#allocation2 + $0x38] sm:$0xf]
    %v4045 = vld [vmem:[#allocation2 + $0x40] sm:$0xff]
    %v4046 = vld [vmem:[#allocation2 + $0x48] sm:$0xff]
    %v4047 = vld [vmem:[#allocation2 + $0x50] sm:$0xff]
    %v4048 = vld [vmem:[#allocation2 + $0x58] sm:$0xf]
    %v4049 = vld [vmem:[#allocation2 + $0x60] sm:$0xff]
    %v4050 = vld [vmem:[#allocation2 + $0x68] sm:$0xff]
    %v4051 = vld [vmem:[#allocation2 + $0x70] sm:$0xff]
    %v4052 = vld [vmem:[#allocation2 + $0x78] sm:$0xf]
    %v4057 = vunpack.c.l.b16 %v4033
    %v4058 = vunpack.c.l.b16 %v4034
    %v4059 = vunpack.c.l.b16 %v4035
    %v4060 = vunpack.c.l.b16 %v4036
    %v4061 = vpack.c.b16 %v4058, %v4057
    %v4062 = vpack.c.b16 %v4060, %v4059
    %v4079 = vunpack.c.l.b16 %v4037
    %v4080 = vunpack.c.h.b16 %v4037
    %v4081 = vunpack.c.l.b16 %v4038
    %v4082 = vunpack.c.h.b16 %v4038
    %v4083 = vunpack.c.l.b16 %v4039
    %v4084 = vunpack.c.h.b16 %v4039
    %v4085 = vunpack.c.l.b16 %v4040
    %v4086 = vunpack.c.l.b16 %v4041
    %v4087 = vunpack.c.h.b16 %v4041
    %v4088 = vunpack.c.l.b16 %v4042
    %v4089 = vunpack.c.h.b16 %v4042
    %v4090 = vunpack.c.l.b16 %v4043
    %v4091 = vunpack.c.h.b16 %v4043
    %v4092 = vunpack.c.l.b16 %v4044
    %v4093 = vunpack.c.l.b16 %v4045
    %v4094 = vunpack.c.h.b16 %v4045
    %v4095 = vunpack.c.l.b16 %v4046
    %v4096 = vunpack.c.h.b16 %v4046
    %v4097 = vunpack.c.l.b16 %v4047
    %v4098 = vunpack.c.h.b16 %v4047
    %v4099 = vunpack.c.l.b16 %v4048
    %v4100 = vunpack.c.l.b16 %v4049
    %v4101 = vunpack.c.h.b16 %v4049
    %v4102 = vunpack.c.l.b16 %v4050
    %v4103 = vunpack.c.h.b16 %v4050
    %v4104 = vunpack.c.l.b16 %v4051
    %v4105 = vunpack.c.h.b16 %v4051
    %v4106 = vunpack.c.l.b16 %v4052
    %v4107 = vpack.c.b16 %v4086, %v4079
    %v4108 = vpack.c.b16 %v4087, %v4080
    %v4109 = vpack.c.b16 %v4088, %v4081
    %v4110 = vpack.c.b16 %v4089, %v4082
    %v4111 = vpack.c.b16 %v4090, %v4083
    %v4112 = vpack.c.b16 %v4091, %v4084
    %v4113 = vpack.c.b16 %v4092, %v4085
    %v4114 = vpack.c.b16 %v4100, %v4093
    %v4115 = vpack.c.b16 %v4101, %v4094
    %v4116 = vpack.c.b16 %v4102, %v4095
    %v4117 = vpack.c.b16 %v4103, %v4096
    %v4118 = vpack.c.b16 %v4104, %v4097
    %v4119 = vpack.c.b16 %v4105, %v4098
    %v4120 = vpack.c.b16 %v4106, %v4099
    %4121 = vrot.lane.b32.xlu0 %v4107, 19
    %v4122 = vpop.permute.xlu0 %4121
    %4123 = vrot.lane.b32.xlu0 %v4108, 19
    %v4124 = vpop.permute.xlu0 %4123
    %4125 = vrot.lane.b32.xlu0 %v4109, 19
    %v4126 = vpop.permute.xlu0 %4125
    %4127 = vrot.lane.b32.xlu0 %v4110, 19
    %v4128 = vpop.permute.xlu0 %4127
    %4129 = vrot.lane.b32.xlu0 %v4111, 19
    %v4130 = vpop.permute.xlu0 %4129
    %4131 = vrot.lane.b32.xlu0 %v4112, 19
    %v4132 = vpop.permute.xlu0 %4131
    %4133 = vrot.lane.b32.xlu0 %v4113, 19
    %v4134 = vpop.permute.xlu0 %4133
    %4135 = vrot.lane.b32.xlu0 %v4114, 19
    %v4136 = vpop.permute.xlu0 %4135
    %4137 = vrot.lane.b32.xlu0 %v4115, 19
    %v4138 = vpop.permute.xlu0 %4137
    %4139 = vrot.lane.b32.xlu0 %v4116, 19
    %v4140 = vpop.permute.xlu0 %4139
    %4141 = vrot.lane.b32.xlu0 %v4117, 19
    %v4142 = vpop.permute.xlu0 %4141
    %4143 = vrot.lane.b32.xlu0 %v4118, 19
    %v4144 = vpop.permute.xlu0 %4143
    %4145 = vrot.lane.b32.xlu0 %v4119, 19
    %v4146 = vpop.permute.xlu0 %4145
    %4147 = vrot.lane.b32.xlu0 %v4120, 19
    %v4148 = vpop.permute.xlu0 %4147
    %v4149 = vsel %vm220, %v4122, %v4124
    %v4150 = vsel %vm220, %v4124, %v4126
    %v4151 = vsel %vm220, %v4126, %v4128
    %v4152 = vsel %vm220, %v4128, %v4130
    %v4153 = vsel %vm220, %v4130, %v4132
    %v4154 = vsel %vm220, %v4132, %v4134
    %v4155 = vsel %vm220, %v4136, %v4138
    %v4156 = vsel %vm220, %v4138, %v4140
    %v4157 = vsel %vm220, %v4140, %v4142
    %v4158 = vsel %vm220, %v4142, %v4144
    %v4159 = vsel %vm220, %v4144, %v4146
    %v4160 = vsel %vm220, %v4146, %v4148
    %vm4173 = vcmask 261120
    %v4175 = vsel %vm4173, %v4061, 0
    %v4178 = vsel %vm4173, %v4062, 0
    %4180 = vmatprep.subr.bf16.mxu0 0
    %4181 = vmatpush1.bf16.msra.mxu0 0
    %4182 = vmatprep.subr.bf16.mxu0 0
    %4183 = vmatpush1.bf16.msra.mxu0 0
    %4184 = vmatprep.subr.bf16.mxu0 0
    %4185 = vmatpush1.bf16.msra.mxu0 0
    %4186 = vmatprep.subr.bf16.mxu0 0
    %4187 = vmatpush1.bf16.msra.mxu0 0
    %4188 = vmatprep.subr.bf16.mxu0 0
    %4189 = vmatpush1.bf16.msra.mxu0 0
    %4190 = vmatprep.subr.bf16.mxu0 0
    %4191 = vmatpush1.bf16.msra.mxu0 0
    %4192 = vmatprep.subr.bf16.mxu0 %v4156
    %4193 = vmatpush1.bf16.msra.mxu0 %v4155
    %4194 = vmatprep.subr.bf16.mxu0 %v4150
    %4195 = vmatpush1.bf16.msra.mxu0 %v4149
    %4196 = vmatprep.subr.bf16.mxu0 0
    %4197 = vmatpush2.bf16.msra.mxu0 0
    %4198 = vmatprep.subr.bf16.mxu0 0
    %4199 = vmatpush2.bf16.msra.mxu0 0
    %4200 = vmatprep.subr.bf16.mxu0 0
    %4201 = vmatpush2.bf16.msra.mxu0 0
    %4202 = vmatprep.subr.bf16.mxu0 0
    %4203 = vmatpush2.bf16.msra.mxu0 0
    %4204 = vmatprep.subr.bf16.mxu0 0
    %4205 = vmatpush2.bf16.msra.mxu0 0
    %4206 = vmatprep.subr.bf16.mxu0 0
    %4207 = vmatpush2.bf16.msra.mxu0 0
    %4208 = vmatprep.subr.bf16.mxu0 0
    %4209 = vmatpush2.bf16.msra.mxu0 0
    %4210 = vmatprep.subr.bf16.mxu0 0
    %4211 = vmatpush2.bf16.msra.mxu0 0
    %4212 = vmatprep.mubr.bf16.mxu0 0
    %4213 = vmatmul.mubr.bf16.gmra.mxu0 %v4175
    %v4214 = vpop.f32.mrf.mxu0
    %v4215 = vadd.f32 0.0, %v4214
    %v4216 = vpop.f32.mrf.mxu0
    %v4217 = vadd.f32 0.0, %v4216
    %v4218 = vpop.f32.mrf.mxu0
    %v4219 = vadd.f32 0.0, %v4218
    %v4220 = vpop.f32.mrf.mxu0
    %v4221 = vadd.f32 0.0, %v4220
    %4222 = vmatprep.mubr.bf16.mxu0 0
    %4223 = vmatmul.mubr.bf16.gmra.mxu0 %v4178
    %v4224 = vpop.f32.mrf.mxu0
    %v4225 = vadd.f32 0.0, %v4224
    %v4226 = vpop.f32.mrf.mxu0
    %v4227 = vadd.f32 0.0, %v4226
    %v4228 = vpop.f32.mrf.mxu0
    %v4229 = vadd.f32 0.0, %v4228
    %v4230 = vpop.f32.mrf.mxu0
    %v4231 = vadd.f32 0.0, %v4230
    %4232 = vdwg.mxu0
    %4233 = vmatprep.subr.bf16.mxu0 0
    %4234 = vmatpush1.bf16.msra.mxu0 0
    %4235 = vmatprep.subr.bf16.mxu0 0
    %4236 = vmatpush1.bf16.msra.mxu0 0
    %4237 = vmatprep.subr.bf16.mxu0 0
    %4238 = vmatpush1.bf16.msra.mxu0 0
    %4239 = vmatprep.subr.bf16.mxu0 0
    %4240 = vmatpush1.bf16.msra.mxu0 0
    %4241 = vmatprep.subr.bf16.mxu0 0
    %4242 = vmatpush1.bf16.msra.mxu0 0
    %4243 = vmatprep.subr.bf16.mxu0 0
    %4244 = vmatpush1.bf16.msra.mxu0 0
    %4245 = vmatprep.subr.bf16.mxu0 %v4158
    %4246 = vmatpush1.bf16.msra.mxu0 %v4157
    %4247 = vmatprep.subr.bf16.mxu0 %v4152
    %4248 = vmatpush1.bf16.msra.mxu0 %v4151
    %4249 = vmatprep.subr.bf16.mxu0 0
    %4250 = vmatpush2.bf16.msra.mxu0 0
    %4251 = vmatprep.subr.bf16.mxu0 0
    %4252 = vmatpush2.bf16.msra.mxu0 0
    %4253 = vmatprep.subr.bf16.mxu0 0
    %4254 = vmatpush2.bf16.msra.mxu0 0
    %4255 = vmatprep.subr.bf16.mxu0 0
    %4256 = vmatpush2.bf16.msra.mxu0 0
    %4257 = vmatprep.subr.bf16.mxu0 0
    %4258 = vmatpush2.bf16.msra.mxu0 0
    %4259 = vmatprep.subr.bf16.mxu0 0
    %4260 = vmatpush2.bf16.msra.mxu0 0
    %4261 = vmatprep.subr.bf16.mxu0 0
    %4262 = vmatpush2.bf16.msra.mxu0 0
    %4263 = vmatprep.subr.bf16.mxu0 0
    %4264 = vmatpush2.bf16.msra.mxu0 0
    %4265 = vmatprep.mubr.bf16.mxu0 0
    %4266 = vmatmul.mubr.bf16.gmra.mxu0 %v4175
    %v4267 = vpop.f32.mrf.mxu0
    %v4268 = vadd.f32 0.0, %v4267
    %v4269 = vpop.f32.mrf.mxu0
    %v4270 = vadd.f32 0.0, %v4269
    %v4271 = vpop.f32.mrf.mxu0
    %v4272 = vadd.f32 0.0, %v4271
    %v4273 = vpop.f32.mrf.mxu0
    %v4274 = vadd.f32 0.0, %v4273
    %4275 = vmatprep.mubr.bf16.mxu0 0
    %4276 = vmatmul.mubr.bf16.gmra.mxu0 %v4178
    %v4277 = vpop.f32.mrf.mxu0
    %v4278 = vadd.f32 0.0, %v4277
    %v4279 = vpop.f32.mrf.mxu0
    %v4280 = vadd.f32 0.0, %v4279
    %v4281 = vpop.f32.mrf.mxu0
    %v4282 = vadd.f32 0.0, %v4281
    %v4283 = vpop.f32.mrf.mxu0
    %v4284 = vadd.f32 0.0, %v4283
    %4285 = vdwg.mxu0
    %4286 = vmatprep.subr.bf16.mxu0 0
    %4287 = vmatpush1.bf16.msra.mxu0 0
    %4288 = vmatprep.subr.bf16.mxu0 0
    %4289 = vmatpush1.bf16.msra.mxu0 0
    %4290 = vmatprep.subr.bf16.mxu0 0
    %4291 = vmatpush1.bf16.msra.mxu0 0
    %4292 = vmatprep.subr.bf16.mxu0 0
    %4293 = vmatpush1.bf16.msra.mxu0 0
    %4294 = vmatprep.subr.bf16.mxu0 0
    %4295 = vmatpush1.bf16.msra.mxu0 0
    %4296 = vmatprep.subr.bf16.mxu0 0
    %4297 = vmatpush1.bf16.msra.mxu0 0
    %4298 = vmatprep.subr.bf16.mxu0 %v4160
    %4299 = vmatpush1.bf16.msra.mxu0 %v4159
    %4300 = vmatprep.subr.bf16.mxu0 %v4154
    %4301 = vmatpush1.bf16.msra.mxu0 %v4153
    %4302 = vmatprep.subr.bf16.mxu0 0
    %4303 = vmatpush2.bf16.msra.mxu0 0
    %4304 = vmatprep.subr.bf16.mxu0 0
    %4305 = vmatpush2.bf16.msra.mxu0 0
    %4306 = vmatprep.subr.bf16.mxu0 0
    %4307 = vmatpush2.bf16.msra.mxu0 0
    %4308 = vmatprep.subr.bf16.mxu0 0
    %4309 = vmatpush2.bf16.msra.mxu0 0
    %4310 = vmatprep.subr.bf16.mxu0 0
    %4311 = vmatpush2.bf16.msra.mxu0 0
    %4312 = vmatprep.subr.bf16.mxu0 0
    %4313 = vmatpush2.bf16.msra.mxu0 0
    %4314 = vmatprep.subr.bf16.mxu0 0
    %4315 = vmatpush2.bf16.msra.mxu0 0
    %4316 = vmatprep.subr.bf16.mxu0 0
    %4317 = vmatpush2.bf16.msra.mxu0 0
    %4318 = vmatprep.mubr.bf16.mxu0 0
    %4319 = vmatmul.mubr.bf16.gmra.mxu0 %v4175
    %v4320 = vpop.f32.mrf.mxu0
    %v4321 = vadd.f32 0.0, %v4320
    %v4322 = vpop.f32.mrf.mxu0
    %v4323 = vadd.f32 0.0, %v4322
    %v4324 = vpop.f32.mrf.mxu0
    %v4325 = vadd.f32 0.0, %v4324
    %v4326 = vpop.f32.mrf.mxu0
    %v4327 = vadd.f32 0.0, %v4326
    %4328 = vmatprep.mubr.bf16.mxu0 0
    %4329 = vmatmul.mubr.bf16.gmra.mxu0 %v4178
    %v4330 = vpop.f32.mrf.mxu0
    %v4331 = vadd.f32 0.0, %v4330
    %v4332 = vpop.f32.mrf.mxu0
    %v4333 = vadd.f32 0.0, %v4332
    %v4334 = vpop.f32.mrf.mxu0
    %v4335 = vadd.f32 0.0, %v4334
    %v4336 = vpop.f32.mrf.mxu0
    %v4337 = vadd.f32 0.0, %v4336
    %4338 = vdwg.mxu0
    %4340 = vset.pattern.permute.xlu0 0
    %4341 = vperm.xlu0 %4340, %v4029
    %v4342 = vpop.permute.xlu0 %4341
    %4345 = vset.pattern.permute.xlu0 0
    %4346 = vperm.xlu0 %4345, %v4030
    %v4347 = vpop.permute.xlu0 %4346
    %4350 = vset.pattern.permute.xlu0 0
    %4351 = vperm.xlu0 %4350, %v4031
    %v4352 = vpop.permute.xlu0 %4351
    %4355 = vset.pattern.permute.xlu0 0
    %4356 = vperm.xlu0 %4355, %v4032
    %v4357 = vpop.permute.xlu0 %4356
    %v4359 = vadd.f32 %v4342, %v4215
    %v4360 = vadd.f32 %v4342, %v4217
    %v4361 = vadd.f32 %v4342, %v4268
    %v4362 = vadd.f32 %v4342, %v4270
    %v4363 = vadd.f32 %v4342, %v4321
    %v4364 = vadd.f32 %v4342, %v4323
    %v4365 = vadd.f32 %v4347, %v4219
    %v4366 = vadd.f32 %v4347, %v4221
    %v4367 = vadd.f32 %v4347, %v4272
    %v4368 = vadd.f32 %v4347, %v4274
    %v4369 = vadd.f32 %v4347, %v4325
    %v4370 = vadd.f32 %v4347, %v4327
    %v4371 = vadd.f32 %v4352, %v4225
    %v4372 = vadd.f32 %v4352, %v4227
    %v4373 = vadd.f32 %v4352, %v4278
    %v4374 = vadd.f32 %v4352, %v4280
    %v4375 = vadd.f32 %v4352, %v4331
    %v4376 = vadd.f32 %v4352, %v4333
    %v4377 = vadd.f32 %v4357, %v4229
    %v4378 = vadd.f32 %v4357, %v4231
    %v4379 = vadd.f32 %v4357, %v4282
    %v4380 = vadd.f32 %v4357, %v4284
    %v4381 = vadd.f32 %v4357, %v4335
    %v4382 = vadd.f32 %v4357, %v4337
    %s4383 = scalar_lea.vmem %s7, 16
    %v4384 = vld [vmem:[%s4383] sm:$0xf]
    %v4385 = vld [vmem:[%s4383 + $0x4] sm:$0xf]
    %v4386 = vld [vmem:[%s4383 + $0x8] sm:$0xf]
    %v4387 = vld [vmem:[%s4383 + $0xc] sm:$0xf]
    %v4392 = vunpack.c.l.b16 %v4384
    %v4393 = vunpack.c.l.b16 %v4385
    %v4394 = vunpack.c.l.b16 %v4386
    %v4395 = vunpack.c.l.b16 %v4387
    %v4396 = vpack.c.b16 %v4393, %v4392
    %v4397 = vpack.c.b16 %v4395, %v4394
    %4398 = vrot.lane.b32.xlu0 %v4107, 18
    %v4399 = vpop.permute.xlu0 %4398
    %4400 = vrot.lane.b32.xlu0 %v4108, 18
    %v4401 = vpop.permute.xlu0 %4400
    %4402 = vrot.lane.b32.xlu0 %v4109, 18
    %v4403 = vpop.permute.xlu0 %4402
    %4404 = vrot.lane.b32.xlu0 %v4110, 18
    %v4405 = vpop.permute.xlu0 %4404
    %4406 = vrot.lane.b32.xlu0 %v4111, 18
    %v4407 = vpop.permute.xlu0 %4406
    %4408 = vrot.lane.b32.xlu0 %v4112, 18
    %v4409 = vpop.permute.xlu0 %4408
    %4410 = vrot.lane.b32.xlu0 %v4113, 18
    %v4411 = vpop.permute.xlu0 %4410
    %4412 = vrot.lane.b32.xlu0 %v4114, 18
    %v4413 = vpop.permute.xlu0 %4412
    %4414 = vrot.lane.b32.xlu0 %v4115, 18
    %v4415 = vpop.permute.xlu0 %4414
    %4416 = vrot.lane.b32.xlu0 %v4116, 18
    %v4417 = vpop.permute.xlu0 %4416
    %4418 = vrot.lane.b32.xlu0 %v4117, 18
    %v4419 = vpop.permute.xlu0 %4418
    %4420 = vrot.lane.b32.xlu0 %v4118, 18
    %v4421 = vpop.permute.xlu0 %4420
    %4422 = vrot.lane.b32.xlu0 %v4119, 18
    %v4423 = vpop.permute.xlu0 %4422
    %4424 = vrot.lane.b32.xlu0 %v4120, 18
    %v4425 = vpop.permute.xlu0 %4424
    %v4426 = vsel %vm472, %v4399, %v4401
    %v4427 = vsel %vm472, %v4401, %v4403
    %v4428 = vsel %vm472, %v4403, %v4405
    %v4429 = vsel %vm472, %v4405, %v4407
    %v4430 = vsel %vm472, %v4407, %v4409
    %v4431 = vsel %vm472, %v4409, %v4411
    %v4432 = vsel %vm472, %v4413, %v4415
    %v4433 = vsel %vm472, %v4415, %v4417
    %v4434 = vsel %vm472, %v4417, %v4419
    %v4435 = vsel %vm472, %v4419, %v4421
    %v4436 = vsel %vm472, %v4421, %v4423
    %v4437 = vsel %vm472, %v4423, %v4425
    %v4451 = vsel %vm4173, %v4396, 0
    %v4454 = vsel %vm4173, %v4397, 0
    %4456 = vmatprep.subr.bf16.mxu0 0
    %4457 = vmatpush1.bf16.msra.mxu0 0
    %4458 = vmatprep.subr.bf16.mxu0 0
    %4459 = vmatpush1.bf16.msra.mxu0 0
    %4460 = vmatprep.subr.bf16.mxu0 0
    %4461 = vmatpush1.bf16.msra.mxu0 0
    %4462 = vmatprep.subr.bf16.mxu0 0
    %4463 = vmatpush1.bf16.msra.mxu0 0
    %4464 = vmatprep.subr.bf16.mxu0 0
    %4465 = vmatpush1.bf16.msra.mxu0 0
    %4466 = vmatprep.subr.bf16.mxu0 0
    %4467 = vmatpush1.bf16.msra.mxu0 0
    %4468 = vmatprep.subr.bf16.mxu0 %v4433
    %4469 = vmatpush1.bf16.msra.mxu0 %v4432
    %4470 = vmatprep.subr.bf16.mxu0 %v4427
    %4471 = vmatpush1.bf16.msra.mxu0 %v4426
    %4472 = vmatprep.subr.bf16.mxu0 0
    %4473 = vmatpush2.bf16.msra.mxu0 0
    %4474 = vmatprep.subr.bf16.mxu0 0
    %4475 = vmatpush2.bf16.msra.mxu0 0
    %4476 = vmatprep.subr.bf16.mxu0 0
    %4477 = vmatpush2.bf16.msra.mxu0 0
    %4478 = vmatprep.subr.bf16.mxu0 0
    %4479 = vmatpush2.bf16.msra.mxu0 0
    %4480 = vmatprep.subr.bf16.mxu0 0
    %4481 = vmatpush2.bf16.msra.mxu0 0
    %4482 = vmatprep.subr.bf16.mxu0 0
    %4483 = vmatpush2.bf16.msra.mxu0 0
    %4484 = vmatprep.subr.bf16.mxu0 0
    %4485 = vmatpush2.bf16.msra.mxu0 0
    %4486 = vmatprep.subr.bf16.mxu0 0
    %4487 = vmatpush2.bf16.msra.mxu0 0
    %4488 = vmatprep.mubr.bf16.mxu0 0
    %4489 = vmatmul.mubr.bf16.gmra.mxu0 %v4451
    %v4490 = vpop.f32.mrf.mxu0
    %v4491 = vadd.f32 0.0, %v4490
    %v4492 = vpop.f32.mrf.mxu0
    %v4493 = vadd.f32 0.0, %v4492
    %v4494 = vpop.f32.mrf.mxu0
    %v4495 = vadd.f32 0.0, %v4494
    %v4496 = vpop.f32.mrf.mxu0
    %v4497 = vadd.f32 0.0, %v4496
    %4498 = vmatprep.mubr.bf16.mxu0 0
    %4499 = vmatmul.mubr.bf16.gmra.mxu0 %v4454
    %v4500 = vpop.f32.mrf.mxu0
    %v4501 = vadd.f32 0.0, %v4500
    %v4502 = vpop.f32.mrf.mxu0
    %v4503 = vadd.f32 0.0, %v4502
    %v4504 = vpop.f32.mrf.mxu0
    %v4505 = vadd.f32 0.0, %v4504
    %v4506 = vpop.f32.mrf.mxu0
    %v4507 = vadd.f32 0.0, %v4506
    %4508 = vdwg.mxu0
    %4509 = vmatprep.subr.bf16.mxu0 0
    %4510 = vmatpush1.bf16.msra.mxu0 0
    %4511 = vmatprep.subr.bf16.mxu0 0
    %4512 = vmatpush1.bf16.msra.mxu0 0
    %4513 = vmatprep.subr.bf16.mxu0 0
    %4514 = vmatpush1.bf16.msra.mxu0 0
    %4515 = vmatprep.subr.bf16.mxu0 0
    %4516 = vmatpush1.bf16.msra.mxu0 0
    %4517 = vmatprep.subr.bf16.mxu0 0
    %4518 = vmatpush1.bf16.msra.mxu0 0
    %4519 = vmatprep.subr.bf16.mxu0 0
    %4520 = vmatpush1.bf16.msra.mxu0 0
    %4521 = vmatprep.subr.bf16.mxu0 %v4435
    %4522 = vmatpush1.bf16.msra.mxu0 %v4434
    %4523 = vmatprep.subr.bf16.mxu0 %v4429
    %4524 = vmatpush1.bf16.msra.mxu0 %v4428
    %4525 = vmatprep.subr.bf16.mxu0 0
    %4526 = vmatpush2.bf16.msra.mxu0 0
    %4527 = vmatprep.subr.bf16.mxu0 0
    %4528 = vmatpush2.bf16.msra.mxu0 0
    %4529 = vmatprep.subr.bf16.mxu0 0
    %4530 = vmatpush2.bf16.msra.mxu0 0
    %4531 = vmatprep.subr.bf16.mxu0 0
    %4532 = vmatpush2.bf16.msra.mxu0 0
    %4533 = vmatprep.subr.bf16.mxu0 0
    %4534 = vmatpush2.bf16.msra.mxu0 0
    %4535 = vmatprep.subr.bf16.mxu0 0
    %4536 = vmatpush2.bf16.msra.mxu0 0
    %4537 = vmatprep.subr.bf16.mxu0 0
    %4538 = vmatpush2.bf16.msra.mxu0 0
    %4539 = vmatprep.subr.bf16.mxu0 0
    %4540 = vmatpush2.bf16.msra.mxu0 0
    %4541 = vmatprep.mubr.bf16.mxu0 0
    %4542 = vmatmul.mubr.bf16.gmra.mxu0 %v4451
    %v4543 = vpop.f32.mrf.mxu0
    %v4544 = vadd.f32 0.0, %v4543
    %v4545 = vpop.f32.mrf.mxu0
    %v4546 = vadd.f32 0.0, %v4545
    %v4547 = vpop.f32.mrf.mxu0
    %v4548 = vadd.f32 0.0, %v4547
    %v4549 = vpop.f32.mrf.mxu0
    %v4550 = vadd.f32 0.0, %v4549
    %4551 = vmatprep.mubr.bf16.mxu0 0
    %4552 = vmatmul.mubr.bf16.gmra.mxu0 %v4454
    %v4553 = vpop.f32.mrf.mxu0
    %v4554 = vadd.f32 0.0, %v4553
    %v4555 = vpop.f32.mrf.mxu0
    %v4556 = vadd.f32 0.0, %v4555
    %v4557 = vpop.f32.mrf.mxu0
    %v4558 = vadd.f32 0.0, %v4557
    %v4559 = vpop.f32.mrf.mxu0
    %v4560 = vadd.f32 0.0, %v4559
    %4561 = vdwg.mxu0
    %4562 = vmatprep.subr.bf16.mxu0 0
    %4563 = vmatpush1.bf16.msra.mxu0 0
    %4564 = vmatprep.subr.bf16.mxu0 0
    %4565 = vmatpush1.bf16.msra.mxu0 0
    %4566 = vmatprep.subr.bf16.mxu0 0
    %4567 = vmatpush1.bf16.msra.mxu0 0
    %4568 = vmatprep.subr.bf16.mxu0 0
    %4569 = vmatpush1.bf16.msra.mxu0 0
    %4570 = vmatprep.subr.bf16.mxu0 0
    %4571 = vmatpush1.bf16.msra.mxu0 0
    %4572 = vmatprep.subr.bf16.mxu0 0
    %4573 = vmatpush1.bf16.msra.mxu0 0
    %4574 = vmatprep.subr.bf16.mxu0 %v4437
    %4575 = vmatpush1.bf16.msra.mxu0 %v4436
    %4576 = vmatprep.subr.bf16.mxu0 %v4431
    %4577 = vmatpush1.bf16.msra.mxu0 %v4430
    %4578 = vmatprep.subr.bf16.mxu0 0
    %4579 = vmatpush2.bf16.msra.mxu0 0
    %4580 = vmatprep.subr.bf16.mxu0 0
    %4581 = vmatpush2.bf16.msra.mxu0 0
    %4582 = vmatprep.subr.bf16.mxu0 0
    %4583 = vmatpush2.bf16.msra.mxu0 0
    %4584 = vmatprep.subr.bf16.mxu0 0
    %4585 = vmatpush2.bf16.msra.mxu0 0
    %4586 = vmatprep.subr.bf16.mxu0 0
    %4587 = vmatpush2.bf16.msra.mxu0 0
    %4588 = vmatprep.subr.bf16.mxu0 0
    %4589 = vmatpush2.bf16.msra.mxu0 0
    %4590 = vmatprep.subr.bf16.mxu0 0
    %4591 = vmatpush2.bf16.msra.mxu0 0
    %4592 = vmatprep.subr.bf16.mxu0 0
    %4593 = vmatpush2.bf16.msra.mxu0 0
    %4594 = vmatprep.mubr.bf16.mxu0 0
    %4595 = vmatmul.mubr.bf16.gmra.mxu0 %v4451
    %v4596 = vpop.f32.mrf.mxu0
    %v4597 = vadd.f32 0.0, %v4596
    %v4598 = vpop.f32.mrf.mxu0
    %v4599 = vadd.f32 0.0, %v4598
    %v4600 = vpop.f32.mrf.mxu0
    %v4601 = vadd.f32 0.0, %v4600
    %v4602 = vpop.f32.mrf.mxu0
    %v4603 = vadd.f32 0.0, %v4602
    %4604 = vmatprep.mubr.bf16.mxu0 0
    %4605 = vmatmul.mubr.bf16.gmra.mxu0 %v4454
    %v4606 = vpop.f32.mrf.mxu0
    %v4607 = vadd.f32 0.0, %v4606
    %v4608 = vpop.f32.mrf.mxu0
    %v4609 = vadd.f32 0.0, %v4608
    %v4610 = vpop.f32.mrf.mxu0
    %v4611 = vadd.f32 0.0, %v4610
    %v4612 = vpop.f32.mrf.mxu0
    %v4613 = vadd.f32 0.0, %v4612
    %4614 = vdwg.mxu0
    %v4615 = vadd.f32 %v4359, %v4491
    %v4616 = vadd.f32 %v4360, %v4493
    %v4617 = vadd.f32 %v4361, %v4544
    %v4618 = vadd.f32 %v4362, %v4546
    %v4619 = vadd.f32 %v4363, %v4597
    %v4620 = vadd.f32 %v4364, %v4599
    %v4621 = vadd.f32 %v4365, %v4495
    %v4622 = vadd.f32 %v4366, %v4497
    %v4623 = vadd.f32 %v4367, %v4548
    %v4624 = vadd.f32 %v4368, %v4550
    %v4625 = vadd.f32 %v4369, %v4601
    %v4626 = vadd.f32 %v4370, %v4603
    %v4627 = vadd.f32 %v4371, %v4501
    %v4628 = vadd.f32 %v4372, %v4503
    %v4629 = vadd.f32 %v4373, %v4554
    %v4630 = vadd.f32 %v4374, %v4556
    %v4631 = vadd.f32 %v4375, %v4607
    %v4632 = vadd.f32 %v4376, %v4609
    %v4633 = vadd.f32 %v4377, %v4505
    %v4634 = vadd.f32 %v4378, %v4507
    %v4635 = vadd.f32 %v4379, %v4558
    %v4636 = vadd.f32 %v4380, %v4560
    %v4637 = vadd.f32 %v4381, %v4611
    %v4638 = vadd.f32 %v4382, %v4613
    %s4639 = scalar_lea.vmem %s7, 32
    %v4640 = vld [vmem:[%s4639] sm:$0xf]
    %v4641 = vld [vmem:[%s4639 + $0x4] sm:$0xf]
    %v4642 = vld [vmem:[%s4639 + $0x8] sm:$0xf]
    %v4643 = vld [vmem:[%s4639 + $0xc] sm:$0xf]
    %v4648 = vunpack.c.l.b16 %v4640
    %v4649 = vunpack.c.l.b16 %v4641
    %v4650 = vunpack.c.l.b16 %v4642
    %v4651 = vunpack.c.l.b16 %v4643
    %v4652 = vpack.c.b16 %v4649, %v4648
    %v4653 = vpack.c.b16 %v4651, %v4650
    %4654 = vrot.lane.b32.xlu0 %v4107, 17
    %v4655 = vpop.permute.xlu0 %4654
    %4656 = vrot.lane.b32.xlu0 %v4108, 17
    %v4657 = vpop.permute.xlu0 %4656
    %4658 = vrot.lane.b32.xlu0 %v4109, 17
    %v4659 = vpop.permute.xlu0 %4658
    %4660 = vrot.lane.b32.xlu0 %v4110, 17
    %v4661 = vpop.permute.xlu0 %4660
    %4662 = vrot.lane.b32.xlu0 %v4111, 17
    %v4663 = vpop.permute.xlu0 %4662
    %4664 = vrot.lane.b32.xlu0 %v4112, 17
    %v4665 = vpop.permute.xlu0 %4664
    %4666 = vrot.lane.b32.xlu0 %v4113, 17
    %v4667 = vpop.permute.xlu0 %4666
    %4668 = vrot.lane.b32.xlu0 %v4114, 17
    %v4669 = vpop.permute.xlu0 %4668
    %4670 = vrot.lane.b32.xlu0 %v4115, 17
    %v4671 = vpop.permute.xlu0 %4670
    %4672 = vrot.lane.b32.xlu0 %v4116, 17
    %v4673 = vpop.permute.xlu0 %4672
    %4674 = vrot.lane.b32.xlu0 %v4117, 17
    %v4675 = vpop.permute.xlu0 %4674
    %4676 = vrot.lane.b32.xlu0 %v4118, 17
    %v4677 = vpop.permute.xlu0 %4676
    %4678 = vrot.lane.b32.xlu0 %v4119, 17
    %v4679 = vpop.permute.xlu0 %4678
    %4680 = vrot.lane.b32.xlu0 %v4120, 17
    %v4681 = vpop.permute.xlu0 %4680
    %v4682 = vsel %vm703, %v4655, %v4657
    %v4683 = vsel %vm703, %v4657, %v4659
    %v4684 = vsel %vm703, %v4659, %v4661
    %v4685 = vsel %vm703, %v4661, %v4663
    %v4686 = vsel %vm703, %v4663, %v4665
    %v4687 = vsel %vm703, %v4665, %v4667
    %v4688 = vsel %vm703, %v4669, %v4671
    %v4689 = vsel %vm703, %v4671, %v4673
    %v4690 = vsel %vm703, %v4673, %v4675
    %v4691 = vsel %vm703, %v4675, %v4677
    %v4692 = vsel %vm703, %v4677, %v4679
    %v4693 = vsel %vm703, %v4679, %v4681
    %v4707 = vsel %vm4173, %v4652, 0
    %v4710 = vsel %vm4173, %v4653, 0
    %4712 = vmatprep.subr.bf16.mxu0 0
    %4713 = vmatpush1.bf16.msra.mxu0 0
    %4714 = vmatprep.subr.bf16.mxu0 0
    %4715 = vmatpush1.bf16.msra.mxu0 0
    %4716 = vmatprep.subr.bf16.mxu0 0
    %4717 = vmatpush1.bf16.msra.mxu0 0
    %4718 = vmatprep.subr.bf16.mxu0 0
    %4719 = vmatpush1.bf16.msra.mxu0 0
    %4720 = vmatprep.subr.bf16.mxu0 0
    %4721 = vmatpush1.bf16.msra.mxu0 0
    %4722 = vmatprep.subr.bf16.mxu0 0
    %4723 = vmatpush1.bf16.msra.mxu0 0
    %4724 = vmatprep.subr.bf16.mxu0 %v4689
    %4725 = vmatpush1.bf16.msra.mxu0 %v4688
    %4726 = vmatprep.subr.bf16.mxu0 %v4683
    %4727 = vmatpush1.bf16.msra.mxu0 %v4682
    %4728 = vmatprep.subr.bf16.mxu0 0
    %4729 = vmatpush2.bf16.msra.mxu0 0
    %4730 = vmatprep.subr.bf16.mxu0 0
    %4731 = vmatpush2.bf16.msra.mxu0 0
    %4732 = vmatprep.subr.bf16.mxu0 0
    %4733 = vmatpush2.bf16.msra.mxu0 0
    %4734 = vmatprep.subr.bf16.mxu0 0
    %4735 = vmatpush2.bf16.msra.mxu0 0
    %4736 = vmatprep.subr.bf16.mxu0 0
    %4737 = vmatpush2.bf16.msra.mxu0 0
    %4738 = vmatprep.subr.bf16.mxu0 0
    %4739 = vmatpush2.bf16.msra.mxu0 0
    %4740 = vmatprep.subr.bf16.mxu0 0
    %4741 = vmatpush2.bf16.msra.mxu0 0
    %4742 = vmatprep.subr.bf16.mxu0 0
    %4743 = vmatpush2.bf16.msra.mxu0 0
    %4744 = vmatprep.mubr.bf16.mxu0 0
    %4745 = vmatmul.mubr.bf16.gmra.mxu0 %v4707
    %v4746 = vpop.f32.mrf.mxu0
    %v4747 = vadd.f32 0.0, %v4746
    %v4748 = vpop.f32.mrf.mxu0
    %v4749 = vadd.f32 0.0, %v4748
    %v4750 = vpop.f32.mrf.mxu0
    %v4751 = vadd.f32 0.0, %v4750
    %v4752 = vpop.f32.mrf.mxu0
    %v4753 = vadd.f32 0.0, %v4752
    %4754 = vmatprep.mubr.bf16.mxu0 0
    %4755 = vmatmul.mubr.bf16.gmra.mxu0 %v4710
    %v4756 = vpop.f32.mrf.mxu0
    %v4757 = vadd.f32 0.0, %v4756
    %v4758 = vpop.f32.mrf.mxu0
    %v4759 = vadd.f32 0.0, %v4758
    %v4760 = vpop.f32.mrf.mxu0
    %v4761 = vadd.f32 0.0, %v4760
    %v4762 = vpop.f32.mrf.mxu0
    %v4763 = vadd.f32 0.0, %v4762
    %4764 = vdwg.mxu0
    %4765 = vmatprep.subr.bf16.mxu0 0
    %4766 = vmatpush1.bf16.msra.mxu0 0
    %4767 = vmatprep.subr.bf16.mxu0 0
    %4768 = vmatpush1.bf16.msra.mxu0 0
    %4769 = vmatprep.subr.bf16.mxu0 0
    %4770 = vmatpush1.bf16.msra.mxu0 0
    %4771 = vmatprep.subr.bf16.mxu0 0
    %4772 = vmatpush1.bf16.msra.mxu0 0
    %4773 = vmatprep.subr.bf16.mxu0 0
    %4774 = vmatpush1.bf16.msra.mxu0 0
    %4775 = vmatprep.subr.bf16.mxu0 0
    %4776 = vmatpush1.bf16.msra.mxu0 0
    %4777 = vmatprep.subr.bf16.mxu0 %v4691
    %4778 = vmatpush1.bf16.msra.mxu0 %v4690
    %4779 = vmatprep.subr.bf16.mxu0 %v4685
    %4780 = vmatpush1.bf16.msra.mxu0 %v4684
    %4781 = vmatprep.subr.bf16.mxu0 0
    %4782 = vmatpush2.bf16.msra.mxu0 0
    %4783 = vmatprep.subr.bf16.mxu0 0
    %4784 = vmatpush2.bf16.msra.mxu0 0
    %4785 = vmatprep.subr.bf16.mxu0 0
    %4786 = vmatpush2.bf16.msra.mxu0 0
    %4787 = vmatprep.subr.bf16.mxu0 0
    %4788 = vmatpush2.bf16.msra.mxu0 0
    %4789 = vmatprep.subr.bf16.mxu0 0
    %4790 = vmatpush2.bf16.msra.mxu0 0
    %4791 = vmatprep.subr.bf16.mxu0 0
    %4792 = vmatpush2.bf16.msra.mxu0 0
    %4793 = vmatprep.subr.bf16.mxu0 0
    %4794 = vmatpush2.bf16.msra.mxu0 0
    %4795 = vmatprep.subr.bf16.mxu0 0
    %4796 = vmatpush2.bf16.msra.mxu0 0
    %4797 = vmatprep.mubr.bf16.mxu0 0
    %4798 = vmatmul.mubr.bf16.gmra.mxu0 %v4707
    %v4799 = vpop.f32.mrf.mxu0
    %v4800 = vadd.f32 0.0, %v4799
    %v4801 = vpop.f32.mrf.mxu0
    %v4802 = vadd.f32 0.0, %v4801
    %v4803 = vpop.f32.mrf.mxu0
    %v4804 = vadd.f32 0.0, %v4803
    %v4805 = vpop.f32.mrf.mxu0
    %v4806 = vadd.f32 0.0, %v4805
    %4807 = vmatprep.mubr.bf16.mxu0 0
    %4808 = vmatmul.mubr.bf16.gmra.mxu0 %v4710
    %v4809 = vpop.f32.mrf.mxu0
    %v4810 = vadd.f32 0.0, %v4809
    %v4811 = vpop.f32.mrf.mxu0
    %v4812 = vadd.f32 0.0, %v4811
    %v4813 = vpop.f32.mrf.mxu0
    %v4814 = vadd.f32 0.0, %v4813
    %v4815 = vpop.f32.mrf.mxu0
    %v4816 = vadd.f32 0.0, %v4815
    %4817 = vdwg.mxu0
    %4818 = vmatprep.subr.bf16.mxu0 0
    %4819 = vmatpush1.bf16.msra.mxu0 0
    %4820 = vmatprep.subr.bf16.mxu0 0
    %4821 = vmatpush1.bf16.msra.mxu0 0
    %4822 = vmatprep.subr.bf16.mxu0 0
    %4823 = vmatpush1.bf16.msra.mxu0 0
    %4824 = vmatprep.subr.bf16.mxu0 0
    %4825 = vmatpush1.bf16.msra.mxu0 0
    %4826 = vmatprep.subr.bf16.mxu0 0
    %4827 = vmatpush1.bf16.msra.mxu0 0
    %4828 = vmatprep.subr.bf16.mxu0 0
    %4829 = vmatpush1.bf16.msra.mxu0 0
    %4830 = vmatprep.subr.bf16.mxu0 %v4693
    %4831 = vmatpush1.bf16.msra.mxu0 %v4692
    %4832 = vmatprep.subr.bf16.mxu0 %v4687
    %4833 = vmatpush1.bf16.msra.mxu0 %v4686
    %4834 = vmatprep.subr.bf16.mxu0 0
    %4835 = vmatpush2.bf16.msra.mxu0 0
    %4836 = vmatprep.subr.bf16.mxu0 0
    %4837 = vmatpush2.bf16.msra.mxu0 0
    %4838 = vmatprep.subr.bf16.mxu0 0
    %4839 = vmatpush2.bf16.msra.mxu0 0
    %4840 = vmatprep.subr.bf16.mxu0 0
    %4841 = vmatpush2.bf16.msra.mxu0 0
    %4842 = vmatprep.subr.bf16.mxu0 0
    %4843 = vmatpush2.bf16.msra.mxu0 0
    %4844 = vmatprep.subr.bf16.mxu0 0
    %4845 = vmatpush2.bf16.msra.mxu0 0
    %4846 = vmatprep.subr.bf16.mxu0 0
    %4847 = vmatpush2.bf16.msra.mxu0 0
    %4848 = vmatprep.subr.bf16.mxu0 0
    %4849 = vmatpush2.bf16.msra.mxu0 0
    %4850 = vmatprep.mubr.bf16.mxu0 0
    %4851 = vmatmul.mubr.bf16.gmra.mxu0 %v4707
    %v4852 = vpop.f32.mrf.mxu0
    %v4853 = vadd.f32 0.0, %v4852
    %v4854 = vpop.f32.mrf.mxu0
    %v4855 = vadd.f32 0.0, %v4854
    %v4856 = vpop.f32.mrf.mxu0
    %v4857 = vadd.f32 0.0, %v4856
    %v4858 = vpop.f32.mrf.mxu0
    %v4859 = vadd.f32 0.0, %v4858
    %4860 = vmatprep.mubr.bf16.mxu0 0
    %4861 = vmatmul.mubr.bf16.gmra.mxu0 %v4710
    %v4862 = vpop.f32.mrf.mxu0
    %v4863 = vadd.f32 0.0, %v4862
    %v4864 = vpop.f32.mrf.mxu0
    %v4865 = vadd.f32 0.0, %v4864
    %v4866 = vpop.f32.mrf.mxu0
    %v4867 = vadd.f32 0.0, %v4866
    %v4868 = vpop.f32.mrf.mxu0
    %v4869 = vadd.f32 0.0, %v4868
    %4870 = vdwg.mxu0
    %v4871 = vadd.f32 %v4615, %v4747
    %v4872 = vadd.f32 %v4616, %v4749
    %v4873 = vadd.f32 %v4617, %v4800
    %v4874 = vadd.f32 %v4618, %v4802
    %v4875 = vadd.f32 %v4619, %v4853
    %v4876 = vadd.f32 %v4620, %v4855
    %v4877 = vadd.f32 %v4621, %v4751
    %v4878 = vadd.f32 %v4622, %v4753
    %v4879 = vadd.f32 %v4623, %v4804
    %v4880 = vadd.f32 %v4624, %v4806
    %v4881 = vadd.f32 %v4625, %v4857
    %v4882 = vadd.f32 %v4626, %v4859
    %v4883 = vadd.f32 %v4627, %v4757
    %v4884 = vadd.f32 %v4628, %v4759
    %v4885 = vadd.f32 %v4629, %v4810
    %v4886 = vadd.f32 %v4630, %v4812
    %v4887 = vadd.f32 %v4631, %v4863
    %v4888 = vadd.f32 %v4632, %v4865
    %v4889 = vadd.f32 %v4633, %v4761
    %v4890 = vadd.f32 %v4634, %v4763
    %v4891 = vadd.f32 %v4635, %v4814
    %v4892 = vadd.f32 %v4636, %v4816
    %v4893 = vadd.f32 %v4637, %v4867
    %v4894 = vadd.f32 %v4638, %v4869
    %s4895 = scalar_lea.vmem %s7, 48
    %v4896 = vld [vmem:[%s4895] sm:$0xf]
    %v4897 = vld [vmem:[%s4895 + $0x4] sm:$0xf]
    %v4898 = vld [vmem:[%s4895 + $0x8] sm:$0xf]
    %v4899 = vld [vmem:[%s4895 + $0xc] sm:$0xf]
    %v4904 = vunpack.c.l.b16 %v4896
    %v4905 = vunpack.c.l.b16 %v4897
    %v4906 = vunpack.c.l.b16 %v4898
    %v4907 = vunpack.c.l.b16 %v4899
    %v4908 = vpack.c.b16 %v4905, %v4904
    %v4909 = vpack.c.b16 %v4907, %v4906
    %4910 = vrot.lane.b32.xlu0 %v4107, 1
    %v4911 = vpop.permute.xlu0 %4910
    %4912 = vrot.lane.b32.xlu0 %v4108, 1
    %v4913 = vpop.permute.xlu0 %4912
    %4914 = vrot.lane.b32.xlu0 %v4109, 1
    %v4915 = vpop.permute.xlu0 %4914
    %4916 = vrot.lane.b32.xlu0 %v4110, 1
    %v4917 = vpop.permute.xlu0 %4916
    %4918 = vrot.lane.b32.xlu0 %v4111, 1
    %v4919 = vpop.permute.xlu0 %4918
    %4920 = vrot.lane.b32.xlu0 %v4112, 1
    %v4921 = vpop.permute.xlu0 %4920
    %4922 = vrot.lane.b32.xlu0 %v4113, 1
    %v4923 = vpop.permute.xlu0 %4922
    %4924 = vrot.lane.b32.xlu0 %v4114, 1
    %v4925 = vpop.permute.xlu0 %4924
    %4926 = vrot.lane.b32.xlu0 %v4115, 1
    %v4927 = vpop.permute.xlu0 %4926
    %4928 = vrot.lane.b32.xlu0 %v4116, 1
    %v4929 = vpop.permute.xlu0 %4928
    %4930 = vrot.lane.b32.xlu0 %v4117, 1
    %v4931 = vpop.permute.xlu0 %4930
    %4932 = vrot.lane.b32.xlu0 %v4118, 1
    %v4933 = vpop.permute.xlu0 %4932
    %4934 = vrot.lane.b32.xlu0 %v4119, 1
    %v4935 = vpop.permute.xlu0 %4934
    %4936 = vrot.lane.b32.xlu0 %v4120, 1
    %v4937 = vpop.permute.xlu0 %4936
    %v4938 = vsel %vm934, %v4911, %v4913
    %v4939 = vsel %vm934, %v4913, %v4915
    %v4940 = vsel %vm934, %v4915, %v4917
    %v4941 = vsel %vm934, %v4917, %v4919
    %v4942 = vsel %vm934, %v4919, %v4921
    %v4943 = vsel %vm934, %v4921, %v4923
    %v4944 = vsel %vm934, %v4925, %v4927
    %v4945 = vsel %vm934, %v4927, %v4929
    %v4946 = vsel %vm934, %v4929, %v4931
    %v4947 = vsel %vm934, %v4931, %v4933
    %v4948 = vsel %vm934, %v4933, %v4935
    %v4949 = vsel %vm934, %v4935, %v4937
    %v4963 = vsel %vm4173, %v4908, 0
    %v4966 = vsel %vm4173, %v4909, 0
    %4968 = vmatprep.subr.bf16.mxu0 0
    %4969 = vmatpush1.bf16.msra.mxu0 0
    %4970 = vmatprep.subr.bf16.mxu0 0
    %4971 = vmatpush1.bf16.msra.mxu0 0
    %4972 = vmatprep.subr.bf16.mxu0 0
    %4973 = vmatpush1.bf16.msra.mxu0 0
    %4974 = vmatprep.subr.bf16.mxu0 0
    %4975 = vmatpush1.bf16.msra.mxu0 0
    %4976 = vmatprep.subr.bf16.mxu0 0
    %4977 = vmatpush1.bf16.msra.mxu0 0
    %4978 = vmatprep.subr.bf16.mxu0 0
    %4979 = vmatpush1.bf16.msra.mxu0 0
    %4980 = vmatprep.subr.bf16.mxu0 %v4945
    %4981 = vmatpush1.bf16.msra.mxu0 %v4944
    %4982 = vmatprep.subr.bf16.mxu0 %v4939
    %4983 = vmatpush1.bf16.msra.mxu0 %v4938
    %4984 = vmatprep.subr.bf16.mxu0 0
    %4985 = vmatpush2.bf16.msra.mxu0 0
    %4986 = vmatprep.subr.bf16.mxu0 0
    %4987 = vmatpush2.bf16.msra.mxu0 0
    %4988 = vmatprep.subr.bf16.mxu0 0
    %4989 = vmatpush2.bf16.msra.mxu0 0
    %4990 = vmatprep.subr.bf16.mxu0 0
    %4991 = vmatpush2.bf16.msra.mxu0 0
    %4992 = vmatprep.subr.bf16.mxu0 0
    %4993 = vmatpush2.bf16.msra.mxu0 0
    %4994 = vmatprep.subr.bf16.mxu0 0
    %4995 = vmatpush2.bf16.msra.mxu0 0
    %4996 = vmatprep.subr.bf16.mxu0 0
    %4997 = vmatpush2.bf16.msra.mxu0 0
    %4998 = vmatprep.subr.bf16.mxu0 0
    %4999 = vmatpush2.bf16.msra.mxu0 0
    %5000 = vmatprep.mubr.bf16.mxu0 0
    %5001 = vmatmul.mubr.bf16.gmra.mxu0 %v4963
    %v5002 = vpop.f32.mrf.mxu0
    %v5003 = vadd.f32 0.0, %v5002
    %v5004 = vpop.f32.mrf.mxu0
    %v5005 = vadd.f32 0.0, %v5004
    %v5006 = vpop.f32.mrf.mxu0
    %v5007 = vadd.f32 0.0, %v5006
    %v5008 = vpop.f32.mrf.mxu0
    %v5009 = vadd.f32 0.0, %v5008
    %5010 = vmatprep.mubr.bf16.mxu0 0
    %5011 = vmatmul.mubr.bf16.gmra.mxu0 %v4966
    %v5012 = vpop.f32.mrf.mxu0
    %v5013 = vadd.f32 0.0, %v5012
    %v5014 = vpop.f32.mrf.mxu0
    %v5015 = vadd.f32 0.0, %v5014
    %v5016 = vpop.f32.mrf.mxu0
    %v5017 = vadd.f32 0.0, %v5016
    %v5018 = vpop.f32.mrf.mxu0
    %v5019 = vadd.f32 0.0, %v5018
    %5020 = vdwg.mxu0
    %5021 = vmatprep.subr.bf16.mxu0 0
    %5022 = vmatpush1.bf16.msra.mxu0 0
    %5023 = vmatprep.subr.bf16.mxu0 0
    %5024 = vmatpush1.bf16.msra.mxu0 0
    %5025 = vmatprep.subr.bf16.mxu0 0
    %5026 = vmatpush1.bf16.msra.mxu0 0
    %5027 = vmatprep.subr.bf16.mxu0 0
    %5028 = vmatpush1.bf16.msra.mxu0 0
    %5029 = vmatprep.subr.bf16.mxu0 0
    %5030 = vmatpush1.bf16.msra.mxu0 0
    %5031 = vmatprep.subr.bf16.mxu0 0
    %5032 = vmatpush1.bf16.msra.mxu0 0
    %5033 = vmatprep.subr.bf16.mxu0 %v4947
    %5034 = vmatpush1.bf16.msra.mxu0 %v4946
    %5035 = vmatprep.subr.bf16.mxu0 %v4941
    %5036 = vmatpush1.bf16.msra.mxu0 %v4940
    %5037 = vmatprep.subr.bf16.mxu0 0
    %5038 = vmatpush2.bf16.msra.mxu0 0
    %5039 = vmatprep.subr.bf16.mxu0 0
    %5040 = vmatpush2.bf16.msra.mxu0 0
    %5041 = vmatprep.subr.bf16.mxu0 0
    %5042 = vmatpush2.bf16.msra.mxu0 0
    %5043 = vmatprep.subr.bf16.mxu0 0
    %5044 = vmatpush2.bf16.msra.mxu0 0
    %5045 = vmatprep.subr.bf16.mxu0 0
    %5046 = vmatpush2.bf16.msra.mxu0 0
    %5047 = vmatprep.subr.bf16.mxu0 0
    %5048 = vmatpush2.bf16.msra.mxu0 0
    %5049 = vmatprep.subr.bf16.mxu0 0
    %5050 = vmatpush2.bf16.msra.mxu0 0
    %5051 = vmatprep.subr.bf16.mxu0 0
    %5052 = vmatpush2.bf16.msra.mxu0 0
    %5053 = vmatprep.mubr.bf16.mxu0 0
    %5054 = vmatmul.mubr.bf16.gmra.mxu0 %v4963
    %v5055 = vpop.f32.mrf.mxu0
    %v5056 = vadd.f32 0.0, %v5055
    %v5057 = vpop.f32.mrf.mxu0
    %v5058 = vadd.f32 0.0, %v5057
    %v5059 = vpop.f32.mrf.mxu0
    %v5060 = vadd.f32 0.0, %v5059
    %v5061 = vpop.f32.mrf.mxu0
    %v5062 = vadd.f32 0.0, %v5061
    %5063 = vmatprep.mubr.bf16.mxu0 0
    %5064 = vmatmul.mubr.bf16.gmra.mxu0 %v4966
    %v5065 = vpop.f32.mrf.mxu0
    %v5066 = vadd.f32 0.0, %v5065
    %v5067 = vpop.f32.mrf.mxu0
    %v5068 = vadd.f32 0.0, %v5067
    %v5069 = vpop.f32.mrf.mxu0
    %v5070 = vadd.f32 0.0, %v5069
    %v5071 = vpop.f32.mrf.mxu0
    %v5072 = vadd.f32 0.0, %v5071
    %5073 = vdwg.mxu0
    %5074 = vmatprep.subr.bf16.mxu0 0
    %5075 = vmatpush1.bf16.msra.mxu0 0
    %5076 = vmatprep.subr.bf16.mxu0 0
    %5077 = vmatpush1.bf16.msra.mxu0 0
    %5078 = vmatprep.subr.bf16.mxu0 0
    %5079 = vmatpush1.bf16.msra.mxu0 0
    %5080 = vmatprep.subr.bf16.mxu0 0
    %5081 = vmatpush1.bf16.msra.mxu0 0
    %5082 = vmatprep.subr.bf16.mxu0 0
    %5083 = vmatpush1.bf16.msra.mxu0 0
    %5084 = vmatprep.subr.bf16.mxu0 0
    %5085 = vmatpush1.bf16.msra.mxu0 0
    %5086 = vmatprep.subr.bf16.mxu0 %v4949
    %5087 = vmatpush1.bf16.msra.mxu0 %v4948
    %5088 = vmatprep.subr.bf16.mxu0 %v4943
    %5089 = vmatpush1.bf16.msra.mxu0 %v4942
    %5090 = vmatprep.subr.bf16.mxu0 0
    %5091 = vmatpush2.bf16.msra.mxu0 0
    %5092 = vmatprep.subr.bf16.mxu0 0
    %5093 = vmatpush2.bf16.msra.mxu0 0
    %5094 = vmatprep.subr.bf16.mxu0 0
    %5095 = vmatpush2.bf16.msra.mxu0 0
    %5096 = vmatprep.subr.bf16.mxu0 0
    %5097 = vmatpush2.bf16.msra.mxu0 0
    %5098 = vmatprep.subr.bf16.mxu0 0
    %5099 = vmatpush2.bf16.msra.mxu0 0
    %5100 = vmatprep.subr.bf16.mxu0 0
    %5101 = vmatpush2.bf16.msra.mxu0 0
    %5102 = vmatprep.subr.bf16.mxu0 0
    %5103 = vmatpush2.bf16.msra.mxu0 0
    %5104 = vmatprep.subr.bf16.mxu0 0
    %5105 = vmatpush2.bf16.msra.mxu0 0
    %5106 = vmatprep.mubr.bf16.mxu0 0
    %5107 = vmatmul.mubr.bf16.gmra.mxu0 %v4963
    %v5108 = vpop.f32.mrf.mxu0
    %v5109 = vadd.f32 0.0, %v5108
    %v5110 = vpop.f32.mrf.mxu0
    %v5111 = vadd.f32 0.0, %v5110
    %v5112 = vpop.f32.mrf.mxu0
    %v5113 = vadd.f32 0.0, %v5112
    %v5114 = vpop.f32.mrf.mxu0
    %v5115 = vadd.f32 0.0, %v5114
    %5116 = vmatprep.mubr.bf16.mxu0 0
    %5117 = vmatmul.mubr.bf16.gmra.mxu0 %v4966
    %v5118 = vpop.f32.mrf.mxu0
    %v5119 = vadd.f32 0.0, %v5118
    %v5120 = vpop.f32.mrf.mxu0
    %v5121 = vadd.f32 0.0, %v5120
    %v5122 = vpop.f32.mrf.mxu0
    %v5123 = vadd.f32 0.0, %v5122
    %v5124 = vpop.f32.mrf.mxu0
    %v5125 = vadd.f32 0.0, %v5124
    %5126 = vdwg.mxu0
    %v5127 = vadd.f32 %v4871, %v5003
    %v5128 = vadd.f32 %v4872, %v5005
    %v5129 = vadd.f32 %v4873, %v5056
    %v5130 = vadd.f32 %v4874, %v5058
    %v5131 = vadd.f32 %v4875, %v5109
    %v5132 = vadd.f32 %v4876, %v5111
    %v5133 = vadd.f32 %v4877, %v5007
    %v5134 = vadd.f32 %v4878, %v5009
    %v5135 = vadd.f32 %v4879, %v5060
    %v5136 = vadd.f32 %v4880, %v5062
    %v5137 = vadd.f32 %v4881, %v5113
    %v5138 = vadd.f32 %v4882, %v5115
    %v5139 = vadd.f32 %v4883, %v5013
    %v5140 = vadd.f32 %v4884, %v5015
    %v5141 = vadd.f32 %v4885, %v5066
    %v5142 = vadd.f32 %v4886, %v5068
    %v5143 = vadd.f32 %v4887, %v5119
    %v5144 = vadd.f32 %v4888, %v5121
    %v5145 = vadd.f32 %v4889, %v5017
    %v5146 = vadd.f32 %v4890, %v5019
    %v5147 = vadd.f32 %v4891, %v5070
    %v5148 = vadd.f32 %v4892, %v5072
    %v5149 = vadd.f32 %v4893, %v5123
    %v5150 = vadd.f32 %v4894, %v5125
    %s5151 = scalar_lea.vmem %s7, 64
    %v5152 = vld [vmem:[%s5151] sm:$0xf]
    %v5153 = vld [vmem:[%s5151 + $0x4] sm:$0xf]
    %v5154 = vld [vmem:[%s5151 + $0x8] sm:$0xf]
    %v5155 = vld [vmem:[%s5151 + $0xc] sm:$0xf]
    %v5156 = vld [vmem:[#allocation2 + $0x4] sm:$0xff]
    %v5157 = vld [vmem:[#allocation2 + $0xc] sm:$0xff]
    %v5158 = vld [vmem:[#allocation2 + $0x14] sm:$0xff]
    %v5159 = vld [vmem:[#allocation2 + $0x24] sm:$0xff]
    %v5160 = vld [vmem:[#allocation2 + $0x2c] sm:$0xff]
    %v5161 = vld [vmem:[#allocation2 + $0x34] sm:$0xff]
    %v5162 = vld [vmem:[#allocation2 + $0x44] sm:$0xff]
    %v5163 = vld [vmem:[#allocation2 + $0x4c] sm:$0xff]
    %v5164 = vld [vmem:[#allocation2 + $0x54] sm:$0xff]
    %v5165 = vld [vmem:[#allocation2 + $0x64] sm:$0xff]
    %v5166 = vld [vmem:[#allocation2 + $0x6c] sm:$0xff]
    %v5167 = vld [vmem:[#allocation2 + $0x74] sm:$0xff]
    %v5172 = vunpack.c.l.b16 %v5152
    %v5173 = vunpack.c.l.b16 %v5153
    %v5174 = vunpack.c.l.b16 %v5154
    %v5175 = vunpack.c.l.b16 %v5155
    %v5176 = vpack.c.b16 %v5173, %v5172
    %v5177 = vpack.c.b16 %v5175, %v5174
    %v5190 = vunpack.c.l.b16 %v5156
    %v5191 = vunpack.c.h.b16 %v5156
    %v5192 = vunpack.c.l.b16 %v5157
    %v5193 = vunpack.c.h.b16 %v5157
    %v5194 = vunpack.c.l.b16 %v5158
    %v5195 = vunpack.c.h.b16 %v5158
    %v5196 = vunpack.c.l.b16 %v5159
    %v5197 = vunpack.c.h.b16 %v5159
    %v5198 = vunpack.c.l.b16 %v5160
    %v5199 = vunpack.c.h.b16 %v5160
    %v5200 = vunpack.c.l.b16 %v5161
    %v5201 = vunpack.c.h.b16 %v5161
    %v5202 = vunpack.c.l.b16 %v5162
    %v5203 = vunpack.c.h.b16 %v5162
    %v5204 = vunpack.c.l.b16 %v5163
    %v5205 = vunpack.c.h.b16 %v5163
    %v5206 = vunpack.c.l.b16 %v5164
    %v5207 = vunpack.c.h.b16 %v5164
    %v5208 = vunpack.c.l.b16 %v5165
    %v5209 = vunpack.c.h.b16 %v5165
    %v5210 = vunpack.c.l.b16 %v5166
    %v5211 = vunpack.c.h.b16 %v5166
    %v5212 = vunpack.c.l.b16 %v5167
    %v5213 = vunpack.c.h.b16 %v5167
    %v5214 = vpack.c.b16 %v5196, %v5190
    %v5215 = vpack.c.b16 %v5197, %v5191
    %v5216 = vpack.c.b16 %v5198, %v5192
    %v5217 = vpack.c.b16 %v5199, %v5193
    %v5218 = vpack.c.b16 %v5200, %v5194
    %v5219 = vpack.c.b16 %v5201, %v5195
    %v5220 = vpack.c.b16 %v5208, %v5202
    %v5221 = vpack.c.b16 %v5209, %v5203
    %v5222 = vpack.c.b16 %v5210, %v5204
    %v5223 = vpack.c.b16 %v5211, %v5205
    %v5224 = vpack.c.b16 %v5212, %v5206
    %v5225 = vpack.c.b16 %v5213, %v5207
    %v5239 = vsel %vm4173, %v5176, 0
    %v5242 = vsel %vm4173, %v5177, 0
    %5244 = vmatprep.subr.bf16.mxu0 0
    %5245 = vmatpush1.bf16.msra.mxu0 0
    %5246 = vmatprep.subr.bf16.mxu0 0
    %5247 = vmatpush1.bf16.msra.mxu0 0
    %5248 = vmatprep.subr.bf16.mxu0 0
    %5249 = vmatpush1.bf16.msra.mxu0 0
    %5250 = vmatprep.subr.bf16.mxu0 0
    %5251 = vmatpush1.bf16.msra.mxu0 0
    %5252 = vmatprep.subr.bf16.mxu0 0
    %5253 = vmatpush1.bf16.msra.mxu0 0
    %5254 = vmatprep.subr.bf16.mxu0 0
    %5255 = vmatpush1.bf16.msra.mxu0 0
    %5256 = vmatprep.subr.bf16.mxu0 %v5221
    %5257 = vmatpush1.bf16.msra.mxu0 %v5220
    %5258 = vmatprep.subr.bf16.mxu0 %v5215
    %5259 = vmatpush1.bf16.msra.mxu0 %v5214
    %5260 = vmatprep.subr.bf16.mxu0 0
    %5261 = vmatpush2.bf16.msra.mxu0 0
    %5262 = vmatprep.subr.bf16.mxu0 0
    %5263 = vmatpush2.bf16.msra.mxu0 0
    %5264 = vmatprep.subr.bf16.mxu0 0
    %5265 = vmatpush2.bf16.msra.mxu0 0
    %5266 = vmatprep.subr.bf16.mxu0 0
    %5267 = vmatpush2.bf16.msra.mxu0 0
    %5268 = vmatprep.subr.bf16.mxu0 0
    %5269 = vmatpush2.bf16.msra.mxu0 0
    %5270 = vmatprep.subr.bf16.mxu0 0
    %5271 = vmatpush2.bf16.msra.mxu0 0
    %5272 = vmatprep.subr.bf16.mxu0 0
    %5273 = vmatpush2.bf16.msra.mxu0 0
    %5274 = vmatprep.subr.bf16.mxu0 0
    %5275 = vmatpush2.bf16.msra.mxu0 0
    %5276 = vmatprep.mubr.bf16.mxu0 0
    %5277 = vmatmul.mubr.bf16.gmra.mxu0 %v5239
    %v5278 = vpop.f32.mrf.mxu0
    %v5279 = vadd.f32 0.0, %v5278
    %v5280 = vpop.f32.mrf.mxu0
    %v5281 = vadd.f32 0.0, %v5280
    %v5282 = vpop.f32.mrf.mxu0
    %v5283 = vadd.f32 0.0, %v5282
    %v5284 = vpop.f32.mrf.mxu0
    %v5285 = vadd.f32 0.0, %v5284
    %5286 = vmatprep.mubr.bf16.mxu0 0
    %5287 = vmatmul.mubr.bf16.gmra.mxu0 %v5242
    %v5288 = vpop.f32.mrf.mxu0
    %v5289 = vadd.f32 0.0, %v5288
    %v5290 = vpop.f32.mrf.mxu0
    %v5291 = vadd.f32 0.0, %v5290
    %v5292 = vpop.f32.mrf.mxu0
    %v5293 = vadd.f32 0.0, %v5292
    %v5294 = vpop.f32.mrf.mxu0
    %v5295 = vadd.f32 0.0, %v5294
    %5296 = vdwg.mxu0
    %5297 = vmatprep.subr.bf16.mxu0 0
    %5298 = vmatpush1.bf16.msra.mxu0 0
    %5299 = vmatprep.subr.bf16.mxu0 0
    %5300 = vmatpush1.bf16.msra.mxu0 0
    %5301 = vmatprep.subr.bf16.mxu0 0
    %5302 = vmatpush1.bf16.msra.mxu0 0
    %5303 = vmatprep.subr.bf16.mxu0 0
    %5304 = vmatpush1.bf16.msra.mxu0 0
    %5305 = vmatprep.subr.bf16.mxu0 0
    %5306 = vmatpush1.bf16.msra.mxu0 0
    %5307 = vmatprep.subr.bf16.mxu0 0
    %5308 = vmatpush1.bf16.msra.mxu0 0
    %5309 = vmatprep.subr.bf16.mxu0 %v5223
    %5310 = vmatpush1.bf16.msra.mxu0 %v5222
    %5311 = vmatprep.subr.bf16.mxu0 %v5217
    %5312 = vmatpush1.bf16.msra.mxu0 %v5216
    %5313 = vmatprep.subr.bf16.mxu0 0
    %5314 = vmatpush2.bf16.msra.mxu0 0
    %5315 = vmatprep.subr.bf16.mxu0 0
    %5316 = vmatpush2.bf16.msra.mxu0 0
    %5317 = vmatprep.subr.bf16.mxu0 0
    %5318 = vmatpush2.bf16.msra.mxu0 0
    %5319 = vmatprep.subr.bf16.mxu0 0
    %5320 = vmatpush2.bf16.msra.mxu0 0
    %5321 = vmatprep.subr.bf16.mxu0 0
    %5322 = vmatpush2.bf16.msra.mxu0 0
    %5323 = vmatprep.subr.bf16.mxu0 0
    %5324 = vmatpush2.bf16.msra.mxu0 0
    %5325 = vmatprep.subr.bf16.mxu0 0
    %5326 = vmatpush2.bf16.msra.mxu0 0
    %5327 = vmatprep.subr.bf16.mxu0 0
    %5328 = vmatpush2.bf16.msra.mxu0 0
    %5329 = vmatprep.mubr.bf16.mxu0 0
    %5330 = vmatmul.mubr.bf16.gmra.mxu0 %v5239
    %v5331 = vpop.f32.mrf.mxu0
    %v5332 = vadd.f32 0.0, %v5331
    %v5333 = vpop.f32.mrf.mxu0
    %v5334 = vadd.f32 0.0, %v5333
    %v5335 = vpop.f32.mrf.mxu0
    %v5336 = vadd.f32 0.0, %v5335
    %v5337 = vpop.f32.mrf.mxu0
    %v5338 = vadd.f32 0.0, %v5337
    %5339 = vmatprep.mubr.bf16.mxu0 0
    %5340 = vmatmul.mubr.bf16.gmra.mxu0 %v5242
    %v5341 = vpop.f32.mrf.mxu0
    %v5342 = vadd.f32 0.0, %v5341
    %v5343 = vpop.f32.mrf.mxu0
    %v5344 = vadd.f32 0.0, %v5343
    %v5345 = vpop.f32.mrf.mxu0
    %v5346 = vadd.f32 0.0, %v5345
    %v5347 = vpop.f32.mrf.mxu0
    %v5348 = vadd.f32 0.0, %v5347
    %5349 = vdwg.mxu0
    %5350 = vmatprep.subr.bf16.mxu0 0
    %5351 = vmatpush1.bf16.msra.mxu0 0
    %5352 = vmatprep.subr.bf16.mxu0 0
    %5353 = vmatpush1.bf16.msra.mxu0 0
    %5354 = vmatprep.subr.bf16.mxu0 0
    %5355 = vmatpush1.bf16.msra.mxu0 0
    %5356 = vmatprep.subr.bf16.mxu0 0
    %5357 = vmatpush1.bf16.msra.mxu0 0
    %5358 = vmatprep.subr.bf16.mxu0 0
    %5359 = vmatpush1.bf16.msra.mxu0 0
    %5360 = vmatprep.subr.bf16.mxu0 0
    %5361 = vmatpush1.bf16.msra.mxu0 0
    %5362 = vmatprep.subr.bf16.mxu0 %v5225
    %5363 = vmatpush1.bf16.msra.mxu0 %v5224
    %5364 = vmatprep.subr.bf16.mxu0 %v5219
    %5365 = vmatpush1.bf16.msra.mxu0 %v5218
    %5366 = vmatprep.subr.bf16.mxu0 0
    %5367 = vmatpush2.bf16.msra.mxu0 0
    %5368 = vmatprep.subr.bf16.mxu0 0
    %5369 = vmatpush2.bf16.msra.mxu0 0
    %5370 = vmatprep.subr.bf16.mxu0 0
    %5371 = vmatpush2.bf16.msra.mxu0 0
    %5372 = vmatprep.subr.bf16.mxu0 0
    %5373 = vmatpush2.bf16.msra.mxu0 0
    %5374 = vmatprep.subr.bf16.mxu0 0
    %5375 = vmatpush2.bf16.msra.mxu0 0
    %5376 = vmatprep.subr.bf16.mxu0 0
    %5377 = vmatpush2.bf16.msra.mxu0 0
    %5378 = vmatprep.subr.bf16.mxu0 0
    %5379 = vmatpush2.bf16.msra.mxu0 0
    %5380 = vmatprep.subr.bf16.mxu0 0
    %5381 = vmatpush2.bf16.msra.mxu0 0
    %5382 = vmatprep.mubr.bf16.mxu0 0
    %5383 = vmatmul.mubr.bf16.gmra.mxu0 %v5239
    %v5384 = vpop.f32.mrf.mxu0
    %v5385 = vadd.f32 0.0, %v5384
    %v5386 = vpop.f32.mrf.mxu0
    %v5387 = vadd.f32 0.0, %v5386
    %v5388 = vpop.f32.mrf.mxu0
    %v5389 = vadd.f32 0.0, %v5388
    %v5390 = vpop.f32.mrf.mxu0
    %v5391 = vadd.f32 0.0, %v5390
    %5392 = vmatprep.mubr.bf16.mxu0 0
    %5393 = vmatmul.mubr.bf16.gmra.mxu0 %v5242
    %v5394 = vpop.f32.mrf.mxu0
    %v5395 = vadd.f32 0.0, %v5394
    %v5396 = vpop.f32.mrf.mxu0
    %v5397 = vadd.f32 0.0, %v5396
    %v5398 = vpop.f32.mrf.mxu0
    %v5399 = vadd.f32 0.0, %v5398
    %v5400 = vpop.f32.mrf.mxu0
    %v5401 = vadd.f32 0.0, %v5400
    %5402 = vdwg.mxu0
    %v5403 = vadd.f32 %v5127, %v5279
    %v5404 = vadd.f32 %v5128, %v5281
    %v5405 = vadd.f32 %v5129, %v5332
    %v5406 = vadd.f32 %v5130, %v5334
    %v5407 = vadd.f32 %v5131, %v5385
    %v5408 = vadd.f32 %v5132, %v5387
    %v5409 = vadd.f32 %v5133, %v5283
    %v5410 = vadd.f32 %v5134, %v5285
    %v5411 = vadd.f32 %v5135, %v5336
    %v5412 = vadd.f32 %v5136, %v5338
    %v5413 = vadd.f32 %v5137, %v5389
    %v5414 = vadd.f32 %v5138, %v5391
    %v5415 = vadd.f32 %v5139, %v5289
    %v5416 = vadd.f32 %v5140, %v5291
    %v5417 = vadd.f32 %v5141, %v5342
    %v5418 = vadd.f32 %v5142, %v5344
    %v5419 = vadd.f32 %v5143, %v5395
    %v5420 = vadd.f32 %v5144, %v5397
    %v5421 = vadd.f32 %v5145, %v5293
    %v5422 = vadd.f32 %v5146, %v5295
    %v5423 = vadd.f32 %v5147, %v5346
    %v5424 = vadd.f32 %v5148, %v5348
    %v5425 = vadd.f32 %v5149, %v5399
    %v5426 = vadd.f32 %v5150, %v5401
    %s5427 = scalar_lea.vmem %s7, 80
    %v5428 = vld [vmem:[%s5427] sm:$0xf]
    %v5429 = vld [vmem:[%s5427 + $0x4] sm:$0xf]
    %v5430 = vld [vmem:[%s5427 + $0x8] sm:$0xf]
    %v5431 = vld [vmem:[%s5427 + $0xc] sm:$0xf]
    %v5432 = vld [vmem:[#allocation2 + $0x4] sm:$0xff]
    %v5433 = vld [vmem:[#allocation2 + $0xc] sm:$0xff]
    %v5434 = vld [vmem:[#allocation2 + $0x14] sm:$0xff]
    %v5435 = vld [vmem:[#allocation2 + $0x1c] sm:$0xf]
    %v5436 = vld [vmem:[#allocation2 + $0x24] sm:$0xff]
    %v5437 = vld [vmem:[#allocation2 + $0x2c] sm:$0xff]
    %v5438 = vld [vmem:[#allocation2 + $0x34] sm:$0xff]
    %v5439 = vld [vmem:[#allocation2 + $0x3c] sm:$0xf]
    %v5440 = vld [vmem:[#allocation2 + $0x44] sm:$0xff]
    %v5441 = vld [vmem:[#allocation2 + $0x4c] sm:$0xff]
    %v5442 = vld [vmem:[#allocation2 + $0x54] sm:$0xff]
    %v5443 = vld [vmem:[#allocation2 + $0x5c] sm:$0xf]
    %v5444 = vld [vmem:[#allocation2 + $0x64] sm:$0xff]
    %v5445 = vld [vmem:[#allocation2 + $0x6c] sm:$0xff]
    %v5446 = vld [vmem:[#allocation2 + $0x74] sm:$0xff]
    %v5447 = vld [vmem:[#allocation2 + $0x7c] sm:$0xf]
    %v5452 = vunpack.c.l.b16 %v5428
    %v5453 = vunpack.c.l.b16 %v5429
    %v5454 = vunpack.c.l.b16 %v5430
    %v5455 = vunpack.c.l.b16 %v5431
    %v5456 = vpack.c.b16 %v5453, %v5452
    %v5457 = vpack.c.b16 %v5455, %v5454
    %v5474 = vunpack.c.l.b16 %v5432
    %v5475 = vunpack.c.h.b16 %v5432
    %v5476 = vunpack.c.l.b16 %v5433
    %v5477 = vunpack.c.h.b16 %v5433
    %v5478 = vunpack.c.l.b16 %v5434
    %v5479 = vunpack.c.h.b16 %v5434
    %v5480 = vunpack.c.l.b16 %v5435
    %v5481 = vunpack.c.l.b16 %v5436
    %v5482 = vunpack.c.h.b16 %v5436
    %v5483 = vunpack.c.l.b16 %v5437
    %v5484 = vunpack.c.h.b16 %v5437
    %v5485 = vunpack.c.l.b16 %v5438
    %v5486 = vunpack.c.h.b16 %v5438
    %v5487 = vunpack.c.l.b16 %v5439
    %v5488 = vunpack.c.l.b16 %v5440
    %v5489 = vunpack.c.h.b16 %v5440
    %v5490 = vunpack.c.l.b16 %v5441
    %v5491 = vunpack.c.h.b16 %v5441
    %v5492 = vunpack.c.l.b16 %v5442
    %v5493 = vunpack.c.h.b16 %v5442
    %v5494 = vunpack.c.l.b16 %v5443
    %v5495 = vunpack.c.l.b16 %v5444
    %v5496 = vunpack.c.h.b16 %v5444
    %v5497 = vunpack.c.l.b16 %v5445
    %v5498 = vunpack.c.h.b16 %v5445
    %v5499 = vunpack.c.l.b16 %v5446
    %v5500 = vunpack.c.h.b16 %v5446
    %v5501 = vunpack.c.l.b16 %v5447
    %v5502 = vpack.c.b16 %v5481, %v5474
    %v5503 = vpack.c.b16 %v5482, %v5475
    %v5504 = vpack.c.b16 %v5483, %v5476
    %v5505 = vpack.c.b16 %v5484, %v5477
    %v5506 = vpack.c.b16 %v5485, %v5478
    %v5507 = vpack.c.b16 %v5486, %v5479
    %v5508 = vpack.c.b16 %v5487, %v5480
    %v5509 = vpack.c.b16 %v5495, %v5488
    %v5510 = vpack.c.b16 %v5496, %v5489
    %v5511 = vpack.c.b16 %v5497, %v5490
    %v5512 = vpack.c.b16 %v5498, %v5491
    %v5513 = vpack.c.b16 %v5499, %v5492
    %v5514 = vpack.c.b16 %v5500, %v5493
    %v5515 = vpack.c.b16 %v5501, %v5494
    %5516 = vrot.lane.b32.xlu0 %v5502, 127
    %v5517 = vpop.permute.xlu0 %5516
    %5518 = vrot.lane.b32.xlu0 %v5503, 127
    %v5519 = vpop.permute.xlu0 %5518
    %5520 = vrot.lane.b32.xlu0 %v5504, 127
    %v5521 = vpop.permute.xlu0 %5520
    %5522 = vrot.lane.b32.xlu0 %v5505, 127
    %v5523 = vpop.permute.xlu0 %5522
    %5524 = vrot.lane.b32.xlu0 %v5506, 127
    %v5525 = vpop.permute.xlu0 %5524
    %5526 = vrot.lane.b32.xlu0 %v5507, 127
    %v5527 = vpop.permute.xlu0 %5526
    %5528 = vrot.lane.b32.xlu0 %v5508, 127
    %v5529 = vpop.permute.xlu0 %5528
    %5530 = vrot.lane.b32.xlu0 %v5509, 127
    %v5531 = vpop.permute.xlu0 %5530
    %5532 = vrot.lane.b32.xlu0 %v5510, 127
    %v5533 = vpop.permute.xlu0 %5532
    %5534 = vrot.lane.b32.xlu0 %v5511, 127
    %v5535 = vpop.permute.xlu0 %5534
    %5536 = vrot.lane.b32.xlu0 %v5512, 127
    %v5537 = vpop.permute.xlu0 %5536
    %5538 = vrot.lane.b32.xlu0 %v5513, 127
    %v5539 = vpop.permute.xlu0 %5538
    %5540 = vrot.lane.b32.xlu0 %v5514, 127
    %v5541 = vpop.permute.xlu0 %5540
    %5542 = vrot.lane.b32.xlu0 %v5515, 127
    %v5543 = vpop.permute.xlu0 %5542
    %v5544 = vsel %vm1442, %v5517, %v5519
    %v5545 = vsel %vm1442, %v5519, %v5521
    %v5546 = vsel %vm1442, %v5521, %v5523
    %v5547 = vsel %vm1442, %v5523, %v5525
    %v5548 = vsel %vm1442, %v5525, %v5527
    %v5549 = vsel %vm1442, %v5527, %v5529
    %v5550 = vsel %vm1442, %v5531, %v5533
    %v5551 = vsel %vm1442, %v5533, %v5535
    %v5552 = vsel %vm1442, %v5535, %v5537
    %v5553 = vsel %vm1442, %v5537, %v5539
    %v5554 = vsel %vm1442, %v5539, %v5541
    %v5555 = vsel %vm1442, %v5541, %v5543
    %v5569 = vsel %vm4173, %v5456, 0
    %v5572 = vsel %vm4173, %v5457, 0
    %5574 = vmatprep.subr.bf16.mxu0 0
    %5575 = vmatpush1.bf16.msra.mxu0 0
    %5576 = vmatprep.subr.bf16.mxu0 0
    %5577 = vmatpush1.bf16.msra.mxu0 0
    %5578 = vmatprep.subr.bf16.mxu0 0
    %5579 = vmatpush1.bf16.msra.mxu0 0
    %5580 = vmatprep.subr.bf16.mxu0 0
    %5581 = vmatpush1.bf16.msra.mxu0 0
    %5582 = vmatprep.subr.bf16.mxu0 0
    %5583 = vmatpush1.bf16.msra.mxu0 0
    %5584 = vmatprep.subr.bf16.mxu0 0
    %5585 = vmatpush1.bf16.msra.mxu0 0
    %5586 = vmatprep.subr.bf16.mxu0 %v5551
    %5587 = vmatpush1.bf16.msra.mxu0 %v5550
    %5588 = vmatprep.subr.bf16.mxu0 %v5545
    %5589 = vmatpush1.bf16.msra.mxu0 %v5544
    %5590 = vmatprep.subr.bf16.mxu0 0
    %5591 = vmatpush2.bf16.msra.mxu0 0
    %5592 = vmatprep.subr.bf16.mxu0 0
    %5593 = vmatpush2.bf16.msra.mxu0 0
    %5594 = vmatprep.subr.bf16.mxu0 0
    %5595 = vmatpush2.bf16.msra.mxu0 0
    %5596 = vmatprep.subr.bf16.mxu0 0
    %5597 = vmatpush2.bf16.msra.mxu0 0
    %5598 = vmatprep.subr.bf16.mxu0 0
    %5599 = vmatpush2.bf16.msra.mxu0 0
    %5600 = vmatprep.subr.bf16.mxu0 0
    %5601 = vmatpush2.bf16.msra.mxu0 0
    %5602 = vmatprep.subr.bf16.mxu0 0
    %5603 = vmatpush2.bf16.msra.mxu0 0
    %5604 = vmatprep.subr.bf16.mxu0 0
    %5605 = vmatpush2.bf16.msra.mxu0 0
    %5606 = vmatprep.mubr.bf16.mxu0 0
    %5607 = vmatmul.mubr.bf16.gmra.mxu0 %v5569
    %v5608 = vpop.f32.mrf.mxu0
    %v5609 = vadd.f32 0.0, %v5608
    %v5610 = vpop.f32.mrf.mxu0
    %v5611 = vadd.f32 0.0, %v5610
    %v5612 = vpop.f32.mrf.mxu0
    %v5613 = vadd.f32 0.0, %v5612
    %v5614 = vpop.f32.mrf.mxu0
    %v5615 = vadd.f32 0.0, %v5614
    %5616 = vmatprep.mubr.bf16.mxu0 0
    %5617 = vmatmul.mubr.bf16.gmra.mxu0 %v5572
    %v5618 = vpop.f32.mrf.mxu0
    %v5619 = vadd.f32 0.0, %v5618
    %v5620 = vpop.f32.mrf.mxu0
    %v5621 = vadd.f32 0.0, %v5620
    %v5622 = vpop.f32.mrf.mxu0
    %v5623 = vadd.f32 0.0, %v5622
    %v5624 = vpop.f32.mrf.mxu0
    %v5625 = vadd.f32 0.0, %v5624
    %5626 = vdwg.mxu0
    %5627 = vmatprep.subr.bf16.mxu0 0
    %5628 = vmatpush1.bf16.msra.mxu0 0
    %5629 = vmatprep.subr.bf16.mxu0 0
    %5630 = vmatpush1.bf16.msra.mxu0 0
    %5631 = vmatprep.subr.bf16.mxu0 0
    %5632 = vmatpush1.bf16.msra.mxu0 0
    %5633 = vmatprep.subr.bf16.mxu0 0
    %5634 = vmatpush1.bf16.msra.mxu0 0
    %5635 = vmatprep.subr.bf16.mxu0 0
    %5636 = vmatpush1.bf16.msra.mxu0 0
    %5637 = vmatprep.subr.bf16.mxu0 0
    %5638 = vmatpush1.bf16.msra.mxu0 0
    %5639 = vmatprep.subr.bf16.mxu0 %v5553
    %5640 = vmatpush1.bf16.msra.mxu0 %v5552
    %5641 = vmatprep.subr.bf16.mxu0 %v5547
    %5642 = vmatpush1.bf16.msra.mxu0 %v5546
    %5643 = vmatprep.subr.bf16.mxu0 0
    %5644 = vmatpush2.bf16.msra.mxu0 0
    %5645 = vmatprep.subr.bf16.mxu0 0
    %5646 = vmatpush2.bf16.msra.mxu0 0
    %5647 = vmatprep.subr.bf16.mxu0 0
    %5648 = vmatpush2.bf16.msra.mxu0 0
    %5649 = vmatprep.subr.bf16.mxu0 0
    %5650 = vmatpush2.bf16.msra.mxu0 0
    %5651 = vmatprep.subr.bf16.mxu0 0
    %5652 = vmatpush2.bf16.msra.mxu0 0
    %5653 = vmatprep.subr.bf16.mxu0 0
    %5654 = vmatpush2.bf16.msra.mxu0 0
    %5655 = vmatprep.subr.bf16.mxu0 0
    %5656 = vmatpush2.bf16.msra.mxu0 0
    %5657 = vmatprep.subr.bf16.mxu0 0
    %5658 = vmatpush2.bf16.msra.mxu0 0
    %5659 = vmatprep.mubr.bf16.mxu0 0
    %5660 = vmatmul.mubr.bf16.gmra.mxu0 %v5569
    %v5661 = vpop.f32.mrf.mxu0
    %v5662 = vadd.f32 0.0, %v5661
    %v5663 = vpop.f32.mrf.mxu0
    %v5664 = vadd.f32 0.0, %v5663
    %v5665 = vpop.f32.mrf.mxu0
    %v5666 = vadd.f32 0.0, %v5665
    %v5667 = vpop.f32.mrf.mxu0
    %v5668 = vadd.f32 0.0, %v5667
    %5669 = vmatprep.mubr.bf16.mxu0 0
    %5670 = vmatmul.mubr.bf16.gmra.mxu0 %v5572
    %v5671 = vpop.f32.mrf.mxu0
    %v5672 = vadd.f32 0.0, %v5671
    %v5673 = vpop.f32.mrf.mxu0
    %v5674 = vadd.f32 0.0, %v5673
    %v5675 = vpop.f32.mrf.mxu0
    %v5676 = vadd.f32 0.0, %v5675
    %v5677 = vpop.f32.mrf.mxu0
    %v5678 = vadd.f32 0.0, %v5677
    %5679 = vdwg.mxu0
    %5680 = vmatprep.subr.bf16.mxu0 0
    %5681 = vmatpush1.bf16.msra.mxu0 0
    %5682 = vmatprep.subr.bf16.mxu0 0
    %5683 = vmatpush1.bf16.msra.mxu0 0
    %5684 = vmatprep.subr.bf16.mxu0 0
    %5685 = vmatpush1.bf16.msra.mxu0 0
    %5686 = vmatprep.subr.bf16.mxu0 0
    %5687 = vmatpush1.bf16.msra.mxu0 0
    %5688 = vmatprep.subr.bf16.mxu0 0
    %5689 = vmatpush1.bf16.msra.mxu0 0
    %5690 = vmatprep.subr.bf16.mxu0 0
    %5691 = vmatpush1.bf16.msra.mxu0 0
    %5692 = vmatprep.subr.bf16.mxu0 %v5555
    %5693 = vmatpush1.bf16.msra.mxu0 %v5554
    %5694 = vmatprep.subr.bf16.mxu0 %v5549
    %5695 = vmatpush1.bf16.msra.mxu0 %v5548
    %5696 = vmatprep.subr.bf16.mxu0 0
    %5697 = vmatpush2.bf16.msra.mxu0 0
    %5698 = vmatprep.subr.bf16.mxu0 0
    %5699 = vmatpush2.bf16.msra.mxu0 0
    %5700 = vmatprep.subr.bf16.mxu0 0
    %5701 = vmatpush2.bf16.msra.mxu0 0
    %5702 = vmatprep.subr.bf16.mxu0 0
    %5703 = vmatpush2.bf16.msra.mxu0 0
    %5704 = vmatprep.subr.bf16.mxu0 0
    %5705 = vmatpush2.bf16.msra.mxu0 0
    %5706 = vmatprep.subr.bf16.mxu0 0
    %5707 = vmatpush2.bf16.msra.mxu0 0
    %5708 = vmatprep.subr.bf16.mxu0 0
    %5709 = vmatpush2.bf16.msra.mxu0 0
    %5710 = vmatprep.subr.bf16.mxu0 0
    %5711 = vmatpush2.bf16.msra.mxu0 0
    %5712 = vmatprep.mubr.bf16.mxu0 0
    %5713 = vmatmul.mubr.bf16.gmra.mxu0 %v5569
    %v5714 = vpop.f32.mrf.mxu0
    %v5715 = vadd.f32 0.0, %v5714
    %v5716 = vpop.f32.mrf.mxu0
    %v5717 = vadd.f32 0.0, %v5716
    %v5718 = vpop.f32.mrf.mxu0
    %v5719 = vadd.f32 0.0, %v5718
    %v5720 = vpop.f32.mrf.mxu0
    %v5721 = vadd.f32 0.0, %v5720
    %5722 = vmatprep.mubr.bf16.mxu0 0
    %5723 = vmatmul.mubr.bf16.gmra.mxu0 %v5572
    %v5724 = vpop.f32.mrf.mxu0
    %v5725 = vadd.f32 0.0, %v5724
    %v5726 = vpop.f32.mrf.mxu0
    %v5727 = vadd.f32 0.0, %v5726
    %v5728 = vpop.f32.mrf.mxu0
    %v5729 = vadd.f32 0.0, %v5728
    %v5730 = vpop.f32.mrf.mxu0
    %v5731 = vadd.f32 0.0, %v5730
    %5732 = vdwg.mxu0
    %v5733 = vadd.f32 %v5403, %v5609
    %v5734 = vadd.f32 %v5404, %v5611
    %v5735 = vadd.f32 %v5405, %v5662
    %v5736 = vadd.f32 %v5406, %v5664
    %v5737 = vadd.f32 %v5407, %v5715
    %v5738 = vadd.f32 %v5408, %v5717
    %v5739 = vadd.f32 %v5409, %v5613
    %v5740 = vadd.f32 %v5410, %v5615
    %v5741 = vadd.f32 %v5411, %v5666
    %v5742 = vadd.f32 %v5412, %v5668
    %v5743 = vadd.f32 %v5413, %v5719
    %v5744 = vadd.f32 %v5414, %v5721
    %v5745 = vadd.f32 %v5415, %v5619
    %v5746 = vadd.f32 %v5416, %v5621
    %v5747 = vadd.f32 %v5417, %v5672
    %v5748 = vadd.f32 %v5418, %v5674
    %v5749 = vadd.f32 %v5419, %v5725
    %v5750 = vadd.f32 %v5420, %v5727
    %v5751 = vadd.f32 %v5421, %v5623
    %v5752 = vadd.f32 %v5422, %v5625
    %v5753 = vadd.f32 %v5423, %v5676
    %v5754 = vadd.f32 %v5424, %v5678
    %v5755 = vadd.f32 %v5425, %v5729
    %v5756 = vadd.f32 %v5426, %v5731
    %s5757 = scalar_lea.vmem %s7, 96
    %v5758 = vld [vmem:[%s5757] sm:$0xf]
    %v5759 = vld [vmem:[%s5757 + $0x4] sm:$0xf]
    %v5760 = vld [vmem:[%s5757 + $0x8] sm:$0xf]
    %v5761 = vld [vmem:[%s5757 + $0xc] sm:$0xf]
    %v5766 = vunpack.c.l.b16 %v5758
    %v5767 = vunpack.c.l.b16 %v5759
    %v5768 = vunpack.c.l.b16 %v5760
    %v5769 = vunpack.c.l.b16 %v5761
    %v5770 = vpack.c.b16 %v5767, %v5766
    %v5771 = vpack.c.b16 %v5769, %v5768
    %5772 = vrot.lane.b32.xlu0 %v5502, 111
    %v5773 = vpop.permute.xlu0 %5772
    %5774 = vrot.lane.b32.xlu0 %v5503, 111
    %v5775 = vpop.permute.xlu0 %5774
    %5776 = vrot.lane.b32.xlu0 %v5504, 111
    %v5777 = vpop.permute.xlu0 %5776
    %5778 = vrot.lane.b32.xlu0 %v5505, 111
    %v5779 = vpop.permute.xlu0 %5778
    %5780 = vrot.lane.b32.xlu0 %v5506, 111
    %v5781 = vpop.permute.xlu0 %5780
    %5782 = vrot.lane.b32.xlu0 %v5507, 111
    %v5783 = vpop.permute.xlu0 %5782
    %5784 = vrot.lane.b32.xlu0 %v5508, 111
    %v5785 = vpop.permute.xlu0 %5784
    %5786 = vrot.lane.b32.xlu0 %v5509, 111
    %v5787 = vpop.permute.xlu0 %5786
    %5788 = vrot.lane.b32.xlu0 %v5510, 111
    %v5789 = vpop.permute.xlu0 %5788
    %5790 = vrot.lane.b32.xlu0 %v5511, 111
    %v5791 = vpop.permute.xlu0 %5790
    %5792 = vrot.lane.b32.xlu0 %v5512, 111
    %v5793 = vpop.permute.xlu0 %5792
    %5794 = vrot.lane.b32.xlu0 %v5513, 111
    %v5795 = vpop.permute.xlu0 %5794
    %5796 = vrot.lane.b32.xlu0 %v5514, 111
    %v5797 = vpop.permute.xlu0 %5796
    %5798 = vrot.lane.b32.xlu0 %v5515, 111
    %v5799 = vpop.permute.xlu0 %5798
    %v5800 = vsel %vm1673, %v5773, %v5775
    %v5801 = vsel %vm1673, %v5775, %v5777
    %v5802 = vsel %vm1673, %v5777, %v5779
    %v5803 = vsel %vm1673, %v5779, %v5781
    %v5804 = vsel %vm1673, %v5781, %v5783
    %v5805 = vsel %vm1673, %v5783, %v5785
    %v5806 = vsel %vm1673, %v5787, %v5789
    %v5807 = vsel %vm1673, %v5789, %v5791
    %v5808 = vsel %vm1673, %v5791, %v5793
    %v5809 = vsel %vm1673, %v5793, %v5795
    %v5810 = vsel %vm1673, %v5795, %v5797
    %v5811 = vsel %vm1673, %v5797, %v5799
    %v5825 = vsel %vm4173, %v5770, 0
    %v5828 = vsel %vm4173, %v5771, 0
    %5830 = vmatprep.subr.bf16.mxu0 0
    %5831 = vmatpush1.bf16.msra.mxu0 0
    %5832 = vmatprep.subr.bf16.mxu0 0
    %5833 = vmatpush1.bf16.msra.mxu0 0
    %5834 = vmatprep.subr.bf16.mxu0 0
    %5835 = vmatpush1.bf16.msra.mxu0 0
    %5836 = vmatprep.subr.bf16.mxu0 0
    %5837 = vmatpush1.bf16.msra.mxu0 0
    %5838 = vmatprep.subr.bf16.mxu0 0
    %5839 = vmatpush1.bf16.msra.mxu0 0
    %5840 = vmatprep.subr.bf16.mxu0 0
    %5841 = vmatpush1.bf16.msra.mxu0 0
    %5842 = vmatprep.subr.bf16.mxu0 %v5807
    %5843 = vmatpush1.bf16.msra.mxu0 %v5806
    %5844 = vmatprep.subr.bf16.mxu0 %v5801
    %5845 = vmatpush1.bf16.msra.mxu0 %v5800
    %5846 = vmatprep.subr.bf16.mxu0 0
    %5847 = vmatpush2.bf16.msra.mxu0 0
    %5848 = vmatprep.subr.bf16.mxu0 0
    %5849 = vmatpush2.bf16.msra.mxu0 0
    %5850 = vmatprep.subr.bf16.mxu0 0
    %5851 = vmatpush2.bf16.msra.mxu0 0
    %5852 = vmatprep.subr.bf16.mxu0 0
    %5853 = vmatpush2.bf16.msra.mxu0 0
    %5854 = vmatprep.subr.bf16.mxu0 0
    %5855 = vmatpush2.bf16.msra.mxu0 0
    %5856 = vmatprep.subr.bf16.mxu0 0
    %5857 = vmatpush2.bf16.msra.mxu0 0
    %5858 = vmatprep.subr.bf16.mxu0 0
    %5859 = vmatpush2.bf16.msra.mxu0 0
    %5860 = vmatprep.subr.bf16.mxu0 0
    %5861 = vmatpush2.bf16.msra.mxu0 0
    %5862 = vmatprep.mubr.bf16.mxu0 0
    %5863 = vmatmul.mubr.bf16.gmra.mxu0 %v5825
    %v5864 = vpop.f32.mrf.mxu0
    %v5865 = vadd.f32 0.0, %v5864
    %v5866 = vpop.f32.mrf.mxu0
    %v5867 = vadd.f32 0.0, %v5866
    %v5868 = vpop.f32.mrf.mxu0
    %v5869 = vadd.f32 0.0, %v5868
    %v5870 = vpop.f32.mrf.mxu0
    %v5871 = vadd.f32 0.0, %v5870
    %5872 = vmatprep.mubr.bf16.mxu0 0
    %5873 = vmatmul.mubr.bf16.gmra.mxu0 %v5828
    %v5874 = vpop.f32.mrf.mxu0
    %v5875 = vadd.f32 0.0, %v5874
    %v5876 = vpop.f32.mrf.mxu0
    %v5877 = vadd.f32 0.0, %v5876
    %v5878 = vpop.f32.mrf.mxu0
    %v5879 = vadd.f32 0.0, %v5878
    %v5880 = vpop.f32.mrf.mxu0
    %v5881 = vadd.f32 0.0, %v5880
    %5882 = vdwg.mxu0
    %5883 = vmatprep.subr.bf16.mxu0 0
    %5884 = vmatpush1.bf16.msra.mxu0 0
    %5885 = vmatprep.subr.bf16.mxu0 0
    %5886 = vmatpush1.bf16.msra.mxu0 0
    %5887 = vmatprep.subr.bf16.mxu0 0
    %5888 = vmatpush1.bf16.msra.mxu0 0
    %5889 = vmatprep.subr.bf16.mxu0 0
    %5890 = vmatpush1.bf16.msra.mxu0 0
    %5891 = vmatprep.subr.bf16.mxu0 0
    %5892 = vmatpush1.bf16.msra.mxu0 0
    %5893 = vmatprep.subr.bf16.mxu0 0
    %5894 = vmatpush1.bf16.msra.mxu0 0
    %5895 = vmatprep.subr.bf16.mxu0 %v5809
    %5896 = vmatpush1.bf16.msra.mxu0 %v5808
    %5897 = vmatprep.subr.bf16.mxu0 %v5803
    %5898 = vmatpush1.bf16.msra.mxu0 %v5802
    %5899 = vmatprep.subr.bf16.mxu0 0
    %5900 = vmatpush2.bf16.msra.mxu0 0
    %5901 = vmatprep.subr.bf16.mxu0 0
    %5902 = vmatpush2.bf16.msra.mxu0 0
    %5903 = vmatprep.subr.bf16.mxu0 0
    %5904 = vmatpush2.bf16.msra.mxu0 0
    %5905 = vmatprep.subr.bf16.mxu0 0
    %5906 = vmatpush2.bf16.msra.mxu0 0
    %5907 = vmatprep.subr.bf16.mxu0 0
    %5908 = vmatpush2.bf16.msra.mxu0 0
    %5909 = vmatprep.subr.bf16.mxu0 0
    %5910 = vmatpush2.bf16.msra.mxu0 0
    %5911 = vmatprep.subr.bf16.mxu0 0
    %5912 = vmatpush2.bf16.msra.mxu0 0
    %5913 = vmatprep.subr.bf16.mxu0 0
    %5914 = vmatpush2.bf16.msra.mxu0 0
    %5915 = vmatprep.mubr.bf16.mxu0 0
    %5916 = vmatmul.mubr.bf16.gmra.mxu0 %v5825
    %v5917 = vpop.f32.mrf.mxu0
    %v5918 = vadd.f32 0.0, %v5917
    %v5919 = vpop.f32.mrf.mxu0
    %v5920 = vadd.f32 0.0, %v5919
    %v5921 = vpop.f32.mrf.mxu0
    %v5922 = vadd.f32 0.0, %v5921
    %v5923 = vpop.f32.mrf.mxu0
    %v5924 = vadd.f32 0.0, %v5923
    %5925 = vmatprep.mubr.bf16.mxu0 0
    %5926 = vmatmul.mubr.bf16.gmra.mxu0 %v5828
    %v5927 = vpop.f32.mrf.mxu0
    %v5928 = vadd.f32 0.0, %v5927
    %v5929 = vpop.f32.mrf.mxu0
    %v5930 = vadd.f32 0.0, %v5929
    %v5931 = vpop.f32.mrf.mxu0
    %v5932 = vadd.f32 0.0, %v5931
    %v5933 = vpop.f32.mrf.mxu0
    %v5934 = vadd.f32 0.0, %v5933
    %5935 = vdwg.mxu0
    %5936 = vmatprep.subr.bf16.mxu0 0
    %5937 = vmatpush1.bf16.msra.mxu0 0
    %5938 = vmatprep.subr.bf16.mxu0 0
    %5939 = vmatpush1.bf16.msra.mxu0 0
    %5940 = vmatprep.subr.bf16.mxu0 0
    %5941 = vmatpush1.bf16.msra.mxu0 0
    %5942 = vmatprep.subr.bf16.mxu0 0
    %5943 = vmatpush1.bf16.msra.mxu0 0
    %5944 = vmatprep.subr.bf16.mxu0 0
    %5945 = vmatpush1.bf16.msra.mxu0 0
    %5946 = vmatprep.subr.bf16.mxu0 0
    %5947 = vmatpush1.bf16.msra.mxu0 0
    %5948 = vmatprep.subr.bf16.mxu0 %v5811
    %5949 = vmatpush1.bf16.msra.mxu0 %v5810
    %5950 = vmatprep.subr.bf16.mxu0 %v5805
    %5951 = vmatpush1.bf16.msra.mxu0 %v5804
    %5952 = vmatprep.subr.bf16.mxu0 0
    %5953 = vmatpush2.bf16.msra.mxu0 0
    %5954 = vmatprep.subr.bf16.mxu0 0
    %5955 = vmatpush2.bf16.msra.mxu0 0
    %5956 = vmatprep.subr.bf16.mxu0 0
    %5957 = vmatpush2.bf16.msra.mxu0 0
    %5958 = vmatprep.subr.bf16.mxu0 0
    %5959 = vmatpush2.bf16.msra.mxu0 0
    %5960 = vmatprep.subr.bf16.mxu0 0
    %5961 = vmatpush2.bf16.msra.mxu0 0
    %5962 = vmatprep.subr.bf16.mxu0 0
    %5963 = vmatpush2.bf16.msra.mxu0 0
    %5964 = vmatprep.subr.bf16.mxu0 0
    %5965 = vmatpush2.bf16.msra.mxu0 0
    %5966 = vmatprep.subr.bf16.mxu0 0
    %5967 = vmatpush2.bf16.msra.mxu0 0
    %5968 = vmatprep.mubr.bf16.mxu0 0
    %5969 = vmatmul.mubr.bf16.gmra.mxu0 %v5825
    %v5970 = vpop.f32.mrf.mxu0
    %v5971 = vadd.f32 0.0, %v5970
    %v5972 = vpop.f32.mrf.mxu0
    %v5973 = vadd.f32 0.0, %v5972
    %v5974 = vpop.f32.mrf.mxu0
    %v5975 = vadd.f32 0.0, %v5974
    %v5976 = vpop.f32.mrf.mxu0
    %v5977 = vadd.f32 0.0, %v5976
    %5978 = vmatprep.mubr.bf16.mxu0 0
    %5979 = vmatmul.mubr.bf16.gmra.mxu0 %v5828
    %v5980 = vpop.f32.mrf.mxu0
    %v5981 = vadd.f32 0.0, %v5980
    %v5982 = vpop.f32.mrf.mxu0
    %v5983 = vadd.f32 0.0, %v5982
    %v5984 = vpop.f32.mrf.mxu0
    %v5985 = vadd.f32 0.0, %v5984
    %v5986 = vpop.f32.mrf.mxu0
    %v5987 = vadd.f32 0.0, %v5986
    %5988 = vdwg.mxu0
    %v5989 = vadd.f32 %v5733, %v5865
    %v5990 = vadd.f32 %v5734, %v5867
    %v5991 = vadd.f32 %v5735, %v5918
    %v5992 = vadd.f32 %v5736, %v5920
    %v5993 = vadd.f32 %v5737, %v5971
    %v5994 = vadd.f32 %v5738, %v5973
    %v5995 = vadd.f32 %v5739, %v5869
    %v5996 = vadd.f32 %v5740, %v5871
    %v5997 = vadd.f32 %v5741, %v5922
    %v5998 = vadd.f32 %v5742, %v5924
    %v5999 = vadd.f32 %v5743, %v5975
    %v6000 = vadd.f32 %v5744, %v5977
    %v6001 = vadd.f32 %v5745, %v5875
    %v6002 = vadd.f32 %v5746, %v5877
    %v6003 = vadd.f32 %v5747, %v5928
    %v6004 = vadd.f32 %v5748, %v5930
    %v6005 = vadd.f32 %v5749, %v5981
    %v6006 = vadd.f32 %v5750, %v5983
    %v6007 = vadd.f32 %v5751, %v5879
    %v6008 = vadd.f32 %v5752, %v5881
    %v6009 = vadd.f32 %v5753, %v5932
    %v6010 = vadd.f32 %v5754, %v5934
    %v6011 = vadd.f32 %v5755, %v5985
    %v6012 = vadd.f32 %v5756, %v5987
    %s6013 = scalar_lea.vmem %s7, 112
    %v6014 = vld [vmem:[%s6013] sm:$0xf]
    %v6015 = vld [vmem:[%s6013 + $0x4] sm:$0xf]
    %v6016 = vld [vmem:[%s6013 + $0x8] sm:$0xf]
    %v6017 = vld [vmem:[%s6013 + $0xc] sm:$0xf]
    %v6022 = vunpack.c.l.b16 %v6014
    %v6023 = vunpack.c.l.b16 %v6015
    %v6024 = vunpack.c.l.b16 %v6016
    %v6025 = vunpack.c.l.b16 %v6017
    %v6026 = vpack.c.b16 %v6023, %v6022
    %v6027 = vpack.c.b16 %v6025, %v6024
    %6028 = vrot.lane.b32.xlu0 %v5502, 110
    %v6029 = vpop.permute.xlu0 %6028
    %6030 = vrot.lane.b32.xlu0 %v5503, 110
    %v6031 = vpop.permute.xlu0 %6030
    %6032 = vrot.lane.b32.xlu0 %v5504, 110
    %v6033 = vpop.permute.xlu0 %6032
    %6034 = vrot.lane.b32.xlu0 %v5505, 110
    %v6035 = vpop.permute.xlu0 %6034
    %6036 = vrot.lane.b32.xlu0 %v5506, 110
    %v6037 = vpop.permute.xlu0 %6036
    %6038 = vrot.lane.b32.xlu0 %v5507, 110
    %v6039 = vpop.permute.xlu0 %6038
    %6040 = vrot.lane.b32.xlu0 %v5508, 110
    %v6041 = vpop.permute.xlu0 %6040
    %6042 = vrot.lane.b32.xlu0 %v5509, 110
    %v6043 = vpop.permute.xlu0 %6042
    %6044 = vrot.lane.b32.xlu0 %v5510, 110
    %v6045 = vpop.permute.xlu0 %6044
    %6046 = vrot.lane.b32.xlu0 %v5511, 110
    %v6047 = vpop.permute.xlu0 %6046
    %6048 = vrot.lane.b32.xlu0 %v5512, 110
    %v6049 = vpop.permute.xlu0 %6048
    %6050 = vrot.lane.b32.xlu0 %v5513, 110
    %v6051 = vpop.permute.xlu0 %6050
    %6052 = vrot.lane.b32.xlu0 %v5514, 110
    %v6053 = vpop.permute.xlu0 %6052
    %6054 = vrot.lane.b32.xlu0 %v5515, 110
    %v6055 = vpop.permute.xlu0 %6054
    %v6056 = vsel %vm1904, %v6029, %v6031
    %v6057 = vsel %vm1904, %v6031, %v6033
    %v6058 = vsel %vm1904, %v6033, %v6035
    %v6059 = vsel %vm1904, %v6035, %v6037
    %v6060 = vsel %vm1904, %v6037, %v6039
    %v6061 = vsel %vm1904, %v6039, %v6041
    %v6062 = vsel %vm1904, %v6043, %v6045
    %v6063 = vsel %vm1904, %v6045, %v6047
    %v6064 = vsel %vm1904, %v6047, %v6049
    %v6065 = vsel %vm1904, %v6049, %v6051
    %v6066 = vsel %vm1904, %v6051, %v6053
    %v6067 = vsel %vm1904, %v6053, %v6055
    %v6081 = vsel %vm4173, %v6026, 0
    %v6084 = vsel %vm4173, %v6027, 0
    %6086 = vmatprep.subr.bf16.mxu0 0
    %6087 = vmatpush1.bf16.msra.mxu0 0
    %6088 = vmatprep.subr.bf16.mxu0 0
    %6089 = vmatpush1.bf16.msra.mxu0 0
    %6090 = vmatprep.subr.bf16.mxu0 0
    %6091 = vmatpush1.bf16.msra.mxu0 0
    %6092 = vmatprep.subr.bf16.mxu0 0
    %6093 = vmatpush1.bf16.msra.mxu0 0
    %6094 = vmatprep.subr.bf16.mxu0 0
    %6095 = vmatpush1.bf16.msra.mxu0 0
    %6096 = vmatprep.subr.bf16.mxu0 0
    %6097 = vmatpush1.bf16.msra.mxu0 0
    %6098 = vmatprep.subr.bf16.mxu0 %v6063
    %6099 = vmatpush1.bf16.msra.mxu0 %v6062
    %6100 = vmatprep.subr.bf16.mxu0 %v6057
    %6101 = vmatpush1.bf16.msra.mxu0 %v6056
    %6102 = vmatprep.subr.bf16.mxu0 0
    %6103 = vmatpush2.bf16.msra.mxu0 0
    %6104 = vmatprep.subr.bf16.mxu0 0
    %6105 = vmatpush2.bf16.msra.mxu0 0
    %6106 = vmatprep.subr.bf16.mxu0 0
    %6107 = vmatpush2.bf16.msra.mxu0 0
    %6108 = vmatprep.subr.bf16.mxu0 0
    %6109 = vmatpush2.bf16.msra.mxu0 0
    %6110 = vmatprep.subr.bf16.mxu0 0
    %6111 = vmatpush2.bf16.msra.mxu0 0
    %6112 = vmatprep.subr.bf16.mxu0 0
    %6113 = vmatpush2.bf16.msra.mxu0 0
    %6114 = vmatprep.subr.bf16.mxu0 0
    %6115 = vmatpush2.bf16.msra.mxu0 0
    %6116 = vmatprep.subr.bf16.mxu0 0
    %6117 = vmatpush2.bf16.msra.mxu0 0
    %6118 = vmatprep.mubr.bf16.mxu0 0
    %6119 = vmatmul.mubr.bf16.gmra.mxu0 %v6081
    %v6120 = vpop.f32.mrf.mxu0
    %v6121 = vadd.f32 0.0, %v6120
    %v6122 = vpop.f32.mrf.mxu0
    %v6123 = vadd.f32 0.0, %v6122
    %v6124 = vpop.f32.mrf.mxu0
    %v6125 = vadd.f32 0.0, %v6124
    %v6126 = vpop.f32.mrf.mxu0
    %v6127 = vadd.f32 0.0, %v6126
    %6128 = vmatprep.mubr.bf16.mxu0 0
    %6129 = vmatmul.mubr.bf16.gmra.mxu0 %v6084
    %v6130 = vpop.f32.mrf.mxu0
    %v6131 = vadd.f32 0.0, %v6130
    %v6132 = vpop.f32.mrf.mxu0
    %v6133 = vadd.f32 0.0, %v6132
    %v6134 = vpop.f32.mrf.mxu0
    %v6135 = vadd.f32 0.0, %v6134
    %v6136 = vpop.f32.mrf.mxu0
    %v6137 = vadd.f32 0.0, %v6136
    %6138 = vdwg.mxu0
    %6139 = vmatprep.subr.bf16.mxu0 0
    %6140 = vmatpush1.bf16.msra.mxu0 0
    %6141 = vmatprep.subr.bf16.mxu0 0
    %6142 = vmatpush1.bf16.msra.mxu0 0
    %6143 = vmatprep.subr.bf16.mxu0 0
    %6144 = vmatpush1.bf16.msra.mxu0 0
    %6145 = vmatprep.subr.bf16.mxu0 0
    %6146 = vmatpush1.bf16.msra.mxu0 0
    %6147 = vmatprep.subr.bf16.mxu0 0
    %6148 = vmatpush1.bf16.msra.mxu0 0
    %6149 = vmatprep.subr.bf16.mxu0 0
    %6150 = vmatpush1.bf16.msra.mxu0 0
    %6151 = vmatprep.subr.bf16.mxu0 %v6065
    %6152 = vmatpush1.bf16.msra.mxu0 %v6064
    %6153 = vmatprep.subr.bf16.mxu0 %v6059
    %6154 = vmatpush1.bf16.msra.mxu0 %v6058
    %6155 = vmatprep.subr.bf16.mxu0 0
    %6156 = vmatpush2.bf16.msra.mxu0 0
    %6157 = vmatprep.subr.bf16.mxu0 0
    %6158 = vmatpush2.bf16.msra.mxu0 0
    %6159 = vmatprep.subr.bf16.mxu0 0
    %6160 = vmatpush2.bf16.msra.mxu0 0
    %6161 = vmatprep.subr.bf16.mxu0 0
    %6162 = vmatpush2.bf16.msra.mxu0 0
    %6163 = vmatprep.subr.bf16.mxu0 0
    %6164 = vmatpush2.bf16.msra.mxu0 0
    %6165 = vmatprep.subr.bf16.mxu0 0
    %6166 = vmatpush2.bf16.msra.mxu0 0
    %6167 = vmatprep.subr.bf16.mxu0 0
    %6168 = vmatpush2.bf16.msra.mxu0 0
    %6169 = vmatprep.subr.bf16.mxu0 0
    %6170 = vmatpush2.bf16.msra.mxu0 0
    %6171 = vmatprep.mubr.bf16.mxu0 0
    %6172 = vmatmul.mubr.bf16.gmra.mxu0 %v6081
    %v6173 = vpop.f32.mrf.mxu0
    %v6174 = vadd.f32 0.0, %v6173
    %v6175 = vpop.f32.mrf.mxu0
    %v6176 = vadd.f32 0.0, %v6175
    %v6177 = vpop.f32.mrf.mxu0
    %v6178 = vadd.f32 0.0, %v6177
    %v6179 = vpop.f32.mrf.mxu0
    %v6180 = vadd.f32 0.0, %v6179
    %6181 = vmatprep.mubr.bf16.mxu0 0
    %6182 = vmatmul.mubr.bf16.gmra.mxu0 %v6084
    %v6183 = vpop.f32.mrf.mxu0
    %v6184 = vadd.f32 0.0, %v6183
    %v6185 = vpop.f32.mrf.mxu0
    %v6186 = vadd.f32 0.0, %v6185
    %v6187 = vpop.f32.mrf.mxu0
    %v6188 = vadd.f32 0.0, %v6187
    %v6189 = vpop.f32.mrf.mxu0
    %v6190 = vadd.f32 0.0, %v6189
    %6191 = vdwg.mxu0
    %6192 = vmatprep.subr.bf16.mxu0 0
    %6193 = vmatpush1.bf16.msra.mxu0 0
    %6194 = vmatprep.subr.bf16.mxu0 0
    %6195 = vmatpush1.bf16.msra.mxu0 0
    %6196 = vmatprep.subr.bf16.mxu0 0
    %6197 = vmatpush1.bf16.msra.mxu0 0
    %6198 = vmatprep.subr.bf16.mxu0 0
    %6199 = vmatpush1.bf16.msra.mxu0 0
    %6200 = vmatprep.subr.bf16.mxu0 0
    %6201 = vmatpush1.bf16.msra.mxu0 0
    %6202 = vmatprep.subr.bf16.mxu0 0
    %6203 = vmatpush1.bf16.msra.mxu0 0
    %6204 = vmatprep.subr.bf16.mxu0 %v6067
    %6205 = vmatpush1.bf16.msra.mxu0 %v6066
    %6206 = vmatprep.subr.bf16.mxu0 %v6061
    %6207 = vmatpush1.bf16.msra.mxu0 %v6060
    %6208 = vmatprep.subr.bf16.mxu0 0
    %6209 = vmatpush2.bf16.msra.mxu0 0
    %6210 = vmatprep.subr.bf16.mxu0 0
    %6211 = vmatpush2.bf16.msra.mxu0 0
    %6212 = vmatprep.subr.bf16.mxu0 0
    %6213 = vmatpush2.bf16.msra.mxu0 0
    %6214 = vmatprep.subr.bf16.mxu0 0
    %6215 = vmatpush2.bf16.msra.mxu0 0
    %6216 = vmatprep.subr.bf16.mxu0 0
    %6217 = vmatpush2.bf16.msra.mxu0 0
    %6218 = vmatprep.subr.bf16.mxu0 0
    %6219 = vmatpush2.bf16.msra.mxu0 0
    %6220 = vmatprep.subr.bf16.mxu0 0
    %6221 = vmatpush2.bf16.msra.mxu0 0
    %6222 = vmatprep.subr.bf16.mxu0 0
    %6223 = vmatpush2.bf16.msra.mxu0 0
    %6224 = vmatprep.mubr.bf16.mxu0 0
    %6225 = vmatmul.mubr.bf16.gmra.mxu0 %v6081
    %v6226 = vpop.f32.mrf.mxu0
    %v6227 = vadd.f32 0.0, %v6226
    %v6228 = vpop.f32.mrf.mxu0
    %v6229 = vadd.f32 0.0, %v6228
    %v6230 = vpop.f32.mrf.mxu0
    %v6231 = vadd.f32 0.0, %v6230
    %v6232 = vpop.f32.mrf.mxu0
    %v6233 = vadd.f32 0.0, %v6232
    %6234 = vmatprep.mubr.bf16.mxu0 0
    %6235 = vmatmul.mubr.bf16.gmra.mxu0 %v6084
    %v6236 = vpop.f32.mrf.mxu0
    %v6237 = vadd.f32 0.0, %v6236
    %v6238 = vpop.f32.mrf.mxu0
    %v6239 = vadd.f32 0.0, %v6238
    %v6240 = vpop.f32.mrf.mxu0
    %v6241 = vadd.f32 0.0, %v6240
    %v6242 = vpop.f32.mrf.mxu0
    %v6243 = vadd.f32 0.0, %v6242
    %6244 = vdwg.mxu0
    %v6245 = vadd.f32 %v5989, %v6121
    %v6246 = vadd.f32 %v5990, %v6123
    %v6247 = vadd.f32 %v5991, %v6174
    %v6248 = vadd.f32 %v5992, %v6176
    %v6249 = vadd.f32 %v5993, %v6227
    %v6250 = vadd.f32 %v5994, %v6229
    %v6251 = vadd.f32 %v5995, %v6125
    %v6252 = vadd.f32 %v5996, %v6127
    %v6253 = vadd.f32 %v5997, %v6178
    %v6254 = vadd.f32 %v5998, %v6180
    %v6255 = vadd.f32 %v5999, %v6231
    %v6256 = vadd.f32 %v6000, %v6233
    %v6257 = vadd.f32 %v6001, %v6131
    %v6258 = vadd.f32 %v6002, %v6133
    %v6259 = vadd.f32 %v6003, %v6184
    %v6260 = vadd.f32 %v6004, %v6186
    %v6261 = vadd.f32 %v6005, %v6237
    %v6262 = vadd.f32 %v6006, %v6239
    %v6263 = vadd.f32 %v6007, %v6135
    %v6264 = vadd.f32 %v6008, %v6137
    %v6265 = vadd.f32 %v6009, %v6188
    %v6266 = vadd.f32 %v6010, %v6190
    %v6267 = vadd.f32 %v6011, %v6241
    %v6268 = vadd.f32 %v6012, %v6243
    %s6269 = scalar_lea.vmem %s7, 128
    %v6270 = vld [vmem:[%s6269] sm:$0xf]
    %v6271 = vld [vmem:[%s6269 + $0x4] sm:$0xf]
    %v6272 = vld [vmem:[%s6269 + $0x8] sm:$0xf]
    %v6273 = vld [vmem:[%s6269 + $0xc] sm:$0xf]
    %v6278 = vunpack.c.l.b16 %v6270
    %v6279 = vunpack.c.l.b16 %v6271
    %v6280 = vunpack.c.l.b16 %v6272
    %v6281 = vunpack.c.l.b16 %v6273
    %v6282 = vpack.c.b16 %v6279, %v6278
    %v6283 = vpack.c.b16 %v6281, %v6280
    %6284 = vrot.lane.b32.xlu0 %v5502, 109
    %v6285 = vpop.permute.xlu0 %6284
    %6286 = vrot.lane.b32.xlu0 %v5503, 109
    %v6287 = vpop.permute.xlu0 %6286
    %6288 = vrot.lane.b32.xlu0 %v5504, 109
    %v6289 = vpop.permute.xlu0 %6288
    %6290 = vrot.lane.b32.xlu0 %v5505, 109
    %v6291 = vpop.permute.xlu0 %6290
    %6292 = vrot.lane.b32.xlu0 %v5506, 109
    %v6293 = vpop.permute.xlu0 %6292
    %6294 = vrot.lane.b32.xlu0 %v5507, 109
    %v6295 = vpop.permute.xlu0 %6294
    %6296 = vrot.lane.b32.xlu0 %v5508, 109
    %v6297 = vpop.permute.xlu0 %6296
    %6298 = vrot.lane.b32.xlu0 %v5509, 109
    %v6299 = vpop.permute.xlu0 %6298
    %6300 = vrot.lane.b32.xlu0 %v5510, 109
    %v6301 = vpop.permute.xlu0 %6300
    %6302 = vrot.lane.b32.xlu0 %v5511, 109
    %v6303 = vpop.permute.xlu0 %6302
    %6304 = vrot.lane.b32.xlu0 %v5512, 109
    %v6305 = vpop.permute.xlu0 %6304
    %6306 = vrot.lane.b32.xlu0 %v5513, 109
    %v6307 = vpop.permute.xlu0 %6306
    %6308 = vrot.lane.b32.xlu0 %v5514, 109
    %v6309 = vpop.permute.xlu0 %6308
    %6310 = vrot.lane.b32.xlu0 %v5515, 109
    %v6311 = vpop.permute.xlu0 %6310
    %v6312 = vsel %vm2135, %v6285, %v6287
    %v6313 = vsel %vm2135, %v6287, %v6289
    %v6314 = vsel %vm2135, %v6289, %v6291
    %v6315 = vsel %vm2135, %v6291, %v6293
    %v6316 = vsel %vm2135, %v6293, %v6295
    %v6317 = vsel %vm2135, %v6295, %v6297
    %v6318 = vsel %vm2135, %v6299, %v6301
    %v6319 = vsel %vm2135, %v6301, %v6303
    %v6320 = vsel %vm2135, %v6303, %v6305
    %v6321 = vsel %vm2135, %v6305, %v6307
    %v6322 = vsel %vm2135, %v6307, %v6309
    %v6323 = vsel %vm2135, %v6309, %v6311
    %v6337 = vsel %vm4173, %v6282, 0
    %v6340 = vsel %vm4173, %v6283, 0
    %6342 = vmatprep.subr.bf16.mxu0 0
    %6343 = vmatpush1.bf16.msra.mxu0 0
    %6344 = vmatprep.subr.bf16.mxu0 0
    %6345 = vmatpush1.bf16.msra.mxu0 0
    %6346 = vmatprep.subr.bf16.mxu0 0
    %6347 = vmatpush1.bf16.msra.mxu0 0
    %6348 = vmatprep.subr.bf16.mxu0 0
    %6349 = vmatpush1.bf16.msra.mxu0 0
    %6350 = vmatprep.subr.bf16.mxu0 0
    %6351 = vmatpush1.bf16.msra.mxu0 0
    %6352 = vmatprep.subr.bf16.mxu0 0
    %6353 = vmatpush1.bf16.msra.mxu0 0
    %6354 = vmatprep.subr.bf16.mxu0 %v6319
    %6355 = vmatpush1.bf16.msra.mxu0 %v6318
    %6356 = vmatprep.subr.bf16.mxu0 %v6313
    %6357 = vmatpush1.bf16.msra.mxu0 %v6312
    %6358 = vmatprep.subr.bf16.mxu0 0
    %6359 = vmatpush2.bf16.msra.mxu0 0
    %6360 = vmatprep.subr.bf16.mxu0 0
    %6361 = vmatpush2.bf16.msra.mxu0 0
    %6362 = vmatprep.subr.bf16.mxu0 0
    %6363 = vmatpush2.bf16.msra.mxu0 0
    %6364 = vmatprep.subr.bf16.mxu0 0
    %6365 = vmatpush2.bf16.msra.mxu0 0
    %6366 = vmatprep.subr.bf16.mxu0 0
    %6367 = vmatpush2.bf16.msra.mxu0 0
    %6368 = vmatprep.subr.bf16.mxu0 0
    %6369 = vmatpush2.bf16.msra.mxu0 0
    %6370 = vmatprep.subr.bf16.mxu0 0
    %6371 = vmatpush2.bf16.msra.mxu0 0
    %6372 = vmatprep.subr.bf16.mxu0 0
    %6373 = vmatpush2.bf16.msra.mxu0 0
    %6374 = vmatprep.mubr.bf16.mxu0 0
    %6375 = vmatmul.mubr.bf16.gmra.mxu0 %v6337
    %v6376 = vpop.f32.mrf.mxu0
    %v6377 = vadd.f32 0.0, %v6376
    %v6378 = vpop.f32.mrf.mxu0
    %v6379 = vadd.f32 0.0, %v6378
    %v6380 = vpop.f32.mrf.mxu0
    %v6381 = vadd.f32 0.0, %v6380
    %v6382 = vpop.f32.mrf.mxu0
    %v6383 = vadd.f32 0.0, %v6382
    %6384 = vmatprep.mubr.bf16.mxu0 0
    %6385 = vmatmul.mubr.bf16.gmra.mxu0 %v6340
    %v6386 = vpop.f32.mrf.mxu0
    %v6387 = vadd.f32 0.0, %v6386
    %v6388 = vpop.f32.mrf.mxu0
    %v6389 = vadd.f32 0.0, %v6388
    %v6390 = vpop.f32.mrf.mxu0
    %v6391 = vadd.f32 0.0, %v6390
    %v6392 = vpop.f32.mrf.mxu0
    %v6393 = vadd.f32 0.0, %v6392
    %6394 = vdwg.mxu0
    %6395 = vmatprep.subr.bf16.mxu0 0
    %6396 = vmatpush1.bf16.msra.mxu0 0
    %6397 = vmatprep.subr.bf16.mxu0 0
    %6398 = vmatpush1.bf16.msra.mxu0 0
    %6399 = vmatprep.subr.bf16.mxu0 0
    %6400 = vmatpush1.bf16.msra.mxu0 0
    %6401 = vmatprep.subr.bf16.mxu0 0
    %6402 = vmatpush1.bf16.msra.mxu0 0
    %6403 = vmatprep.subr.bf16.mxu0 0
    %6404 = vmatpush1.bf16.msra.mxu0 0
    %6405 = vmatprep.subr.bf16.mxu0 0
    %6406 = vmatpush1.bf16.msra.mxu0 0
    %6407 = vmatprep.subr.bf16.mxu0 %v6321
    %6408 = vmatpush1.bf16.msra.mxu0 %v6320
    %6409 = vmatprep.subr.bf16.mxu0 %v6315
    %6410 = vmatpush1.bf16.msra.mxu0 %v6314
    %6411 = vmatprep.subr.bf16.mxu0 0
    %6412 = vmatpush2.bf16.msra.mxu0 0
    %6413 = vmatprep.subr.bf16.mxu0 0
    %6414 = vmatpush2.bf16.msra.mxu0 0
    %6415 = vmatprep.subr.bf16.mxu0 0
    %6416 = vmatpush2.bf16.msra.mxu0 0
    %6417 = vmatprep.subr.bf16.mxu0 0
    %6418 = vmatpush2.bf16.msra.mxu0 0
    %6419 = vmatprep.subr.bf16.mxu0 0
    %6420 = vmatpush2.bf16.msra.mxu0 0
    %6421 = vmatprep.subr.bf16.mxu0 0
    %6422 = vmatpush2.bf16.msra.mxu0 0
    %6423 = vmatprep.subr.bf16.mxu0 0
    %6424 = vmatpush2.bf16.msra.mxu0 0
    %6425 = vmatprep.subr.bf16.mxu0 0
    %6426 = vmatpush2.bf16.msra.mxu0 0
    %6427 = vmatprep.mubr.bf16.mxu0 0
    %6428 = vmatmul.mubr.bf16.gmra.mxu0 %v6337
    %v6429 = vpop.f32.mrf.mxu0
    %v6430 = vadd.f32 0.0, %v6429
    %v6431 = vpop.f32.mrf.mxu0
    %v6432 = vadd.f32 0.0, %v6431
    %v6433 = vpop.f32.mrf.mxu0
    %v6434 = vadd.f32 0.0, %v6433
    %v6435 = vpop.f32.mrf.mxu0
    %v6436 = vadd.f32 0.0, %v6435
    %6437 = vmatprep.mubr.bf16.mxu0 0
    %6438 = vmatmul.mubr.bf16.gmra.mxu0 %v6340
    %v6439 = vpop.f32.mrf.mxu0
    %v6440 = vadd.f32 0.0, %v6439
    %v6441 = vpop.f32.mrf.mxu0
    %v6442 = vadd.f32 0.0, %v6441
    %v6443 = vpop.f32.mrf.mxu0
    %v6444 = vadd.f32 0.0, %v6443
    %v6445 = vpop.f32.mrf.mxu0
    %v6446 = vadd.f32 0.0, %v6445
    %6447 = vdwg.mxu0
    %6448 = vmatprep.subr.bf16.mxu0 0
    %6449 = vmatpush1.bf16.msra.mxu0 0
    %6450 = vmatprep.subr.bf16.mxu0 0
    %6451 = vmatpush1.bf16.msra.mxu0 0
    %6452 = vmatprep.subr.bf16.mxu0 0
    %6453 = vmatpush1.bf16.msra.mxu0 0
    %6454 = vmatprep.subr.bf16.mxu0 0
    %6455 = vmatpush1.bf16.msra.mxu0 0
    %6456 = vmatprep.subr.bf16.mxu0 0
    %6457 = vmatpush1.bf16.msra.mxu0 0
    %6458 = vmatprep.subr.bf16.mxu0 0
    %6459 = vmatpush1.bf16.msra.mxu0 0
    %6460 = vmatprep.subr.bf16.mxu0 %v6323
    %6461 = vmatpush1.bf16.msra.mxu0 %v6322
    %6462 = vmatprep.subr.bf16.mxu0 %v6317
    %6463 = vmatpush1.bf16.msra.mxu0 %v6316
    %6464 = vmatprep.subr.bf16.mxu0 0
    %6465 = vmatpush2.bf16.msra.mxu0 0
    %6466 = vmatprep.subr.bf16.mxu0 0
    %6467 = vmatpush2.bf16.msra.mxu0 0
    %6468 = vmatprep.subr.bf16.mxu0 0
    %6469 = vmatpush2.bf16.msra.mxu0 0
    %6470 = vmatprep.subr.bf16.mxu0 0
    %6471 = vmatpush2.bf16.msra.mxu0 0
    %6472 = vmatprep.subr.bf16.mxu0 0
    %6473 = vmatpush2.bf16.msra.mxu0 0
    %6474 = vmatprep.subr.bf16.mxu0 0
    %6475 = vmatpush2.bf16.msra.mxu0 0
    %6476 = vmatprep.subr.bf16.mxu0 0
    %6477 = vmatpush2.bf16.msra.mxu0 0
    %6478 = vmatprep.subr.bf16.mxu0 0
    %6479 = vmatpush2.bf16.msra.mxu0 0
    %6480 = vmatprep.mubr.bf16.mxu0 0
    %6481 = vmatmul.mubr.bf16.gmra.mxu0 %v6337
    %v6482 = vpop.f32.mrf.mxu0
    %v6483 = vadd.f32 0.0, %v6482
    %v6484 = vpop.f32.mrf.mxu0
    %v6485 = vadd.f32 0.0, %v6484
    %v6486 = vpop.f32.mrf.mxu0
    %v6487 = vadd.f32 0.0, %v6486
    %v6488 = vpop.f32.mrf.mxu0
    %v6489 = vadd.f32 0.0, %v6488
    %6490 = vmatprep.mubr.bf16.mxu0 0
    %6491 = vmatmul.mubr.bf16.gmra.mxu0 %v6340
    %v6492 = vpop.f32.mrf.mxu0
    %v6493 = vadd.f32 0.0, %v6492
    %v6494 = vpop.f32.mrf.mxu0
    %v6495 = vadd.f32 0.0, %v6494
    %v6496 = vpop.f32.mrf.mxu0
    %v6497 = vadd.f32 0.0, %v6496
    %v6498 = vpop.f32.mrf.mxu0
    %v6499 = vadd.f32 0.0, %v6498
    %6500 = vdwg.mxu0
    %v6501 = vadd.f32 %v6245, %v6377
    %v6502 = vadd.f32 %v6246, %v6379
    %v6503 = vadd.f32 %v6247, %v6430
    %v6504 = vadd.f32 %v6248, %v6432
    %v6505 = vadd.f32 %v6249, %v6483
    %v6506 = vadd.f32 %v6250, %v6485
    %v6507 = vadd.f32 %v6251, %v6381
    %v6508 = vadd.f32 %v6252, %v6383
    %v6509 = vadd.f32 %v6253, %v6434
    %v6510 = vadd.f32 %v6254, %v6436
    %v6511 = vadd.f32 %v6255, %v6487
    %v6512 = vadd.f32 %v6256, %v6489
    %v6513 = vadd.f32 %v6257, %v6387
    %v6514 = vadd.f32 %v6258, %v6389
    %v6515 = vadd.f32 %v6259, %v6440
    %v6516 = vadd.f32 %v6260, %v6442
    %v6517 = vadd.f32 %v6261, %v6493
    %v6518 = vadd.f32 %v6262, %v6495
    %v6519 = vadd.f32 %v6263, %v6391
    %v6520 = vadd.f32 %v6264, %v6393
    %v6521 = vadd.f32 %v6265, %v6444
    %v6522 = vadd.f32 %v6266, %v6446
    %v6523 = vadd.f32 %v6267, %v6497
    %v6524 = vadd.f32 %v6268, %v6499
    %v6525 = vld [vmem:[%s9] sm:$0xff]
    %v6526 = vld [vmem:[%s9 + $0x8] sm:$0xff]
    %v6527 = vld [vmem:[%s10] sm:$0xff]
    %v6528 = vld [vmem:[%s10 + $0x8] sm:$0xff]
    %6529 = vmatprep.subr.mxu0 0.0
    %6530 = vmatpush1.msra.mxu0 %v70
    %6531 = vmatprep.subr.mxu0 0.0
    %6532 = vmatpush1.msra.mxu0 %v69
    %6533 = vmatprep.subr.mxu0 0.0
    %6534 = vmatpush1.msra.mxu0 %v68
    %6535 = vmatprep.subr.mxu0 0.0
    %6536 = vmatpush1.msra.mxu0 %v67
    %6537 = vmatprep.subr.mxu0 0.0
    %6538 = vmatpush1.msra.mxu0 %v66
    %6539 = vmatprep.subr.mxu0 0.0
    %6540 = vmatpush1.msra.mxu0 %v65
    %6541 = vmatprep.subr.mxu0 0.0
    %6542 = vmatpush1.msra.mxu0 %v64
    %6543 = vmatprep.subr.mxu0 0.0
    %6544 = vmatpush1.msra.mxu0 %v63
    %6545 = vmatprep.subr.mxu0 0.0
    %6546 = vmatpush1.msra.mxu0 %v62
    %6547 = vmatprep.subr.mxu0 0.0
    %6548 = vmatpush1.msra.mxu0 %v61
    %6549 = vmatprep.subr.mxu0 0.0
    %6550 = vmatpush1.msra.mxu0 %v60
    %6551 = vmatprep.subr.mxu0 0.0
    %6552 = vmatpush1.msra.mxu0 %v59
    %6553 = vmatprep.subr.mxu0 0.0
    %6554 = vmatpush1.msra.mxu0 %v58
    %6555 = vmatprep.subr.mxu0 0.0
    %6556 = vmatpush1.msra.mxu0 %v57
    %6557 = vmatprep.subr.mxu0 0.0
    %6558 = vmatpush1.msra.mxu0 %v56
    %6559 = vmatprep.subr.mxu0 0.0
    %6560 = vmatpush1.msra.mxu0 %v55
    %6561 = vmatprep.subr.mxu0 0.0
    %6562 = vmatpush2.msra.mxu0 %v86
    %6563 = vmatprep.subr.mxu0 0.0
    %6564 = vmatpush2.msra.mxu0 %v85
    %6565 = vmatprep.subr.mxu0 0.0
    %6566 = vmatpush2.msra.mxu0 %v84
    %6567 = vmatprep.subr.mxu0 0.0
    %6568 = vmatpush2.msra.mxu0 %v83
    %6569 = vmatprep.subr.mxu0 0.0
    %6570 = vmatpush2.msra.mxu0 %v82
    %6571 = vmatprep.subr.mxu0 0.0
    %6572 = vmatpush2.msra.mxu0 %v81
    %6573 = vmatprep.subr.mxu0 0.0
    %6574 = vmatpush2.msra.mxu0 %v80
    %6575 = vmatprep.subr.mxu0 0.0
    %6576 = vmatpush2.msra.mxu0 %v79
    %6577 = vmatprep.subr.mxu0 0.0
    %6578 = vmatpush2.msra.mxu0 %v78
    %6579 = vmatprep.subr.mxu0 0.0
    %6580 = vmatpush2.msra.mxu0 %v77
    %6581 = vmatprep.subr.mxu0 0.0
    %6582 = vmatpush2.msra.mxu0 %v76
    %6583 = vmatprep.subr.mxu0 0.0
    %6584 = vmatpush2.msra.mxu0 %v75
    %6585 = vmatprep.subr.mxu0 0.0
    %6586 = vmatpush2.msra.mxu0 %v74
    %6587 = vmatprep.subr.mxu0 0.0
    %6588 = vmatpush2.msra.mxu0 %v73
    %6589 = vmatprep.subr.mxu0 0.0
    %6590 = vmatpush2.msra.mxu0 %v72
    %6591 = vmatprep.subr.mxu0 0.0
    %6592 = vmatpush2.msra.mxu0 %v71
    %6593 = vmatprep.mubr.f32.mxu0 %v6502
    %6594 = vmatmul.mubr.f32.gmra.mxu0 %v6501
    %v6595 = vpop.f32.mrf.mxu0
    %v6596 = vadd.f32 0.0, %v6595
    %v6597 = vpop.f32.mrf.mxu0
    %6598 = vmatprep.mubr.f32.mxu0 %v6508
    %6599 = vmatmul.mubr.f32.gmra.mxu0 %v6507
    %v6600 = vpop.f32.mrf.mxu0
    %v6601 = vadd.f32 0.0, %v6600
    %v6602 = vpop.f32.mrf.mxu0
    %6603 = vdwg.mxu0
    %6604 = vmatprep.subr.mxu0 0.0
    %6605 = vmatpush1.msra.mxu0 %v102
    %6606 = vmatprep.subr.mxu0 0.0
    %6607 = vmatpush1.msra.mxu0 %v101
    %6608 = vmatprep.subr.mxu0 0.0
    %6609 = vmatpush1.msra.mxu0 %v100
    %6610 = vmatprep.subr.mxu0 0.0
    %6611 = vmatpush1.msra.mxu0 %v99
    %6612 = vmatprep.subr.mxu0 0.0
    %6613 = vmatpush1.msra.mxu0 %v98
    %6614 = vmatprep.subr.mxu0 0.0
    %6615 = vmatpush1.msra.mxu0 %v97
    %6616 = vmatprep.subr.mxu0 0.0
    %6617 = vmatpush1.msra.mxu0 %v96
    %6618 = vmatprep.subr.mxu0 0.0
    %6619 = vmatpush1.msra.mxu0 %v95
    %6620 = vmatprep.subr.mxu0 0.0
    %6621 = vmatpush1.msra.mxu0 %v94
    %6622 = vmatprep.subr.mxu0 0.0
    %6623 = vmatpush1.msra.mxu0 %v93
    %6624 = vmatprep.subr.mxu0 0.0
    %6625 = vmatpush1.msra.mxu0 %v92
    %6626 = vmatprep.subr.mxu0 0.0
    %6627 = vmatpush1.msra.mxu0 %v91
    %6628 = vmatprep.subr.mxu0 0.0
    %6629 = vmatpush1.msra.mxu0 %v90
    %6630 = vmatprep.subr.mxu0 0.0
    %6631 = vmatpush1.msra.mxu0 %v89
    %6632 = vmatprep.subr.mxu0 0.0
    %6633 = vmatpush1.msra.mxu0 %v88
    %6634 = vmatprep.subr.mxu0 0.0
    %6635 = vmatpush1.msra.mxu0 %v87
    %6636 = vmatprep.subr.mxu0 0.0
    %6637 = vmatpush2.msra.mxu0 %v118
    %6638 = vmatprep.subr.mxu0 0.0
    %6639 = vmatpush2.msra.mxu0 %v117
    %6640 = vmatprep.subr.mxu0 0.0
    %6641 = vmatpush2.msra.mxu0 %v116
    %6642 = vmatprep.subr.mxu0 0.0
    %6643 = vmatpush2.msra.mxu0 %v115
    %6644 = vmatprep.subr.mxu0 0.0
    %6645 = vmatpush2.msra.mxu0 %v114
    %6646 = vmatprep.subr.mxu0 0.0
    %6647 = vmatpush2.msra.mxu0 %v113
    %6648 = vmatprep.subr.mxu0 0.0
    %6649 = vmatpush2.msra.mxu0 %v112
    %6650 = vmatprep.subr.mxu0 0.0
    %6651 = vmatpush2.msra.mxu0 %v111
    %6652 = vmatprep.subr.mxu0 0.0
    %6653 = vmatpush2.msra.mxu0 %v110
    %6654 = vmatprep.subr.mxu0 0.0
    %6655 = vmatpush2.msra.mxu0 %v109
    %6656 = vmatprep.subr.mxu0 0.0
    %6657 = vmatpush2.msra.mxu0 %v108
    %6658 = vmatprep.subr.mxu0 0.0
    %6659 = vmatpush2.msra.mxu0 %v107
    %6660 = vmatprep.subr.mxu0 0.0
    %6661 = vmatpush2.msra.mxu0 %v106
    %6662 = vmatprep.subr.mxu0 0.0
    %6663 = vmatpush2.msra.mxu0 %v105
    %6664 = vmatprep.subr.mxu0 0.0
    %6665 = vmatpush2.msra.mxu0 %v104
    %6666 = vmatprep.subr.mxu0 0.0
    %6667 = vmatpush2.msra.mxu0 %v103
    %6668 = vmatprep.mubr.f32.mxu0 %v6504
    %6669 = vmatmul.mubr.f32.gmra.mxu0 %v6503
    %v6670 = vpop.f32.mrf.mxu0
    %v6671 = vadd.f32 %v6596, %v6670
    %v6672 = vpop.f32.mrf.mxu0
    %6673 = vmatprep.mubr.f32.mxu0 %v6510
    %6674 = vmatmul.mubr.f32.gmra.mxu0 %v6509
    %v6675 = vpop.f32.mrf.mxu0
    %v6676 = vadd.f32 %v6601, %v6675
    %v6677 = vpop.f32.mrf.mxu0
    %6678 = vdwg.mxu0
    %6679 = vmatprep.subr.mxu0 0.0
    %6680 = vmatpush1.msra.mxu0 %v134
    %6681 = vmatprep.subr.mxu0 0.0
    %6682 = vmatpush1.msra.mxu0 %v133
    %6683 = vmatprep.subr.mxu0 0.0
    %6684 = vmatpush1.msra.mxu0 %v132
    %6685 = vmatprep.subr.mxu0 0.0
    %6686 = vmatpush1.msra.mxu0 %v131
    %6687 = vmatprep.subr.mxu0 0.0
    %6688 = vmatpush1.msra.mxu0 %v130
    %6689 = vmatprep.subr.mxu0 0.0
    %6690 = vmatpush1.msra.mxu0 %v129
    %6691 = vmatprep.subr.mxu0 0.0
    %6692 = vmatpush1.msra.mxu0 %v128
    %6693 = vmatprep.subr.mxu0 0.0
    %6694 = vmatpush1.msra.mxu0 %v127
    %6695 = vmatprep.subr.mxu0 0.0
    %6696 = vmatpush1.msra.mxu0 %v126
    %6697 = vmatprep.subr.mxu0 0.0
    %6698 = vmatpush1.msra.mxu0 %v125
    %6699 = vmatprep.subr.mxu0 0.0
    %6700 = vmatpush1.msra.mxu0 %v124
    %6701 = vmatprep.subr.mxu0 0.0
    %6702 = vmatpush1.msra.mxu0 %v123
    %6703 = vmatprep.subr.mxu0 0.0
    %6704 = vmatpush1.msra.mxu0 %v122
    %6705 = vmatprep.subr.mxu0 0.0
    %6706 = vmatpush1.msra.mxu0 %v121
    %6707 = vmatprep.subr.mxu0 0.0
    %6708 = vmatpush1.msra.mxu0 %v120
    %6709 = vmatprep.subr.mxu0 0.0
    %6710 = vmatpush1.msra.mxu0 %v119
    %6711 = vmatprep.subr.mxu0 0.0
    %6712 = vmatpush2.msra.mxu0 %v150
    %6713 = vmatprep.subr.mxu0 0.0
    %6714 = vmatpush2.msra.mxu0 %v149
    %6715 = vmatprep.subr.mxu0 0.0
    %6716 = vmatpush2.msra.mxu0 %v148
    %6717 = vmatprep.subr.mxu0 0.0
    %6718 = vmatpush2.msra.mxu0 %v147
    %6719 = vmatprep.subr.mxu0 0.0
    %6720 = vmatpush2.msra.mxu0 %v146
    %6721 = vmatprep.subr.mxu0 0.0
    %6722 = vmatpush2.msra.mxu0 %v145
    %6723 = vmatprep.subr.mxu0 0.0
    %6724 = vmatpush2.msra.mxu0 %v144
    %6725 = vmatprep.subr.mxu0 0.0
    %6726 = vmatpush2.msra.mxu0 %v143
    %6727 = vmatprep.subr.mxu0 0.0
    %6728 = vmatpush2.msra.mxu0 %v142
    %6729 = vmatprep.subr.mxu0 0.0
    %6730 = vmatpush2.msra.mxu0 %v141
    %6731 = vmatprep.subr.mxu0 0.0
    %6732 = vmatpush2.msra.mxu0 %v140
    %6733 = vmatprep.subr.mxu0 0.0
    %6734 = vmatpush2.msra.mxu0 %v139
    %6735 = vmatprep.subr.mxu0 0.0
    %6736 = vmatpush2.msra.mxu0 %v138
    %6737 = vmatprep.subr.mxu0 0.0
    %6738 = vmatpush2.msra.mxu0 %v137
    %6739 = vmatprep.subr.mxu0 0.0
    %6740 = vmatpush2.msra.mxu0 %v136
    %6741 = vmatprep.subr.mxu0 0.0
    %6742 = vmatpush2.msra.mxu0 %v135
    %6743 = vmatprep.mubr.f32.mxu0 %v6506
    %6744 = vmatmul.mubr.f32.gmra.mxu0 %v6505
    %v6745 = vpop.f32.mrf.mxu0
    %v6746 = vadd.f32 %v6671, %v6745
    %v6747 = vpop.f32.mrf.mxu0
    %6748 = vmatprep.mubr.f32.mxu0 %v6512
    %6749 = vmatmul.mubr.f32.gmra.mxu0 %v6511
    %v6750 = vpop.f32.mrf.mxu0
    %v6751 = vadd.f32 %v6676, %v6750
    %v6752 = vpop.f32.mrf.mxu0
    %6753 = vdwg.mxu0
    %v6754 = vmul.f32 %v6746, 0.001953125
    %v6755 = vmul.f32 %v6751, 0.001953125
    %6756 = vmatprep.subr.mxu0 0.0
    %6757 = vmatpush1.msra.mxu0 %v70
    %6758 = vmatprep.subr.mxu0 0.0
    %6759 = vmatpush1.msra.mxu0 %v69
    %6760 = vmatprep.subr.mxu0 0.0
    %6761 = vmatpush1.msra.mxu0 %v68
    %6762 = vmatprep.subr.mxu0 0.0
    %6763 = vmatpush1.msra.mxu0 %v67
    %6764 = vmatprep.subr.mxu0 0.0
    %6765 = vmatpush1.msra.mxu0 %v66
    %6766 = vmatprep.subr.mxu0 0.0
    %6767 = vmatpush1.msra.mxu0 %v65
    %6768 = vmatprep.subr.mxu0 0.0
    %6769 = vmatpush1.msra.mxu0 %v64
    %6770 = vmatprep.subr.mxu0 0.0
    %6771 = vmatpush1.msra.mxu0 %v63
    %6772 = vmatprep.subr.mxu0 0.0
    %6773 = vmatpush1.msra.mxu0 %v62
    %6774 = vmatprep.subr.mxu0 0.0
    %6775 = vmatpush1.msra.mxu0 %v61
    %6776 = vmatprep.subr.mxu0 0.0
    %6777 = vmatpush1.msra.mxu0 %v60
    %6778 = vmatprep.subr.mxu0 0.0
    %6779 = vmatpush1.msra.mxu0 %v59
    %6780 = vmatprep.subr.mxu0 0.0
    %6781 = vmatpush1.msra.mxu0 %v58
    %6782 = vmatprep.subr.mxu0 0.0
    %6783 = vmatpush1.msra.mxu0 %v57
    %6784 = vmatprep.subr.mxu0 0.0
    %6785 = vmatpush1.msra.mxu0 %v56
    %6786 = vmatprep.subr.mxu0 0.0
    %6787 = vmatpush1.msra.mxu0 %v55
    %6788 = vmatprep.subr.mxu0 0.0
    %6789 = vmatpush2.msra.mxu0 %v86
    %6790 = vmatprep.subr.mxu0 0.0
    %6791 = vmatpush2.msra.mxu0 %v85
    %6792 = vmatprep.subr.mxu0 0.0
    %6793 = vmatpush2.msra.mxu0 %v84
    %6794 = vmatprep.subr.mxu0 0.0
    %6795 = vmatpush2.msra.mxu0 %v83
    %6796 = vmatprep.subr.mxu0 0.0
    %6797 = vmatpush2.msra.mxu0 %v82
    %6798 = vmatprep.subr.mxu0 0.0
    %6799 = vmatpush2.msra.mxu0 %v81
    %6800 = vmatprep.subr.mxu0 0.0
    %6801 = vmatpush2.msra.mxu0 %v80
    %6802 = vmatprep.subr.mxu0 0.0
    %6803 = vmatpush2.msra.mxu0 %v79
    %6804 = vmatprep.subr.mxu0 0.0
    %6805 = vmatpush2.msra.mxu0 %v78
    %6806 = vmatprep.subr.mxu0 0.0
    %6807 = vmatpush2.msra.mxu0 %v77
    %6808 = vmatprep.subr.mxu0 0.0
    %6809 = vmatpush2.msra.mxu0 %v76
    %6810 = vmatprep.subr.mxu0 0.0
    %6811 = vmatpush2.msra.mxu0 %v75
    %6812 = vmatprep.subr.mxu0 0.0
    %6813 = vmatpush2.msra.mxu0 %v74
    %6814 = vmatprep.subr.mxu0 0.0
    %6815 = vmatpush2.msra.mxu0 %v73
    %6816 = vmatprep.subr.mxu0 0.0
    %6817 = vmatpush2.msra.mxu0 %v72
    %6818 = vmatprep.subr.mxu0 0.0
    %6819 = vmatpush2.msra.mxu0 %v71
    %6820 = vmatprep.mubr.f32.mxu0 %v6514
    %6821 = vmatmul.mubr.f32.gmra.mxu0 %v6513
    %v6822 = vpop.f32.mrf.mxu0
    %v6823 = vadd.f32 0.0, %v6822
    %v6824 = vpop.f32.mrf.mxu0
    %6825 = vmatprep.mubr.f32.mxu0 %v6520
    %6826 = vmatmul.mubr.f32.gmra.mxu0 %v6519
    %v6827 = vpop.f32.mrf.mxu0
    %v6828 = vadd.f32 0.0, %v6827
    %v6829 = vpop.f32.mrf.mxu0
    %6830 = vdwg.mxu0
    %6831 = vmatprep.subr.mxu0 0.0
    %6832 = vmatpush1.msra.mxu0 %v102
    %6833 = vmatprep.subr.mxu0 0.0
    %6834 = vmatpush1.msra.mxu0 %v101
    %6835 = vmatprep.subr.mxu0 0.0
    %6836 = vmatpush1.msra.mxu0 %v100
    %6837 = vmatprep.subr.mxu0 0.0
    %6838 = vmatpush1.msra.mxu0 %v99
    %6839 = vmatprep.subr.mxu0 0.0
    %6840 = vmatpush1.msra.mxu0 %v98
    %6841 = vmatprep.subr.mxu0 0.0
    %6842 = vmatpush1.msra.mxu0 %v97
    %6843 = vmatprep.subr.mxu0 0.0
    %6844 = vmatpush1.msra.mxu0 %v96
    %6845 = vmatprep.subr.mxu0 0.0
    %6846 = vmatpush1.msra.mxu0 %v95
    %6847 = vmatprep.subr.mxu0 0.0
    %6848 = vmatpush1.msra.mxu0 %v94
    %6849 = vmatprep.subr.mxu0 0.0
    %6850 = vmatpush1.msra.mxu0 %v93
    %6851 = vmatprep.subr.mxu0 0.0
    %6852 = vmatpush1.msra.mxu0 %v92
    %6853 = vmatprep.subr.mxu0 0.0
    %6854 = vmatpush1.msra.mxu0 %v91
    %6855 = vmatprep.subr.mxu0 0.0
    %6856 = vmatpush1.msra.mxu0 %v90
    %6857 = vmatprep.subr.mxu0 0.0
    %6858 = vmatpush1.msra.mxu0 %v89
    %6859 = vmatprep.subr.mxu0 0.0
    %6860 = vmatpush1.msra.mxu0 %v88
    %6861 = vmatprep.subr.mxu0 0.0
    %6862 = vmatpush1.msra.mxu0 %v87
    %6863 = vmatprep.subr.mxu0 0.0
    %6864 = vmatpush2.msra.mxu0 %v118
    %6865 = vmatprep.subr.mxu0 0.0
    %6866 = vmatpush2.msra.mxu0 %v117
    %6867 = vmatprep.subr.mxu0 0.0
    %6868 = vmatpush2.msra.mxu0 %v116
    %6869 = vmatprep.subr.mxu0 0.0
    %6870 = vmatpush2.msra.mxu0 %v115
    %6871 = vmatprep.subr.mxu0 0.0
    %6872 = vmatpush2.msra.mxu0 %v114
    %6873 = vmatprep.subr.mxu0 0.0
    %6874 = vmatpush2.msra.mxu0 %v113
    %6875 = vmatprep.subr.mxu0 0.0
    %6876 = vmatpush2.msra.mxu0 %v112
    %6877 = vmatprep.subr.mxu0 0.0
    %6878 = vmatpush2.msra.mxu0 %v111
    %6879 = vmatprep.subr.mxu0 0.0
    %6880 = vmatpush2.msra.mxu0 %v110
    %6881 = vmatprep.subr.mxu0 0.0
    %6882 = vmatpush2.msra.mxu0 %v109
    %6883 = vmatprep.subr.mxu0 0.0
    %6884 = vmatpush2.msra.mxu0 %v108
    %6885 = vmatprep.subr.mxu0 0.0
    %6886 = vmatpush2.msra.mxu0 %v107
    %6887 = vmatprep.subr.mxu0 0.0
    %6888 = vmatpush2.msra.mxu0 %v106
    %6889 = vmatprep.subr.mxu0 0.0
    %6890 = vmatpush2.msra.mxu0 %v105
    %6891 = vmatprep.subr.mxu0 0.0
    %6892 = vmatpush2.msra.mxu0 %v104
    %6893 = vmatprep.subr.mxu0 0.0
    %6894 = vmatpush2.msra.mxu0 %v103
    %6895 = vmatprep.mubr.f32.mxu0 %v6516
    %6896 = vmatmul.mubr.f32.gmra.mxu0 %v6515
    %v6897 = vpop.f32.mrf.mxu0
    %v6898 = vadd.f32 %v6823, %v6897
    %v6899 = vpop.f32.mrf.mxu0
    %6900 = vmatprep.mubr.f32.mxu0 %v6522
    %6901 = vmatmul.mubr.f32.gmra.mxu0 %v6521
    %v6902 = vpop.f32.mrf.mxu0
    %v6903 = vadd.f32 %v6828, %v6902
    %v6904 = vpop.f32.mrf.mxu0
    %6905 = vdwg.mxu0
    %6906 = vmatprep.subr.mxu0 0.0
    %6907 = vmatpush1.msra.mxu0 %v134
    %6908 = vmatprep.subr.mxu0 0.0
    %6909 = vmatpush1.msra.mxu0 %v133
    %6910 = vmatprep.subr.mxu0 0.0
    %6911 = vmatpush1.msra.mxu0 %v132
    %6912 = vmatprep.subr.mxu0 0.0
    %6913 = vmatpush1.msra.mxu0 %v131
    %6914 = vmatprep.subr.mxu0 0.0
    %6915 = vmatpush1.msra.mxu0 %v130
    %6916 = vmatprep.subr.mxu0 0.0
    %6917 = vmatpush1.msra.mxu0 %v129
    %6918 = vmatprep.subr.mxu0 0.0
    %6919 = vmatpush1.msra.mxu0 %v128
    %6920 = vmatprep.subr.mxu0 0.0
    %6921 = vmatpush1.msra.mxu0 %v127
    %6922 = vmatprep.subr.mxu0 0.0
    %6923 = vmatpush1.msra.mxu0 %v126
    %6924 = vmatprep.subr.mxu0 0.0
    %6925 = vmatpush1.msra.mxu0 %v125
    %6926 = vmatprep.subr.mxu0 0.0
    %6927 = vmatpush1.msra.mxu0 %v124
    %6928 = vmatprep.subr.mxu0 0.0
    %6929 = vmatpush1.msra.mxu0 %v123
    %6930 = vmatprep.subr.mxu0 0.0
    %6931 = vmatpush1.msra.mxu0 %v122
    %6932 = vmatprep.subr.mxu0 0.0
    %6933 = vmatpush1.msra.mxu0 %v121
    %6934 = vmatprep.subr.mxu0 0.0
    %6935 = vmatpush1.msra.mxu0 %v120
    %6936 = vmatprep.subr.mxu0 0.0
    %6937 = vmatpush1.msra.mxu0 %v119
    %6938 = vmatprep.subr.mxu0 0.0
    %6939 = vmatpush2.msra.mxu0 %v150
    %6940 = vmatprep.subr.mxu0 0.0
    %6941 = vmatpush2.msra.mxu0 %v149
    %6942 = vmatprep.subr.mxu0 0.0
    %6943 = vmatpush2.msra.mxu0 %v148
    %6944 = vmatprep.subr.mxu0 0.0
    %6945 = vmatpush2.msra.mxu0 %v147
    %6946 = vmatprep.subr.mxu0 0.0
    %6947 = vmatpush2.msra.mxu0 %v146
    %6948 = vmatprep.subr.mxu0 0.0
    %6949 = vmatpush2.msra.mxu0 %v145
    %6950 = vmatprep.subr.mxu0 0.0
    %6951 = vmatpush2.msra.mxu0 %v144
    %6952 = vmatprep.subr.mxu0 0.0
    %6953 = vmatpush2.msra.mxu0 %v143
    %6954 = vmatprep.subr.mxu0 0.0
    %6955 = vmatpush2.msra.mxu0 %v142
    %6956 = vmatprep.subr.mxu0 0.0
    %6957 = vmatpush2.msra.mxu0 %v141
    %6958 = vmatprep.subr.mxu0 0.0
    %6959 = vmatpush2.msra.mxu0 %v140
    %6960 = vmatprep.subr.mxu0 0.0
    %6961 = vmatpush2.msra.mxu0 %v139
    %6962 = vmatprep.subr.mxu0 0.0
    %6963 = vmatpush2.msra.mxu0 %v138
    %6964 = vmatprep.subr.mxu0 0.0
    %6965 = vmatpush2.msra.mxu0 %v137
    %6966 = vmatprep.subr.mxu0 0.0
    %6967 = vmatpush2.msra.mxu0 %v136
    %6968 = vmatprep.subr.mxu0 0.0
    %6969 = vmatpush2.msra.mxu0 %v135
    %6970 = vmatprep.mubr.f32.mxu0 %v6518
    %6971 = vmatmul.mubr.f32.gmra.mxu0 %v6517
    %v6972 = vpop.f32.mrf.mxu0
    %v6973 = vadd.f32 %v6898, %v6972
    %v6974 = vpop.f32.mrf.mxu0
    %6975 = vmatprep.mubr.f32.mxu0 %v6524
    %6976 = vmatmul.mubr.f32.gmra.mxu0 %v6523
    %v6977 = vpop.f32.mrf.mxu0
    %v6978 = vadd.f32 %v6903, %v6977
    %v6979 = vpop.f32.mrf.mxu0
    %6980 = vdwg.mxu0
    %v6981 = vmul.f32 %v6973, 0.001953125
    %v6982 = vmul.f32 %v6978, 0.001953125
    %v6983 = vmul.f32 %v6501, %v6501
    %v6984 = vmul.f32 %v6502, %v6502
    %v6985 = vmul.f32 %v6503, %v6503
    %v6986 = vmul.f32 %v6504, %v6504
    %v6987 = vmul.f32 %v6505, %v6505
    %v6988 = vmul.f32 %v6506, %v6506
    %v6989 = vmul.f32 %v6507, %v6507
    %v6990 = vmul.f32 %v6508, %v6508
    %v6991 = vmul.f32 %v6509, %v6509
    %v6992 = vmul.f32 %v6510, %v6510
    %v6993 = vmul.f32 %v6511, %v6511
    %v6994 = vmul.f32 %v6512, %v6512
    %6995 = vmatprep.subr.mxu0 0.0
    %6996 = vmatpush1.msra.mxu0 %v70
    %6997 = vmatprep.subr.mxu0 0.0
    %6998 = vmatpush1.msra.mxu0 %v69
    %6999 = vmatprep.subr.mxu0 0.0
    %7000 = vmatpush1.msra.mxu0 %v68
    %7001 = vmatprep.subr.mxu0 0.0
    %7002 = vmatpush1.msra.mxu0 %v67
    %7003 = vmatprep.subr.mxu0 0.0
    %7004 = vmatpush1.msra.mxu0 %v66
    %7005 = vmatprep.subr.mxu0 0.0
    %7006 = vmatpush1.msra.mxu0 %v65
    %7007 = vmatprep.subr.mxu0 0.0
    %7008 = vmatpush1.msra.mxu0 %v64
    %7009 = vmatprep.subr.mxu0 0.0
    %7010 = vmatpush1.msra.mxu0 %v63
    %7011 = vmatprep.subr.mxu0 0.0
    %7012 = vmatpush1.msra.mxu0 %v62
    %7013 = vmatprep.subr.mxu0 0.0
    %7014 = vmatpush1.msra.mxu0 %v61
    %7015 = vmatprep.subr.mxu0 0.0
    %7016 = vmatpush1.msra.mxu0 %v60
    %7017 = vmatprep.subr.mxu0 0.0
    %7018 = vmatpush1.msra.mxu0 %v59
    %7019 = vmatprep.subr.mxu0 0.0
    %7020 = vmatpush1.msra.mxu0 %v58
    %7021 = vmatprep.subr.mxu0 0.0
    %7022 = vmatpush1.msra.mxu0 %v57
    %7023 = vmatprep.subr.mxu0 0.0
    %7024 = vmatpush1.msra.mxu0 %v56
    %7025 = vmatprep.subr.mxu0 0.0
    %7026 = vmatpush1.msra.mxu0 %v55
    %7027 = vmatprep.subr.mxu0 0.0
    %7028 = vmatpush2.msra.mxu0 %v86
    %7029 = vmatprep.subr.mxu0 0.0
    %7030 = vmatpush2.msra.mxu0 %v85
    %7031 = vmatprep.subr.mxu0 0.0
    %7032 = vmatpush2.msra.mxu0 %v84
    %7033 = vmatprep.subr.mxu0 0.0
    %7034 = vmatpush2.msra.mxu0 %v83
    %7035 = vmatprep.subr.mxu0 0.0
    %7036 = vmatpush2.msra.mxu0 %v82
    %7037 = vmatprep.subr.mxu0 0.0
    %7038 = vmatpush2.msra.mxu0 %v81
    %7039 = vmatprep.subr.mxu0 0.0
    %7040 = vmatpush2.msra.mxu0 %v80
    %7041 = vmatprep.subr.mxu0 0.0
    %7042 = vmatpush2.msra.mxu0 %v79
    %7043 = vmatprep.subr.mxu0 0.0
    %7044 = vmatpush2.msra.mxu0 %v78
    %7045 = vmatprep.subr.mxu0 0.0
    %7046 = vmatpush2.msra.mxu0 %v77
    %7047 = vmatprep.subr.mxu0 0.0
    %7048 = vmatpush2.msra.mxu0 %v76
    %7049 = vmatprep.subr.mxu0 0.0
    %7050 = vmatpush2.msra.mxu0 %v75
    %7051 = vmatprep.subr.mxu0 0.0
    %7052 = vmatpush2.msra.mxu0 %v74
    %7053 = vmatprep.subr.mxu0 0.0
    %7054 = vmatpush2.msra.mxu0 %v73
    %7055 = vmatprep.subr.mxu0 0.0
    %7056 = vmatpush2.msra.mxu0 %v72
    %7057 = vmatprep.subr.mxu0 0.0
    %7058 = vmatpush2.msra.mxu0 %v71
    %7059 = vmatprep.mubr.f32.mxu0 %v6984
    %7060 = vmatmul.mubr.f32.gmra.mxu0 %v6983
    %v7061 = vpop.f32.mrf.mxu0
    %v7062 = vadd.f32 0.0, %v7061
    %v7063 = vpop.f32.mrf.mxu0
    %7064 = vmatprep.mubr.f32.mxu0 %v6990
    %7065 = vmatmul.mubr.f32.gmra.mxu0 %v6989
    %v7066 = vpop.f32.mrf.mxu0
    %v7067 = vadd.f32 0.0, %v7066
    %v7068 = vpop.f32.mrf.mxu0
    %7069 = vdwg.mxu0
    %7070 = vmatprep.subr.mxu0 0.0
    %7071 = vmatpush1.msra.mxu0 %v102
    %7072 = vmatprep.subr.mxu0 0.0
    %7073 = vmatpush1.msra.mxu0 %v101
    %7074 = vmatprep.subr.mxu0 0.0
    %7075 = vmatpush1.msra.mxu0 %v100
    %7076 = vmatprep.subr.mxu0 0.0
    %7077 = vmatpush1.msra.mxu0 %v99
    %7078 = vmatprep.subr.mxu0 0.0
    %7079 = vmatpush1.msra.mxu0 %v98
    %7080 = vmatprep.subr.mxu0 0.0
    %7081 = vmatpush1.msra.mxu0 %v97
    %7082 = vmatprep.subr.mxu0 0.0
    %7083 = vmatpush1.msra.mxu0 %v96
    %7084 = vmatprep.subr.mxu0 0.0
    %7085 = vmatpush1.msra.mxu0 %v95
    %7086 = vmatprep.subr.mxu0 0.0
    %7087 = vmatpush1.msra.mxu0 %v94
    %7088 = vmatprep.subr.mxu0 0.0
    %7089 = vmatpush1.msra.mxu0 %v93
    %7090 = vmatprep.subr.mxu0 0.0
    %7091 = vmatpush1.msra.mxu0 %v92
    %7092 = vmatprep.subr.mxu0 0.0
    %7093 = vmatpush1.msra.mxu0 %v91
    %7094 = vmatprep.subr.mxu0 0.0
    %7095 = vmatpush1.msra.mxu0 %v90
    %7096 = vmatprep.subr.mxu0 0.0
    %7097 = vmatpush1.msra.mxu0 %v89
    %7098 = vmatprep.subr.mxu0 0.0
    %7099 = vmatpush1.msra.mxu0 %v88
    %7100 = vmatprep.subr.mxu0 0.0
    %7101 = vmatpush1.msra.mxu0 %v87
    %7102 = vmatprep.subr.mxu0 0.0
    %7103 = vmatpush2.msra.mxu0 %v118
    %7104 = vmatprep.subr.mxu0 0.0
    %7105 = vmatpush2.msra.mxu0 %v117
    %7106 = vmatprep.subr.mxu0 0.0
    %7107 = vmatpush2.msra.mxu0 %v116
    %7108 = vmatprep.subr.mxu0 0.0
    %7109 = vmatpush2.msra.mxu0 %v115
    %7110 = vmatprep.subr.mxu0 0.0
    %7111 = vmatpush2.msra.mxu0 %v114
    %7112 = vmatprep.subr.mxu0 0.0
    %7113 = vmatpush2.msra.mxu0 %v113
    %7114 = vmatprep.subr.mxu0 0.0
    %7115 = vmatpush2.msra.mxu0 %v112
    %7116 = vmatprep.subr.mxu0 0.0
    %7117 = vmatpush2.msra.mxu0 %v111
    %7118 = vmatprep.subr.mxu0 0.0
    %7119 = vmatpush2.msra.mxu0 %v110
    %7120 = vmatprep.subr.mxu0 0.0
    %7121 = vmatpush2.msra.mxu0 %v109
    %7122 = vmatprep.subr.mxu0 0.0
    %7123 = vmatpush2.msra.mxu0 %v108
    %7124 = vmatprep.subr.mxu0 0.0
    %7125 = vmatpush2.msra.mxu0 %v107
    %7126 = vmatprep.subr.mxu0 0.0
    %7127 = vmatpush2.msra.mxu0 %v106
    %7128 = vmatprep.subr.mxu0 0.0
    %7129 = vmatpush2.msra.mxu0 %v105
    %7130 = vmatprep.subr.mxu0 0.0
    %7131 = vmatpush2.msra.mxu0 %v104
    %7132 = vmatprep.subr.mxu0 0.0
    %7133 = vmatpush2.msra.mxu0 %v103
    %7134 = vmatprep.mubr.f32.mxu0 %v6986
    %7135 = vmatmul.mubr.f32.gmra.mxu0 %v6985
    %v7136 = vpop.f32.mrf.mxu0
    %v7137 = vadd.f32 %v7062, %v7136
    %v7138 = vpop.f32.mrf.mxu0
    %7139 = vmatprep.mubr.f32.mxu0 %v6992
    %7140 = vmatmul.mubr.f32.gmra.mxu0 %v6991
    %v7141 = vpop.f32.mrf.mxu0
    %v7142 = vadd.f32 %v7067, %v7141
    %v7143 = vpop.f32.mrf.mxu0
    %7144 = vdwg.mxu0
    %7145 = vmatprep.subr.mxu0 0.0
    %7146 = vmatpush1.msra.mxu0 %v134
    %7147 = vmatprep.subr.mxu0 0.0
    %7148 = vmatpush1.msra.mxu0 %v133
    %7149 = vmatprep.subr.mxu0 0.0
    %7150 = vmatpush1.msra.mxu0 %v132
    %7151 = vmatprep.subr.mxu0 0.0
    %7152 = vmatpush1.msra.mxu0 %v131
    %7153 = vmatprep.subr.mxu0 0.0
    %7154 = vmatpush1.msra.mxu0 %v130
    %7155 = vmatprep.subr.mxu0 0.0
    %7156 = vmatpush1.msra.mxu0 %v129
    %7157 = vmatprep.subr.mxu0 0.0
    %7158 = vmatpush1.msra.mxu0 %v128
    %7159 = vmatprep.subr.mxu0 0.0
    %7160 = vmatpush1.msra.mxu0 %v127
    %7161 = vmatprep.subr.mxu0 0.0
    %7162 = vmatpush1.msra.mxu0 %v126
    %7163 = vmatprep.subr.mxu0 0.0
    %7164 = vmatpush1.msra.mxu0 %v125
    %7165 = vmatprep.subr.mxu0 0.0
    %7166 = vmatpush1.msra.mxu0 %v124
    %7167 = vmatprep.subr.mxu0 0.0
    %7168 = vmatpush1.msra.mxu0 %v123
    %7169 = vmatprep.subr.mxu0 0.0
    %7170 = vmatpush1.msra.mxu0 %v122
    %7171 = vmatprep.subr.mxu0 0.0
    %7172 = vmatpush1.msra.mxu0 %v121
    %7173 = vmatprep.subr.mxu0 0.0
    %7174 = vmatpush1.msra.mxu0 %v120
    %7175 = vmatprep.subr.mxu0 0.0
    %7176 = vmatpush1.msra.mxu0 %v119
    %7177 = vmatprep.subr.mxu0 0.0
    %7178 = vmatpush2.msra.mxu0 %v150
    %7179 = vmatprep.subr.mxu0 0.0
    %7180 = vmatpush2.msra.mxu0 %v149
    %7181 = vmatprep.subr.mxu0 0.0
    %7182 = vmatpush2.msra.mxu0 %v148
    %7183 = vmatprep.subr.mxu0 0.0
    %7184 = vmatpush2.msra.mxu0 %v147
    %7185 = vmatprep.subr.mxu0 0.0
    %7186 = vmatpush2.msra.mxu0 %v146
    %7187 = vmatprep.subr.mxu0 0.0
    %7188 = vmatpush2.msra.mxu0 %v145
    %7189 = vmatprep.subr.mxu0 0.0
    %7190 = vmatpush2.msra.mxu0 %v144
    %7191 = vmatprep.subr.mxu0 0.0
    %7192 = vmatpush2.msra.mxu0 %v143
    %7193 = vmatprep.subr.mxu0 0.0
    %7194 = vmatpush2.msra.mxu0 %v142
    %7195 = vmatprep.subr.mxu0 0.0
    %7196 = vmatpush2.msra.mxu0 %v141
    %7197 = vmatprep.subr.mxu0 0.0
    %7198 = vmatpush2.msra.mxu0 %v140
    %7199 = vmatprep.subr.mxu0 0.0
    %7200 = vmatpush2.msra.mxu0 %v139
    %7201 = vmatprep.subr.mxu0 0.0
    %7202 = vmatpush2.msra.mxu0 %v138
    %7203 = vmatprep.subr.mxu0 0.0
    %7204 = vmatpush2.msra.mxu0 %v137
    %7205 = vmatprep.subr.mxu0 0.0
    %7206 = vmatpush2.msra.mxu0 %v136
    %7207 = vmatprep.subr.mxu0 0.0
    %7208 = vmatpush2.msra.mxu0 %v135
    %7209 = vmatprep.mubr.f32.mxu0 %v6988
    %7210 = vmatmul.mubr.f32.gmra.mxu0 %v6987
    %v7211 = vpop.f32.mrf.mxu0
    %v7212 = vadd.f32 %v7137, %v7211
    %v7213 = vpop.f32.mrf.mxu0
    %7214 = vmatprep.mubr.f32.mxu0 %v6994
    %7215 = vmatmul.mubr.f32.gmra.mxu0 %v6993
    %v7216 = vpop.f32.mrf.mxu0
    %v7217 = vadd.f32 %v7142, %v7216
    %v7218 = vpop.f32.mrf.mxu0
    %7219 = vdwg.mxu0
    %v7220 = vmul.f32 %v7212, 0.001953125
    %v7221 = vmul.f32 %v7217, 0.001953125
    %v7222 = vmul.f32 %v6754, %v6754
    %v7223 = vmul.f32 %v6755, %v6755
    %v7224 = vsub.f32 %v7220, %v7222
    %v7225 = vsub.f32 %v7221, %v7223
    %v7226 = vadd.f32 %v7224, 1e-05
    %v7227 = vadd.f32 %v7225, 1e-05
    %v7228 = vmul.f32 %v6513, %v6513
    %v7229 = vmul.f32 %v6514, %v6514
    %v7230 = vmul.f32 %v6515, %v6515
    %v7231 = vmul.f32 %v6516, %v6516
    %v7232 = vmul.f32 %v6517, %v6517
    %v7233 = vmul.f32 %v6518, %v6518
    %v7234 = vmul.f32 %v6519, %v6519
    %v7235 = vmul.f32 %v6520, %v6520
    %v7236 = vmul.f32 %v6521, %v6521
    %v7237 = vmul.f32 %v6522, %v6522
    %v7238 = vmul.f32 %v6523, %v6523
    %v7239 = vmul.f32 %v6524, %v6524
    %7240 = vmatprep.subr.mxu0 0.0
    %7241 = vmatpush1.msra.mxu0 %v70
    %7242 = vmatprep.subr.mxu0 0.0
    %7243 = vmatpush1.msra.mxu0 %v69
    %7244 = vmatprep.subr.mxu0 0.0
    %7245 = vmatpush1.msra.mxu0 %v68
    %7246 = vmatprep.subr.mxu0 0.0
    %7247 = vmatpush1.msra.mxu0 %v67
    %7248 = vmatprep.subr.mxu0 0.0
    %7249 = vmatpush1.msra.mxu0 %v66
    %7250 = vmatprep.subr.mxu0 0.0
    %7251 = vmatpush1.msra.mxu0 %v65
    %7252 = vmatprep.subr.mxu0 0.0
    %7253 = vmatpush1.msra.mxu0 %v64
    %7254 = vmatprep.subr.mxu0 0.0
    %7255 = vmatpush1.msra.mxu0 %v63
    %7256 = vmatprep.subr.mxu0 0.0
    %7257 = vmatpush1.msra.mxu0 %v62
    %7258 = vmatprep.subr.mxu0 0.0
    %7259 = vmatpush1.msra.mxu0 %v61
    %7260 = vmatprep.subr.mxu0 0.0
    %7261 = vmatpush1.msra.mxu0 %v60
    %7262 = vmatprep.subr.mxu0 0.0
    %7263 = vmatpush1.msra.mxu0 %v59
    %7264 = vmatprep.subr.mxu0 0.0
    %7265 = vmatpush1.msra.mxu0 %v58
    %7266 = vmatprep.subr.mxu0 0.0
    %7267 = vmatpush1.msra.mxu0 %v57
    %7268 = vmatprep.subr.mxu0 0.0
    %7269 = vmatpush1.msra.mxu0 %v56
    %7270 = vmatprep.subr.mxu0 0.0
    %7271 = vmatpush1.msra.mxu0 %v55
    %7272 = vmatprep.subr.mxu0 0.0
    %7273 = vmatpush2.msra.mxu0 %v86
    %7274 = vmatprep.subr.mxu0 0.0
    %7275 = vmatpush2.msra.mxu0 %v85
    %7276 = vmatprep.subr.mxu0 0.0
    %7277 = vmatpush2.msra.mxu0 %v84
    %7278 = vmatprep.subr.mxu0 0.0
    %7279 = vmatpush2.msra.mxu0 %v83
    %7280 = vmatprep.subr.mxu0 0.0
    %7281 = vmatpush2.msra.mxu0 %v82
    %7282 = vmatprep.subr.mxu0 0.0
    %7283 = vmatpush2.msra.mxu0 %v81
    %7284 = vmatprep.subr.mxu0 0.0
    %7285 = vmatpush2.msra.mxu0 %v80
    %7286 = vmatprep.subr.mxu0 0.0
    %7287 = vmatpush2.msra.mxu0 %v79
    %7288 = vmatprep.subr.mxu0 0.0
    %7289 = vmatpush2.msra.mxu0 %v78
    %7290 = vmatprep.subr.mxu0 0.0
    %7291 = vmatpush2.msra.mxu0 %v77
    %7292 = vmatprep.subr.mxu0 0.0
    %7293 = vmatpush2.msra.mxu0 %v76
    %7294 = vmatprep.subr.mxu0 0.0
    %7295 = vmatpush2.msra.mxu0 %v75
    %7296 = vmatprep.subr.mxu0 0.0
    %7297 = vmatpush2.msra.mxu0 %v74
    %7298 = vmatprep.subr.mxu0 0.0
    %7299 = vmatpush2.msra.mxu0 %v73
    %7300 = vmatprep.subr.mxu0 0.0
    %7301 = vmatpush2.msra.mxu0 %v72
    %7302 = vmatprep.subr.mxu0 0.0
    %7303 = vmatpush2.msra.mxu0 %v71
    %7304 = vmatprep.mubr.f32.mxu0 %v7229
    %7305 = vmatmul.mubr.f32.gmra.mxu0 %v7228
    %v7306 = vpop.f32.mrf.mxu0
    %v7307 = vadd.f32 0.0, %v7306
    %v7308 = vpop.f32.mrf.mxu0
    %7309 = vmatprep.mubr.f32.mxu0 %v7235
    %7310 = vmatmul.mubr.f32.gmra.mxu0 %v7234
    %v7311 = vpop.f32.mrf.mxu0
    %v7312 = vadd.f32 0.0, %v7311
    %v7313 = vpop.f32.mrf.mxu0
    %7314 = vdwg.mxu0
    %7315 = vmatprep.subr.mxu0 0.0
    %7316 = vmatpush1.msra.mxu0 %v102
    %7317 = vmatprep.subr.mxu0 0.0
    %7318 = vmatpush1.msra.mxu0 %v101
    %7319 = vmatprep.subr.mxu0 0.0
    %7320 = vmatpush1.msra.mxu0 %v100
    %7321 = vmatprep.subr.mxu0 0.0
    %7322 = vmatpush1.msra.mxu0 %v99
    %7323 = vmatprep.subr.mxu0 0.0
    %7324 = vmatpush1.msra.mxu0 %v98
    %7325 = vmatprep.subr.mxu0 0.0
    %7326 = vmatpush1.msra.mxu0 %v97
    %7327 = vmatprep.subr.mxu0 0.0
    %7328 = vmatpush1.msra.mxu0 %v96
    %7329 = vmatprep.subr.mxu0 0.0
    %7330 = vmatpush1.msra.mxu0 %v95
    %7331 = vmatprep.subr.mxu0 0.0
    %7332 = vmatpush1.msra.mxu0 %v94
    %7333 = vmatprep.subr.mxu0 0.0
    %7334 = vmatpush1.msra.mxu0 %v93
    %7335 = vmatprep.subr.mxu0 0.0
    %7336 = vmatpush1.msra.mxu0 %v92
    %7337 = vmatprep.subr.mxu0 0.0
    %7338 = vmatpush1.msra.mxu0 %v91
    %7339 = vmatprep.subr.mxu0 0.0
    %7340 = vmatpush1.msra.mxu0 %v90
    %7341 = vmatprep.subr.mxu0 0.0
    %7342 = vmatpush1.msra.mxu0 %v89
    %7343 = vmatprep.subr.mxu0 0.0
    %7344 = vmatpush1.msra.mxu0 %v88
    %7345 = vmatprep.subr.mxu0 0.0
    %7346 = vmatpush1.msra.mxu0 %v87
    %7347 = vmatprep.subr.mxu0 0.0
    %7348 = vmatpush2.msra.mxu0 %v118
    %7349 = vmatprep.subr.mxu0 0.0
    %7350 = vmatpush2.msra.mxu0 %v117
    %7351 = vmatprep.subr.mxu0 0.0
    %7352 = vmatpush2.msra.mxu0 %v116
    %7353 = vmatprep.subr.mxu0 0.0
    %7354 = vmatpush2.msra.mxu0 %v115
    %7355 = vmatprep.subr.mxu0 0.0
    %7356 = vmatpush2.msra.mxu0 %v114
    %7357 = vmatprep.subr.mxu0 0.0
    %7358 = vmatpush2.msra.mxu0 %v113
    %7359 = vmatprep.subr.mxu0 0.0
    %7360 = vmatpush2.msra.mxu0 %v112
    %7361 = vmatprep.subr.mxu0 0.0
    %7362 = vmatpush2.msra.mxu0 %v111
    %7363 = vmatprep.subr.mxu0 0.0
    %7364 = vmatpush2.msra.mxu0 %v110
    %7365 = vmatprep.subr.mxu0 0.0
    %7366 = vmatpush2.msra.mxu0 %v109
    %7367 = vmatprep.subr.mxu0 0.0
    %7368 = vmatpush2.msra.mxu0 %v108
    %7369 = vmatprep.subr.mxu0 0.0
    %7370 = vmatpush2.msra.mxu0 %v107
    %7371 = vmatprep.subr.mxu0 0.0
    %7372 = vmatpush2.msra.mxu0 %v106
    %7373 = vmatprep.subr.mxu0 0.0
    %7374 = vmatpush2.msra.mxu0 %v105
    %7375 = vmatprep.subr.mxu0 0.0
    %7376 = vmatpush2.msra.mxu0 %v104
    %7377 = vmatprep.subr.mxu0 0.0
    %7378 = vmatpush2.msra.mxu0 %v103
    %7379 = vmatprep.mubr.f32.mxu0 %v7231
    %7380 = vmatmul.mubr.f32.gmra.mxu0 %v7230
    %v7381 = vpop.f32.mrf.mxu0
    %v7382 = vadd.f32 %v7307, %v7381
    %v7383 = vpop.f32.mrf.mxu0
    %7384 = vmatprep.mubr.f32.mxu0 %v7237
    %7385 = vmatmul.mubr.f32.gmra.mxu0 %v7236
    %v7386 = vpop.f32.mrf.mxu0
    %v7387 = vadd.f32 %v7312, %v7386
    %v7388 = vpop.f32.mrf.mxu0
    %7389 = vdwg.mxu0
    %7390 = vmatprep.subr.mxu0 0.0
    %7391 = vmatpush1.msra.mxu0 %v134
    %7392 = vmatprep.subr.mxu0 0.0
    %7393 = vmatpush1.msra.mxu0 %v133
    %7394 = vmatprep.subr.mxu0 0.0
    %7395 = vmatpush1.msra.mxu0 %v132
    %7396 = vmatprep.subr.mxu0 0.0
    %7397 = vmatpush1.msra.mxu0 %v131
    %7398 = vmatprep.subr.mxu0 0.0
    %7399 = vmatpush1.msra.mxu0 %v130
    %7400 = vmatprep.subr.mxu0 0.0
    %7401 = vmatpush1.msra.mxu0 %v129
    %7402 = vmatprep.subr.mxu0 0.0
    %7403 = vmatpush1.msra.mxu0 %v128
    %7404 = vmatprep.subr.mxu0 0.0
    %7405 = vmatpush1.msra.mxu0 %v127
    %7406 = vmatprep.subr.mxu0 0.0
    %7407 = vmatpush1.msra.mxu0 %v126
    %7408 = vmatprep.subr.mxu0 0.0
    %7409 = vmatpush1.msra.mxu0 %v125
    %7410 = vmatprep.subr.mxu0 0.0
    %7411 = vmatpush1.msra.mxu0 %v124
    %7412 = vmatprep.subr.mxu0 0.0
    %7413 = vmatpush1.msra.mxu0 %v123
    %7414 = vmatprep.subr.mxu0 0.0
    %7415 = vmatpush1.msra.mxu0 %v122
    %7416 = vmatprep.subr.mxu0 0.0
    %7417 = vmatpush1.msra.mxu0 %v121
    %7418 = vmatprep.subr.mxu0 0.0
    %7419 = vmatpush1.msra.mxu0 %v120
    %7420 = vmatprep.subr.mxu0 0.0
    %7421 = vmatpush1.msra.mxu0 %v119
    %7422 = vmatprep.subr.mxu0 0.0
    %7423 = vmatpush2.msra.mxu0 %v150
    %7424 = vmatprep.subr.mxu0 0.0
    %7425 = vmatpush2.msra.mxu0 %v149
    %7426 = vmatprep.subr.mxu0 0.0
    %7427 = vmatpush2.msra.mxu0 %v148
    %7428 = vmatprep.subr.mxu0 0.0
    %7429 = vmatpush2.msra.mxu0 %v147
    %7430 = vmatprep.subr.mxu0 0.0
    %7431 = vmatpush2.msra.mxu0 %v146
    %7432 = vmatprep.subr.mxu0 0.0
    %7433 = vmatpush2.msra.mxu0 %v145
    %7434 = vmatprep.subr.mxu0 0.0
    %7435 = vmatpush2.msra.mxu0 %v144
    %7436 = vmatprep.subr.mxu0 0.0
    %7437 = vmatpush2.msra.mxu0 %v143
    %7438 = vmatprep.subr.mxu0 0.0
    %7439 = vmatpush2.msra.mxu0 %v142
    %7440 = vmatprep.subr.mxu0 0.0
    %7441 = vmatpush2.msra.mxu0 %v141
    %7442 = vmatprep.subr.mxu0 0.0
    %7443 = vmatpush2.msra.mxu0 %v140
    %7444 = vmatprep.subr.mxu0 0.0
    %7445 = vmatpush2.msra.mxu0 %v139
    %7446 = vmatprep.subr.mxu0 0.0
    %7447 = vmatpush2.msra.mxu0 %v138
    %7448 = vmatprep.subr.mxu0 0.0
    %7449 = vmatpush2.msra.mxu0 %v137
    %7450 = vmatprep.subr.mxu0 0.0
    %7451 = vmatpush2.msra.mxu0 %v136
    %7452 = vmatprep.subr.mxu0 0.0
    %7453 = vmatpush2.msra.mxu0 %v135
    %7454 = vmatprep.mubr.f32.mxu0 %v7233
    %7455 = vmatmul.mubr.f32.gmra.mxu0 %v7232
    %v7456 = vpop.f32.mrf.mxu0
    %v7457 = vadd.f32 %v7382, %v7456
    %v7458 = vpop.f32.mrf.mxu0
    %7459 = vmatprep.mubr.f32.mxu0 %v7239
    %7460 = vmatmul.mubr.f32.gmra.mxu0 %v7238
    %v7461 = vpop.f32.mrf.mxu0
    %v7462 = vadd.f32 %v7387, %v7461
    %v7463 = vpop.f32.mrf.mxu0
    %7464 = vdwg.mxu0
    %v7465 = vmul.f32 %v7457, 0.001953125
    %v7466 = vmul.f32 %v7462, 0.001953125
    %v7467 = vmul.f32 %v6981, %v6981
    %v7468 = vmul.f32 %v6982, %v6982
    %v7469 = vsub.f32 %v7465, %v7467
    %v7470 = vsub.f32 %v7466, %v7468
    %v7471 = vadd.f32 %v7469, 1e-05
    %v7472 = vadd.f32 %v7470, 1e-05
    %v7473 = vmul.f32 %v6501, %v6513
    %v7474 = vmul.f32 %v6502, %v6514
    %v7475 = vmul.f32 %v6503, %v6515
    %v7476 = vmul.f32 %v6504, %v6516
    %v7477 = vmul.f32 %v6505, %v6517
    %v7478 = vmul.f32 %v6506, %v6518
    %v7479 = vmul.f32 %v6507, %v6519
    %v7480 = vmul.f32 %v6508, %v6520
    %v7481 = vmul.f32 %v6509, %v6521
    %v7482 = vmul.f32 %v6510, %v6522
    %v7483 = vmul.f32 %v6511, %v6523
    %v7484 = vmul.f32 %v6512, %v6524
    %7485 = vmatprep.subr.mxu0 0.0
    %7486 = vmatpush1.msra.mxu0 %v70
    %7487 = vmatprep.subr.mxu0 0.0
    %7488 = vmatpush1.msra.mxu0 %v69
    %7489 = vmatprep.subr.mxu0 0.0
    %7490 = vmatpush1.msra.mxu0 %v68
    %7491 = vmatprep.subr.mxu0 0.0
    %7492 = vmatpush1.msra.mxu0 %v67
    %7493 = vmatprep.subr.mxu0 0.0
    %7494 = vmatpush1.msra.mxu0 %v66
    %7495 = vmatprep.subr.mxu0 0.0
    %7496 = vmatpush1.msra.mxu0 %v65
    %7497 = vmatprep.subr.mxu0 0.0
    %7498 = vmatpush1.msra.mxu0 %v64
    %7499 = vmatprep.subr.mxu0 0.0
    %7500 = vmatpush1.msra.mxu0 %v63
    %7501 = vmatprep.subr.mxu0 0.0
    %7502 = vmatpush1.msra.mxu0 %v62
    %7503 = vmatprep.subr.mxu0 0.0
    %7504 = vmatpush1.msra.mxu0 %v61
    %7505 = vmatprep.subr.mxu0 0.0
    %7506 = vmatpush1.msra.mxu0 %v60
    %7507 = vmatprep.subr.mxu0 0.0
    %7508 = vmatpush1.msra.mxu0 %v59
    %7509 = vmatprep.subr.mxu0 0.0
    %7510 = vmatpush1.msra.mxu0 %v58
    %7511 = vmatprep.subr.mxu0 0.0
    %7512 = vmatpush1.msra.mxu0 %v57
    %7513 = vmatprep.subr.mxu0 0.0
    %7514 = vmatpush1.msra.mxu0 %v56
    %7515 = vmatprep.subr.mxu0 0.0
    %7516 = vmatpush1.msra.mxu0 %v55
    %7517 = vmatprep.subr.mxu0 0.0
    %7518 = vmatpush2.msra.mxu0 %v86
    %7519 = vmatprep.subr.mxu0 0.0
    %7520 = vmatpush2.msra.mxu0 %v85
    %7521 = vmatprep.subr.mxu0 0.0
    %7522 = vmatpush2.msra.mxu0 %v84
    %7523 = vmatprep.subr.mxu0 0.0
    %7524 = vmatpush2.msra.mxu0 %v83
    %7525 = vmatprep.subr.mxu0 0.0
    %7526 = vmatpush2.msra.mxu0 %v82
    %7527 = vmatprep.subr.mxu0 0.0
    %7528 = vmatpush2.msra.mxu0 %v81
    %7529 = vmatprep.subr.mxu0 0.0
    %7530 = vmatpush2.msra.mxu0 %v80
    %7531 = vmatprep.subr.mxu0 0.0
    %7532 = vmatpush2.msra.mxu0 %v79
    %7533 = vmatprep.subr.mxu0 0.0
    %7534 = vmatpush2.msra.mxu0 %v78
    %7535 = vmatprep.subr.mxu0 0.0
    %7536 = vmatpush2.msra.mxu0 %v77
    %7537 = vmatprep.subr.mxu0 0.0
    %7538 = vmatpush2.msra.mxu0 %v76
    %7539 = vmatprep.subr.mxu0 0.0
    %7540 = vmatpush2.msra.mxu0 %v75
    %7541 = vmatprep.subr.mxu0 0.0
    %7542 = vmatpush2.msra.mxu0 %v74
    %7543 = vmatprep.subr.mxu0 0.0
    %7544 = vmatpush2.msra.mxu0 %v73
    %7545 = vmatprep.subr.mxu0 0.0
    %7546 = vmatpush2.msra.mxu0 %v72
    %7547 = vmatprep.subr.mxu0 0.0
    %7548 = vmatpush2.msra.mxu0 %v71
    %7549 = vmatprep.mubr.f32.mxu0 %v7474
    %7550 = vmatmul.mubr.f32.gmra.mxu0 %v7473
    %v7551 = vpop.f32.mrf.mxu0
    %v7552 = vadd.f32 0.0, %v7551
    %v7553 = vpop.f32.mrf.mxu0
    %7554 = vmatprep.mubr.f32.mxu0 %v7480
    %7555 = vmatmul.mubr.f32.gmra.mxu0 %v7479
    %v7556 = vpop.f32.mrf.mxu0
    %v7557 = vadd.f32 0.0, %v7556
    %v7558 = vpop.f32.mrf.mxu0
    %7559 = vdwg.mxu0
    %7560 = vmatprep.subr.mxu0 0.0
    %7561 = vmatpush1.msra.mxu0 %v102
    %7562 = vmatprep.subr.mxu0 0.0
    %7563 = vmatpush1.msra.mxu0 %v101
    %7564 = vmatprep.subr.mxu0 0.0
    %7565 = vmatpush1.msra.mxu0 %v100
    %7566 = vmatprep.subr.mxu0 0.0
    %7567 = vmatpush1.msra.mxu0 %v99
    %7568 = vmatprep.subr.mxu0 0.0
    %7569 = vmatpush1.msra.mxu0 %v98
    %7570 = vmatprep.subr.mxu0 0.0
    %7571 = vmatpush1.msra.mxu0 %v97
    %7572 = vmatprep.subr.mxu0 0.0
    %7573 = vmatpush1.msra.mxu0 %v96
    %7574 = vmatprep.subr.mxu0 0.0
    %7575 = vmatpush1.msra.mxu0 %v95
    %7576 = vmatprep.subr.mxu0 0.0
    %7577 = vmatpush1.msra.mxu0 %v94
    %7578 = vmatprep.subr.mxu0 0.0
    %7579 = vmatpush1.msra.mxu0 %v93
    %7580 = vmatprep.subr.mxu0 0.0
    %7581 = vmatpush1.msra.mxu0 %v92
    %7582 = vmatprep.subr.mxu0 0.0
    %7583 = vmatpush1.msra.mxu0 %v91
    %7584 = vmatprep.subr.mxu0 0.0
    %7585 = vmatpush1.msra.mxu0 %v90
    %7586 = vmatprep.subr.mxu0 0.0
    %7587 = vmatpush1.msra.mxu0 %v89
    %7588 = vmatprep.subr.mxu0 0.0
    %7589 = vmatpush1.msra.mxu0 %v88
    %7590 = vmatprep.subr.mxu0 0.0
    %7591 = vmatpush1.msra.mxu0 %v87
    %7592 = vmatprep.subr.mxu0 0.0
    %7593 = vmatpush2.msra.mxu0 %v118
    %7594 = vmatprep.subr.mxu0 0.0
    %7595 = vmatpush2.msra.mxu0 %v117
    %7596 = vmatprep.subr.mxu0 0.0
    %7597 = vmatpush2.msra.mxu0 %v116
    %7598 = vmatprep.subr.mxu0 0.0
    %7599 = vmatpush2.msra.mxu0 %v115
    %7600 = vmatprep.subr.mxu0 0.0
    %7601 = vmatpush2.msra.mxu0 %v114
    %7602 = vmatprep.subr.mxu0 0.0
    %7603 = vmatpush2.msra.mxu0 %v113
    %7604 = vmatprep.subr.mxu0 0.0
    %7605 = vmatpush2.msra.mxu0 %v112
    %7606 = vmatprep.subr.mxu0 0.0
    %7607 = vmatpush2.msra.mxu0 %v111
    %7608 = vmatprep.subr.mxu0 0.0
    %7609 = vmatpush2.msra.mxu0 %v110
    %7610 = vmatprep.subr.mxu0 0.0
    %7611 = vmatpush2.msra.mxu0 %v109
    %7612 = vmatprep.subr.mxu0 0.0
    %7613 = vmatpush2.msra.mxu0 %v108
    %7614 = vmatprep.subr.mxu0 0.0
    %7615 = vmatpush2.msra.mxu0 %v107
    %7616 = vmatprep.subr.mxu0 0.0
    %7617 = vmatpush2.msra.mxu0 %v106
    %7618 = vmatprep.subr.mxu0 0.0
    %7619 = vmatpush2.msra.mxu0 %v105
    %7620 = vmatprep.subr.mxu0 0.0
    %7621 = vmatpush2.msra.mxu0 %v104
    %7622 = vmatprep.subr.mxu0 0.0
    %7623 = vmatpush2.msra.mxu0 %v103
    %7624 = vmatprep.mubr.f32.mxu0 %v7476
    %7625 = vmatmul.mubr.f32.gmra.mxu0 %v7475
    %v7626 = vpop.f32.mrf.mxu0
    %v7627 = vadd.f32 %v7552, %v7626
    %v7628 = vpop.f32.mrf.mxu0
    %7629 = vmatprep.mubr.f32.mxu0 %v7482
    %7630 = vmatmul.mubr.f32.gmra.mxu0 %v7481
    %v7631 = vpop.f32.mrf.mxu0
    %v7632 = vadd.f32 %v7557, %v7631
    %v7633 = vpop.f32.mrf.mxu0
    %7634 = vdwg.mxu0
    %7635 = vmatprep.subr.mxu0 0.0
    %7636 = vmatpush1.msra.mxu0 %v134
    %7637 = vmatprep.subr.mxu0 0.0
    %7638 = vmatpush1.msra.mxu0 %v133
    %7639 = vmatprep.subr.mxu0 0.0
    %7640 = vmatpush1.msra.mxu0 %v132
    %7641 = vmatprep.subr.mxu0 0.0
    %7642 = vmatpush1.msra.mxu0 %v131
    %7643 = vmatprep.subr.mxu0 0.0
    %7644 = vmatpush1.msra.mxu0 %v130
    %7645 = vmatprep.subr.mxu0 0.0
    %7646 = vmatpush1.msra.mxu0 %v129
    %7647 = vmatprep.subr.mxu0 0.0
    %7648 = vmatpush1.msra.mxu0 %v128
    %7649 = vmatprep.subr.mxu0 0.0
    %7650 = vmatpush1.msra.mxu0 %v127
    %7651 = vmatprep.subr.mxu0 0.0
    %7652 = vmatpush1.msra.mxu0 %v126
    %7653 = vmatprep.subr.mxu0 0.0
    %7654 = vmatpush1.msra.mxu0 %v125
    %7655 = vmatprep.subr.mxu0 0.0
    %7656 = vmatpush1.msra.mxu0 %v124
    %7657 = vmatprep.subr.mxu0 0.0
    %7658 = vmatpush1.msra.mxu0 %v123
    %7659 = vmatprep.subr.mxu0 0.0
    %7660 = vmatpush1.msra.mxu0 %v122
    %7661 = vmatprep.subr.mxu0 0.0
    %7662 = vmatpush1.msra.mxu0 %v121
    %7663 = vmatprep.subr.mxu0 0.0
    %7664 = vmatpush1.msra.mxu0 %v120
    %7665 = vmatprep.subr.mxu0 0.0
    %7666 = vmatpush1.msra.mxu0 %v119
    %7667 = vmatprep.subr.mxu0 0.0
    %7668 = vmatpush2.msra.mxu0 %v150
    %7669 = vmatprep.subr.mxu0 0.0
    %7670 = vmatpush2.msra.mxu0 %v149
    %7671 = vmatprep.subr.mxu0 0.0
    %7672 = vmatpush2.msra.mxu0 %v148
    %7673 = vmatprep.subr.mxu0 0.0
    %7674 = vmatpush2.msra.mxu0 %v147
    %7675 = vmatprep.subr.mxu0 0.0
    %7676 = vmatpush2.msra.mxu0 %v146
    %7677 = vmatprep.subr.mxu0 0.0
    %7678 = vmatpush2.msra.mxu0 %v145
    %7679 = vmatprep.subr.mxu0 0.0
    %7680 = vmatpush2.msra.mxu0 %v144
    %7681 = vmatprep.subr.mxu0 0.0
    %7682 = vmatpush2.msra.mxu0 %v143
    %7683 = vmatprep.subr.mxu0 0.0
    %7684 = vmatpush2.msra.mxu0 %v142
    %7685 = vmatprep.subr.mxu0 0.0
    %7686 = vmatpush2.msra.mxu0 %v141
    %7687 = vmatprep.subr.mxu0 0.0
    %7688 = vmatpush2.msra.mxu0 %v140
    %7689 = vmatprep.subr.mxu0 0.0
    %7690 = vmatpush2.msra.mxu0 %v139
    %7691 = vmatprep.subr.mxu0 0.0
    %7692 = vmatpush2.msra.mxu0 %v138
    %7693 = vmatprep.subr.mxu0 0.0
    %7694 = vmatpush2.msra.mxu0 %v137
    %7695 = vmatprep.subr.mxu0 0.0
    %7696 = vmatpush2.msra.mxu0 %v136
    %7697 = vmatprep.subr.mxu0 0.0
    %7698 = vmatpush2.msra.mxu0 %v135
    %7699 = vmatprep.mubr.f32.mxu0 %v7478
    %7700 = vmatmul.mubr.f32.gmra.mxu0 %v7477
    %v7701 = vpop.f32.mrf.mxu0
    %v7702 = vadd.f32 %v7627, %v7701
    %v7703 = vpop.f32.mrf.mxu0
    %7704 = vmatprep.mubr.f32.mxu0 %v7484
    %7705 = vmatmul.mubr.f32.gmra.mxu0 %v7483
    %v7706 = vpop.f32.mrf.mxu0
    %v7707 = vadd.f32 %v7632, %v7706
    %v7708 = vpop.f32.mrf.mxu0
    %7709 = vdwg.mxu0
    %v7710 = vmul.f32 %v7702, 0.001953125
    %v7711 = vmul.f32 %v7707, 0.001953125
    %v7712 = vmul.f32 %v6754, %v6981
    %v7713 = vmul.f32 %v6755, %v6982
    %v7714 = vsub.f32 %v7710, %v7712
    %v7715 = vsub.f32 %v7711, %v7713
    %v7716 = vmul.f32 %v7226, %v7471
    %v7717 = vmul.f32 %v7227, %v7472
    %v7718 = vmul.f32 %v7714, %v7714
    %v7719 = vmul.f32 %v7715, %v7715
    %v7720 = vsub.f32 %v7716, %v7718
    %v7721 = vsub.f32 %v7717, %v7719
    %v7722 = vmax.f32 %v7720, 1e-12
    %v7723 = vmax.f32 %v7721, 1e-12
    %v7724 = vrsqrt.pop %v7722
    %v7725 = vmul.f32 %v7722, %v7724
    %vm7726 = vcmp.eq.f32.partialorder %v7722, inf
    %v7727 = vsel %vm7726, %v7722, %v7725
    %vm7728 = vcmp.eq.f32.partialorder %v7722, 0.0
    %v7729 = vand.u32 %v7722, 2147483648
    %v7730 = vsel %vm7728, %v7729, %v7727
    %v7731 = vrsqrt.pop %v7723
    %v7732 = vmul.f32 %v7723, %v7731
    %vm7733 = vcmp.eq.f32.partialorder %v7723, inf
    %v7734 = vsel %vm7733, %v7723, %v7732
    %vm7735 = vcmp.eq.f32.partialorder %v7723, 0.0
    %v7736 = vand.u32 %v7723, 2147483648
    %v7737 = vsel %vm7735, %v7736, %v7734
    %v7738 = vadd.f32 %v7226, %v7471
    %v7739 = vadd.f32 %v7227, %v7472
    %v7740 = vmul.f32 %v7730, 2.0
    %v7741 = vmul.f32 %v7737, 2.0
    %v7742 = vadd.f32 %v7738, %v7740
    %v7743 = vadd.f32 %v7739, %v7741
    %v7744 = vmul.f32 %v7722, %v7742
    %v7745 = vmul.f32 %v7723, %v7743
    %v7746 = vrsqrt.pop %v7744
    %v7747 = vrsqrt.pop %v7745
    %v7748 = vadd.f32 %v7471, %v7730
    %v7749 = vadd.f32 %v7472, %v7737
    %v7750 = vmul.f32 %v7748, %v7746
    %v7751 = vmul.f32 %v7749, %v7747
    %v7752 = vadd.f32 %v7226, %v7730
    %v7753 = vadd.f32 %v7227, %v7737
    %v7754 = vmul.f32 %v7752, %v7746
    %v7755 = vmul.f32 %v7753, %v7747
    %v7756 = vsub.f32 0.0, %v7714
    %v7757 = vsub.f32 0.0, %v7715
    %v7758 = vmul.f32 %v7756, %v7746
    %v7759 = vmul.f32 %v7757, %v7747
    %7761 = vset.pattern.permute.xlu0 0
    %7762 = vperm.xlu0 %7761, %v6754
    %v7763 = vpop.permute.xlu0 %7762
    %7766 = vset.pattern.permute.xlu0 0
    %7767 = vperm.xlu0 %7766, %v6755
    %v7768 = vpop.permute.xlu0 %7767
    %v7770 = vsub.f32 %v6501, %v7763
    %v7771 = vsub.f32 %v6502, %v7763
    %v7772 = vsub.f32 %v6503, %v7763
    %v7773 = vsub.f32 %v6504, %v7763
    %v7774 = vsub.f32 %v6505, %v7763
    %v7775 = vsub.f32 %v6506, %v7763
    %v7776 = vsub.f32 %v6507, %v7768
    %v7777 = vsub.f32 %v6508, %v7768
    %v7778 = vsub.f32 %v6509, %v7768
    %v7779 = vsub.f32 %v6510, %v7768
    %v7780 = vsub.f32 %v6511, %v7768
    %v7781 = vsub.f32 %v6512, %v7768
    %7783 = vset.pattern.permute.xlu0 0
    %7784 = vperm.xlu0 %7783, %v6981
    %v7785 = vpop.permute.xlu0 %7784
    %7788 = vset.pattern.permute.xlu0 0
    %7789 = vperm.xlu0 %7788, %v6982
    %v7790 = vpop.permute.xlu0 %7789
    %v7792 = vsub.f32 %v6513, %v7785
    %v7793 = vsub.f32 %v6514, %v7785
    %v7794 = vsub.f32 %v6515, %v7785
    %v7795 = vsub.f32 %v6516, %v7785
    %v7796 = vsub.f32 %v6517, %v7785
    %v7797 = vsub.f32 %v6518, %v7785
    %v7798 = vsub.f32 %v6519, %v7790
    %v7799 = vsub.f32 %v6520, %v7790
    %v7800 = vsub.f32 %v6521, %v7790
    %v7801 = vsub.f32 %v6522, %v7790
    %v7802 = vsub.f32 %v6523, %v7790
    %v7803 = vsub.f32 %v6524, %v7790
    %7805 = vset.pattern.permute.xlu0 0
    %7806 = vperm.xlu0 %7805, %v7750
    %v7807 = vpop.permute.xlu0 %7806
    %7810 = vset.pattern.permute.xlu0 0
    %7811 = vperm.xlu0 %7810, %v7751
    %v7812 = vpop.permute.xlu0 %7811
    %v7814 = vmul.f32 %v7807, %v7770
    %v7815 = vmul.f32 %v7807, %v7771
    %v7816 = vmul.f32 %v7807, %v7772
    %v7817 = vmul.f32 %v7807, %v7773
    %v7818 = vmul.f32 %v7807, %v7774
    %v7819 = vmul.f32 %v7807, %v7775
    %v7820 = vmul.f32 %v7812, %v7776
    %v7821 = vmul.f32 %v7812, %v7777
    %v7822 = vmul.f32 %v7812, %v7778
    %v7823 = vmul.f32 %v7812, %v7779
    %v7824 = vmul.f32 %v7812, %v7780
    %v7825 = vmul.f32 %v7812, %v7781
    %7827 = vset.pattern.permute.xlu0 0
    %7828 = vperm.xlu0 %7827, %v7758
    %v7829 = vpop.permute.xlu0 %7828
    %7832 = vset.pattern.permute.xlu0 0
    %7833 = vperm.xlu0 %7832, %v7759
    %v7834 = vpop.permute.xlu0 %7833
    %v7836 = vmul.f32 %v7829, %v7792
    %v7837 = vmul.f32 %v7829, %v7793
    %v7838 = vmul.f32 %v7829, %v7794
    %v7839 = vmul.f32 %v7829, %v7795
    %v7840 = vmul.f32 %v7829, %v7796
    %v7841 = vmul.f32 %v7829, %v7797
    %v7842 = vmul.f32 %v7834, %v7798
    %v7843 = vmul.f32 %v7834, %v7799
    %v7844 = vmul.f32 %v7834, %v7800
    %v7845 = vmul.f32 %v7834, %v7801
    %v7846 = vmul.f32 %v7834, %v7802
    %v7847 = vmul.f32 %v7834, %v7803
    %v7848 = vadd.f32 %v7814, %v7836
    %v7849 = vadd.f32 %v7815, %v7837
    %v7850 = vadd.f32 %v7816, %v7838
    %v7851 = vadd.f32 %v7817, %v7839
    %v7852 = vadd.f32 %v7818, %v7840
    %v7853 = vadd.f32 %v7819, %v7841
    %v7854 = vadd.f32 %v7820, %v7842
    %v7855 = vadd.f32 %v7821, %v7843
    %v7856 = vadd.f32 %v7822, %v7844
    %v7857 = vadd.f32 %v7823, %v7845
    %v7858 = vadd.f32 %v7824, %v7846
    %v7859 = vadd.f32 %v7825, %v7847
    %v7860 = vmul.f32 %v7829, %v7770
    %v7861 = vmul.f32 %v7829, %v7771
    %v7862 = vmul.f32 %v7829, %v7772
    %v7863 = vmul.f32 %v7829, %v7773
    %v7864 = vmul.f32 %v7829, %v7774
    %v7865 = vmul.f32 %v7829, %v7775
    %v7866 = vmul.f32 %v7834, %v7776
    %v7867 = vmul.f32 %v7834, %v7777
    %v7868 = vmul.f32 %v7834, %v7778
    %v7869 = vmul.f32 %v7834, %v7779
    %v7870 = vmul.f32 %v7834, %v7780
    %v7871 = vmul.f32 %v7834, %v7781
    %7873 = vset.pattern.permute.xlu0 0
    %7874 = vperm.xlu0 %7873, %v7754
    %v7875 = vpop.permute.xlu0 %7874
    %7878 = vset.pattern.permute.xlu0 0
    %7879 = vperm.xlu0 %7878, %v7755
    %v7880 = vpop.permute.xlu0 %7879
    %v7882 = vmul.f32 %v7875, %v7792
    %v7883 = vmul.f32 %v7875, %v7793
    %v7884 = vmul.f32 %v7875, %v7794
    %v7885 = vmul.f32 %v7875, %v7795
    %v7886 = vmul.f32 %v7875, %v7796
    %v7887 = vmul.f32 %v7875, %v7797
    %v7888 = vmul.f32 %v7880, %v7798
    %v7889 = vmul.f32 %v7880, %v7799
    %v7890 = vmul.f32 %v7880, %v7800
    %v7891 = vmul.f32 %v7880, %v7801
    %v7892 = vmul.f32 %v7880, %v7802
    %v7893 = vmul.f32 %v7880, %v7803
    %v7894 = vadd.f32 %v7860, %v7882
    %v7895 = vadd.f32 %v7861, %v7883
    %v7896 = vadd.f32 %v7862, %v7884
    %v7897 = vadd.f32 %v7863, %v7885
    %v7898 = vadd.f32 %v7864, %v7886
    %v7899 = vadd.f32 %v7865, %v7887
    %v7900 = vadd.f32 %v7866, %v7888
    %v7901 = vadd.f32 %v7867, %v7889
    %v7902 = vadd.f32 %v7868, %v7890
    %v7903 = vadd.f32 %v7869, %v7891
    %v7904 = vadd.f32 %v7870, %v7892
    %v7905 = vadd.f32 %v7871, %v7893
    %7907 = vset.pattern.permute.xlu0 0
    %7908 = vperm.xlu0 %7907, %v6525
    %v7909 = vpop.permute.xlu0 %7908
    %7912 = vset.pattern.permute.xlu0 0
    %7913 = vperm.xlu0 %7912, %v6526
    %v7914 = vpop.permute.xlu0 %7913
    %v7916 = vmul.f32 %v7909, %v7848
    %v7917 = vmul.f32 %v7909, %v7849
    %v7918 = vmul.f32 %v7909, %v7850
    %v7919 = vmul.f32 %v7909, %v7851
    %v7920 = vmul.f32 %v7909, %v7852
    %v7921 = vmul.f32 %v7909, %v7853
    %v7922 = vmul.f32 %v7914, %v7854
    %v7923 = vmul.f32 %v7914, %v7855
    %v7924 = vmul.f32 %v7914, %v7856
    %v7925 = vmul.f32 %v7914, %v7857
    %v7926 = vmul.f32 %v7914, %v7858
    %v7927 = vmul.f32 %v7914, %v7859
    %7928 = vset.pattern.permute.xlu0 2
    %7929 = vperm.xlu0 %7928, %v6525
    %v7930 = vpop.permute.xlu0 %7929
    %7932 = vset.pattern.permute.xlu0 2
    %7933 = vperm.xlu0 %7932, %v6526
    %v7934 = vpop.permute.xlu0 %7933
    %v7936 = vmul.f32 %v7930, %v7894
    %v7937 = vmul.f32 %v7930, %v7895
    %v7938 = vmul.f32 %v7930, %v7896
    %v7939 = vmul.f32 %v7930, %v7897
    %v7940 = vmul.f32 %v7930, %v7898
    %v7941 = vmul.f32 %v7930, %v7899
    %v7942 = vmul.f32 %v7934, %v7900
    %v7943 = vmul.f32 %v7934, %v7901
    %v7944 = vmul.f32 %v7934, %v7902
    %v7945 = vmul.f32 %v7934, %v7903
    %v7946 = vmul.f32 %v7934, %v7904
    %v7947 = vmul.f32 %v7934, %v7905
    %v7948 = vadd.f32 %v7916, %v7936
    %v7949 = vadd.f32 %v7917, %v7937
    %v7950 = vadd.f32 %v7918, %v7938
    %v7951 = vadd.f32 %v7919, %v7939
    %v7952 = vadd.f32 %v7920, %v7940
    %v7953 = vadd.f32 %v7921, %v7941
    %v7954 = vadd.f32 %v7922, %v7942
    %v7955 = vadd.f32 %v7923, %v7943
    %v7956 = vadd.f32 %v7924, %v7944
    %v7957 = vadd.f32 %v7925, %v7945
    %v7958 = vadd.f32 %v7926, %v7946
    %v7959 = vadd.f32 %v7927, %v7947
    %7961 = vset.pattern.permute.xlu0 0
    %7962 = vperm.xlu0 %7961, %v6527
    %v7963 = vpop.permute.xlu0 %7962
    %7966 = vset.pattern.permute.xlu0 0
    %7967 = vperm.xlu0 %7966, %v6528
    %v7968 = vpop.permute.xlu0 %7967
    %v7970 = vadd.f32 %v7948, %v7963
    %v7971 = vadd.f32 %v7949, %v7963
    %v7972 = vadd.f32 %v7950, %v7963
    %v7973 = vadd.f32 %v7951, %v7963
    %v7974 = vadd.f32 %v7952, %v7963
    %v7975 = vadd.f32 %v7953, %v7963
    %v7976 = vadd.f32 %v7954, %v7968
    %v7977 = vadd.f32 %v7955, %v7968
    %v7978 = vadd.f32 %v7956, %v7968
    %v7979 = vadd.f32 %v7957, %v7968
    %v7980 = vadd.f32 %v7958, %v7968
    %v7981 = vadd.f32 %v7959, %v7968
    %v7982 = vmul.f32 %v7930, %v7848
    %v7983 = vmul.f32 %v7930, %v7849
    %v7984 = vmul.f32 %v7930, %v7850
    %v7985 = vmul.f32 %v7930, %v7851
    %v7986 = vmul.f32 %v7930, %v7852
    %v7987 = vmul.f32 %v7930, %v7853
    %v7988 = vmul.f32 %v7934, %v7854
    %v7989 = vmul.f32 %v7934, %v7855
    %v7990 = vmul.f32 %v7934, %v7856
    %v7991 = vmul.f32 %v7934, %v7857
    %v7992 = vmul.f32 %v7934, %v7858
    %v7993 = vmul.f32 %v7934, %v7859
    %7994 = vset.pattern.permute.xlu0 1
    %7995 = vperm.xlu0 %7994, %v6525
    %v7996 = vpop.permute.xlu0 %7995
    %7998 = vset.pattern.permute.xlu0 1
    %7999 = vperm.xlu0 %7998, %v6526
    %v8000 = vpop.permute.xlu0 %7999
    %v8002 = vmul.f32 %v7996, %v7894
    %v8003 = vmul.f32 %v7996, %v7895
    %v8004 = vmul.f32 %v7996, %v7896
    %v8005 = vmul.f32 %v7996, %v7897
    %v8006 = vmul.f32 %v7996, %v7898
    %v8007 = vmul.f32 %v7996, %v7899
    %v8008 = vmul.f32 %v8000, %v7900
    %v8009 = vmul.f32 %v8000, %v7901
    %v8010 = vmul.f32 %v8000, %v7902
    %v8011 = vmul.f32 %v8000, %v7903
    %v8012 = vmul.f32 %v8000, %v7904
    %v8013 = vmul.f32 %v8000, %v7905
    %v8014 = vadd.f32 %v7982, %v8002
    %v8015 = vadd.f32 %v7983, %v8003
    %v8016 = vadd.f32 %v7984, %v8004
    %v8017 = vadd.f32 %v7985, %v8005
    %v8018 = vadd.f32 %v7986, %v8006
    %v8019 = vadd.f32 %v7987, %v8007
    %v8020 = vadd.f32 %v7988, %v8008
    %v8021 = vadd.f32 %v7989, %v8009
    %v8022 = vadd.f32 %v7990, %v8010
    %v8023 = vadd.f32 %v7991, %v8011
    %v8024 = vadd.f32 %v7992, %v8012
    %v8025 = vadd.f32 %v7993, %v8013
    %8026 = vset.pattern.permute.xlu0 1
    %8027 = vperm.xlu0 %8026, %v6527
    %v8028 = vpop.permute.xlu0 %8027
    %8030 = vset.pattern.permute.xlu0 1
    %8031 = vperm.xlu0 %8030, %v6528
    %v8032 = vpop.permute.xlu0 %8031
    %v8034 = vadd.f32 %v8014, %v8028
    %v8035 = vadd.f32 %v8015, %v8028
    %v8036 = vadd.f32 %v8016, %v8028
    %v8037 = vadd.f32 %v8017, %v8028
    %v8038 = vadd.f32 %v8018, %v8028
    %v8039 = vadd.f32 %v8019, %v8028
    %v8040 = vadd.f32 %v8020, %v8032
    %v8041 = vadd.f32 %v8021, %v8032
    %v8042 = vadd.f32 %v8022, %v8032
    %v8043 = vadd.f32 %v8023, %v8032
    %v8044 = vadd.f32 %v8024, %v8032
    %v8045 = vadd.f32 %v8025, %v8032
    %v8046 = vmax.f32 %v7970, 0.0
    %v8047 = vmax.f32 %v7971, 0.0
    %v8048 = vmax.f32 %v7972, 0.0
    %v8049 = vmax.f32 %v7973, 0.0
    %v8050 = vmax.f32 %v7974, 0.0
    %v8051 = vmax.f32 %v7975, 0.0
    %v8052 = vmax.f32 %v7976, 0.0
    %v8053 = vmax.f32 %v7977, 0.0
    %v8054 = vmax.f32 %v7978, 0.0
    %v8055 = vmax.f32 %v7979, 0.0
    %v8056 = vmax.f32 %v7980, 0.0
    %v8057 = vmax.f32 %v7981, 0.0
    %v8058 = vmax.f32 %v8034, 0.0
    %v8059 = vmax.f32 %v8035, 0.0
    %v8060 = vmax.f32 %v8036, 0.0
    %v8061 = vmax.f32 %v8037, 0.0
    %v8062 = vmax.f32 %v8038, 0.0
    %v8063 = vmax.f32 %v8039, 0.0
    %v8064 = vmax.f32 %v8040, 0.0
    %v8065 = vmax.f32 %v8041, 0.0
    %v8066 = vmax.f32 %v8042, 0.0
    %v8067 = vmax.f32 %v8043, 0.0
    %v8068 = vmax.f32 %v8044, 0.0
    %v8069 = vmax.f32 %v8045, 0.0
    %8070 = vst [vmem:[#allocation6] sm:$0xff] %v8046
    %8071 = vst [vmem:[#allocation6 + $0x8] sm:$0xff] %v8047
    %8072 = vst [vmem:[#allocation6 + $0x10] sm:$0xff] %v8048
    %8073 = vst [vmem:[#allocation6 + $0x18] sm:$0xff] %v8049
    %8074 = vst [vmem:[#allocation6 + $0x20] sm:$0xff] %v8050
    %8075 = vst [vmem:[#allocation6 + $0x28] sm:$0xff] %v8051
    %8076 = vst [vmem:[#allocation6 + $0x30] sm:$0xff] %v8052
    %8077 = vst [vmem:[#allocation6 + $0x38] sm:$0xff] %v8053
    %8078 = vst [vmem:[#allocation6 + $0x40] sm:$0xff] %v8054
    %8079 = vst [vmem:[#allocation6 + $0x48] sm:$0xff] %v8055
    %8080 = vst [vmem:[#allocation6 + $0x50] sm:$0xff] %v8056
    %8081 = vst [vmem:[#allocation6 + $0x58] sm:$0xff] %v8057
    %8082 = vst [vmem:[#allocation6 + $0x60] sm:$0xff] %v8058
    %8083 = vst [vmem:[#allocation6 + $0x68] sm:$0xff] %v8059
    %8084 = vst [vmem:[#allocation6 + $0x70] sm:$0xff] %v8060
    %8085 = vst [vmem:[#allocation6 + $0x78] sm:$0xff] %v8061
    %8086 = vst [vmem:[#allocation6 + $0x80] sm:$0xff] %v8062
    %8087 = vst [vmem:[#allocation6 + $0x88] sm:$0xff] %v8063
    %8088 = vst [vmem:[#allocation6 + $0x90] sm:$0xff] %v8064
    %8089 = vst [vmem:[#allocation6 + $0x98] sm:$0xff] %v8065
    %8090 = vst [vmem:[#allocation6 + $0xa0] sm:$0xff] %v8066
    %8091 = vst [vmem:[#allocation6 + $0xa8] sm:$0xff] %v8067
    %8092 = vst [vmem:[#allocation6 + $0xb0] sm:$0xff] %v8068
    %8093 = vst [vmem:[#allocation6 + $0xb8] sm:$0xff] %v8069
    // Predicated region
    $region50: #{tpu_custom_call.1} parent=1 // pred_check
      _
    $region51: #{tpu_custom_call.1} parent=1 // pred_check_branch
      %8095 = sbr.rel (0) target = $region53
    $region52: #{tpu_custom_call.1} parent=1 // pred_region
      %s8097 = ssub.s32 3072, 3072
      %8098 = vsyncadd [#allocation5], %s8097
      %s8099 = sshll.u32 [#allocation6], 4
      %s8100 = int_to_ptr.vmem [resolvable:$true] %s8099
      %8105 = dma.vmem_to_hbm [thread:$0]  %s8100, 3072, %s11, [#allocation5], 768, 768, 48
    $region53: #{tpu_custom_call.1} parent=1 // pred_fallthru
      _
    // Predicated region
    $region54: #{tpu_custom_call.1} parent=1 // pred_check
      _
    $region55: #{tpu_custom_call.1} parent=1 // pred_check_branch
      %8107 = sbr.rel (0) target = $region57
    $region56: #{tpu_custom_call.1} parent=1 // pred_region
      %8108 = dma.done [#allocation5], 3072
    $region57: #{tpu_custom_call.1} parent=1 // pred_fallthru
      _
    %8109 = vsyncpa [#allocation4], 1
    %8110 = vsyncpa [#allocation5], 1

</llo_original>
